<compile_context>
chip_gen: v5e
topology: v5e:2x2
jax: 0.10.0
libtpu: 0.0.40
codegen_flags: <defaults>
</compile_context>

<pallas_src>
import functools

import jax
import jax.numpy as jnp
from jax.experimental import pallas as pl
from jax.experimental.pallas import tpu as pltpu


# ------------------------------ tiling helpers ------------------------------ #
_VMEM_BUDGET = 24 * 1024 * 1024        # per-kernel tile working set (v7x-safe)
_VMEM_LIMIT = 48 * 1024 * 1024         # scoped VMEM limit handed to Mosaic
_POW2_TILES = (4096, 2048, 1024, 512, 256, 128, 64, 32, 16, 8)


def _round_up(x, m):
    return ((x + m - 1) // m) * m


def _pick_row_tile(M, bytes_per_row, budget):
    """Largest power-of-two row tile under `budget`, keeping >= 2 row blocks
    whenever M allows it (so the 'parallel' M axis shards across 2 TCs)."""
    cap = max(8, budget // max(bytes_per_row, 1))
    limit = M // 2 if M >= 16 else max(M, 8)
    for t in _POW2_TILES:
        if t <= cap and t <= limit and M % t == 0:
            return t
    return 8          # tiny / awkward M (e.g. conv5, M = batch): pad rows to 8


def _gemm_tiles(M, K, Np, out_bytes):
    """Pick (tm, tk, tn) for an [M,K] x [K,Np] GEMM under the VMEM budget."""
    tn = 256 if Np % 256 == 0 else 128           # fill 256-wide MXU when we can
    tn = min(tn, Np)
    if K <= 2048:
        tk = K                                   # collapse the k axis entirely
    else:
        tk = next((t for t in (2048, 1024, 512, 256, 128, 64, 32, 16, 8)
                   if K % t == 0), K)
    b_bytes = 2 * tk * tn * 2                            # B double-buffered bf16
    per_row = 2 * tk * 2 + 2 * tn * out_bytes + tn * 4   # A dbuf + out dbuf + acc
    tm = _pick_row_tile(M, per_row, _VMEM_BUDGET - b_bytes)
    return tm, tk, tn


# ----------------------------- Pallas kernels ------------------------------ #
def _gemm_act_kernel(a_ref, b_ref, o_ref, acc_ref, *, act):
    """bf16 GEMM with f32 accumulation; activation fused into the last-k store."""
    @pl.when(pl.program_id(2) == 0)
    def _():
        acc_ref[...] = jnp.zeros_like(acc_ref)

    acc_ref[...] += jnp.dot(a_ref[...], b_ref[...],
                            preferred_element_type=jnp.float32)

    @pl.when(pl.program_id(2) == pl.num_programs(2) - 1)
    def _():
        y = acc_ref[...]
        if act == "leaky":
            y = jnp.where(y >= 0.0, y, jnp.float32(0.2) * y)
        elif act == "sigmoid":
            y = jax.nn.sigmoid(y)
        o_ref[...] = y.astype(o_ref.dtype)


def _gemm_stats_kernel(a_ref, b_ref, o_ref, sum_ref, sq_ref, acc_ref):
    """bf16 GEMM; last k step stores bf16 conv output + f32 column sum / sum-sq."""
    @pl.when(pl.program_id(2) == 0)
    def _():
        acc_ref[...] = jnp.zeros_like(acc_ref)

    acc_ref[...] += jnp.dot(a_ref[...], b_ref[...],
                            preferred_element_type=jnp.float32)

    @pl.when(pl.program_id(2) == pl.num_programs(2) - 1)
    def _():
        acc = acc_ref[...]
        o_ref[...] = acc.astype(o_ref.dtype)              # bf16 conv intermediate
        tn = acc.shape[1]
        col = jnp.sum(acc, axis=0, keepdims=True)         # (1, tn) f32
        col2 = jnp.sum(acc * acc, axis=0, keepdims=True)  # (1, tn) f32
        row = jax.lax.broadcasted_iota(jnp.int32, (8, tn), 0)
        sum_ref[...] = jnp.where(row == 0, col, 0.0)
        sq_ref[...] = jnp.where(row == 0, col2, 0.0)


def _bn_leaky_kernel(x_ref, scale_ref, shift_ref, o_ref):
    """Per-channel affine (BN apply) + LeakyReLU(0.2); f32 math, lane-dense out."""
    y = x_ref[...].astype(jnp.float32) * scale_ref[...] + shift_ref[...]
    o_ref[...] = jnp.where(y >= 0.0, y, jnp.float32(0.2) * y).astype(o_ref.dtype)


# ------------------------------ kernel wrappers ----------------------------- #
def gemm_fused_act(a, rhs, *, act, out_dtype):
    """a: [M, K] bf16, rhs: [K, Np] bf16 (Np % 128 == 0) -> act(a @ rhs)[:M]."""
    M, K = a.shape
    Kw, Np = rhs.shape
    assert K == Kw and Np % 128 == 0
    tm, tk, tn = _gemm_tiles(M, K, Np, jnp.dtype(out_dtype).itemsize)
    Mp = _round_up(M, tm)
    if Mp != M:
        a = jnp.pad(a, ((0, Mp - M), (0, 0)))
    grid = (Mp // tm, Np // tn, K // tk)
    out = pl.pallas_call(
        functools.partial(_gemm_act_kernel, act=act),
        out_shape=jax.ShapeDtypeStruct((Mp, Np), out_dtype),
        grid_spec=pltpu.PrefetchScalarGridSpec(
            num_scalar_prefetch=0,
            grid=grid,
            in_specs=[pl.BlockSpec((tm, tk), lambda i, j, k: (i, k)),
                      pl.BlockSpec((tk, tn), lambda i, j, k: (k, j))],
            out_specs=pl.BlockSpec((tm, tn), lambda i, j, k: (i, j)),
            scratch_shapes=[pltpu.VMEM((tm, tn), jnp.float32)]),
        compiler_params=pltpu.CompilerParams(
            dimension_semantics=("parallel", "parallel", "arbitrary"),
            vmem_limit_bytes=_VMEM_LIMIT),
    )(a, rhs)
    return out if Mp == M else out[:M]


def gemm_conv_stats(a, rhs):
    """Conv GEMM -> bf16 output + per-M-tile f32 column sums / sums of squares."""
    M, K = a.shape
    Kw, Np = rhs.shape
    assert K == Kw and Np % 128 == 0
    tm, tk, tn = _gemm_tiles(M, K, Np, 2)        # bf16 conv intermediate
    Mp = _round_up(M, tm)
    if Mp != M:
        a = jnp.pad(a, ((0, Mp - M), (0, 0)))
    grid = (Mp // tm, Np // tn, K // tk)
    gm = Mp // tm
    out, psum, psq = pl.pallas_call(
        _gemm_stats_kernel,
        out_shape=(jax.ShapeDtypeStruct((Mp, Np), jnp.bfloat16),
                   jax.ShapeDtypeStruct((gm * 8, Np), jnp.float32),
                   jax.ShapeDtypeStruct((gm * 8, Np), jnp.float32)),
        grid_spec=pltpu.PrefetchScalarGridSpec(
            num_scalar_prefetch=0,
            grid=grid,
            in_specs=[pl.BlockSpec((tm, tk), lambda i, j, k: (i, k)),
                      pl.BlockSpec((tk, tn), lambda i, j, k: (k, j))],
            out_specs=(pl.BlockSpec((tm, tn), lambda i, j, k: (i, j)),
                       pl.BlockSpec((8, tn), lambda i, j, k: (i, j)),
                       pl.BlockSpec((8, tn), lambda i, j, k: (i, j))),
            scratch_shapes=[pltpu.VMEM((tm, tn), jnp.float32)]),
        compiler_params=pltpu.CompilerParams(
            dimension_semantics=("parallel", "parallel", "arbitrary"),
            vmem_limit_bytes=_VMEM_LIMIT),
    )(a, rhs)
    return (out if Mp == M else out[:M]), psum, psq


def bn_leaky(x, scale, shift, out_dtype=jnp.bfloat16):
    """x: [M, Np] bf16; scale/shift: [Np] f32. Tiled lane-dense BN-apply + LReLU."""
    M, Np = x.shape
    per_row = 2 * Np * x.dtype.itemsize + 2 * Np * jnp.dtype(out_dtype).itemsize
    bm = _pick_row_tile(M, per_row, _VMEM_BUDGET)
    Mp = _round_up(M, bm)
    if Mp != M:
        x = jnp.pad(x, ((0, Mp - M), (0, 0)))
    out = pl.pallas_call(
        _bn_leaky_kernel,
        out_shape=jax.ShapeDtypeStruct((Mp, Np), out_dtype),
        grid_spec=pltpu.PrefetchScalarGridSpec(
            num_scalar_prefetch=0,
            grid=(Mp // bm,),
            in_specs=[pl.BlockSpec((bm, Np), lambda i: (i, 0)),
                      pl.BlockSpec((1, Np), lambda i: (0, 0)),
                      pl.BlockSpec((1, Np), lambda i: (0, 0))],
            out_specs=pl.BlockSpec((bm, Np), lambda i: (i, 0))),
        compiler_params=pltpu.CompilerParams(
            dimension_semantics=("parallel",),
            vmem_limit_bytes=_VMEM_LIMIT),
    )(x, scale.reshape(1, Np).astype(jnp.float32),
      shift.reshape(1, Np).astype(jnp.float32))
    return out if Mp == M else out[:M]


# ------------------------------ conv / BN glue ------------------------------ #
def _im2col(x_nhwc, c_real, k, stride, pad):
    """x: [N, H, W, C_pad] -> patches [N*Ho*Wo, k*k*c_real]; channel de-pad is
    folded into the gather (no separate full-activation slice copy)."""
    N, H, W, _ = x_nhwc.shape
    x = x_nhwc[..., :c_real]
    if pad:
        x = jnp.pad(x, ((0, 0), (pad, pad), (pad, pad), (0, 0)))
    Ho = (H + 2 * pad - k) // stride + 1
    Wo = (W + 2 * pad - k) // stride + 1
    cols = []
    for ki in range(k):
        for kj in range(k):
            cols.append(x[:,
                          ki:ki + (Ho - 1) * stride + 1:stride,
                          kj:kj + (Wo - 1) * stride + 1:stride,
                          :])                        # [N, Ho, Wo, c_real]
    patches = jnp.stack(cols, axis=3)                # [N, Ho, Wo, k*k, c_real]
    return patches.reshape(N * Ho * Wo, k * k * c_real), N, Ho, Wo


def _bn_scale_shift(psum, psq, m_real, gamma_pad, beta_pad, eps=1e-5):
    """Finish training-mode BN (biased batch variance) from partial sums."""
    s = jnp.sum(psum, axis=0)
    sq = jnp.sum(psq, axis=0)
    mean = s / jnp.float32(m_real)
    var = jnp.maximum(sq / jnp.float32(m_real) - mean * mean, 0.0)
    scale = gamma_pad * jax.lax.rsqrt(var + eps)
    shift = beta_pad - mean * scale
    return scale, shift


# --------------------------- Discriminator forward -------------------------- #
def make_forward(nic, ndf):
    couts = (ndf, ndf * 2, ndf * 4, ndf * 8, 1)

    def forward(x_nchw, params):
        x = jnp.transpose(x_nchw, (0, 2, 3, 1)).astype(jnp.bfloat16)  # NHWC bf16
        c_real = nic

        # layer 1: conv + LeakyReLU fused into the matmul epilogue (no BN).
        patches, N, Ho, Wo = _im2col(x, c_real, 4, 2, 1)
        y = gemm_fused_act(patches, params["w1"], act="leaky",
                           out_dtype=jnp.bfloat16)
        x = y.reshape(N, Ho, Wo, y.shape[-1])        # keep padded channels
        c_real = couts[0]

        # layers 2-4: conv (with fused batch-stats) -> BN apply + LeakyReLU.
        for li, (wk, gk, bk) in enumerate((("w2", "g2", "b2"),
                                           ("w3", "g3", "b3"),
                                           ("w4", "g4", "b4"))):
            patches, N, Ho, Wo = _im2col(x, c_real, 4, 2, 1)
            conv, psum, psq = gemm_conv_stats(patches, params[wk])
            scale, shift = _bn_scale_shift(psum, psq, patches.shape[0],
                                           params[gk], params[bk])
            y = bn_leaky(conv, scale, shift)
            x = y.reshape(N, Ho, Wo, y.shape[-1])    # keep padded channels
            c_real = couts[li + 1]

        # conv5: k=4, stride=1, pad=0, then sigmoid (fused), then view(-1).
        patches, N, Ho, Wo = _im2col(x, c_real, 4, 1, 0)
        y = gemm_fused_act(patches, params["w5"], act="sigmoid",
                           out_dtype=jnp.float32)
        return y[:, 0].reshape(-1)

    return forward


# ------------------------------ param init ---------------------------------- #
def init_params(key, nic, ndf):
    """Weights stored GEMM-ready: [kh*kw*Cin, Cout padded to 128] in bf16."""
    ks = jax.random.split(key, 5)

    def conv_rhs(k, cout, cin):
        w = (0.02 * jax.random.normal(k, (cout, cin, 4, 4))).astype(jnp.float32)
        rhs = jnp.transpose(w, (2, 3, 1, 0)).reshape(16 * cin, cout)
        rhs = jnp.pad(rhs, ((0, 0), (0, _round_up(cout, 128) - cout)))
        return rhs.astype(jnp.bfloat16)

    def bn_p(c):
        padn = _round_up(c, 128) - c
        return (jnp.pad(jnp.ones((c,), jnp.float32), (0, padn)),
                jnp.pad(jnp.zeros((c,), jnp.float32), (0, padn)))

    g2, b2 = bn_p(ndf * 2)
    g3, b3 = bn_p(ndf * 4)
    g4, b4 = bn_p(ndf * 8)
    return {
        "w1": conv_rhs(ks[0], ndf, nic),
        "w2": conv_rhs(ks[1], ndf * 2, ndf),
        "w3": conv_rhs(ks[2], ndf * 4, ndf * 2),
        "w4": conv_rhs(ks[3], ndf * 8, ndf * 4),
        "w5": conv_rhs(ks[4], 1, ndf * 8),
        "g2": g2, "b2": b2,
        "g3": g3, "b3": b3,
        "g4": g4, "b4": b4,
    }


if __name__ == "__main__":
    # DCGAN discriminator needs 64x64 spatial input for conv5 (4x4, no pad).
    batch, nic, ndf, spatial = 2, 3, 8, 64
    key = jax.random.PRNGKey(0)
    k_x, k_p = jax.random.split(key)
    x = jax.random.normal(k_x, (batch, nic, spatial, spatial), jnp.float32)
    params = init_params(k_p, nic, ndf)

    fwd = jax.jit(make_forward(nic, ndf))
    out = jax.block_until_ready(fwd(x, params))
    assert out.shape == (batch,)
    assert bool(jnp.all((out >= 0.0) & (out <= 1.0)))
    print("KERNEL_OK")
</pallas_src>

<mosaic_0001>
module attributes {stable_mosaic.version = 11 : i64} {
  func.func @_gemm_act_kernel(%arg0: i32, %arg1: i32, %arg2: i32, %arg3: memref<1024x48xbf16, #tpu.memory_space<vmem>>, %arg4: memref<48x128xbf16, #tpu.memory_space<vmem>>, %arg5: memref<1024x128xbf16, #tpu.memory_space<vmem>>, %arg6: memref<1024x128xf32, #tpu.memory_space<vmem>>) attributes {dimension_semantics = [#tpu.dimension_semantics<parallel>, #tpu.dimension_semantics<parallel>, #tpu.dimension_semantics<arbitrary>], iteration_bounds = array<i64: 2, 1, 1>, scalar_prefetch = 0 : i64, scratch_operands = 1 : i64, tpu.core_type = #tpu.core_type<tc>, window_params = [{transform_indices = @transform_0, window_bounds = array<i64: 1024, 48>}, {transform_indices = @transform_1, window_bounds = array<i64: 48, 128>}, {transform_indices = @transform_2, window_bounds = array<i64: 1024, 128>}]} {
    %c0_i32 = arith.constant 0 : i32
    %0 = arith.cmpi eq, %arg2, %c0_i32 : i32
    %1 = arith.extui %0 : i1 to i32
    %c0_i32_0 = arith.constant 0 : i32
    %2 = arith.cmpi ne, %1, %c0_i32_0 : i32
    scf.if %2 {
      %cst_10 = arith.constant 0.000000e+00 : f32
      %12 = vector.broadcast %cst_10 : f32 to vector<1024x128xf32>
      %c0_11 = arith.constant 0 : index
      %c0_12 = arith.constant 0 : index
      %13 = vector.load %arg6[%c0_11, %c0_12] : memref<1024x128xf32, #tpu.memory_space<vmem>>, vector<1024x128xf32>
      tpu.vector_store %arg6[%c0_11, %c0_12], %12 {strides = array<i32>} : memref<1024x128xf32, #tpu.memory_space<vmem>>, vector<1024x128xf32>,
    } else {
    }
    %c0 = arith.constant 0 : index
    %c0_1 = arith.constant 0 : index
    %3 = vector.load %arg6[%c0, %c0_1] : memref<1024x128xf32, #tpu.memory_space<vmem>>, vector<1024x128xf32>
    %c0_2 = arith.constant 0 : index
    %c0_3 = arith.constant 0 : index
    %4 = vector.load %arg3[%c0_2, %c0_3] : memref<1024x48xbf16, #tpu.memory_space<vmem>>, vector<1024x48xbf16>
    %c0_4 = arith.constant 0 : index
    %c0_5 = arith.constant 0 : index
    %5 = vector.load %arg4[%c0_4, %c0_5] : memref<48x128xbf16, #tpu.memory_space<vmem>>, vector<48x128xbf16>
    %cst = arith.constant dense<0.000000e+00> : vector<1024x128xf32>
    %6 = tpu.matmul %4, %5, %cst {dimension_numbers = #tpu.dot_dimension_numbers<[1], [0], [0], [1], [0, 0, 1, 1], [], []>} : vector<1024x48xbf16>, vector<48x128xbf16>, vector<1024x128xf32> -> vector<1024x128xf32>
    %7 = arith.addf %3, %6 : vector<1024x128xf32>
    %c0_6 = arith.constant 0 : index
    %c0_7 = arith.constant 0 : index
    %8 = vector.load %arg6[%c0_6, %c0_7] : memref<1024x128xf32, #tpu.memory_space<vmem>>, vector<1024x128xf32>
    tpu.vector_store %arg6[%c0_6, %c0_7], %7 {strides = array<i32>} : memref<1024x128xf32, #tpu.memory_space<vmem>>, vector<1024x128xf32>,
    %c0_i32_8 = arith.constant 0 : i32
    %9 = arith.cmpi eq, %arg2, %c0_i32_8 : i32
    %10 = arith.extui %9 : i1 to i32
    %c0_i32_9 = arith.constant 0 : i32
    %11 = arith.cmpi ne, %10, %c0_i32_9 : i32
    scf.if %11 {
      %c0_10 = arith.constant 0 : index
      %c0_11 = arith.constant 0 : index
      %12 = vector.load %arg6[%c0_10, %c0_11] : memref<1024x128xf32, #tpu.memory_space<vmem>>, vector<1024x128xf32>
      %cst_12 = arith.constant 0.000000e+00 : f32
      %13 = vector.broadcast %cst_12 : f32 to vector<1024x128xf32>
      %14 = arith.cmpf oge, %12, %13 : vector<1024x128xf32>
      %cst_13 = arith.constant 2.000000e-01 : f32
      %15 = vector.broadcast %cst_13 : f32 to vector<1024x128xf32>
      %16 = arith.mulf %15, %12 : vector<1024x128xf32>
      %17 = arith.select %14, %12, %16 : vector<1024x128xi1>, vector<1024x128xf32>
      %18 = arith.truncf %17 : vector<1024x128xf32> to vector<1024x128xbf16>
      %c0_14 = arith.constant 0 : index
      %c0_15 = arith.constant 0 : index
      %19 = vector.load %arg5[%c0_14, %c0_15] : memref<1024x128xbf16, #tpu.memory_space<vmem>>, vector<1024x128xbf16>
      tpu.vector_store %arg5[%c0_14, %c0_15], %18 {strides = array<i32>} : memref<1024x128xbf16, #tpu.memory_space<vmem>>, vector<1024x128xbf16>,
    } else {
    }
    return
  }
  func.func @transform_0(%arg0: i32, %arg1: i32, %arg2: i32) -> (i32, i32) {
    %c0_i32 = arith.constant 0 : i32
    return %arg0, %arg2 : i32, i32
  }
  func.func @transform_1(%arg0: i32, %arg1: i32, %arg2: i32) -> (i32, i32) {
    %c0_i32 = arith.constant 0 : i32
    return %arg2, %arg1 : i32, i32
  }
  func.func @transform_2(%arg0: i32, %arg1: i32, %arg2: i32) -> (i32, i32) {
    %c0_i32 = arith.constant 0 : i32
    return %arg0, %arg1 : i32, i32
  }
}

module attributes {stable_mosaic.version = 11 : i64} {
  func.func @_gemm_stats_kernel(%arg0: i32, %arg1: i32, %arg2: i32, %arg3: memref<256x128xbf16, #tpu.memory_space<vmem>>, %arg4: memref<128x128xbf16, #tpu.memory_space<vmem>>, %arg5: memref<256x128xbf16, #tpu.memory_space<vmem>>, %arg6: memref<8x128xf32, #tpu.memory_space<vmem>>, %arg7: memref<8x128xf32, #tpu.memory_space<vmem>>, %arg8: memref<256x128xf32, #tpu.memory_space<vmem>>) attributes {dimension_semantics = [#tpu.dimension_semantics<parallel>, #tpu.dimension_semantics<parallel>, #tpu.dimension_semantics<arbitrary>], iteration_bounds = array<i64: 2, 1, 1>, scalar_prefetch = 0 : i64, scratch_operands = 1 : i64, tpu.core_type = #tpu.core_type<tc>, window_params = [{transform_indices = @transform_0, window_bounds = array<i64: 256, 128>}, {transform_indices = @transform_1, window_bounds = array<i64: 128, 128>}, {transform_indices = @transform_2, window_bounds = array<i64: 256, 128>}, {transform_indices = @transform_3, window_bounds = array<i64: 8, 128>}, {transform_indices = @transform_4, window_bounds = array<i64: 8, 128>}]} {
    %c0_i32 = arith.constant 0 : i32
    %0 = arith.cmpi eq, %arg2, %c0_i32 : i32
    %1 = arith.extui %0 : i1 to i32
    %c0_i32_0 = arith.constant 0 : i32
    %2 = arith.cmpi ne, %1, %c0_i32_0 : i32
    scf.if %2 {
      %cst_10 = arith.constant 0.000000e+00 : f32
      %12 = vector.broadcast %cst_10 : f32 to vector<256x128xf32>
      %c0_11 = arith.constant 0 : index
      %c0_12 = arith.constant 0 : index
      %13 = vector.load %arg8[%c0_11, %c0_12] : memref<256x128xf32, #tpu.memory_space<vmem>>, vector<256x128xf32>
      tpu.vector_store %arg8[%c0_11, %c0_12], %12 {strides = array<i32>} : memref<256x128xf32, #tpu.memory_space<vmem>>, vector<256x128xf32>,
    } else {
    }
    %c0 = arith.constant 0 : index
    %c0_1 = arith.constant 0 : index
    %3 = vector.load %arg8[%c0, %c0_1] : memref<256x128xf32, #tpu.memory_space<vmem>>, vector<256x128xf32>
    %c0_2 = arith.constant 0 : index
    %c0_3 = arith.constant 0 : index
    %4 = vector.load %arg3[%c0_2, %c0_3] : memref<256x128xbf16, #tpu.memory_space<vmem>>, vector<256x128xbf16>
    %c0_4 = arith.constant 0 : index
    %c0_5 = arith.constant 0 : index
    %5 = vector.load %arg4[%c0_4, %c0_5] : memref<128x128xbf16, #tpu.memory_space<vmem>>, vector<128x128xbf16>
    %cst = arith.constant dense<0.000000e+00> : vector<256x128xf32>
    %6 = tpu.matmul %4, %5, %cst {dimension_numbers = #tpu.dot_dimension_numbers<[1], [0], [0], [1], [0, 0, 1, 1], [], []>} : vector<256x128xbf16>, vector<128x128xbf16>, vector<256x128xf32> -> vector<256x128xf32>
    %7 = arith.addf %3, %6 : vector<256x128xf32>
    %c0_6 = arith.constant 0 : index
    %c0_7 = arith.constant 0 : index
    %8 = vector.load %arg8[%c0_6, %c0_7] : memref<256x128xf32, #tpu.memory_space<vmem>>, vector<256x128xf32>
    tpu.vector_store %arg8[%c0_6, %c0_7], %7 {strides = array<i32>} : memref<256x128xf32, #tpu.memory_space<vmem>>, vector<256x128xf32>,
    %c0_i32_8 = arith.constant 0 : i32
    %9 = arith.cmpi eq, %arg2, %c0_i32_8 : i32
    %10 = arith.extui %9 : i1 to i32
    %c0_i32_9 = arith.constant 0 : i32
    %11 = arith.cmpi ne, %10, %c0_i32_9 : i32
    scf.if %11 {
      %c0_10 = arith.constant 0 : index
      %c0_11 = arith.constant 0 : index
      %12 = vector.load %arg8[%c0_10, %c0_11] : memref<256x128xf32, #tpu.memory_space<vmem>>, vector<256x128xf32>
      %13 = arith.truncf %12 : vector<256x128xf32> to vector<256x128xbf16>
      %c0_12 = arith.constant 0 : index
      %c0_13 = arith.constant 0 : index
      %14 = vector.load %arg5[%c0_12, %c0_13] : memref<256x128xbf16, #tpu.memory_space<vmem>>, vector<256x128xbf16>
      tpu.vector_store %arg5[%c0_12, %c0_13], %13 {strides = array<i32>} : memref<256x128xbf16, #tpu.memory_space<vmem>>, vector<256x128xbf16>,
      %cst_14 = arith.constant dense<0.000000e+00> : vector<128xf32>
      %15 = vector.multi_reduction <add>, %12, %cst_14 [0] : vector<256x128xf32> to vector<128xf32>
      %16 = vector.shape_cast %15 : vector<128xf32> to vector<1x128xf32>
      %17 = arith.mulf %12, %12 : vector<256x128xf32>
      %cst_15 = arith.constant dense<0.000000e+00> : vector<128xf32>
      %18 = vector.multi_reduction <add>, %17, %cst_15 [0] : vector<256x128xf32> to vector<128xf32>
      %19 = vector.shape_cast %18 : vector<128xf32> to vector<1x128xf32>
      %20 = tpu.iota {dimensions = array<i32: 0>} : vector<8x128xi32>
      %c0_i32_16 = arith.constant 0 : i32
      %21 = vector.broadcast %c0_i32_16 : i32 to vector<8x128xi32>
      %22 = arith.cmpi eq, %20, %21 : vector<8x128xi32>
      %cst_17 = arith.constant 0.000000e+00 : f32
      %23 = vector.shape_cast %16 : vector<1x128xf32> to vector<1x128xf32>
      %24 = vector.broadcast %23 : vector<1x128xf32> to vector<8x128xf32>
      %25 = vector.broadcast %cst_17 : f32 to vector<8x128xf32>
      %26 = arith.select %22, %24, %25 : vector<8x128xi1>, vector<8x128xf32>
      %c0_18 = arith.constant 0 : index
      %c0_19 = arith.constant 0 : index
      %27 = vector.load %arg6[%c0_18, %c0_19] : memref<8x128xf32, #tpu.memory_space<vmem>>, vector<8x128xf32>
      tpu.vector_store %arg6[%c0_18, %c0_19], %26 {strides = array<i32>} : memref<8x128xf32, #tpu.memory_space<vmem>>, vector<8x128xf32>,
      %c0_i32_20 = arith.constant 0 : i32
      %28 = vector.broadcast %c0_i32_20 : i32 to vector<8x128xi32>
      %29 = arith.cmpi eq, %20, %28 : vector<8x128xi32>
      %cst_21 = arith.constant 0.000000e+00 : f32
      %30 = vector.shape_cast %19 : vector<1x128xf32> to vector<1x128xf32>
      %31 = vector.broadcast %30 : vector<1x128xf32> to vector<8x128xf32>
      %32 = vector.broadcast %cst_21 : f32 to vector<8x128xf32>
      %33 = arith.select %29, %31, %32 : vector<8x128xi1>, vector<8x128xf32>
      %c0_22 = arith.constant 0 : index
      %c0_23 = arith.constant 0 : index
      %34 = vector.load %arg7[%c0_22, %c0_23] : memref<8x128xf32, #tpu.memory_space<vmem>>, vector<8x128xf32>
      tpu.vector_store %arg7[%c0_22, %c0_23], %33 {strides = array<i32>} : memref<8x128xf32, #tpu.memory_space<vmem>>, vector<8x128xf32>,
    } else {
    }
    return
  }
  func.func @transform_0(%arg0: i32, %arg1: i32, %arg2: i32) -> (i32, i32) {
    %c0_i32 = arith.constant 0 : i32
    return %arg0, %arg2 : i32, i32
  }
  func.func @transform_1(%arg0: i32, %arg1: i32, %arg2: i32) -> (i32, i32) {
    %c0_i32 = arith.constant 0 : i32
    return %arg2, %arg1 : i32, i32
  }
  func.func @transform_2(%arg0: i32, %arg1: i32, %arg2: i32) -> (i32, i32) {
    %c0_i32 = arith.constant 0 : i32
    return %arg0, %arg1 : i32, i32
  }
  func.func @transform_3(%arg0: i32, %arg1: i32, %arg2: i32) -> (i32, i32) {
    %c0_i32 = arith.constant 0 : i32
    return %arg0, %arg1 : i32, i32
  }
  func.func @transform_4(%arg0: i32, %arg1: i32, %arg2: i32) -> (i32, i32) {
    %c0_i32 = arith.constant 0 : i32
    return %arg0, %arg1 : i32, i32
  }
}

module attributes {stable_mosaic.version = 11 : i64} {
  func.func @_bn_leaky_kernel(%arg0: i32, %arg1: memref<256x128xbf16, #tpu.memory_space<vmem>>, %arg2: memref<1x128xf32, #tpu.memory_space<vmem>>, %arg3: memref<1x128xf32, #tpu.memory_space<vmem>>, %arg4: memref<256x128xbf16, #tpu.memory_space<vmem>>) attributes {dimension_semantics = [#tpu.dimension_semantics<parallel>], iteration_bounds = array<i64: 2>, scalar_prefetch = 0 : i64, scratch_operands = 0 : i64, tpu.core_type = #tpu.core_type<tc>, window_params = [{transform_indices = @transform_0, window_bounds = array<i64: 256, 128>}, {pipeline_mode = #tpu.pipeline_mode<synchronous>, transform_indices = @transform_1, window_bounds = array<i64: 1, 128>}, {pipeline_mode = #tpu.pipeline_mode<synchronous>, transform_indices = @transform_2, window_bounds = array<i64: 1, 128>}, {transform_indices = @transform_3, window_bounds = array<i64: 256, 128>}]} {
    %c0 = arith.constant 0 : index
    %c0_0 = arith.constant 0 : index
    %0 = vector.load %arg1[%c0, %c0_0] : memref<256x128xbf16, #tpu.memory_space<vmem>>, vector<256x128xbf16>
    %1 = arith.extf %0 : vector<256x128xbf16> to vector<256x128xf32>
    %c0_1 = arith.constant 0 : index
    %c0_2 = arith.constant 0 : index
    %2 = vector.load %arg2[%c0_1, %c0_2] : memref<1x128xf32, #tpu.memory_space<vmem>>, vector<1x128xf32>
    %3 = vector.broadcast %2 : vector<1x128xf32> to vector<256x128xf32>
    %4 = arith.mulf %1, %3 : vector<256x128xf32>
    %c0_3 = arith.constant 0 : index
    %c0_4 = arith.constant 0 : index
    %5 = vector.load %arg3[%c0_3, %c0_4] : memref<1x128xf32, #tpu.memory_space<vmem>>, vector<1x128xf32>
    %6 = vector.broadcast %5 : vector<1x128xf32> to vector<256x128xf32>
    %7 = arith.addf %4, %6 : vector<256x128xf32>
    %cst = arith.constant 0.000000e+00 : f32
    %8 = vector.broadcast %cst : f32 to vector<256x128xf32>
    %9 = arith.cmpf oge, %7, %8 : vector<256x128xf32>
    %cst_5 = arith.constant 2.000000e-01 : f32
    %10 = vector.broadcast %cst_5 : f32 to vector<256x128xf32>
    %11 = arith.mulf %10, %7 : vector<256x128xf32>
    %12 = arith.select %9, %7, %11 : vector<256x128xi1>, vector<256x128xf32>
    %13 = arith.truncf %12 : vector<256x128xf32> to vector<256x128xbf16>
    %c0_6 = arith.constant 0 : index
    %c0_7 = arith.constant 0 : index
    %14 = vector.load %arg4[%c0_6, %c0_7] : memref<256x128xbf16, #tpu.memory_space<vmem>>, vector<256x128xbf16>
    tpu.vector_store %arg4[%c0_6, %c0_7], %13 {strides = array<i32>} : memref<256x128xbf16, #tpu.memory_space<vmem>>, vector<256x128xbf16>,
    return
  }
  func.func @transform_0(%arg0: i32) -> (i32, i32) {
    %c0_i32 = arith.constant 0 : i32
    %c0_i32_0 = arith.constant 0 : i32
    return %arg0, %c0_i32 : i32, i32
  }
  func.func @transform_1(%arg0: i32) -> (i32, i32) {
    %c0_i32 = arith.constant 0 : i32
    %c0_i32_0 = arith.constant 0 : i32
    %c0_i32_1 = arith.constant 0 : i32
    return %c0_i32, %c0_i32_0 : i32, i32
  }
  func.func @transform_2(%arg0: i32) -> (i32, i32) {
    %c0_i32 = arith.constant 0 : i32
    %c0_i32_0 = arith.constant 0 : i32
    %c0_i32_1 = arith.constant 0 : i32
    return %c0_i32, %c0_i32_0 : i32, i32
  }
  func.func @transform_3(%arg0: i32) -> (i32, i32) {
    %c0_i32 = arith.constant 0 : i32
    %c0_i32_0 = arith.constant 0 : i32
    return %arg0, %c0_i32 : i32, i32
  }
}

module attributes {stable_mosaic.version = 11 : i64} {
  func.func @_gemm_stats_kernel(%arg0: i32, %arg1: i32, %arg2: i32, %arg3: memref<64x256xbf16, #tpu.memory_space<vmem>>, %arg4: memref<256x128xbf16, #tpu.memory_space<vmem>>, %arg5: memref<64x128xbf16, #tpu.memory_space<vmem>>, %arg6: memref<8x128xf32, #tpu.memory_space<vmem>>, %arg7: memref<8x128xf32, #tpu.memory_space<vmem>>, %arg8: memref<64x128xf32, #tpu.memory_space<vmem>>) attributes {dimension_semantics = [#tpu.dimension_semantics<parallel>, #tpu.dimension_semantics<parallel>, #tpu.dimension_semantics<arbitrary>], iteration_bounds = array<i64: 2, 1, 1>, scalar_prefetch = 0 : i64, scratch_operands = 1 : i64, tpu.core_type = #tpu.core_type<tc>, window_params = [{transform_indices = @transform_0, window_bounds = array<i64: 64, 256>}, {transform_indices = @transform_1, window_bounds = array<i64: 256, 128>}, {transform_indices = @transform_2, window_bounds = array<i64: 64, 128>}, {transform_indices = @transform_3, window_bounds = array<i64: 8, 128>}, {transform_indices = @transform_4, window_bounds = array<i64: 8, 128>}]} {
    %c0_i32 = arith.constant 0 : i32
    %0 = arith.cmpi eq, %arg2, %c0_i32 : i32
    %1 = arith.extui %0 : i1 to i32
    %c0_i32_0 = arith.constant 0 : i32
    %2 = arith.cmpi ne, %1, %c0_i32_0 : i32
    scf.if %2 {
      %cst_10 = arith.constant 0.000000e+00 : f32
      %12 = vector.broadcast %cst_10 : f32 to vector<64x128xf32>
      %c0_11 = arith.constant 0 : index
      %c0_12 = arith.constant 0 : index
      %13 = vector.load %arg8[%c0_11, %c0_12] : memref<64x128xf32, #tpu.memory_space<vmem>>, vector<64x128xf32>
      tpu.vector_store %arg8[%c0_11, %c0_12], %12 {strides = array<i32>} : memref<64x128xf32, #tpu.memory_space<vmem>>, vector<64x128xf32>,
    } else {
    }
    %c0 = arith.constant 0 : index
    %c0_1 = arith.constant 0 : index
    %3 = vector.load %arg8[%c0, %c0_1] : memref<64x128xf32, #tpu.memory_space<vmem>>, vector<64x128xf32>
    %c0_2 = arith.constant 0 : index
    %c0_3 = arith.constant 0 : index
    %4 = vector.load %arg3[%c0_2, %c0_3] : memref<64x256xbf16, #tpu.memory_space<vmem>>, vector<64x256xbf16>
    %c0_4 = arith.constant 0 : index
    %c0_5 = arith.constant 0 : index
    %5 = vector.load %arg4[%c0_4, %c0_5] : memref<256x128xbf16, #tpu.memory_space<vmem>>, vector<256x128xbf16>
    %cst = arith.constant dense<0.000000e+00> : vector<64x128xf32>
    %6 = tpu.matmul %4, %5, %cst {dimension_numbers = #tpu.dot_dimension_numbers<[1], [0], [0], [1], [0, 0, 1, 1], [], []>} : vector<64x256xbf16>, vector<256x128xbf16>, vector<64x128xf32> -> vector<64x128xf32>
    %7 = arith.addf %3, %6 : vector<64x128xf32>
    %c0_6 = arith.constant 0 : index
    %c0_7 = arith.constant 0 : index
    %8 = vector.load %arg8[%c0_6, %c0_7] : memref<64x128xf32, #tpu.memory_space<vmem>>, vector<64x128xf32>
    tpu.vector_store %arg8[%c0_6, %c0_7], %7 {strides = array<i32>} : memref<64x128xf32, #tpu.memory_space<vmem>>, vector<64x128xf32>,
    %c0_i32_8 = arith.constant 0 : i32
    %9 = arith.cmpi eq, %arg2, %c0_i32_8 : i32
    %10 = arith.extui %9 : i1 to i32
    %c0_i32_9 = arith.constant 0 : i32
    %11 = arith.cmpi ne, %10, %c0_i32_9 : i32
    scf.if %11 {
      %c0_10 = arith.constant 0 : index
      %c0_11 = arith.constant 0 : index
      %12 = vector.load %arg8[%c0_10, %c0_11] : memref<64x128xf32, #tpu.memory_space<vmem>>, vector<64x128xf32>
      %13 = arith.truncf %12 : vector<64x128xf32> to vector<64x128xbf16>
      %c0_12 = arith.constant 0 : index
      %c0_13 = arith.constant 0 : index
      %14 = vector.load %arg5[%c0_12, %c0_13] : memref<64x128xbf16, #tpu.memory_space<vmem>>, vector<64x128xbf16>
      tpu.vector_store %arg5[%c0_12, %c0_13], %13 {strides = array<i32>} : memref<64x128xbf16, #tpu.memory_space<vmem>>, vector<64x128xbf16>,
      %cst_14 = arith.constant dense<0.000000e+00> : vector<128xf32>
      %15 = vector.multi_reduction <add>, %12, %cst_14 [0] : vector<64x128xf32> to vector<128xf32>
      %16 = vector.shape_cast %15 : vector<128xf32> to vector<1x128xf32>
      %17 = arith.mulf %12, %12 : vector<64x128xf32>
      %cst_15 = arith.constant dense<0.000000e+00> : vector<128xf32>
      %18 = vector.multi_reduction <add>, %17, %cst_15 [0] : vector<64x128xf32> to vector<128xf32>
      %19 = vector.shape_cast %18 : vector<128xf32> to vector<1x128xf32>
      %20 = tpu.iota {dimensions = array<i32: 0>} : vector<8x128xi32>
      %c0_i32_16 = arith.constant 0 : i32
      %21 = vector.broadcast %c0_i32_16 : i32 to vector<8x128xi32>
      %22 = arith.cmpi eq, %20, %21 : vector<8x128xi32>
      %cst_17 = arith.constant 0.000000e+00 : f32
      %23 = vector.shape_cast %16 : vector<1x128xf32> to vector<1x128xf32>
      %24 = vector.broadcast %23 : vector<1x128xf32> to vector<8x128xf32>
      %25 = vector.broadcast %cst_17 : f32 to vector<8x128xf32>
      %26 = arith.select %22, %24, %25 : vector<8x128xi1>, vector<8x128xf32>
      %c0_18 = arith.constant 0 : index
      %c0_19 = arith.constant 0 : index
      %27 = vector.load %arg6[%c0_18, %c0_19] : memref<8x128xf32, #tpu.memory_space<vmem>>, vector<8x128xf32>
      tpu.vector_store %arg6[%c0_18, %c0_19], %26 {strides = array<i32>} : memref<8x128xf32, #tpu.memory_space<vmem>>, vector<8x128xf32>,
      %c0_i32_20 = arith.constant 0 : i32
      %28 = vector.broadcast %c0_i32_20 : i32 to vector<8x128xi32>
      %29 = arith.cmpi eq, %20, %28 : vector<8x128xi32>
      %cst_21 = arith.constant 0.000000e+00 : f32
      %30 = vector.shape_cast %19 : vector<1x128xf32> to vector<1x128xf32>
      %31 = vector.broadcast %30 : vector<1x128xf32> to vector<8x128xf32>
      %32 = vector.broadcast %cst_21 : f32 to vector<8x128xf32>
      %33 = arith.select %29, %31, %32 : vector<8x128xi1>, vector<8x128xf32>
      %c0_22 = arith.constant 0 : index
      %c0_23 = arith.constant 0 : index
      %34 = vector.load %arg7[%c0_22, %c0_23] : memref<8x128xf32, #tpu.memory_space<vmem>>, vector<8x128xf32>
      tpu.vector_store %arg7[%c0_22, %c0_23], %33 {strides = array<i32>} : memref<8x128xf32, #tpu.memory_space<vmem>>, vector<8x128xf32>,
    } else {
    }
    return
  }
  func.func @transform_0(%arg0: i32, %arg1: i32, %arg2: i32) -> (i32, i32) {
    %c0_i32 = arith.constant 0 : i32
    return %arg0, %arg2 : i32, i32
  }
  func.func @transform_1(%arg0: i32, %arg1: i32, %arg2: i32) -> (i32, i32) {
    %c0_i32 = arith.constant 0 : i32
    return %arg2, %arg1 : i32, i32
  }
  func.func @transform_2(%arg0: i32, %arg1: i32, %arg2: i32) -> (i32, i32) {
    %c0_i32 = arith.constant 0 : i32
    return %arg0, %arg1 : i32, i32
  }
  func.func @transform_3(%arg0: i32, %arg1: i32, %arg2: i32) -> (i32, i32) {
    %c0_i32 = arith.constant 0 : i32
    return %arg0, %arg1 : i32, i32
  }
  func.func @transform_4(%arg0: i32, %arg1: i32, %arg2: i32) -> (i32, i32) {
    %c0_i32 = arith.constant 0 : i32
    return %arg0, %arg1 : i32, i32
  }
}

module attributes {stable_mosaic.version = 11 : i64} {
  func.func @_bn_leaky_kernel(%arg0: i32, %arg1: memref<64x128xbf16, #tpu.memory_space<vmem>>, %arg2: memref<1x128xf32, #tpu.memory_space<vmem>>, %arg3: memref<1x128xf32, #tpu.memory_space<vmem>>, %arg4: memref<64x128xbf16, #tpu.memory_space<vmem>>) attributes {dimension_semantics = [#tpu.dimension_semantics<parallel>], iteration_bounds = array<i64: 2>, scalar_prefetch = 0 : i64, scratch_operands = 0 : i64, tpu.core_type = #tpu.core_type<tc>, window_params = [{transform_indices = @transform_0, window_bounds = array<i64: 64, 128>}, {pipeline_mode = #tpu.pipeline_mode<synchronous>, transform_indices = @transform_1, window_bounds = array<i64: 1, 128>}, {pipeline_mode = #tpu.pipeline_mode<synchronous>, transform_indices = @transform_2, window_bounds = array<i64: 1, 128>}, {transform_indices = @transform_3, window_bounds = array<i64: 64, 128>}]} {
    %c0 = arith.constant 0 : index
    %c0_0 = arith.constant 0 : index
    %0 = vector.load %arg1[%c0, %c0_0] : memref<64x128xbf16, #tpu.memory_space<vmem>>, vector<64x128xbf16>
    %1 = arith.extf %0 : vector<64x128xbf16> to vector<64x128xf32>
    %c0_1 = arith.constant 0 : index
    %c0_2 = arith.constant 0 : index
    %2 = vector.load %arg2[%c0_1, %c0_2] : memref<1x128xf32, #tpu.memory_space<vmem>>, vector<1x128xf32>
    %3 = vector.broadcast %2 : vector<1x128xf32> to vector<64x128xf32>
    %4 = arith.mulf %1, %3 : vector<64x128xf32>
    %c0_3 = arith.constant 0 : index
    %c0_4 = arith.constant 0 : index
    %5 = vector.load %arg3[%c0_3, %c0_4] : memref<1x128xf32, #tpu.memory_space<vmem>>, vector<1x128xf32>
    %6 = vector.broadcast %5 : vector<1x128xf32> to vector<64x128xf32>
    %7 = arith.addf %4, %6 : vector<64x128xf32>
    %cst = arith.constant 0.000000e+00 : f32
    %8 = vector.broadcast %cst : f32 to vector<64x128xf32>
    %9 = arith.cmpf oge, %7, %8 : vector<64x128xf32>
    %cst_5 = arith.constant 2.000000e-01 : f32
    %10 = vector.broadcast %cst_5 : f32 to vector<64x128xf32>
    %11 = arith.mulf %10, %7 : vector<64x128xf32>
    %12 = arith.select %9, %7, %11 : vector<64x128xi1>, vector<64x128xf32>
    %13 = arith.truncf %12 : vector<64x128xf32> to vector<64x128xbf16>
    %c0_6 = arith.constant 0 : index
    %c0_7 = arith.constant 0 : index
    %14 = vector.load %arg4[%c0_6, %c0_7] : memref<64x128xbf16, #tpu.memory_space<vmem>>, vector<64x128xbf16>
    tpu.vector_store %arg4[%c0_6, %c0_7], %13 {strides = array<i32>} : memref<64x128xbf16, #tpu.memory_space<vmem>>, vector<64x128xbf16>,
    return
  }
  func.func @transform_0(%arg0: i32) -> (i32, i32) {
    %c0_i32 = arith.constant 0 : i32
    %c0_i32_0 = arith.constant 0 : i32
    return %arg0, %c0_i32 : i32, i32
  }
  func.func @transform_1(%arg0: i32) -> (i32, i32) {
    %c0_i32 = arith.constant 0 : i32
    %c0_i32_0 = arith.constant 0 : i32
    %c0_i32_1 = arith.constant 0 : i32
    return %c0_i32, %c0_i32_0 : i32, i32
  }
  func.func @transform_2(%arg0: i32) -> (i32, i32) {
    %c0_i32 = arith.constant 0 : i32
    %c0_i32_0 = arith.constant 0 : i32
    %c0_i32_1 = arith.constant 0 : i32
    return %c0_i32, %c0_i32_0 : i32, i32
  }
  func.func @transform_3(%arg0: i32) -> (i32, i32) {
    %c0_i32 = arith.constant 0 : i32
    %c0_i32_0 = arith.constant 0 : i32
    return %arg0, %c0_i32 : i32, i32
  }
}

module attributes {stable_mosaic.version = 11 : i64} {
  func.func @_gemm_stats_kernel(%arg0: i32, %arg1: i32, %arg2: i32, %arg3: memref<16x512xbf16, #tpu.memory_space<vmem>>, %arg4: memref<512x128xbf16, #tpu.memory_space<vmem>>, %arg5: memref<16x128xbf16, #tpu.memory_space<vmem>>, %arg6: memref<8x128xf32, #tpu.memory_space<vmem>>, %arg7: memref<8x128xf32, #tpu.memory_space<vmem>>, %arg8: memref<16x128xf32, #tpu.memory_space<vmem>>) attributes {dimension_semantics = [#tpu.dimension_semantics<parallel>, #tpu.dimension_semantics<parallel>, #tpu.dimension_semantics<arbitrary>], iteration_bounds = array<i64: 2, 1, 1>, scalar_prefetch = 0 : i64, scratch_operands = 1 : i64, tpu.core_type = #tpu.core_type<tc>, window_params = [{transform_indices = @transform_0, window_bounds = array<i64: 16, 512>}, {transform_indices = @transform_1, window_bounds = array<i64: 512, 128>}, {transform_indices = @transform_2, window_bounds = array<i64: 16, 128>}, {transform_indices = @transform_3, window_bounds = array<i64: 8, 128>}, {transform_indices = @transform_4, window_bounds = array<i64: 8, 128>}]} {
    %c0_i32 = arith.constant 0 : i32
    %0 = arith.cmpi eq, %arg2, %c0_i32 : i32
    %1 = arith.extui %0 : i1 to i32
    %c0_i32_0 = arith.constant 0 : i32
    %2 = arith.cmpi ne, %1, %c0_i32_0 : i32
    scf.if %2 {
      %cst_10 = arith.constant 0.000000e+00 : f32
      %12 = vector.broadcast %cst_10 : f32 to vector<16x128xf32>
      %c0_11 = arith.constant 0 : index
      %c0_12 = arith.constant 0 : index
      %13 = vector.load %arg8[%c0_11, %c0_12] : memref<16x128xf32, #tpu.memory_space<vmem>>, vector<16x128xf32>
      tpu.vector_store %arg8[%c0_11, %c0_12], %12 {strides = array<i32>} : memref<16x128xf32, #tpu.memory_space<vmem>>, vector<16x128xf32>,
    } else {
    }
    %c0 = arith.constant 0 : index
    %c0_1 = arith.constant 0 : index
    %3 = vector.load %arg8[%c0, %c0_1] : memref<16x128xf32, #tpu.memory_space<vmem>>, vector<16x128xf32>
    %c0_2 = arith.constant 0 : index
    %c0_3 = arith.constant 0 : index
    %4 = vector.load %arg3[%c0_2, %c0_3] : memref<16x512xbf16, #tpu.memory_space<vmem>>, vector<16x512xbf16>
    %c0_4 = arith.constant 0 : index
    %c0_5 = arith.constant 0 : index
    %5 = vector.load %arg4[%c0_4, %c0_5] : memref<512x128xbf16, #tpu.memory_space<vmem>>, vector<512x128xbf16>
    %cst = arith.constant dense<0.000000e+00> : vector<16x128xf32>
    %6 = tpu.matmul %4, %5, %cst {dimension_numbers = #tpu.dot_dimension_numbers<[1], [0], [0], [1], [0, 0, 1, 1], [], []>} : vector<16x512xbf16>, vector<512x128xbf16>, vector<16x128xf32> -> vector<16x128xf32>
    %7 = arith.addf %3, %6 : vector<16x128xf32>
    %c0_6 = arith.constant 0 : index
    %c0_7 = arith.constant 0 : index
    %8 = vector.load %arg8[%c0_6, %c0_7] : memref<16x128xf32, #tpu.memory_space<vmem>>, vector<16x128xf32>
    tpu.vector_store %arg8[%c0_6, %c0_7], %7 {strides = array<i32>} : memref<16x128xf32, #tpu.memory_space<vmem>>, vector<16x128xf32>,
    %c0_i32_8 = arith.constant 0 : i32
    %9 = arith.cmpi eq, %arg2, %c0_i32_8 : i32
    %10 = arith.extui %9 : i1 to i32
    %c0_i32_9 = arith.constant 0 : i32
    %11 = arith.cmpi ne, %10, %c0_i32_9 : i32
    scf.if %11 {
      %c0_10 = arith.constant 0 : index
      %c0_11 = arith.constant 0 : index
      %12 = vector.load %arg8[%c0_10, %c0_11] : memref<16x128xf32, #tpu.memory_space<vmem>>, vector<16x128xf32>
      %13 = arith.truncf %12 : vector<16x128xf32> to vector<16x128xbf16>
      %c0_12 = arith.constant 0 : index
      %c0_13 = arith.constant 0 : index
      %14 = vector.load %arg5[%c0_12, %c0_13] : memref<16x128xbf16, #tpu.memory_space<vmem>>, vector<16x128xbf16>
      tpu.vector_store %arg5[%c0_12, %c0_13], %13 {strides = array<i32>} : memref<16x128xbf16, #tpu.memory_space<vmem>>, vector<16x128xbf16>,
      %cst_14 = arith.constant dense<0.000000e+00> : vector<128xf32>
      %15 = vector.multi_reduction <add>, %12, %cst_14 [0] : vector<16x128xf32> to vector<128xf32>
      %16 = vector.shape_cast %15 : vector<128xf32> to vector<1x128xf32>
      %17 = arith.mulf %12, %12 : vector<16x128xf32>
      %cst_15 = arith.constant dense<0.000000e+00> : vector<128xf32>
      %18 = vector.multi_reduction <add>, %17, %cst_15 [0] : vector<16x128xf32> to vector<128xf32>
      %19 = vector.shape_cast %18 : vector<128xf32> to vector<1x128xf32>
      %20 = tpu.iota {dimensions = array<i32: 0>} : vector<8x128xi32>
      %c0_i32_16 = arith.constant 0 : i32
      %21 = vector.broadcast %c0_i32_16 : i32 to vector<8x128xi32>
      %22 = arith.cmpi eq, %20, %21 : vector<8x128xi32>
      %cst_17 = arith.constant 0.000000e+00 : f32
      %23 = vector.shape_cast %16 : vector<1x128xf32> to vector<1x128xf32>
      %24 = vector.broadcast %23 : vector<1x128xf32> to vector<8x128xf32>
      %25 = vector.broadcast %cst_17 : f32 to vector<8x128xf32>
      %26 = arith.select %22, %24, %25 : vector<8x128xi1>, vector<8x128xf32>
      %c0_18 = arith.constant 0 : index
      %c0_19 = arith.constant 0 : index
      %27 = vector.load %arg6[%c0_18, %c0_19] : memref<8x128xf32, #tpu.memory_space<vmem>>, vector<8x128xf32>
      tpu.vector_store %arg6[%c0_18, %c0_19], %26 {strides = array<i32>} : memref<8x128xf32, #tpu.memory_space<vmem>>, vector<8x128xf32>,
      %c0_i32_20 = arith.constant 0 : i32
      %28 = vector.broadcast %c0_i32_20 : i32 to vector<8x128xi32>
      %29 = arith.cmpi eq, %20, %28 : vector<8x128xi32>
      %cst_21 = arith.constant 0.000000e+00 : f32
      %30 = vector.shape_cast %19 : vector<1x128xf32> to vector<1x128xf32>
      %31 = vector.broadcast %30 : vector<1x128xf32> to vector<8x128xf32>
      %32 = vector.broadcast %cst_21 : f32 to vector<8x128xf32>
      %33 = arith.select %29, %31, %32 : vector<8x128xi1>, vector<8x128xf32>
      %c0_22 = arith.constant 0 : index
      %c0_23 = arith.constant 0 : index
      %34 = vector.load %arg7[%c0_22, %c0_23] : memref<8x128xf32, #tpu.memory_space<vmem>>, vector<8x128xf32>
      tpu.vector_store %arg7[%c0_22, %c0_23], %33 {strides = array<i32>} : memref<8x128xf32, #tpu.memory_space<vmem>>, vector<8x128xf32>,
    } else {
    }
    return
  }
  func.func @transform_0(%arg0: i32, %arg1: i32, %arg2: i32) -> (i32, i32) {
    %c0_i32 = arith.constant 0 : i32
    return %arg0, %arg2 : i32, i32
  }
  func.func @transform_1(%arg0: i32, %arg1: i32, %arg2: i32) -> (i32, i32) {
    %c0_i32 = arith.constant 0 : i32
    return %arg2, %arg1 : i32, i32
  }
  func.func @transform_2(%arg0: i32, %arg1: i32, %arg2: i32) -> (i32, i32) {
    %c0_i32 = arith.constant 0 : i32
    return %arg0, %arg1 : i32, i32
  }
  func.func @transform_3(%arg0: i32, %arg1: i32, %arg2: i32) -> (i32, i32) {
    %c0_i32 = arith.constant 0 : i32
    return %arg0, %arg1 : i32, i32
  }
  func.func @transform_4(%arg0: i32, %arg1: i32, %arg2: i32) -> (i32, i32) {
    %c0_i32 = arith.constant 0 : i32
    return %arg0, %arg1 : i32, i32
  }
}

module attributes {stable_mosaic.version = 11 : i64} {
  func.func @_bn_leaky_kernel(%arg0: i32, %arg1: memref<16x128xbf16, #tpu.memory_space<vmem>>, %arg2: memref<1x128xf32, #tpu.memory_space<vmem>>, %arg3: memref<1x128xf32, #tpu.memory_space<vmem>>, %arg4: memref<16x128xbf16, #tpu.memory_space<vmem>>) attributes {dimension_semantics = [#tpu.dimension_semantics<parallel>], iteration_bounds = array<i64: 2>, scalar_prefetch = 0 : i64, scratch_operands = 0 : i64, tpu.core_type = #tpu.core_type<tc>, window_params = [{transform_indices = @transform_0, window_bounds = array<i64: 16, 128>}, {pipeline_mode = #tpu.pipeline_mode<synchronous>, transform_indices = @transform_1, window_bounds = array<i64: 1, 128>}, {pipeline_mode = #tpu.pipeline_mode<synchronous>, transform_indices = @transform_2, window_bounds = array<i64: 1, 128>}, {transform_indices = @transform_3, window_bounds = array<i64: 16, 128>}]} {
    %c0 = arith.constant 0 : index
    %c0_0 = arith.constant 0 : index
    %0 = vector.load %arg1[%c0, %c0_0] : memref<16x128xbf16, #tpu.memory_space<vmem>>, vector<16x128xbf16>
    %1 = arith.extf %0 : vector<16x128xbf16> to vector<16x128xf32>
    %c0_1 = arith.constant 0 : index
    %c0_2 = arith.constant 0 : index
    %2 = vector.load %arg2[%c0_1, %c0_2] : memref<1x128xf32, #tpu.memory_space<vmem>>, vector<1x128xf32>
    %3 = vector.broadcast %2 : vector<1x128xf32> to vector<16x128xf32>
    %4 = arith.mulf %1, %3 : vector<16x128xf32>
    %c0_3 = arith.constant 0 : index
    %c0_4 = arith.constant 0 : index
    %5 = vector.load %arg3[%c0_3, %c0_4] : memref<1x128xf32, #tpu.memory_space<vmem>>, vector<1x128xf32>
    %6 = vector.broadcast %5 : vector<1x128xf32> to vector<16x128xf32>
    %7 = arith.addf %4, %6 : vector<16x128xf32>
    %cst = arith.constant 0.000000e+00 : f32
    %8 = vector.broadcast %cst : f32 to vector<16x128xf32>
    %9 = arith.cmpf oge, %7, %8 : vector<16x128xf32>
    %cst_5 = arith.constant 2.000000e-01 : f32
    %10 = vector.broadcast %cst_5 : f32 to vector<16x128xf32>
    %11 = arith.mulf %10, %7 : vector<16x128xf32>
    %12 = arith.select %9, %7, %11 : vector<16x128xi1>, vector<16x128xf32>
    %13 = arith.truncf %12 : vector<16x128xf32> to vector<16x128xbf16>
    %c0_6 = arith.constant 0 : index
    %c0_7 = arith.constant 0 : index
    %14 = vector.load %arg4[%c0_6, %c0_7] : memref<16x128xbf16, #tpu.memory_space<vmem>>, vector<16x128xbf16>
    tpu.vector_store %arg4[%c0_6, %c0_7], %13 {strides = array<i32>} : memref<16x128xbf16, #tpu.memory_space<vmem>>, vector<16x128xbf16>,
    return
  }
  func.func @transform_0(%arg0: i32) -> (i32, i32) {
    %c0_i32 = arith.constant 0 : i32
    %c0_i32_0 = arith.constant 0 : i32
    return %arg0, %c0_i32 : i32, i32
  }
  func.func @transform_1(%arg0: i32) -> (i32, i32) {
    %c0_i32 = arith.constant 0 : i32
    %c0_i32_0 = arith.constant 0 : i32
    %c0_i32_1 = arith.constant 0 : i32
    return %c0_i32, %c0_i32_0 : i32, i32
  }
  func.func @transform_2(%arg0: i32) -> (i32, i32) {
    %c0_i32 = arith.constant 0 : i32
    %c0_i32_0 = arith.constant 0 : i32
    %c0_i32_1 = arith.constant 0 : i32
    return %c0_i32, %c0_i32_0 : i32, i32
  }
  func.func @transform_3(%arg0: i32) -> (i32, i32) {
    %c0_i32 = arith.constant 0 : i32
    %c0_i32_0 = arith.constant 0 : i32
    return %arg0, %c0_i32 : i32, i32
  }
}

module attributes {stable_mosaic.version = 11 : i64} {
  func.func @_gemm_act_kernel(%arg0: i32, %arg1: i32, %arg2: i32, %arg3: memref<8x1024xbf16, #tpu.memory_space<vmem>>, %arg4: memref<1024x128xbf16, #tpu.memory_space<vmem>>, %arg5: memref<8x128xf32, #tpu.memory_space<vmem>>, %arg6: memref<8x128xf32, #tpu.memory_space<vmem>>) attributes {dimension_semantics = [#tpu.dimension_semantics<parallel>, #tpu.dimension_semantics<parallel>, #tpu.dimension_semantics<arbitrary>], iteration_bounds = array<i64: 1, 1, 1>, scalar_prefetch = 0 : i64, scratch_operands = 1 : i64, tpu.core_type = #tpu.core_type<tc>, window_params = [{transform_indices = @transform_0, window_bounds = array<i64: 8, 1024>}, {transform_indices = @transform_1, window_bounds = array<i64: 1024, 128>}, {transform_indices = @transform_2, window_bounds = array<i64: 8, 128>}]} {
    %c0_i32 = arith.constant 0 : i32
    %0 = arith.cmpi eq, %arg2, %c0_i32 : i32
    %1 = arith.extui %0 : i1 to i32
    %c0_i32_0 = arith.constant 0 : i32
    %2 = arith.cmpi ne, %1, %c0_i32_0 : i32
    scf.if %2 {
      %cst_10 = arith.constant 0.000000e+00 : f32
      %12 = vector.broadcast %cst_10 : f32 to vector<8x128xf32>
      %c0_11 = arith.constant 0 : index
      %c0_12 = arith.constant 0 : index
      %13 = vector.load %arg6[%c0_11, %c0_12] : memref<8x128xf32, #tpu.memory_space<vmem>>, vector<8x128xf32>
      tpu.vector_store %arg6[%c0_11, %c0_12], %12 {strides = array<i32>} : memref<8x128xf32, #tpu.memory_space<vmem>>, vector<8x128xf32>,
    } else {
    }
    %c0 = arith.constant 0 : index
    %c0_1 = arith.constant 0 : index
    %3 = vector.load %arg6[%c0, %c0_1] : memref<8x128xf32, #tpu.memory_space<vmem>>, vector<8x128xf32>
    %c0_2 = arith.constant 0 : index
    %c0_3 = arith.constant 0 : index
    %4 = vector.load %arg3[%c0_2, %c0_3] : memref<8x1024xbf16, #tpu.memory_space<vmem>>, vector<8x1024xbf16>
    %c0_4 = arith.constant 0 : index
    %c0_5 = arith.constant 0 : index
    %5 = vector.load %arg4[%c0_4, %c0_5] : memref<1024x128xbf16, #tpu.memory_space<vmem>>, vector<1024x128xbf16>
    %cst = arith.constant dense<0.000000e+00> : vector<8x128xf32>
    %6 = tpu.matmul %4, %5, %cst {dimension_numbers = #tpu.dot_dimension_numbers<[1], [0], [0], [1], [0, 0, 1, 1], [], []>} : vector<8x1024xbf16>, vector<1024x128xbf16>, vector<8x128xf32> -> vector<8x128xf32>
    %7 = arith.addf %3, %6 : vector<8x128xf32>
    %c0_6 = arith.constant 0 : index
    %c0_7 = arith.constant 0 : index
    %8 = vector.load %arg6[%c0_6, %c0_7] : memref<8x128xf32, #tpu.memory_space<vmem>>, vector<8x128xf32>
    tpu.vector_store %arg6[%c0_6, %c0_7], %7 {strides = array<i32>} : memref<8x128xf32, #tpu.memory_space<vmem>>, vector<8x128xf32>,
    %c0_i32_8 = arith.constant 0 : i32
    %9 = arith.cmpi eq, %arg2, %c0_i32_8 : i32
    %10 = arith.extui %9 : i1 to i32
    %c0_i32_9 = arith.constant 0 : i32
    %11 = arith.cmpi ne, %10, %c0_i32_9 : i32
    scf.if %11 {
      %c0_10 = arith.constant 0 : index
      %c0_11 = arith.constant 0 : index
      %12 = vector.load %arg6[%c0_10, %c0_11] : memref<8x128xf32, #tpu.memory_space<vmem>>, vector<8x128xf32>
      %13 = arith.negf %12 : vector<8x128xf32>
      %14 = math.exp %13 : vector<8x128xf32>
      %cst_12 = arith.constant 1.000000e+00 : f32
      %15 = vector.broadcast %cst_12 : f32 to vector<8x128xf32>
      %16 = arith.addf %15, %14 : vector<8x128xf32>
      %17 = arith.divf %15, %16 : vector<8x128xf32>
      %c0_13 = arith.constant 0 : index
      %c0_14 = arith.constant 0 : index
      %18 = vector.load %arg5[%c0_13, %c0_14] : memref<8x128xf32, #tpu.memory_space<vmem>>, vector<8x128xf32>
      tpu.vector_store %arg5[%c0_13, %c0_14], %17 {strides = array<i32>} : memref<8x128xf32, #tpu.memory_space<vmem>>, vector<8x128xf32>,
    } else {
    }
    return
  }
  func.func @transform_0(%arg0: i32, %arg1: i32, %arg2: i32) -> (i32, i32) {
    %c0_i32 = arith.constant 0 : i32
    return %arg0, %arg2 : i32, i32
  }
  func.func @transform_1(%arg0: i32, %arg1: i32, %arg2: i32) -> (i32, i32) {
    %c0_i32 = arith.constant 0 : i32
    return %arg2, %arg1 : i32, i32
  }
  func.func @transform_2(%arg0: i32, %arg1: i32, %arg2: i32) -> (i32, i32) {
    %c0_i32 = arith.constant 0 : i32
    return %arg0, %arg1 : i32, i32
  }
}

</mosaic_0001>

<llo_original>
// kernel: forward.8
$region0: #{forward.8}
  #allocation0 [shape = 'u32[]', space=smem, size = 0x4, offset = 0x4, fixed_abs, tag = 'smem constant byte address 0x4 - core index']
  #allocation1 [shape = 'u32[72,128]{1,0:T(1,128)}', space=vmem, size = 0x9000, scoped, tag = 'internal scratch']
  #allocation2 [shape = 'f32[1024,128]{1,0:T(8,128)}', space=vmem, size = 0x80000, scoped, tag = 'scratch operand']
  %s0 = inlined_call_operand.vmem [shape: bf16[2048,48], index: 0, kind: input, shape index: {}]
  %s1 = inlined_call_operand.vmem [shape: bf16[48,128], index: 1, kind: input, shape index: {}]
  %s2 = inlined_call_operand.vmem [shape: bf16[2048,128], index: 2, kind: output, shape index: {}]
  %s3 = sld [smem:[#allocation0]]
  $region49: #{forward.8} parent=0
    _
  %s5 = ssub.s32 1, %s3
  %s6 = scalar_select 0, %s5, %s3
  loop: start=0, step=1, limit=4
  $region2: #{forward.8} parent=0 // loop_pre_header
    _
  $region3: #{forward.8} parent=0 // loop_header
    %s8 = sphi 0, %s12
    %p9 = scmp.ge.s32.totalorder %s8, 4
    %s15 = sphi 0, %s34
    %s16 = sphi 0, %s30
    %s17 = sphi 0, %s26
    %s18 = sphi 0, %s15
    %s19 = sphi 0, %s16
    %s20 = sphi 0, %s17
    %s21 = sphi 0, %s18
    %s22 = sphi 0, %s19
    %s23 = sphi 0, %s20
    %s39 = sphi 0, %s41
    %s42 = sphi 0, %s39
    %s43 = sphi 0, %s42
    %s59 = sphi 0, %s43
    %s67 = sphi 0, %s69
    %s70 = sphi 0, %s67
    %s71 = sphi 0, %s70
    %s87 = sphi 0, %s71
    %s95 = sphi 0, %s97
    %s98 = sphi 0, %s95
    %s99 = sphi 0, %s98
    %s115 = sphi 0, %s99
  $region4: #{forward.8} parent=0 // loop_header_branch
    %11 = sbr.rel (%p9) target = $region8
  $region5: #{forward.8} parent=0 // loop_body
    %s13 = ssub.s32 %s8, 1
    %s14 = ssub.s32 %s8, 2
    %s24 = sadd.s32 1, %s17
    %p25 = scmp.ge.s32.totalorder %s24, 1
    %s26 = scalar_select %p25, 0, %s24
    %s27 = sadd.s32 1, %s16
    %s28 = scalar_select %p25, %s27, %s16
    %p29 = scmp.ge.s32.totalorder %s28, 1
    %s30 = scalar_select %p29, 0, %s28
    %s31 = sadd.s32 1, %s15
    %s32 = scalar_select %p29, %s31, %s15
    %p33 = scmp.ge.s32.totalorder %s32, 2
    %s34 = scalar_select %p33, 0, %s32
    %s35 = ssub.s32 %s15, %s34
    %s36 = ssub.s32 %s17, %s26
    %s37 = sor.u32 %s35, %s36
    %p38 = scmp.eq.s32.totalorder %s37, 0
    %s40 = sadd.s32 %s39, 1
    %s41 = scalar_select %p38, %s39, %s40
    %p44 = pneg %p38
    %p45 = scmp.eq.s32.totalorder %s8, 1
    %p46 = por %p44, %p45
    %p47 = scmp.ne.s32.totalorder %s39, %s42
    %p48 = scmp.eq.s32.totalorder %s8, 0
    %p49 = por %p47, %p48
    %p50 = scmp.ne.s32.totalorder %s39, %s42
    %p51 = scmp.eq.s32.totalorder %s13, 1
    %p52 = por %p50, %p51
    %p53 = scmp.ne.s32.totalorder %s42, %s43
    %p54 = scmp.eq.s32.totalorder %s13, 0
    %p55 = por %p53, %p54
    %p56 = scmp.ne.s32.totalorder %s42, %s43
    %p57 = scmp.eq.s32.totalorder %s14, 1
    %p58 = por %p56, %p57
    %p60 = scmp.ne.s32.totalorder %s43, %s59
    %p61 = scmp.eq.s32.totalorder %s14, 0
    %p62 = por %p60, %p61
    %s63 = ssub.s32 %s17, %s26
    %s64 = ssub.s32 %s16, %s30
    %s65 = sor.u32 %s63, %s64
    %p66 = scmp.eq.s32.totalorder %s65, 0
    %s68 = sadd.s32 %s67, 1
    %s69 = scalar_select %p66, %s67, %s68
    %p72 = pneg %p66
    %p73 = scmp.eq.s32.totalorder %s8, 1
    %p74 = por %p72, %p73
    %p75 = scmp.ne.s32.totalorder %s67, %s70
    %p76 = scmp.eq.s32.totalorder %s8, 0
    %p77 = por %p75, %p76
    %p78 = scmp.ne.s32.totalorder %s67, %s70
    %p79 = scmp.eq.s32.totalorder %s13, 1
    %p80 = por %p78, %p79
    %p81 = scmp.ne.s32.totalorder %s70, %s71
    %p82 = scmp.eq.s32.totalorder %s13, 0
    %p83 = por %p81, %p82
    %p84 = scmp.ne.s32.totalorder %s70, %s71
    %p85 = scmp.eq.s32.totalorder %s14, 1
    %p86 = por %p84, %p85
    %p88 = scmp.ne.s32.totalorder %s71, %s87
    %p89 = scmp.eq.s32.totalorder %s14, 0
    %p90 = por %p88, %p89
    %s91 = ssub.s32 %s15, %s34
    %s92 = ssub.s32 %s16, %s30
    %s93 = sor.u32 %s91, %s92
    %p94 = scmp.eq.s32.totalorder %s93, 0
    %s96 = sadd.s32 %s95, 1
    %s97 = scalar_select %p94, %s95, %s96
    %p100 = pneg %p94
    %p101 = scmp.eq.s32.totalorder %s8, 1
    %p102 = por %p100, %p101
    %p103 = scmp.ne.s32.totalorder %s95, %s98
    %p104 = scmp.eq.s32.totalorder %s8, 0
    %p105 = por %p103, %p104
    %p106 = scmp.ne.s32.totalorder %s95, %s98
    %p107 = scmp.eq.s32.totalorder %s13, 1
    %p108 = por %p106, %p107
    %p109 = scmp.ne.s32.totalorder %s98, %s99
    %p110 = scmp.eq.s32.totalorder %s13, 0
    %p111 = por %p109, %p110
    %p112 = scmp.ne.s32.totalorder %s98, %s99
    %p113 = scmp.eq.s32.totalorder %s14, 1
    %p114 = por %p112, %p113
    %p116 = scmp.ne.s32.totalorder %s99, %s115
    %p117 = scmp.eq.s32.totalorder %s14, 0
    %p118 = por %p116, %p117
    %p119 = scmp.le.s32.totalorder 1, %s8
    %p120 = scmp.lt.s32.totalorder %s8, 3
    %p121 = pnand %p119, %p120
    %p122 = pneg %p121
    // Predicated region
    $region9: #{forward.8} parent=5 // pred_check
      _
    $region10: #{forward.8} parent=5 // pred_check_branch
      %124 = sbr.rel (%p121) target = $region12
    $region11: #{forward.8} parent=5 // pred_region
      %s125 = ssub.s32 %s8, 1
      // Predicated region
      $region13: #{forward.8} parent=11 // pred_check
        %p126 = pneg %p83
      $region14: #{forward.8} parent=11 // pred_check_branch
        %128 = sbr.rel (%p126) target = $region16
      $region15: #{forward.8} parent=11 // pred_region
        %s129 = smul.u32 6, %s20
        %p130 = scmp.lt.s32.totalorder %s129, 5
        %s131 = scalar_select %p130, %s129, 5
        %p132 = scmp.lt.s32.totalorder %s19, 0
        %s133 = scalar_select %p132, %s19, 0
        %s134 = sadd.s32 %s133, %s131
        %s135 = smul.addr %s134, 4
        %s136 = scalar_lea.vmem %s1, %s135
        %s137 = smul.u32 6, %s20
      $region16: #{forward.8} parent=11 // pred_fallthru
        _
    $region12: #{forward.8} parent=5 // pred_fallthru
      _
    %p138 = scmp.lt.s32.totalorder %s8, 2
    // Predicated region
    $region17: #{forward.8} parent=5 // pred_check
      %p139 = pneg %p138
    $region18: #{forward.8} parent=5 // pred_check_branch
      %141 = sbr.rel (%p139) target = $region20
    $region19: #{forward.8} parent=5 // pred_region
      // Predicated region
      $region21: #{forward.8} parent=19 // pred_check
        %p142 = pneg %p49
      $region22: #{forward.8} parent=19 // pred_check_branch
        %144 = sbr.rel (%p142) target = $region24
      $region23: #{forward.8} parent=19 // pred_region
        %s145 = smul.u32 128, %s15
        %p146 = scmp.lt.s32.totalorder %s145, 255
        %s147 = scalar_select %p146, %s145, 255
        %p148 = scmp.lt.s32.totalorder %s17, 0
        %s149 = scalar_select %p148, %s17, 0
        %s150 = sadd.s32 %s149, %s147
        %s151 = smul.addr %s150, 4
        %s152 = scalar_lea.vmem %s0, %s151
        %s153 = smul.u32 128, %s15
      $region24: #{forward.8} parent=19 // pred_fallthru
        _
    $region20: #{forward.8} parent=5 // pred_fallthru
      _
    %p154 = scmp.le.s32.totalorder 1, %s8
    %p155 = scmp.lt.s32.totalorder %s8, 3
    %p156 = pnand %p154, %p155
    %p157 = pneg %p156
    // Predicated region
    $region25: #{forward.8} parent=5 // pred_check
      _
    $region26: #{forward.8} parent=5 // pred_check_branch
      %159 = sbr.rel (%p156) target = $region28
    $region27: #{forward.8} parent=5 // pred_region
      %s160 = ssub.s32 %s8, 1
      %s161 = smul.u32 128, %s18
      %p162 = scmp.lt.s32.totalorder %s161, 255
      %s163 = scalar_select %p162, %s161, 255
      %p164 = scmp.lt.s32.totalorder %s20, 0
      %s165 = scalar_select %p164, %s20, 0
      %s166 = sadd.s32 %s165, %s163
      %s167 = smul.addr %s166, 4
      %s168 = scalar_lea.vmem %s0, %s167
      %p169 = pneg %p55
      %p170 = pneg %p52
      %s171 = smul.u32 6, %s20
      %p172 = scmp.lt.s32.totalorder %s171, 5
      %s173 = scalar_select %p172, %s171, 5
      %p174 = scmp.lt.s32.totalorder %s19, 0
      %s175 = scalar_select %p174, %s19, 0
      %s176 = sadd.s32 %s175, %s173
      %s177 = smul.addr %s176, 4
      %s178 = scalar_lea.vmem %s1, %s177
      %p179 = pneg %p83
      %p180 = pneg %p80
      %p181 = pneg %p111
      %p182 = pneg %p108
      %s183 = smul.u32 128, %s18
      %p184 = scmp.lt.s32.totalorder %s183, 255
      %s185 = scalar_select %p184, %s183, 255
      %p186 = scmp.lt.s32.totalorder %s19, 0
      %s187 = scalar_select %p186, %s19, 0
      %s188 = sadd.s32 %s187, %s185
      %s189 = smul.addr %s188, 4
      %s190 = scalar_lea.vmem %s2, %s189
      %s191 = smul.u32 128, %s18
      %p192 = scmp.lt.s32.totalorder %s191, 255
      %s193 = scalar_select %p192, %s191, 255
      %p194 = scmp.lt.s32.totalorder %s20, 0
      %s195 = scalar_select %p194, %s20, 0
      %s196 = sadd.s32 %s195, %s193
      %s197 = smul.addr %s196, 4
      %s198 = scalar_lea.vmem %s0, %s197
      %s199 = smul.u32 128, %s18
      %s200 = smul.u32 6, %s20
      %p201 = scmp.lt.s32.totalorder %s200, 5
      %s202 = scalar_select %p201, %s200, 5
      %p203 = scmp.lt.s32.totalorder %s19, 0
      %s204 = scalar_select %p203, %s19, 0
      %s205 = sadd.s32 %s204, %s202
      %s206 = smul.addr %s205, 4
      %s207 = scalar_lea.vmem %s1, %s206
      %s208 = smul.u32 6, %s20
      %s209 = smul.u32 128, %s18
      %p210 = scmp.lt.s32.totalorder %s209, 255
      %s211 = scalar_select %p210, %s209, 255
      %p212 = scmp.lt.s32.totalorder %s19, 0
      %s213 = scalar_select %p212, %s19, 0
      %s214 = sadd.s32 %s213, %s211
      %s215 = smul.addr %s214, 4
      %s216 = scalar_lea.vmem %s2, %s215
      %s217 = smul.u32 128, %s18
      %p219 = scmp.eq.s32.totalorder %s20, 0
      // Predicated region
      $region29: #{forward.8} parent=27 // pred_check
        %p220 = pneg %p219
      $region30: #{forward.8} parent=27 // pred_check_branch
        %222 = sbr.rel (%p220) target = $region32
      $region31: #{forward.8} parent=27 // pred_region
        %223 = vst [vmem:[#allocation2] sm:$0xff] 0.0
        %224 = vst [vmem:[#allocation2 + $0x8] sm:$0xff] 0.0
        %225 = vst [vmem:[#allocation2 + $0x10] sm:$0xff] 0.0
        %226 = vst [vmem:[#allocation2 + $0x18] sm:$0xff] 0.0
        %227 = vst [vmem:[#allocation2 + $0x20] sm:$0xff] 0.0
        %228 = vst [vmem:[#allocation2 + $0x28] sm:$0xff] 0.0
        %229 = vst [vmem:[#allocation2 + $0x30] sm:$0xff] 0.0
        %230 = vst [vmem:[#allocation2 + $0x38] sm:$0xff] 0.0
        %231 = vst [vmem:[#allocation2 + $0x40] sm:$0xff] 0.0
        %232 = vst [vmem:[#allocation2 + $0x48] sm:$0xff] 0.0
        %233 = vst [vmem:[#allocation2 + $0x50] sm:$0xff] 0.0
        %234 = vst [vmem:[#allocation2 + $0x58] sm:$0xff] 0.0
        %235 = vst [vmem:[#allocation2 + $0x60] sm:$0xff] 0.0
        %236 = vst [vmem:[#allocation2 + $0x68] sm:$0xff] 0.0
        %237 = vst [vmem:[#allocation2 + $0x70] sm:$0xff] 0.0
        %238 = vst [vmem:[#allocation2 + $0x78] sm:$0xff] 0.0
        %239 = vst [vmem:[#allocation2 + $0x80] sm:$0xff] 0.0
        %240 = vst [vmem:[#allocation2 + $0x88] sm:$0xff] 0.0
        %241 = vst [vmem:[#allocation2 + $0x90] sm:$0xff] 0.0
        %242 = vst [vmem:[#allocation2 + $0x98] sm:$0xff] 0.0
        %243 = vst [vmem:[#allocation2 + $0xa0] sm:$0xff] 0.0
        %244 = vst [vmem:[#allocation2 + $0xa8] sm:$0xff] 0.0
        %245 = vst [vmem:[#allocation2 + $0xb0] sm:$0xff] 0.0
        %246 = vst [vmem:[#allocation2 + $0xb8] sm:$0xff] 0.0
        %247 = vst [vmem:[#allocation2 + $0xc0] sm:$0xff] 0.0
        %248 = vst [vmem:[#allocation2 + $0xc8] sm:$0xff] 0.0
        %249 = vst [vmem:[#allocation2 + $0xd0] sm:$0xff] 0.0
        %250 = vst [vmem:[#allocation2 + $0xd8] sm:$0xff] 0.0
        %251 = vst [vmem:[#allocation2 + $0xe0] sm:$0xff] 0.0
        %252 = vst [vmem:[#allocation2 + $0xe8] sm:$0xff] 0.0
        %253 = vst [vmem:[#allocation2 + $0xf0] sm:$0xff] 0.0
        %254 = vst [vmem:[#allocation2 + $0xf8] sm:$0xff] 0.0
        %255 = vst [vmem:[#allocation2 + $0x100] sm:$0xff] 0.0
        %256 = vst [vmem:[#allocation2 + $0x108] sm:$0xff] 0.0
        %257 = vst [vmem:[#allocation2 + $0x110] sm:$0xff] 0.0
        %258 = vst [vmem:[#allocation2 + $0x118] sm:$0xff] 0.0
        %259 = vst [vmem:[#allocation2 + $0x120] sm:$0xff] 0.0
        %260 = vst [vmem:[#allocation2 + $0x128] sm:$0xff] 0.0
        %261 = vst [vmem:[#allocation2 + $0x130] sm:$0xff] 0.0
        %262 = vst [vmem:[#allocation2 + $0x138] sm:$0xff] 0.0
        %263 = vst [vmem:[#allocation2 + $0x140] sm:$0xff] 0.0
        %264 = vst [vmem:[#allocation2 + $0x148] sm:$0xff] 0.0
        %265 = vst [vmem:[#allocation2 + $0x150] sm:$0xff] 0.0
        %266 = vst [vmem:[#allocation2 + $0x158] sm:$0xff] 0.0
        %267 = vst [vmem:[#allocation2 + $0x160] sm:$0xff] 0.0
        %268 = vst [vmem:[#allocation2 + $0x168] sm:$0xff] 0.0
        %269 = vst [vmem:[#allocation2 + $0x170] sm:$0xff] 0.0
        %270 = vst [vmem:[#allocation2 + $0x178] sm:$0xff] 0.0
        %271 = vst [vmem:[#allocation2 + $0x180] sm:$0xff] 0.0
        %272 = vst [vmem:[#allocation2 + $0x188] sm:$0xff] 0.0
        %273 = vst [vmem:[#allocation2 + $0x190] sm:$0xff] 0.0
        %274 = vst [vmem:[#allocation2 + $0x198] sm:$0xff] 0.0
        %275 = vst [vmem:[#allocation2 + $0x1a0] sm:$0xff] 0.0
        %276 = vst [vmem:[#allocation2 + $0x1a8] sm:$0xff] 0.0
        %277 = vst [vmem:[#allocation2 + $0x1b0] sm:$0xff] 0.0
        %278 = vst [vmem:[#allocation2 + $0x1b8] sm:$0xff] 0.0
        %279 = vst [vmem:[#allocation2 + $0x1c0] sm:$0xff] 0.0
        %280 = vst [vmem:[#allocation2 + $0x1c8] sm:$0xff] 0.0
        %281 = vst [vmem:[#allocation2 + $0x1d0] sm:$0xff] 0.0
        %282 = vst [vmem:[#allocation2 + $0x1d8] sm:$0xff] 0.0
        %283 = vst [vmem:[#allocation2 + $0x1e0] sm:$0xff] 0.0
        %284 = vst [vmem:[#allocation2 + $0x1e8] sm:$0xff] 0.0
        %285 = vst [vmem:[#allocation2 + $0x1f0] sm:$0xff] 0.0
        %286 = vst [vmem:[#allocation2 + $0x1f8] sm:$0xff] 0.0
        %287 = vst [vmem:[#allocation2 + $0x200] sm:$0xff] 0.0
        %288 = vst [vmem:[#allocation2 + $0x208] sm:$0xff] 0.0
        %289 = vst [vmem:[#allocation2 + $0x210] sm:$0xff] 0.0
        %290 = vst [vmem:[#allocation2 + $0x218] sm:$0xff] 0.0
        %291 = vst [vmem:[#allocation2 + $0x220] sm:$0xff] 0.0
        %292 = vst [vmem:[#allocation2 + $0x228] sm:$0xff] 0.0
        %293 = vst [vmem:[#allocation2 + $0x230] sm:$0xff] 0.0
        %294 = vst [vmem:[#allocation2 + $0x238] sm:$0xff] 0.0
        %295 = vst [vmem:[#allocation2 + $0x240] sm:$0xff] 0.0
        %296 = vst [vmem:[#allocation2 + $0x248] sm:$0xff] 0.0
        %297 = vst [vmem:[#allocation2 + $0x250] sm:$0xff] 0.0
        %298 = vst [vmem:[#allocation2 + $0x258] sm:$0xff] 0.0
        %299 = vst [vmem:[#allocation2 + $0x260] sm:$0xff] 0.0
        %300 = vst [vmem:[#allocation2 + $0x268] sm:$0xff] 0.0
        %301 = vst [vmem:[#allocation2 + $0x270] sm:$0xff] 0.0
        %302 = vst [vmem:[#allocation2 + $0x278] sm:$0xff] 0.0
        %303 = vst [vmem:[#allocation2 + $0x280] sm:$0xff] 0.0
        %304 = vst [vmem:[#allocation2 + $0x288] sm:$0xff] 0.0
        %305 = vst [vmem:[#allocation2 + $0x290] sm:$0xff] 0.0
        %306 = vst [vmem:[#allocation2 + $0x298] sm:$0xff] 0.0
        %307 = vst [vmem:[#allocation2 + $0x2a0] sm:$0xff] 0.0
        %308 = vst [vmem:[#allocation2 + $0x2a8] sm:$0xff] 0.0
        %309 = vst [vmem:[#allocation2 + $0x2b0] sm:$0xff] 0.0
        %310 = vst [vmem:[#allocation2 + $0x2b8] sm:$0xff] 0.0
        %311 = vst [vmem:[#allocation2 + $0x2c0] sm:$0xff] 0.0
        %312 = vst [vmem:[#allocation2 + $0x2c8] sm:$0xff] 0.0
        %313 = vst [vmem:[#allocation2 + $0x2d0] sm:$0xff] 0.0
        %314 = vst [vmem:[#allocation2 + $0x2d8] sm:$0xff] 0.0
        %315 = vst [vmem:[#allocation2 + $0x2e0] sm:$0xff] 0.0
        %316 = vst [vmem:[#allocation2 + $0x2e8] sm:$0xff] 0.0
        %317 = vst [vmem:[#allocation2 + $0x2f0] sm:$0xff] 0.0
        %318 = vst [vmem:[#allocation2 + $0x2f8] sm:$0xff] 0.0
        %319 = vst [vmem:[#allocation2 + $0x300] sm:$0xff] 0.0
        %320 = vst [vmem:[#allocation2 + $0x308] sm:$0xff] 0.0
        %321 = vst [vmem:[#allocation2 + $0x310] sm:$0xff] 0.0
        %322 = vst [vmem:[#allocation2 + $0x318] sm:$0xff] 0.0
        %323 = vst [vmem:[#allocation2 + $0x320] sm:$0xff] 0.0
        %324 = vst [vmem:[#allocation2 + $0x328] sm:$0xff] 0.0
        %325 = vst [vmem:[#allocation2 + $0x330] sm:$0xff] 0.0
        %326 = vst [vmem:[#allocation2 + $0x338] sm:$0xff] 0.0
        %327 = vst [vmem:[#allocation2 + $0x340] sm:$0xff] 0.0
        %328 = vst [vmem:[#allocation2 + $0x348] sm:$0xff] 0.0
        %329 = vst [vmem:[#allocation2 + $0x350] sm:$0xff] 0.0
        %330 = vst [vmem:[#allocation2 + $0x358] sm:$0xff] 0.0
        %331 = vst [vmem:[#allocation2 + $0x360] sm:$0xff] 0.0
        %332 = vst [vmem:[#allocation2 + $0x368] sm:$0xff] 0.0
        %333 = vst [vmem:[#allocation2 + $0x370] sm:$0xff] 0.0
        %334 = vst [vmem:[#allocation2 + $0x378] sm:$0xff] 0.0
        %335 = vst [vmem:[#allocation2 + $0x380] sm:$0xff] 0.0
        %336 = vst [vmem:[#allocation2 + $0x388] sm:$0xff] 0.0
        %337 = vst [vmem:[#allocation2 + $0x390] sm:$0xff] 0.0
        %338 = vst [vmem:[#allocation2 + $0x398] sm:$0xff] 0.0
        %339 = vst [vmem:[#allocation2 + $0x3a0] sm:$0xff] 0.0
        %340 = vst [vmem:[#allocation2 + $0x3a8] sm:$0xff] 0.0
        %341 = vst [vmem:[#allocation2 + $0x3b0] sm:$0xff] 0.0
        %342 = vst [vmem:[#allocation2 + $0x3b8] sm:$0xff] 0.0
        %343 = vst [vmem:[#allocation2 + $0x3c0] sm:$0xff] 0.0
        %344 = vst [vmem:[#allocation2 + $0x3c8] sm:$0xff] 0.0
        %345 = vst [vmem:[#allocation2 + $0x3d0] sm:$0xff] 0.0
        %346 = vst [vmem:[#allocation2 + $0x3d8] sm:$0xff] 0.0
        %347 = vst [vmem:[#allocation2 + $0x3e0] sm:$0xff] 0.0
        %348 = vst [vmem:[#allocation2 + $0x3e8] sm:$0xff] 0.0
        %349 = vst [vmem:[#allocation2 + $0x3f0] sm:$0xff] 0.0
        %350 = vst [vmem:[#allocation2 + $0x3f8] sm:$0xff] 0.0
      $region32: #{forward.8} parent=27 // pred_fallthru
        _
      %v351 = vld [vmem:[#allocation2] sm:$0xff]
      %v352 = vld [vmem:[#allocation2 + $0x8] sm:$0xff]
      %v353 = vld [vmem:[#allocation2 + $0x10] sm:$0xff]
      %v354 = vld [vmem:[#allocation2 + $0x18] sm:$0xff]
      %v355 = vld [vmem:[#allocation2 + $0x20] sm:$0xff]
      %v356 = vld [vmem:[#allocation2 + $0x28] sm:$0xff]
      %v357 = vld [vmem:[#allocation2 + $0x30] sm:$0xff]
      %v358 = vld [vmem:[#allocation2 + $0x38] sm:$0xff]
      %v359 = vld [vmem:[#allocation2 + $0x40] sm:$0xff]
      %v360 = vld [vmem:[#allocation2 + $0x48] sm:$0xff]
      %v361 = vld [vmem:[#allocation2 + $0x50] sm:$0xff]
      %v362 = vld [vmem:[#allocation2 + $0x58] sm:$0xff]
      %v363 = vld [vmem:[#allocation2 + $0x60] sm:$0xff]
      %v364 = vld [vmem:[#allocation2 + $0x68] sm:$0xff]
      %v365 = vld [vmem:[#allocation2 + $0x70] sm:$0xff]
      %v366 = vld [vmem:[#allocation2 + $0x78] sm:$0xff]
      %v367 = vld [vmem:[#allocation2 + $0x80] sm:$0xff]
      %v368 = vld [vmem:[#allocation2 + $0x88] sm:$0xff]
      %v369 = vld [vmem:[#allocation2 + $0x90] sm:$0xff]
      %v370 = vld [vmem:[#allocation2 + $0x98] sm:$0xff]
      %v371 = vld [vmem:[#allocation2 + $0xa0] sm:$0xff]
      %v372 = vld [vmem:[#allocation2 + $0xa8] sm:$0xff]
      %v373 = vld [vmem:[#allocation2 + $0xb0] sm:$0xff]
      %v374 = vld [vmem:[#allocation2 + $0xb8] sm:$0xff]
      %v375 = vld [vmem:[#allocation2 + $0xc0] sm:$0xff]
      %v376 = vld [vmem:[#allocation2 + $0xc8] sm:$0xff]
      %v377 = vld [vmem:[#allocation2 + $0xd0] sm:$0xff]
      %v378 = vld [vmem:[#allocation2 + $0xd8] sm:$0xff]
      %v379 = vld [vmem:[#allocation2 + $0xe0] sm:$0xff]
      %v380 = vld [vmem:[#allocation2 + $0xe8] sm:$0xff]
      %v381 = vld [vmem:[#allocation2 + $0xf0] sm:$0xff]
      %v382 = vld [vmem:[#allocation2 + $0xf8] sm:$0xff]
      %v383 = vld [vmem:[#allocation2 + $0x100] sm:$0xff]
      %v384 = vld [vmem:[#allocation2 + $0x108] sm:$0xff]
      %v385 = vld [vmem:[#allocation2 + $0x110] sm:$0xff]
      %v386 = vld [vmem:[#allocation2 + $0x118] sm:$0xff]
      %v387 = vld [vmem:[#allocation2 + $0x120] sm:$0xff]
      %v388 = vld [vmem:[#allocation2 + $0x128] sm:$0xff]
      %v389 = vld [vmem:[#allocation2 + $0x130] sm:$0xff]
      %v390 = vld [vmem:[#allocation2 + $0x138] sm:$0xff]
      %v391 = vld [vmem:[#allocation2 + $0x140] sm:$0xff]
      %v392 = vld [vmem:[#allocation2 + $0x148] sm:$0xff]
      %v393 = vld [vmem:[#allocation2 + $0x150] sm:$0xff]
      %v394 = vld [vmem:[#allocation2 + $0x158] sm:$0xff]
      %v395 = vld [vmem:[#allocation2 + $0x160] sm:$0xff]
      %v396 = vld [vmem:[#allocation2 + $0x168] sm:$0xff]
      %v397 = vld [vmem:[#allocation2 + $0x170] sm:$0xff]
      %v398 = vld [vmem:[#allocation2 + $0x178] sm:$0xff]
      %v399 = vld [vmem:[#allocation2 + $0x180] sm:$0xff]
      %v400 = vld [vmem:[#allocation2 + $0x188] sm:$0xff]
      %v401 = vld [vmem:[#allocation2 + $0x190] sm:$0xff]
      %v402 = vld [vmem:[#allocation2 + $0x198] sm:$0xff]
      %v403 = vld [vmem:[#allocation2 + $0x1a0] sm:$0xff]
      %v404 = vld [vmem:[#allocation2 + $0x1a8] sm:$0xff]
      %v405 = vld [vmem:[#allocation2 + $0x1b0] sm:$0xff]
      %v406 = vld [vmem:[#allocation2 + $0x1b8] sm:$0xff]
      %v407 = vld [vmem:[#allocation2 + $0x1c0] sm:$0xff]
      %v408 = vld [vmem:[#allocation2 + $0x1c8] sm:$0xff]
      %v409 = vld [vmem:[#allocation2 + $0x1d0] sm:$0xff]
      %v410 = vld [vmem:[#allocation2 + $0x1d8] sm:$0xff]
      %v411 = vld [vmem:[#allocation2 + $0x1e0] sm:$0xff]
      %v412 = vld [vmem:[#allocation2 + $0x1e8] sm:$0xff]
      %v413 = vld [vmem:[#allocation2 + $0x1f0] sm:$0xff]
      %v414 = vld [vmem:[#allocation2 + $0x1f8] sm:$0xff]
      %v415 = vld [vmem:[#allocation2 + $0x200] sm:$0xff]
      %v416 = vld [vmem:[#allocation2 + $0x208] sm:$0xff]
      %v417 = vld [vmem:[#allocation2 + $0x210] sm:$0xff]
      %v418 = vld [vmem:[#allocation2 + $0x218] sm:$0xff]
      %v419 = vld [vmem:[#allocation2 + $0x220] sm:$0xff]
      %v420 = vld [vmem:[#allocation2 + $0x228] sm:$0xff]
      %v421 = vld [vmem:[#allocation2 + $0x230] sm:$0xff]
      %v422 = vld [vmem:[#allocation2 + $0x238] sm:$0xff]
      %v423 = vld [vmem:[#allocation2 + $0x240] sm:$0xff]
      %v424 = vld [vmem:[#allocation2 + $0x248] sm:$0xff]
      %v425 = vld [vmem:[#allocation2 + $0x250] sm:$0xff]
      %v426 = vld [vmem:[#allocation2 + $0x258] sm:$0xff]
      %v427 = vld [vmem:[#allocation2 + $0x260] sm:$0xff]
      %v428 = vld [vmem:[#allocation2 + $0x268] sm:$0xff]
      %v429 = vld [vmem:[#allocation2 + $0x270] sm:$0xff]
      %v430 = vld [vmem:[#allocation2 + $0x278] sm:$0xff]
      %v431 = vld [vmem:[#allocation2 + $0x280] sm:$0xff]
      %v432 = vld [vmem:[#allocation2 + $0x288] sm:$0xff]
      %v433 = vld [vmem:[#allocation2 + $0x290] sm:$0xff]
      %v434 = vld [vmem:[#allocation2 + $0x298] sm:$0xff]
      %v435 = vld [vmem:[#allocation2 + $0x2a0] sm:$0xff]
      %v436 = vld [vmem:[#allocation2 + $0x2a8] sm:$0xff]
      %v437 = vld [vmem:[#allocation2 + $0x2b0] sm:$0xff]
      %v438 = vld [vmem:[#allocation2 + $0x2b8] sm:$0xff]
      %v439 = vld [vmem:[#allocation2 + $0x2c0] sm:$0xff]
      %v440 = vld [vmem:[#allocation2 + $0x2c8] sm:$0xff]
      %v441 = vld [vmem:[#allocation2 + $0x2d0] sm:$0xff]
      %v442 = vld [vmem:[#allocation2 + $0x2d8] sm:$0xff]
      %v443 = vld [vmem:[#allocation2 + $0x2e0] sm:$0xff]
      %v444 = vld [vmem:[#allocation2 + $0x2e8] sm:$0xff]
      %v445 = vld [vmem:[#allocation2 + $0x2f0] sm:$0xff]
      %v446 = vld [vmem:[#allocation2 + $0x2f8] sm:$0xff]
      %v447 = vld [vmem:[#allocation2 + $0x300] sm:$0xff]
      %v448 = vld [vmem:[#allocation2 + $0x308] sm:$0xff]
      %v449 = vld [vmem:[#allocation2 + $0x310] sm:$0xff]
      %v450 = vld [vmem:[#allocation2 + $0x318] sm:$0xff]
      %v451 = vld [vmem:[#allocation2 + $0x320] sm:$0xff]
      %v452 = vld [vmem:[#allocation2 + $0x328] sm:$0xff]
      %v453 = vld [vmem:[#allocation2 + $0x330] sm:$0xff]
      %v454 = vld [vmem:[#allocation2 + $0x338] sm:$0xff]
      %v455 = vld [vmem:[#allocation2 + $0x340] sm:$0xff]
      %v456 = vld [vmem:[#allocation2 + $0x348] sm:$0xff]
      %v457 = vld [vmem:[#allocation2 + $0x350] sm:$0xff]
      %v458 = vld [vmem:[#allocation2 + $0x358] sm:$0xff]
      %v459 = vld [vmem:[#allocation2 + $0x360] sm:$0xff]
      %v460 = vld [vmem:[#allocation2 + $0x368] sm:$0xff]
      %v461 = vld [vmem:[#allocation2 + $0x370] sm:$0xff]
      %v462 = vld [vmem:[#allocation2 + $0x378] sm:$0xff]
      %v463 = vld [vmem:[#allocation2 + $0x380] sm:$0xff]
      %v464 = vld [vmem:[#allocation2 + $0x388] sm:$0xff]
      %v465 = vld [vmem:[#allocation2 + $0x390] sm:$0xff]
      %v466 = vld [vmem:[#allocation2 + $0x398] sm:$0xff]
      %v467 = vld [vmem:[#allocation2 + $0x3a0] sm:$0xff]
      %v468 = vld [vmem:[#allocation2 + $0x3a8] sm:$0xff]
      %v469 = vld [vmem:[#allocation2 + $0x3b0] sm:$0xff]
      %v470 = vld [vmem:[#allocation2 + $0x3b8] sm:$0xff]
      %v471 = vld [vmem:[#allocation2 + $0x3c0] sm:$0xff]
      %v472 = vld [vmem:[#allocation2 + $0x3c8] sm:$0xff]
      %v473 = vld [vmem:[#allocation2 + $0x3d0] sm:$0xff]
      %v474 = vld [vmem:[#allocation2 + $0x3d8] sm:$0xff]
      %v475 = vld [vmem:[#allocation2 + $0x3e0] sm:$0xff]
      %v476 = vld [vmem:[#allocation2 + $0x3e8] sm:$0xff]
      %v477 = vld [vmem:[#allocation2 + $0x3f0] sm:$0xff]
      %v478 = vld [vmem:[#allocation2 + $0x3f8] sm:$0xff]
      %v479 = vld [vmem:[%s198] sm:$0xf]
      %v480 = vld [vmem:[%s198 + $0x4] sm:$0xf]
      %v481 = vld [vmem:[%s198 + $0x8] sm:$0xf]
      %v482 = vld [vmem:[%s198 + $0xc] sm:$0xf]
      %v483 = vld [vmem:[%s198 + $0x10] sm:$0xf]
      %v484 = vld [vmem:[%s198 + $0x14] sm:$0xf]
      %v485 = vld [vmem:[%s198 + $0x18] sm:$0xf]
      %v486 = vld [vmem:[%s198 + $0x1c] sm:$0xf]
      %v487 = vld [vmem:[%s198 + $0x20] sm:$0xf]
      %v488 = vld [vmem:[%s198 + $0x24] sm:$0xf]
      %v489 = vld [vmem:[%s198 + $0x28] sm:$0xf]
      %v490 = vld [vmem:[%s198 + $0x2c] sm:$0xf]
      %v491 = vld [vmem:[%s198 + $0x30] sm:$0xf]
      %v492 = vld [vmem:[%s198 + $0x34] sm:$0xf]
      %v493 = vld [vmem:[%s198 + $0x38] sm:$0xf]
      %v494 = vld [vmem:[%s198 + $0x3c] sm:$0xf]
      %v495 = vld [vmem:[%s198 + $0x40] sm:$0xf]
      %v496 = vld [vmem:[%s198 + $0x44] sm:$0xf]
      %v497 = vld [vmem:[%s198 + $0x48] sm:$0xf]
      %v498 = vld [vmem:[%s198 + $0x4c] sm:$0xf]
      %v499 = vld [vmem:[%s198 + $0x50] sm:$0xf]
      %v500 = vld [vmem:[%s198 + $0x54] sm:$0xf]
      %v501 = vld [vmem:[%s198 + $0x58] sm:$0xf]
      %v502 = vld [vmem:[%s198 + $0x5c] sm:$0xf]
      %v503 = vld [vmem:[%s198 + $0x60] sm:$0xf]
      %v504 = vld [vmem:[%s198 + $0x64] sm:$0xf]
      %v505 = vld [vmem:[%s198 + $0x68] sm:$0xf]
      %v506 = vld [vmem:[%s198 + $0x6c] sm:$0xf]
      %v507 = vld [vmem:[%s198 + $0x70] sm:$0xf]
      %v508 = vld [vmem:[%s198 + $0x74] sm:$0xf]
      %v509 = vld [vmem:[%s198 + $0x78] sm:$0xf]
      %v510 = vld [vmem:[%s198 + $0x7c] sm:$0xf]
      %v511 = vld [vmem:[%s198 + $0x80] sm:$0xf]
      %v512 = vld [vmem:[%s198 + $0x84] sm:$0xf]
      %v513 = vld [vmem:[%s198 + $0x88] sm:$0xf]
      %v514 = vld [vmem:[%s198 + $0x8c] sm:$0xf]
      %v515 = vld [vmem:[%s198 + $0x90] sm:$0xf]
      %v516 = vld [vmem:[%s198 + $0x94] sm:$0xf]
      %v517 = vld [vmem:[%s198 + $0x98] sm:$0xf]
      %v518 = vld [vmem:[%s198 + $0x9c] sm:$0xf]
      %v519 = vld [vmem:[%s198 + $0xa0] sm:$0xf]
      %v520 = vld [vmem:[%s198 + $0xa4] sm:$0xf]
      %v521 = vld [vmem:[%s198 + $0xa8] sm:$0xf]
      %v522 = vld [vmem:[%s198 + $0xac] sm:$0xf]
      %v523 = vld [vmem:[%s198 + $0xb0] sm:$0xf]
      %v524 = vld [vmem:[%s198 + $0xb4] sm:$0xf]
      %v525 = vld [vmem:[%s198 + $0xb8] sm:$0xf]
      %v526 = vld [vmem:[%s198 + $0xbc] sm:$0xf]
      %v527 = vld [vmem:[%s198 + $0xc0] sm:$0xf]
      %v528 = vld [vmem:[%s198 + $0xc4] sm:$0xf]
      %v529 = vld [vmem:[%s198 + $0xc8] sm:$0xf]
      %v530 = vld [vmem:[%s198 + $0xcc] sm:$0xf]
      %v531 = vld [vmem:[%s198 + $0xd0] sm:$0xf]
      %v532 = vld [vmem:[%s198 + $0xd4] sm:$0xf]
      %v533 = vld [vmem:[%s198 + $0xd8] sm:$0xf]
      %v534 = vld [vmem:[%s198 + $0xdc] sm:$0xf]
      %v535 = vld [vmem:[%s198 + $0xe0] sm:$0xf]
      %v536 = vld [vmem:[%s198 + $0xe4] sm:$0xf]
      %v537 = vld [vmem:[%s198 + $0xe8] sm:$0xf]
      %v538 = vld [vmem:[%s198 + $0xec] sm:$0xf]
      %v539 = vld [vmem:[%s198 + $0xf0] sm:$0xf]
      %v540 = vld [vmem:[%s198 + $0xf4] sm:$0xf]
      %v541 = vld [vmem:[%s198 + $0xf8] sm:$0xf]
      %v542 = vld [vmem:[%s198 + $0xfc] sm:$0xf]
      %v543 = vld [vmem:[%s198 + $0x100] sm:$0xf]
      %v544 = vld [vmem:[%s198 + $0x104] sm:$0xf]
      %v545 = vld [vmem:[%s198 + $0x108] sm:$0xf]
      %v546 = vld [vmem:[%s198 + $0x10c] sm:$0xf]
      %v547 = vld [vmem:[%s198 + $0x110] sm:$0xf]
      %v548 = vld [vmem:[%s198 + $0x114] sm:$0xf]
      %v549 = vld [vmem:[%s198 + $0x118] sm:$0xf]
      %v550 = vld [vmem:[%s198 + $0x11c] sm:$0xf]
      %v551 = vld [vmem:[%s198 + $0x120] sm:$0xf]
      %v552 = vld [vmem:[%s198 + $0x124] sm:$0xf]
      %v553 = vld [vmem:[%s198 + $0x128] sm:$0xf]
      %v554 = vld [vmem:[%s198 + $0x12c] sm:$0xf]
      %v555 = vld [vmem:[%s198 + $0x130] sm:$0xf]
      %v556 = vld [vmem:[%s198 + $0x134] sm:$0xf]
      %v557 = vld [vmem:[%s198 + $0x138] sm:$0xf]
      %v558 = vld [vmem:[%s198 + $0x13c] sm:$0xf]
      %v559 = vld [vmem:[%s198 + $0x140] sm:$0xf]
      %v560 = vld [vmem:[%s198 + $0x144] sm:$0xf]
      %v561 = vld [vmem:[%s198 + $0x148] sm:$0xf]
      %v562 = vld [vmem:[%s198 + $0x14c] sm:$0xf]
      %v563 = vld [vmem:[%s198 + $0x150] sm:$0xf]
      %v564 = vld [vmem:[%s198 + $0x154] sm:$0xf]
      %v565 = vld [vmem:[%s198 + $0x158] sm:$0xf]
      %v566 = vld [vmem:[%s198 + $0x15c] sm:$0xf]
      %v567 = vld [vmem:[%s198 + $0x160] sm:$0xf]
      %v568 = vld [vmem:[%s198 + $0x164] sm:$0xf]
      %v569 = vld [vmem:[%s198 + $0x168] sm:$0xf]
      %v570 = vld [vmem:[%s198 + $0x16c] sm:$0xf]
      %v571 = vld [vmem:[%s198 + $0x170] sm:$0xf]
      %v572 = vld [vmem:[%s198 + $0x174] sm:$0xf]
      %v573 = vld [vmem:[%s198 + $0x178] sm:$0xf]
      %v574 = vld [vmem:[%s198 + $0x17c] sm:$0xf]
      %v575 = vld [vmem:[%s198 + $0x180] sm:$0xf]
      %v576 = vld [vmem:[%s198 + $0x184] sm:$0xf]
      %v577 = vld [vmem:[%s198 + $0x188] sm:$0xf]
      %v578 = vld [vmem:[%s198 + $0x18c] sm:$0xf]
      %v579 = vld [vmem:[%s198 + $0x190] sm:$0xf]
      %v580 = vld [vmem:[%s198 + $0x194] sm:$0xf]
      %v581 = vld [vmem:[%s198 + $0x198] sm:$0xf]
      %v582 = vld [vmem:[%s198 + $0x19c] sm:$0xf]
      %v583 = vld [vmem:[%s198 + $0x1a0] sm:$0xf]
      %v584 = vld [vmem:[%s198 + $0x1a4] sm:$0xf]
      %v585 = vld [vmem:[%s198 + $0x1a8] sm:$0xf]
      %v586 = vld [vmem:[%s198 + $0x1ac] sm:$0xf]
      %v587 = vld [vmem:[%s198 + $0x1b0] sm:$0xf]
      %v588 = vld [vmem:[%s198 + $0x1b4] sm:$0xf]
      %v589 = vld [vmem:[%s198 + $0x1b8] sm:$0xf]
      %v590 = vld [vmem:[%s198 + $0x1bc] sm:$0xf]
      %v591 = vld [vmem:[%s198 + $0x1c0] sm:$0xf]
      %v592 = vld [vmem:[%s198 + $0x1c4] sm:$0xf]
      %v593 = vld [vmem:[%s198 + $0x1c8] sm:$0xf]
      %v594 = vld [vmem:[%s198 + $0x1cc] sm:$0xf]
      %v595 = vld [vmem:[%s198 + $0x1d0] sm:$0xf]
      %v596 = vld [vmem:[%s198 + $0x1d4] sm:$0xf]
      %v597 = vld [vmem:[%s198 + $0x1d8] sm:$0xf]
      %v598 = vld [vmem:[%s198 + $0x1dc] sm:$0xf]
      %v599 = vld [vmem:[%s198 + $0x1e0] sm:$0xf]
      %v600 = vld [vmem:[%s198 + $0x1e4] sm:$0xf]
      %v601 = vld [vmem:[%s198 + $0x1e8] sm:$0xf]
      %v602 = vld [vmem:[%s198 + $0x1ec] sm:$0xf]
      %v603 = vld [vmem:[%s198 + $0x1f0] sm:$0xf]
      %v604 = vld [vmem:[%s198 + $0x1f4] sm:$0xf]
      %v605 = vld [vmem:[%s198 + $0x1f8] sm:$0xf]
      %v606 = vld [vmem:[%s198 + $0x1fc] sm:$0xf]
      %v607 = vld [vmem:[%s207] sm:$0xf]
      %v608 = vld [vmem:[%s207 + $0x4] sm:$0xf]
      %v609 = vld [vmem:[%s207 + $0x8] sm:$0xf]
      %v610 = vld [vmem:[%s207 + $0xc] sm:$0xf]
      %v611 = vld [vmem:[%s207 + $0x10] sm:$0xf]
      %v612 = vld [vmem:[%s207 + $0x14] sm:$0xf]
      %v741 = vunpack.c.l.b16 %v479
      %v742 = vunpack.c.l.b16 %v480
      %v743 = vunpack.c.l.b16 %v481
      %v744 = vunpack.c.l.b16 %v482
      %v745 = vunpack.c.l.b16 %v483
      %v746 = vunpack.c.l.b16 %v484
      %v747 = vunpack.c.l.b16 %v485
      %v748 = vunpack.c.l.b16 %v486
      %v749 = vunpack.c.l.b16 %v487
      %v750 = vunpack.c.l.b16 %v488
      %v751 = vunpack.c.l.b16 %v489
      %v752 = vunpack.c.l.b16 %v490
      %v753 = vunpack.c.l.b16 %v491
      %v754 = vunpack.c.l.b16 %v492
      %v755 = vunpack.c.l.b16 %v493
      %v756 = vunpack.c.l.b16 %v494
      %v757 = vunpack.c.l.b16 %v495
      %v758 = vunpack.c.l.b16 %v496
      %v759 = vunpack.c.l.b16 %v497
      %v760 = vunpack.c.l.b16 %v498
      %v761 = vunpack.c.l.b16 %v499
      %v762 = vunpack.c.l.b16 %v500
      %v763 = vunpack.c.l.b16 %v501
      %v764 = vunpack.c.l.b16 %v502
      %v765 = vunpack.c.l.b16 %v503
      %v766 = vunpack.c.l.b16 %v504
      %v767 = vunpack.c.l.b16 %v505
      %v768 = vunpack.c.l.b16 %v506
      %v769 = vunpack.c.l.b16 %v507
      %v770 = vunpack.c.l.b16 %v508
      %v771 = vunpack.c.l.b16 %v509
      %v772 = vunpack.c.l.b16 %v510
      %v773 = vunpack.c.l.b16 %v511
      %v774 = vunpack.c.l.b16 %v512
      %v775 = vunpack.c.l.b16 %v513
      %v776 = vunpack.c.l.b16 %v514
      %v777 = vunpack.c.l.b16 %v515
      %v778 = vunpack.c.l.b16 %v516
      %v779 = vunpack.c.l.b16 %v517
      %v780 = vunpack.c.l.b16 %v518
      %v781 = vunpack.c.l.b16 %v519
      %v782 = vunpack.c.l.b16 %v520
      %v783 = vunpack.c.l.b16 %v521
      %v784 = vunpack.c.l.b16 %v522
      %v785 = vunpack.c.l.b16 %v523
      %v786 = vunpack.c.l.b16 %v524
      %v787 = vunpack.c.l.b16 %v525
      %v788 = vunpack.c.l.b16 %v526
      %v789 = vunpack.c.l.b16 %v527
      %v790 = vunpack.c.l.b16 %v528
      %v791 = vunpack.c.l.b16 %v529
      %v792 = vunpack.c.l.b16 %v530
      %v793 = vunpack.c.l.b16 %v531
      %v794 = vunpack.c.l.b16 %v532
      %v795 = vunpack.c.l.b16 %v533
      %v796 = vunpack.c.l.b16 %v534
      %v797 = vunpack.c.l.b16 %v535
      %v798 = vunpack.c.l.b16 %v536
      %v799 = vunpack.c.l.b16 %v537
      %v800 = vunpack.c.l.b16 %v538
      %v801 = vunpack.c.l.b16 %v539
      %v802 = vunpack.c.l.b16 %v540
      %v803 = vunpack.c.l.b16 %v541
      %v804 = vunpack.c.l.b16 %v542
      %v805 = vunpack.c.l.b16 %v543
      %v806 = vunpack.c.l.b16 %v544
      %v807 = vunpack.c.l.b16 %v545
      %v808 = vunpack.c.l.b16 %v546
      %v809 = vunpack.c.l.b16 %v547
      %v810 = vunpack.c.l.b16 %v548
      %v811 = vunpack.c.l.b16 %v549
      %v812 = vunpack.c.l.b16 %v550
      %v813 = vunpack.c.l.b16 %v551
      %v814 = vunpack.c.l.b16 %v552
      %v815 = vunpack.c.l.b16 %v553
      %v816 = vunpack.c.l.b16 %v554
      %v817 = vunpack.c.l.b16 %v555
      %v818 = vunpack.c.l.b16 %v556
      %v819 = vunpack.c.l.b16 %v557
      %v820 = vunpack.c.l.b16 %v558
      %v821 = vunpack.c.l.b16 %v559
      %v822 = vunpack.c.l.b16 %v560
      %v823 = vunpack.c.l.b16 %v561
      %v824 = vunpack.c.l.b16 %v562
      %v825 = vunpack.c.l.b16 %v563
      %v826 = vunpack.c.l.b16 %v564
      %v827 = vunpack.c.l.b16 %v565
      %v828 = vunpack.c.l.b16 %v566
      %v829 = vunpack.c.l.b16 %v567
      %v830 = vunpack.c.l.b16 %v568
      %v831 = vunpack.c.l.b16 %v569
      %v832 = vunpack.c.l.b16 %v570
      %v833 = vunpack.c.l.b16 %v571
      %v834 = vunpack.c.l.b16 %v572
      %v835 = vunpack.c.l.b16 %v573
      %v836 = vunpack.c.l.b16 %v574
      %v837 = vunpack.c.l.b16 %v575
      %v838 = vunpack.c.l.b16 %v576
      %v839 = vunpack.c.l.b16 %v577
      %v840 = vunpack.c.l.b16 %v578
      %v841 = vunpack.c.l.b16 %v579
      %v842 = vunpack.c.l.b16 %v580
      %v843 = vunpack.c.l.b16 %v581
      %v844 = vunpack.c.l.b16 %v582
      %v845 = vunpack.c.l.b16 %v583
      %v846 = vunpack.c.l.b16 %v584
      %v847 = vunpack.c.l.b16 %v585
      %v848 = vunpack.c.l.b16 %v586
      %v849 = vunpack.c.l.b16 %v587
      %v850 = vunpack.c.l.b16 %v588
      %v851 = vunpack.c.l.b16 %v589
      %v852 = vunpack.c.l.b16 %v590
      %v853 = vunpack.c.l.b16 %v591
      %v854 = vunpack.c.l.b16 %v592
      %v855 = vunpack.c.l.b16 %v593
      %v856 = vunpack.c.l.b16 %v594
      %v857 = vunpack.c.l.b16 %v595
      %v858 = vunpack.c.l.b16 %v596
      %v859 = vunpack.c.l.b16 %v597
      %v860 = vunpack.c.l.b16 %v598
      %v861 = vunpack.c.l.b16 %v599
      %v862 = vunpack.c.l.b16 %v600
      %v863 = vunpack.c.l.b16 %v601
      %v864 = vunpack.c.l.b16 %v602
      %v865 = vunpack.c.l.b16 %v603
      %v866 = vunpack.c.l.b16 %v604
      %v867 = vunpack.c.l.b16 %v605
      %v868 = vunpack.c.l.b16 %v606
      %v869 = vpack.c.b16 %v742, %v741
      %v870 = vpack.c.b16 %v744, %v743
      %v871 = vpack.c.b16 %v746, %v745
      %v872 = vpack.c.b16 %v748, %v747
      %v873 = vpack.c.b16 %v750, %v749
      %v874 = vpack.c.b16 %v752, %v751
      %v875 = vpack.c.b16 %v754, %v753
      %v876 = vpack.c.b16 %v756, %v755
      %v877 = vpack.c.b16 %v758, %v757
      %v878 = vpack.c.b16 %v760, %v759
      %v879 = vpack.c.b16 %v762, %v761
      %v880 = vpack.c.b16 %v764, %v763
      %v881 = vpack.c.b16 %v766, %v765
      %v882 = vpack.c.b16 %v768, %v767
      %v883 = vpack.c.b16 %v770, %v769
      %v884 = vpack.c.b16 %v772, %v771
      %v885 = vpack.c.b16 %v774, %v773
      %v886 = vpack.c.b16 %v776, %v775
      %v887 = vpack.c.b16 %v778, %v777
      %v888 = vpack.c.b16 %v780, %v779
      %v889 = vpack.c.b16 %v782, %v781
      %v890 = vpack.c.b16 %v784, %v783
      %v891 = vpack.c.b16 %v786, %v785
      %v892 = vpack.c.b16 %v788, %v787
      %v893 = vpack.c.b16 %v790, %v789
      %v894 = vpack.c.b16 %v792, %v791
      %v895 = vpack.c.b16 %v794, %v793
      %v896 = vpack.c.b16 %v796, %v795
      %v897 = vpack.c.b16 %v798, %v797
      %v898 = vpack.c.b16 %v800, %v799
      %v899 = vpack.c.b16 %v802, %v801
      %v900 = vpack.c.b16 %v804, %v803
      %v901 = vpack.c.b16 %v806, %v805
      %v902 = vpack.c.b16 %v808, %v807
      %v903 = vpack.c.b16 %v810, %v809
      %v904 = vpack.c.b16 %v812, %v811
      %v905 = vpack.c.b16 %v814, %v813
      %v906 = vpack.c.b16 %v816, %v815
      %v907 = vpack.c.b16 %v818, %v817
      %v908 = vpack.c.b16 %v820, %v819
      %v909 = vpack.c.b16 %v822, %v821
      %v910 = vpack.c.b16 %v824, %v823
      %v911 = vpack.c.b16 %v826, %v825
      %v912 = vpack.c.b16 %v828, %v827
      %v913 = vpack.c.b16 %v830, %v829
      %v914 = vpack.c.b16 %v832, %v831
      %v915 = vpack.c.b16 %v834, %v833
      %v916 = vpack.c.b16 %v836, %v835
      %v917 = vpack.c.b16 %v838, %v837
      %v918 = vpack.c.b16 %v840, %v839
      %v919 = vpack.c.b16 %v842, %v841
      %v920 = vpack.c.b16 %v844, %v843
      %v921 = vpack.c.b16 %v846, %v845
      %v922 = vpack.c.b16 %v848, %v847
      %v923 = vpack.c.b16 %v850, %v849
      %v924 = vpack.c.b16 %v852, %v851
      %v925 = vpack.c.b16 %v854, %v853
      %v926 = vpack.c.b16 %v856, %v855
      %v927 = vpack.c.b16 %v858, %v857
      %v928 = vpack.c.b16 %v860, %v859
      %v929 = vpack.c.b16 %v862, %v861
      %v930 = vpack.c.b16 %v864, %v863
      %v931 = vpack.c.b16 %v866, %v865
      %v932 = vpack.c.b16 %v868, %v867
      %v939 = vunpack.c.l.b16 %v607
      %v940 = vunpack.c.l.b16 %v608
      %v941 = vunpack.c.l.b16 %v609
      %v942 = vunpack.c.l.b16 %v610
      %v943 = vunpack.c.l.b16 %v611
      %v944 = vunpack.c.l.b16 %v612
      %v945 = vpack.c.b16 %v940, %v939
      %v946 = vpack.c.b16 %v942, %v941
      %v947 = vpack.c.b16 %v944, %v943
      %vm951 = vcmask 392192
      %v953 = vsel %vm951, %v869, 0
      %v956 = vsel %vm951, %v870, 0
      %v959 = vsel %vm951, %v871, 0
      %v962 = vsel %vm951, %v872, 0
      %v965 = vsel %vm951, %v873, 0
      %v968 = vsel %vm951, %v874, 0
      %v971 = vsel %vm951, %v875, 0
      %v974 = vsel %vm951, %v876, 0
      %v977 = vsel %vm951, %v877, 0
      %v980 = vsel %vm951, %v878, 0
      %v983 = vsel %vm951, %v879, 0
      %v986 = vsel %vm951, %v880, 0
      %v989 = vsel %vm951, %v881, 0
      %v992 = vsel %vm951, %v882, 0
      %v995 = vsel %vm951, %v883, 0
      %v998 = vsel %vm951, %v884, 0
      %v1001 = vsel %vm951, %v885, 0
      %v1004 = vsel %vm951, %v886, 0
      %v1007 = vsel %vm951, %v887, 0
      %v1010 = vsel %vm951, %v888, 0
      %v1013 = vsel %vm951, %v889, 0
      %v1016 = vsel %vm951, %v890, 0
      %v1019 = vsel %vm951, %v891, 0
      %v1022 = vsel %vm951, %v892, 0
      %v1025 = vsel %vm951, %v893, 0
      %v1028 = vsel %vm951, %v894, 0
      %v1031 = vsel %vm951, %v895, 0
      %v1034 = vsel %vm951, %v896, 0
      %v1037 = vsel %vm951, %v897, 0
      %v1040 = vsel %vm951, %v898, 0
      %v1043 = vsel %vm951, %v899, 0
      %v1046 = vsel %vm951, %v900, 0
      %v1049 = vsel %vm951, %v901, 0
      %v1052 = vsel %vm951, %v902, 0
      %v1055 = vsel %vm951, %v903, 0
      %v1058 = vsel %vm951, %v904, 0
      %v1061 = vsel %vm951, %v905, 0
      %v1064 = vsel %vm951, %v906, 0
      %v1067 = vsel %vm951, %v907, 0
      %v1070 = vsel %vm951, %v908, 0
      %v1073 = vsel %vm951, %v909, 0
      %v1076 = vsel %vm951, %v910, 0
      %v1079 = vsel %vm951, %v911, 0
      %v1082 = vsel %vm951, %v912, 0
      %v1085 = vsel %vm951, %v913, 0
      %v1088 = vsel %vm951, %v914, 0
      %v1091 = vsel %vm951, %v915, 0
      %v1094 = vsel %vm951, %v916, 0
      %v1097 = vsel %vm951, %v917, 0
      %v1100 = vsel %vm951, %v918, 0
      %v1103 = vsel %vm951, %v919, 0
      %v1106 = vsel %vm951, %v920, 0
      %v1109 = vsel %vm951, %v921, 0
      %v1112 = vsel %vm951, %v922, 0
      %v1115 = vsel %vm951, %v923, 0
      %v1118 = vsel %vm951, %v924, 0
      %v1121 = vsel %vm951, %v925, 0
      %v1124 = vsel %vm951, %v926, 0
      %v1127 = vsel %vm951, %v927, 0
      %v1130 = vsel %vm951, %v928, 0
      %v1133 = vsel %vm951, %v929, 0
      %v1136 = vsel %vm951, %v930, 0
      %v1139 = vsel %vm951, %v931, 0
      %v1142 = vsel %vm951, %v932, 0
      %1144 = vmatpush.bf16.msra.mxu0 0
      %1145 = vmatpush.bf16.msra.mxu0 0
      %1146 = vmatpush.bf16.msra.mxu0 0
      %1147 = vmatpush.bf16.msra.mxu0 0
      %1148 = vmatpush.bf16.msra.mxu0 0
      %1149 = vmatpush.bf16.msra.mxu0 %v947
      %1150 = vmatpush.bf16.msra.mxu0 %v946
      %1151 = vmatpush.bf16.msra.mxu0 %v945
      %1152 = vmatmul.bf16.gmra.mxu0 %v953
      %v1153 = vpop.f32.mrf.mxu0
      %v1154 = vadd.f32 0.0, %v1153
      %v1155 = vpop.f32.mrf.mxu0
      %v1156 = vadd.f32 0.0, %v1155
      %1157 = vmatmul.bf16.gmra.mxu0 %v956
      %v1158 = vpop.f32.mrf.mxu0
      %v1159 = vadd.f32 0.0, %v1158
      %v1160 = vpop.f32.mrf.mxu0
      %v1161 = vadd.f32 0.0, %v1160
      %1162 = vmatmul.bf16.gmra.mxu0 %v959
      %v1163 = vpop.f32.mrf.mxu0
      %v1164 = vadd.f32 0.0, %v1163
      %v1165 = vpop.f32.mrf.mxu0
      %v1166 = vadd.f32 0.0, %v1165
      %1167 = vmatmul.bf16.gmra.mxu0 %v962
      %v1168 = vpop.f32.mrf.mxu0
      %v1169 = vadd.f32 0.0, %v1168
      %v1170 = vpop.f32.mrf.mxu0
      %v1171 = vadd.f32 0.0, %v1170
      %1172 = vmatmul.bf16.gmra.mxu0 %v965
      %v1173 = vpop.f32.mrf.mxu0
      %v1174 = vadd.f32 0.0, %v1173
      %v1175 = vpop.f32.mrf.mxu0
      %v1176 = vadd.f32 0.0, %v1175
      %1177 = vmatmul.bf16.gmra.mxu0 %v968
      %v1178 = vpop.f32.mrf.mxu0
      %v1179 = vadd.f32 0.0, %v1178
      %v1180 = vpop.f32.mrf.mxu0
      %v1181 = vadd.f32 0.0, %v1180
      %1182 = vmatmul.bf16.gmra.mxu0 %v971
      %v1183 = vpop.f32.mrf.mxu0
      %v1184 = vadd.f32 0.0, %v1183
      %v1185 = vpop.f32.mrf.mxu0
      %v1186 = vadd.f32 0.0, %v1185
      %1187 = vmatmul.bf16.gmra.mxu0 %v974
      %v1188 = vpop.f32.mrf.mxu0
      %v1189 = vadd.f32 0.0, %v1188
      %v1190 = vpop.f32.mrf.mxu0
      %v1191 = vadd.f32 0.0, %v1190
      %1192 = vmatmul.bf16.gmra.mxu0 %v977
      %v1193 = vpop.f32.mrf.mxu0
      %v1194 = vadd.f32 0.0, %v1193
      %v1195 = vpop.f32.mrf.mxu0
      %v1196 = vadd.f32 0.0, %v1195
      %1197 = vmatmul.bf16.gmra.mxu0 %v980
      %v1198 = vpop.f32.mrf.mxu0
      %v1199 = vadd.f32 0.0, %v1198
      %v1200 = vpop.f32.mrf.mxu0
      %v1201 = vadd.f32 0.0, %v1200
      %1202 = vmatmul.bf16.gmra.mxu0 %v983
      %v1203 = vpop.f32.mrf.mxu0
      %v1204 = vadd.f32 0.0, %v1203
      %v1205 = vpop.f32.mrf.mxu0
      %v1206 = vadd.f32 0.0, %v1205
      %1207 = vmatmul.bf16.gmra.mxu0 %v986
      %v1208 = vpop.f32.mrf.mxu0
      %v1209 = vadd.f32 0.0, %v1208
      %v1210 = vpop.f32.mrf.mxu0
      %v1211 = vadd.f32 0.0, %v1210
      %1212 = vmatmul.bf16.gmra.mxu0 %v989
      %v1213 = vpop.f32.mrf.mxu0
      %v1214 = vadd.f32 0.0, %v1213
      %v1215 = vpop.f32.mrf.mxu0
      %v1216 = vadd.f32 0.0, %v1215
      %1217 = vmatmul.bf16.gmra.mxu0 %v992
      %v1218 = vpop.f32.mrf.mxu0
      %v1219 = vadd.f32 0.0, %v1218
      %v1220 = vpop.f32.mrf.mxu0
      %v1221 = vadd.f32 0.0, %v1220
      %1222 = vmatmul.bf16.gmra.mxu0 %v995
      %v1223 = vpop.f32.mrf.mxu0
      %v1224 = vadd.f32 0.0, %v1223
      %v1225 = vpop.f32.mrf.mxu0
      %v1226 = vadd.f32 0.0, %v1225
      %1227 = vmatmul.bf16.gmra.mxu0 %v998
      %v1228 = vpop.f32.mrf.mxu0
      %v1229 = vadd.f32 0.0, %v1228
      %v1230 = vpop.f32.mrf.mxu0
      %v1231 = vadd.f32 0.0, %v1230
      %1232 = vmatmul.bf16.gmra.mxu0 %v1001
      %v1233 = vpop.f32.mrf.mxu0
      %v1234 = vadd.f32 0.0, %v1233
      %v1235 = vpop.f32.mrf.mxu0
      %v1236 = vadd.f32 0.0, %v1235
      %1237 = vmatmul.bf16.gmra.mxu0 %v1004
      %v1238 = vpop.f32.mrf.mxu0
      %v1239 = vadd.f32 0.0, %v1238
      %v1240 = vpop.f32.mrf.mxu0
      %v1241 = vadd.f32 0.0, %v1240
      %1242 = vmatmul.bf16.gmra.mxu0 %v1007
      %v1243 = vpop.f32.mrf.mxu0
      %v1244 = vadd.f32 0.0, %v1243
      %v1245 = vpop.f32.mrf.mxu0
      %v1246 = vadd.f32 0.0, %v1245
      %1247 = vmatmul.bf16.gmra.mxu0 %v1010
      %v1248 = vpop.f32.mrf.mxu0
      %v1249 = vadd.f32 0.0, %v1248
      %v1250 = vpop.f32.mrf.mxu0
      %v1251 = vadd.f32 0.0, %v1250
      %1252 = vmatmul.bf16.gmra.mxu0 %v1013
      %v1253 = vpop.f32.mrf.mxu0
      %v1254 = vadd.f32 0.0, %v1253
      %v1255 = vpop.f32.mrf.mxu0
      %v1256 = vadd.f32 0.0, %v1255
      %1257 = vmatmul.bf16.gmra.mxu0 %v1016
      %v1258 = vpop.f32.mrf.mxu0
      %v1259 = vadd.f32 0.0, %v1258
      %v1260 = vpop.f32.mrf.mxu0
      %v1261 = vadd.f32 0.0, %v1260
      %1262 = vmatmul.bf16.gmra.mxu0 %v1019
      %v1263 = vpop.f32.mrf.mxu0
      %v1264 = vadd.f32 0.0, %v1263
      %v1265 = vpop.f32.mrf.mxu0
      %v1266 = vadd.f32 0.0, %v1265
      %1267 = vmatmul.bf16.gmra.mxu0 %v1022
      %v1268 = vpop.f32.mrf.mxu0
      %v1269 = vadd.f32 0.0, %v1268
      %v1270 = vpop.f32.mrf.mxu0
      %v1271 = vadd.f32 0.0, %v1270
      %1272 = vmatmul.bf16.gmra.mxu0 %v1025
      %v1273 = vpop.f32.mrf.mxu0
      %v1274 = vadd.f32 0.0, %v1273
      %v1275 = vpop.f32.mrf.mxu0
      %v1276 = vadd.f32 0.0, %v1275
      %1277 = vmatmul.bf16.gmra.mxu0 %v1028
      %v1278 = vpop.f32.mrf.mxu0
      %v1279 = vadd.f32 0.0, %v1278
      %v1280 = vpop.f32.mrf.mxu0
      %v1281 = vadd.f32 0.0, %v1280
      %1282 = vmatmul.bf16.gmra.mxu0 %v1031
      %v1283 = vpop.f32.mrf.mxu0
      %v1284 = vadd.f32 0.0, %v1283
      %v1285 = vpop.f32.mrf.mxu0
      %v1286 = vadd.f32 0.0, %v1285
      %1287 = vmatmul.bf16.gmra.mxu0 %v1034
      %v1288 = vpop.f32.mrf.mxu0
      %v1289 = vadd.f32 0.0, %v1288
      %v1290 = vpop.f32.mrf.mxu0
      %v1291 = vadd.f32 0.0, %v1290
      %1292 = vmatmul.bf16.gmra.mxu0 %v1037
      %v1293 = vpop.f32.mrf.mxu0
      %v1294 = vadd.f32 0.0, %v1293
      %v1295 = vpop.f32.mrf.mxu0
      %v1296 = vadd.f32 0.0, %v1295
      %1297 = vmatmul.bf16.gmra.mxu0 %v1040
      %v1298 = vpop.f32.mrf.mxu0
      %v1299 = vadd.f32 0.0, %v1298
      %v1300 = vpop.f32.mrf.mxu0
      %v1301 = vadd.f32 0.0, %v1300
      %1302 = vmatmul.bf16.gmra.mxu0 %v1043
      %v1303 = vpop.f32.mrf.mxu0
      %v1304 = vadd.f32 0.0, %v1303
      %v1305 = vpop.f32.mrf.mxu0
      %v1306 = vadd.f32 0.0, %v1305
      %1307 = vmatmul.bf16.gmra.mxu0 %v1046
      %v1308 = vpop.f32.mrf.mxu0
      %v1309 = vadd.f32 0.0, %v1308
      %v1310 = vpop.f32.mrf.mxu0
      %v1311 = vadd.f32 0.0, %v1310
      %1312 = vmatmul.bf16.gmra.mxu0 %v1049
      %v1313 = vpop.f32.mrf.mxu0
      %v1314 = vadd.f32 0.0, %v1313
      %v1315 = vpop.f32.mrf.mxu0
      %v1316 = vadd.f32 0.0, %v1315
      %1317 = vmatmul.bf16.gmra.mxu0 %v1052
      %v1318 = vpop.f32.mrf.mxu0
      %v1319 = vadd.f32 0.0, %v1318
      %v1320 = vpop.f32.mrf.mxu0
      %v1321 = vadd.f32 0.0, %v1320
      %1322 = vmatmul.bf16.gmra.mxu0 %v1055
      %v1323 = vpop.f32.mrf.mxu0
      %v1324 = vadd.f32 0.0, %v1323
      %v1325 = vpop.f32.mrf.mxu0
      %v1326 = vadd.f32 0.0, %v1325
      %1327 = vmatmul.bf16.gmra.mxu0 %v1058
      %v1328 = vpop.f32.mrf.mxu0
      %v1329 = vadd.f32 0.0, %v1328
      %v1330 = vpop.f32.mrf.mxu0
      %v1331 = vadd.f32 0.0, %v1330
      %1332 = vmatmul.bf16.gmra.mxu0 %v1061
      %v1333 = vpop.f32.mrf.mxu0
      %v1334 = vadd.f32 0.0, %v1333
      %v1335 = vpop.f32.mrf.mxu0
      %v1336 = vadd.f32 0.0, %v1335
      %1337 = vmatmul.bf16.gmra.mxu0 %v1064
      %v1338 = vpop.f32.mrf.mxu0
      %v1339 = vadd.f32 0.0, %v1338
      %v1340 = vpop.f32.mrf.mxu0
      %v1341 = vadd.f32 0.0, %v1340
      %1342 = vmatmul.bf16.gmra.mxu0 %v1067
      %v1343 = vpop.f32.mrf.mxu0
      %v1344 = vadd.f32 0.0, %v1343
      %v1345 = vpop.f32.mrf.mxu0
      %v1346 = vadd.f32 0.0, %v1345
      %1347 = vmatmul.bf16.gmra.mxu0 %v1070
      %v1348 = vpop.f32.mrf.mxu0
      %v1349 = vadd.f32 0.0, %v1348
      %v1350 = vpop.f32.mrf.mxu0
      %v1351 = vadd.f32 0.0, %v1350
      %1352 = vmatmul.bf16.gmra.mxu0 %v1073
      %v1353 = vpop.f32.mrf.mxu0
      %v1354 = vadd.f32 0.0, %v1353
      %v1355 = vpop.f32.mrf.mxu0
      %v1356 = vadd.f32 0.0, %v1355
      %1357 = vmatmul.bf16.gmra.mxu0 %v1076
      %v1358 = vpop.f32.mrf.mxu0
      %v1359 = vadd.f32 0.0, %v1358
      %v1360 = vpop.f32.mrf.mxu0
      %v1361 = vadd.f32 0.0, %v1360
      %1362 = vmatmul.bf16.gmra.mxu0 %v1079
      %v1363 = vpop.f32.mrf.mxu0
      %v1364 = vadd.f32 0.0, %v1363
      %v1365 = vpop.f32.mrf.mxu0
      %v1366 = vadd.f32 0.0, %v1365
      %1367 = vmatmul.bf16.gmra.mxu0 %v1082
      %v1368 = vpop.f32.mrf.mxu0
      %v1369 = vadd.f32 0.0, %v1368
      %v1370 = vpop.f32.mrf.mxu0
      %v1371 = vadd.f32 0.0, %v1370
      %1372 = vmatmul.bf16.gmra.mxu0 %v1085
      %v1373 = vpop.f32.mrf.mxu0
      %v1374 = vadd.f32 0.0, %v1373
      %v1375 = vpop.f32.mrf.mxu0
      %v1376 = vadd.f32 0.0, %v1375
      %1377 = vmatmul.bf16.gmra.mxu0 %v1088
      %v1378 = vpop.f32.mrf.mxu0
      %v1379 = vadd.f32 0.0, %v1378
      %v1380 = vpop.f32.mrf.mxu0
      %v1381 = vadd.f32 0.0, %v1380
      %1382 = vmatmul.bf16.gmra.mxu0 %v1091
      %v1383 = vpop.f32.mrf.mxu0
      %v1384 = vadd.f32 0.0, %v1383
      %v1385 = vpop.f32.mrf.mxu0
      %v1386 = vadd.f32 0.0, %v1385
      %1387 = vmatmul.bf16.gmra.mxu0 %v1094
      %v1388 = vpop.f32.mrf.mxu0
      %v1389 = vadd.f32 0.0, %v1388
      %v1390 = vpop.f32.mrf.mxu0
      %v1391 = vadd.f32 0.0, %v1390
      %1392 = vmatmul.bf16.gmra.mxu0 %v1097
      %v1393 = vpop.f32.mrf.mxu0
      %v1394 = vadd.f32 0.0, %v1393
      %v1395 = vpop.f32.mrf.mxu0
      %v1396 = vadd.f32 0.0, %v1395
      %1397 = vmatmul.bf16.gmra.mxu0 %v1100
      %v1398 = vpop.f32.mrf.mxu0
      %v1399 = vadd.f32 0.0, %v1398
      %v1400 = vpop.f32.mrf.mxu0
      %v1401 = vadd.f32 0.0, %v1400
      %1402 = vmatmul.bf16.gmra.mxu0 %v1103
      %v1403 = vpop.f32.mrf.mxu0
      %v1404 = vadd.f32 0.0, %v1403
      %v1405 = vpop.f32.mrf.mxu0
      %v1406 = vadd.f32 0.0, %v1405
      %1407 = vmatmul.bf16.gmra.mxu0 %v1106
      %v1408 = vpop.f32.mrf.mxu0
      %v1409 = vadd.f32 0.0, %v1408
      %v1410 = vpop.f32.mrf.mxu0
      %v1411 = vadd.f32 0.0, %v1410
      %1412 = vmatmul.bf16.gmra.mxu0 %v1109
      %v1413 = vpop.f32.mrf.mxu0
      %v1414 = vadd.f32 0.0, %v1413
      %v1415 = vpop.f32.mrf.mxu0
      %v1416 = vadd.f32 0.0, %v1415
      %1417 = vmatmul.bf16.gmra.mxu0 %v1112
      %v1418 = vpop.f32.mrf.mxu0
      %v1419 = vadd.f32 0.0, %v1418
      %v1420 = vpop.f32.mrf.mxu0
      %v1421 = vadd.f32 0.0, %v1420
      %1422 = vmatmul.bf16.gmra.mxu0 %v1115
      %v1423 = vpop.f32.mrf.mxu0
      %v1424 = vadd.f32 0.0, %v1423
      %v1425 = vpop.f32.mrf.mxu0
      %v1426 = vadd.f32 0.0, %v1425
      %1427 = vmatmul.bf16.gmra.mxu0 %v1118
      %v1428 = vpop.f32.mrf.mxu0
      %v1429 = vadd.f32 0.0, %v1428
      %v1430 = vpop.f32.mrf.mxu0
      %v1431 = vadd.f32 0.0, %v1430
      %1432 = vmatmul.bf16.gmra.mxu0 %v1121
      %v1433 = vpop.f32.mrf.mxu0
      %v1434 = vadd.f32 0.0, %v1433
      %v1435 = vpop.f32.mrf.mxu0
      %v1436 = vadd.f32 0.0, %v1435
      %1437 = vmatmul.bf16.gmra.mxu0 %v1124
      %v1438 = vpop.f32.mrf.mxu0
      %v1439 = vadd.f32 0.0, %v1438
      %v1440 = vpop.f32.mrf.mxu0
      %v1441 = vadd.f32 0.0, %v1440
      %1442 = vmatmul.bf16.gmra.mxu0 %v1127
      %v1443 = vpop.f32.mrf.mxu0
      %v1444 = vadd.f32 0.0, %v1443
      %v1445 = vpop.f32.mrf.mxu0
      %v1446 = vadd.f32 0.0, %v1445
      %1447 = vmatmul.bf16.gmra.mxu0 %v1130
      %v1448 = vpop.f32.mrf.mxu0
      %v1449 = vadd.f32 0.0, %v1448
      %v1450 = vpop.f32.mrf.mxu0
      %v1451 = vadd.f32 0.0, %v1450
      %1452 = vmatmul.bf16.gmra.mxu0 %v1133
      %v1453 = vpop.f32.mrf.mxu0
      %v1454 = vadd.f32 0.0, %v1453
      %v1455 = vpop.f32.mrf.mxu0
      %v1456 = vadd.f32 0.0, %v1455
      %1457 = vmatmul.bf16.gmra.mxu0 %v1136
      %v1458 = vpop.f32.mrf.mxu0
      %v1459 = vadd.f32 0.0, %v1458
      %v1460 = vpop.f32.mrf.mxu0
      %v1461 = vadd.f32 0.0, %v1460
      %1462 = vmatmul.bf16.gmra.mxu0 %v1139
      %v1463 = vpop.f32.mrf.mxu0
      %v1464 = vadd.f32 0.0, %v1463
      %v1465 = vpop.f32.mrf.mxu0
      %v1466 = vadd.f32 0.0, %v1465
      %1467 = vmatmul.bf16.gmra.mxu0 %v1142
      %v1468 = vpop.f32.mrf.mxu0
      %v1469 = vadd.f32 0.0, %v1468
      %v1470 = vpop.f32.mrf.mxu0
      %v1471 = vadd.f32 0.0, %v1470
      %1472 = vdwg.mxu0
      %v1473 = vadd.f32 %v351, %v1154
      %v1474 = vadd.f32 %v352, %v1156
      %v1475 = vadd.f32 %v353, %v1159
      %v1476 = vadd.f32 %v354, %v1161
      %v1477 = vadd.f32 %v355, %v1164
      %v1478 = vadd.f32 %v356, %v1166
      %v1479 = vadd.f32 %v357, %v1169
      %v1480 = vadd.f32 %v358, %v1171
      %v1481 = vadd.f32 %v359, %v1174
      %v1482 = vadd.f32 %v360, %v1176
      %v1483 = vadd.f32 %v361, %v1179
      %v1484 = vadd.f32 %v362, %v1181
      %v1485 = vadd.f32 %v363, %v1184
      %v1486 = vadd.f32 %v364, %v1186
      %v1487 = vadd.f32 %v365, %v1189
      %v1488 = vadd.f32 %v366, %v1191
      %v1489 = vadd.f32 %v367, %v1194
      %v1490 = vadd.f32 %v368, %v1196
      %v1491 = vadd.f32 %v369, %v1199
      %v1492 = vadd.f32 %v370, %v1201
      %v1493 = vadd.f32 %v371, %v1204
      %v1494 = vadd.f32 %v372, %v1206
      %v1495 = vadd.f32 %v373, %v1209
      %v1496 = vadd.f32 %v374, %v1211
      %v1497 = vadd.f32 %v375, %v1214
      %v1498 = vadd.f32 %v376, %v1216
      %v1499 = vadd.f32 %v377, %v1219
      %v1500 = vadd.f32 %v378, %v1221
      %v1501 = vadd.f32 %v379, %v1224
      %v1502 = vadd.f32 %v380, %v1226
      %v1503 = vadd.f32 %v381, %v1229
      %v1504 = vadd.f32 %v382, %v1231
      %v1505 = vadd.f32 %v383, %v1234
      %v1506 = vadd.f32 %v384, %v1236
      %v1507 = vadd.f32 %v385, %v1239
      %v1508 = vadd.f32 %v386, %v1241
      %v1509 = vadd.f32 %v387, %v1244
      %v1510 = vadd.f32 %v388, %v1246
      %v1511 = vadd.f32 %v389, %v1249
      %v1512 = vadd.f32 %v390, %v1251
      %v1513 = vadd.f32 %v391, %v1254
      %v1514 = vadd.f32 %v392, %v1256
      %v1515 = vadd.f32 %v393, %v1259
      %v1516 = vadd.f32 %v394, %v1261
      %v1517 = vadd.f32 %v395, %v1264
      %v1518 = vadd.f32 %v396, %v1266
      %v1519 = vadd.f32 %v397, %v1269
      %v1520 = vadd.f32 %v398, %v1271
      %v1521 = vadd.f32 %v399, %v1274
      %v1522 = vadd.f32 %v400, %v1276
      %v1523 = vadd.f32 %v401, %v1279
      %v1524 = vadd.f32 %v402, %v1281
      %v1525 = vadd.f32 %v403, %v1284
      %v1526 = vadd.f32 %v404, %v1286
      %v1527 = vadd.f32 %v405, %v1289
      %v1528 = vadd.f32 %v406, %v1291
      %v1529 = vadd.f32 %v407, %v1294
      %v1530 = vadd.f32 %v408, %v1296
      %v1531 = vadd.f32 %v409, %v1299
      %v1532 = vadd.f32 %v410, %v1301
      %v1533 = vadd.f32 %v411, %v1304
      %v1534 = vadd.f32 %v412, %v1306
      %v1535 = vadd.f32 %v413, %v1309
      %v1536 = vadd.f32 %v414, %v1311
      %v1537 = vadd.f32 %v415, %v1314
      %v1538 = vadd.f32 %v416, %v1316
      %v1539 = vadd.f32 %v417, %v1319
      %v1540 = vadd.f32 %v418, %v1321
      %v1541 = vadd.f32 %v419, %v1324
      %v1542 = vadd.f32 %v420, %v1326
      %v1543 = vadd.f32 %v421, %v1329
      %v1544 = vadd.f32 %v422, %v1331
      %v1545 = vadd.f32 %v423, %v1334
      %v1546 = vadd.f32 %v424, %v1336
      %v1547 = vadd.f32 %v425, %v1339
      %v1548 = vadd.f32 %v426, %v1341
      %v1549 = vadd.f32 %v427, %v1344
      %v1550 = vadd.f32 %v428, %v1346
      %v1551 = vadd.f32 %v429, %v1349
      %v1552 = vadd.f32 %v430, %v1351
      %v1553 = vadd.f32 %v431, %v1354
      %v1554 = vadd.f32 %v432, %v1356
      %v1555 = vadd.f32 %v433, %v1359
      %v1556 = vadd.f32 %v434, %v1361
      %v1557 = vadd.f32 %v435, %v1364
      %v1558 = vadd.f32 %v436, %v1366
      %v1559 = vadd.f32 %v437, %v1369
      %v1560 = vadd.f32 %v438, %v1371
      %v1561 = vadd.f32 %v439, %v1374
      %v1562 = vadd.f32 %v440, %v1376
      %v1563 = vadd.f32 %v441, %v1379
      %v1564 = vadd.f32 %v442, %v1381
      %v1565 = vadd.f32 %v443, %v1384
      %v1566 = vadd.f32 %v444, %v1386
      %v1567 = vadd.f32 %v445, %v1389
      %v1568 = vadd.f32 %v446, %v1391
      %v1569 = vadd.f32 %v447, %v1394
      %v1570 = vadd.f32 %v448, %v1396
      %v1571 = vadd.f32 %v449, %v1399
      %v1572 = vadd.f32 %v450, %v1401
      %v1573 = vadd.f32 %v451, %v1404
      %v1574 = vadd.f32 %v452, %v1406
      %v1575 = vadd.f32 %v453, %v1409
      %v1576 = vadd.f32 %v454, %v1411
      %v1577 = vadd.f32 %v455, %v1414
      %v1578 = vadd.f32 %v456, %v1416
      %v1579 = vadd.f32 %v457, %v1419
      %v1580 = vadd.f32 %v458, %v1421
      %v1581 = vadd.f32 %v459, %v1424
      %v1582 = vadd.f32 %v460, %v1426
      %v1583 = vadd.f32 %v461, %v1429
      %v1584 = vadd.f32 %v462, %v1431
      %v1585 = vadd.f32 %v463, %v1434
      %v1586 = vadd.f32 %v464, %v1436
      %v1587 = vadd.f32 %v465, %v1439
      %v1588 = vadd.f32 %v466, %v1441
      %v1589 = vadd.f32 %v467, %v1444
      %v1590 = vadd.f32 %v468, %v1446
      %v1591 = vadd.f32 %v469, %v1449
      %v1592 = vadd.f32 %v470, %v1451
      %v1593 = vadd.f32 %v471, %v1454
      %v1594 = vadd.f32 %v472, %v1456
      %v1595 = vadd.f32 %v473, %v1459
      %v1596 = vadd.f32 %v474, %v1461
      %v1597 = vadd.f32 %v475, %v1464
      %v1598 = vadd.f32 %v476, %v1466
      %v1599 = vadd.f32 %v477, %v1469
      %v1600 = vadd.f32 %v478, %v1471
      %1601 = vst [vmem:[#allocation2] sm:$0xff] %v1473
      %1602 = vst [vmem:[#allocation2 + $0x8] sm:$0xff] %v1474
      %1603 = vst [vmem:[#allocation2 + $0x10] sm:$0xff] %v1475
      %1604 = vst [vmem:[#allocation2 + $0x18] sm:$0xff] %v1476
      %1605 = vst [vmem:[#allocation2 + $0x20] sm:$0xff] %v1477
      %1606 = vst [vmem:[#allocation2 + $0x28] sm:$0xff] %v1478
      %1607 = vst [vmem:[#allocation2 + $0x30] sm:$0xff] %v1479
      %1608 = vst [vmem:[#allocation2 + $0x38] sm:$0xff] %v1480
      %1609 = vst [vmem:[#allocation2 + $0x40] sm:$0xff] %v1481
      %1610 = vst [vmem:[#allocation2 + $0x48] sm:$0xff] %v1482
      %1611 = vst [vmem:[#allocation2 + $0x50] sm:$0xff] %v1483
      %1612 = vst [vmem:[#allocation2 + $0x58] sm:$0xff] %v1484
      %1613 = vst [vmem:[#allocation2 + $0x60] sm:$0xff] %v1485
      %1614 = vst [vmem:[#allocation2 + $0x68] sm:$0xff] %v1486
      %1615 = vst [vmem:[#allocation2 + $0x70] sm:$0xff] %v1487
      %1616 = vst [vmem:[#allocation2 + $0x78] sm:$0xff] %v1488
      %1617 = vst [vmem:[#allocation2 + $0x80] sm:$0xff] %v1489
      %1618 = vst [vmem:[#allocation2 + $0x88] sm:$0xff] %v1490
      %1619 = vst [vmem:[#allocation2 + $0x90] sm:$0xff] %v1491
      %1620 = vst [vmem:[#allocation2 + $0x98] sm:$0xff] %v1492
      %1621 = vst [vmem:[#allocation2 + $0xa0] sm:$0xff] %v1493
      %1622 = vst [vmem:[#allocation2 + $0xa8] sm:$0xff] %v1494
      %1623 = vst [vmem:[#allocation2 + $0xb0] sm:$0xff] %v1495
      %1624 = vst [vmem:[#allocation2 + $0xb8] sm:$0xff] %v1496
      %1625 = vst [vmem:[#allocation2 + $0xc0] sm:$0xff] %v1497
      %1626 = vst [vmem:[#allocation2 + $0xc8] sm:$0xff] %v1498
      %1627 = vst [vmem:[#allocation2 + $0xd0] sm:$0xff] %v1499
      %1628 = vst [vmem:[#allocation2 + $0xd8] sm:$0xff] %v1500
      %1629 = vst [vmem:[#allocation2 + $0xe0] sm:$0xff] %v1501
      %1630 = vst [vmem:[#allocation2 + $0xe8] sm:$0xff] %v1502
      %1631 = vst [vmem:[#allocation2 + $0xf0] sm:$0xff] %v1503
      %1632 = vst [vmem:[#allocation2 + $0xf8] sm:$0xff] %v1504
      %1633 = vst [vmem:[#allocation2 + $0x100] sm:$0xff] %v1505
      %1634 = vst [vmem:[#allocation2 + $0x108] sm:$0xff] %v1506
      %1635 = vst [vmem:[#allocation2 + $0x110] sm:$0xff] %v1507
      %1636 = vst [vmem:[#allocation2 + $0x118] sm:$0xff] %v1508
      %1637 = vst [vmem:[#allocation2 + $0x120] sm:$0xff] %v1509
      %1638 = vst [vmem:[#allocation2 + $0x128] sm:$0xff] %v1510
      %1639 = vst [vmem:[#allocation2 + $0x130] sm:$0xff] %v1511
      %1640 = vst [vmem:[#allocation2 + $0x138] sm:$0xff] %v1512
      %1641 = vst [vmem:[#allocation2 + $0x140] sm:$0xff] %v1513
      %1642 = vst [vmem:[#allocation2 + $0x148] sm:$0xff] %v1514
      %1643 = vst [vmem:[#allocation2 + $0x150] sm:$0xff] %v1515
      %1644 = vst [vmem:[#allocation2 + $0x158] sm:$0xff] %v1516
      %1645 = vst [vmem:[#allocation2 + $0x160] sm:$0xff] %v1517
      %1646 = vst [vmem:[#allocation2 + $0x168] sm:$0xff] %v1518
      %1647 = vst [vmem:[#allocation2 + $0x170] sm:$0xff] %v1519
      %1648 = vst [vmem:[#allocation2 + $0x178] sm:$0xff] %v1520
      %1649 = vst [vmem:[#allocation2 + $0x180] sm:$0xff] %v1521
      %1650 = vst [vmem:[#allocation2 + $0x188] sm:$0xff] %v1522
      %1651 = vst [vmem:[#allocation2 + $0x190] sm:$0xff] %v1523
      %1652 = vst [vmem:[#allocation2 + $0x198] sm:$0xff] %v1524
      %1653 = vst [vmem:[#allocation2 + $0x1a0] sm:$0xff] %v1525
      %1654 = vst [vmem:[#allocation2 + $0x1a8] sm:$0xff] %v1526
      %1655 = vst [vmem:[#allocation2 + $0x1b0] sm:$0xff] %v1527
      %1656 = vst [vmem:[#allocation2 + $0x1b8] sm:$0xff] %v1528
      %1657 = vst [vmem:[#allocation2 + $0x1c0] sm:$0xff] %v1529
      %1658 = vst [vmem:[#allocation2 + $0x1c8] sm:$0xff] %v1530
      %1659 = vst [vmem:[#allocation2 + $0x1d0] sm:$0xff] %v1531
      %1660 = vst [vmem:[#allocation2 + $0x1d8] sm:$0xff] %v1532
      %1661 = vst [vmem:[#allocation2 + $0x1e0] sm:$0xff] %v1533
      %1662 = vst [vmem:[#allocation2 + $0x1e8] sm:$0xff] %v1534
      %1663 = vst [vmem:[#allocation2 + $0x1f0] sm:$0xff] %v1535
      %1664 = vst [vmem:[#allocation2 + $0x1f8] sm:$0xff] %v1536
      %1665 = vst [vmem:[#allocation2 + $0x200] sm:$0xff] %v1537
      %1666 = vst [vmem:[#allocation2 + $0x208] sm:$0xff] %v1538
      %1667 = vst [vmem:[#allocation2 + $0x210] sm:$0xff] %v1539
      %1668 = vst [vmem:[#allocation2 + $0x218] sm:$0xff] %v1540
      %1669 = vst [vmem:[#allocation2 + $0x220] sm:$0xff] %v1541
      %1670 = vst [vmem:[#allocation2 + $0x228] sm:$0xff] %v1542
      %1671 = vst [vmem:[#allocation2 + $0x230] sm:$0xff] %v1543
      %1672 = vst [vmem:[#allocation2 + $0x238] sm:$0xff] %v1544
      %1673 = vst [vmem:[#allocation2 + $0x240] sm:$0xff] %v1545
      %1674 = vst [vmem:[#allocation2 + $0x248] sm:$0xff] %v1546
      %1675 = vst [vmem:[#allocation2 + $0x250] sm:$0xff] %v1547
      %1676 = vst [vmem:[#allocation2 + $0x258] sm:$0xff] %v1548
      %1677 = vst [vmem:[#allocation2 + $0x260] sm:$0xff] %v1549
      %1678 = vst [vmem:[#allocation2 + $0x268] sm:$0xff] %v1550
      %1679 = vst [vmem:[#allocation2 + $0x270] sm:$0xff] %v1551
      %1680 = vst [vmem:[#allocation2 + $0x278] sm:$0xff] %v1552
      %1681 = vst [vmem:[#allocation2 + $0x280] sm:$0xff] %v1553
      %1682 = vst [vmem:[#allocation2 + $0x288] sm:$0xff] %v1554
      %1683 = vst [vmem:[#allocation2 + $0x290] sm:$0xff] %v1555
      %1684 = vst [vmem:[#allocation2 + $0x298] sm:$0xff] %v1556
      %1685 = vst [vmem:[#allocation2 + $0x2a0] sm:$0xff] %v1557
      %1686 = vst [vmem:[#allocation2 + $0x2a8] sm:$0xff] %v1558
      %1687 = vst [vmem:[#allocation2 + $0x2b0] sm:$0xff] %v1559
      %1688 = vst [vmem:[#allocation2 + $0x2b8] sm:$0xff] %v1560
      %1689 = vst [vmem:[#allocation2 + $0x2c0] sm:$0xff] %v1561
      %1690 = vst [vmem:[#allocation2 + $0x2c8] sm:$0xff] %v1562
      %1691 = vst [vmem:[#allocation2 + $0x2d0] sm:$0xff] %v1563
      %1692 = vst [vmem:[#allocation2 + $0x2d8] sm:$0xff] %v1564
      %1693 = vst [vmem:[#allocation2 + $0x2e0] sm:$0xff] %v1565
      %1694 = vst [vmem:[#allocation2 + $0x2e8] sm:$0xff] %v1566
      %1695 = vst [vmem:[#allocation2 + $0x2f0] sm:$0xff] %v1567
      %1696 = vst [vmem:[#allocation2 + $0x2f8] sm:$0xff] %v1568
      %1697 = vst [vmem:[#allocation2 + $0x300] sm:$0xff] %v1569
      %1698 = vst [vmem:[#allocation2 + $0x308] sm:$0xff] %v1570
      %1699 = vst [vmem:[#allocation2 + $0x310] sm:$0xff] %v1571
      %1700 = vst [vmem:[#allocation2 + $0x318] sm:$0xff] %v1572
      %1701 = vst [vmem:[#allocation2 + $0x320] sm:$0xff] %v1573
      %1702 = vst [vmem:[#allocation2 + $0x328] sm:$0xff] %v1574
      %1703 = vst [vmem:[#allocation2 + $0x330] sm:$0xff] %v1575
      %1704 = vst [vmem:[#allocation2 + $0x338] sm:$0xff] %v1576
      %1705 = vst [vmem:[#allocation2 + $0x340] sm:$0xff] %v1577
      %1706 = vst [vmem:[#allocation2 + $0x348] sm:$0xff] %v1578
      %1707 = vst [vmem:[#allocation2 + $0x350] sm:$0xff] %v1579
      %1708 = vst [vmem:[#allocation2 + $0x358] sm:$0xff] %v1580
      %1709 = vst [vmem:[#allocation2 + $0x360] sm:$0xff] %v1581
      %1710 = vst [vmem:[#allocation2 + $0x368] sm:$0xff] %v1582
      %1711 = vst [vmem:[#allocation2 + $0x370] sm:$0xff] %v1583
      %1712 = vst [vmem:[#allocation2 + $0x378] sm:$0xff] %v1584
      %1713 = vst [vmem:[#allocation2 + $0x380] sm:$0xff] %v1585
      %1714 = vst [vmem:[#allocation2 + $0x388] sm:$0xff] %v1586
      %1715 = vst [vmem:[#allocation2 + $0x390] sm:$0xff] %v1587
      %1716 = vst [vmem:[#allocation2 + $0x398] sm:$0xff] %v1588
      %1717 = vst [vmem:[#allocation2 + $0x3a0] sm:$0xff] %v1589
      %1718 = vst [vmem:[#allocation2 + $0x3a8] sm:$0xff] %v1590
      %1719 = vst [vmem:[#allocation2 + $0x3b0] sm:$0xff] %v1591
      %1720 = vst [vmem:[#allocation2 + $0x3b8] sm:$0xff] %v1592
      %1721 = vst [vmem:[#allocation2 + $0x3c0] sm:$0xff] %v1593
      %1722 = vst [vmem:[#allocation2 + $0x3c8] sm:$0xff] %v1594
      %1723 = vst [vmem:[#allocation2 + $0x3d0] sm:$0xff] %v1595
      %1724 = vst [vmem:[#allocation2 + $0x3d8] sm:$0xff] %v1596
      %1725 = vst [vmem:[#allocation2 + $0x3e0] sm:$0xff] %v1597
      %1726 = vst [vmem:[#allocation2 + $0x3e8] sm:$0xff] %v1598
      %1727 = vst [vmem:[#allocation2 + $0x3f0] sm:$0xff] %v1599
      %1728 = vst [vmem:[#allocation2 + $0x3f8] sm:$0xff] %v1600
      // Predicated region
      $region33: #{forward.8} parent=27 // pred_check
        %p1729 = pneg %p219
      $region34: #{forward.8} parent=27 // pred_check_branch
        %1731 = sbr.rel (%p1729) target = $region36
      $region35: #{forward.8} parent=27 // pred_region
        %v1732 = vld [vmem:[#allocation2] sm:$0xff]
        %v1733 = vld [vmem:[#allocation2 + $0x8] sm:$0xff]
        %v1734 = vld [vmem:[#allocation2 + $0x10] sm:$0xff]
        %v1735 = vld [vmem:[#allocation2 + $0x18] sm:$0xff]
        %v1736 = vld [vmem:[#allocation2 + $0x20] sm:$0xff]
        %v1737 = vld [vmem:[#allocation2 + $0x28] sm:$0xff]
        %v1738 = vld [vmem:[#allocation2 + $0x30] sm:$0xff]
        %v1739 = vld [vmem:[#allocation2 + $0x38] sm:$0xff]
        %v1740 = vld [vmem:[#allocation2 + $0x40] sm:$0xff]
        %v1741 = vld [vmem:[#allocation2 + $0x48] sm:$0xff]
        %v1742 = vld [vmem:[#allocation2 + $0x50] sm:$0xff]
        %v1743 = vld [vmem:[#allocation2 + $0x58] sm:$0xff]
        %v1744 = vld [vmem:[#allocation2 + $0x60] sm:$0xff]
        %v1745 = vld [vmem:[#allocation2 + $0x68] sm:$0xff]
        %v1746 = vld [vmem:[#allocation2 + $0x70] sm:$0xff]
        %v1747 = vld [vmem:[#allocation2 + $0x78] sm:$0xff]
        %v1748 = vld [vmem:[#allocation2 + $0x80] sm:$0xff]
        %v1749 = vld [vmem:[#allocation2 + $0x88] sm:$0xff]
        %v1750 = vld [vmem:[#allocation2 + $0x90] sm:$0xff]
        %v1751 = vld [vmem:[#allocation2 + $0x98] sm:$0xff]
        %v1752 = vld [vmem:[#allocation2 + $0xa0] sm:$0xff]
        %v1753 = vld [vmem:[#allocation2 + $0xa8] sm:$0xff]
        %v1754 = vld [vmem:[#allocation2 + $0xb0] sm:$0xff]
        %v1755 = vld [vmem:[#allocation2 + $0xb8] sm:$0xff]
        %v1756 = vld [vmem:[#allocation2 + $0xc0] sm:$0xff]
        %v1757 = vld [vmem:[#allocation2 + $0xc8] sm:$0xff]
        %v1758 = vld [vmem:[#allocation2 + $0xd0] sm:$0xff]
        %v1759 = vld [vmem:[#allocation2 + $0xd8] sm:$0xff]
        %v1760 = vld [vmem:[#allocation2 + $0xe0] sm:$0xff]
        %v1761 = vld [vmem:[#allocation2 + $0xe8] sm:$0xff]
        %v1762 = vld [vmem:[#allocation2 + $0xf0] sm:$0xff]
        %v1763 = vld [vmem:[#allocation2 + $0xf8] sm:$0xff]
        %v1764 = vld [vmem:[#allocation2 + $0x100] sm:$0xff]
        %v1765 = vld [vmem:[#allocation2 + $0x108] sm:$0xff]
        %v1766 = vld [vmem:[#allocation2 + $0x110] sm:$0xff]
        %v1767 = vld [vmem:[#allocation2 + $0x118] sm:$0xff]
        %v1768 = vld [vmem:[#allocation2 + $0x120] sm:$0xff]
        %v1769 = vld [vmem:[#allocation2 + $0x128] sm:$0xff]
        %v1770 = vld [vmem:[#allocation2 + $0x130] sm:$0xff]
        %v1771 = vld [vmem:[#allocation2 + $0x138] sm:$0xff]
        %v1772 = vld [vmem:[#allocation2 + $0x140] sm:$0xff]
        %v1773 = vld [vmem:[#allocation2 + $0x148] sm:$0xff]
        %v1774 = vld [vmem:[#allocation2 + $0x150] sm:$0xff]
        %v1775 = vld [vmem:[#allocation2 + $0x158] sm:$0xff]
        %v1776 = vld [vmem:[#allocation2 + $0x160] sm:$0xff]
        %v1777 = vld [vmem:[#allocation2 + $0x168] sm:$0xff]
        %v1778 = vld [vmem:[#allocation2 + $0x170] sm:$0xff]
        %v1779 = vld [vmem:[#allocation2 + $0x178] sm:$0xff]
        %v1780 = vld [vmem:[#allocation2 + $0x180] sm:$0xff]
        %v1781 = vld [vmem:[#allocation2 + $0x188] sm:$0xff]
        %v1782 = vld [vmem:[#allocation2 + $0x190] sm:$0xff]
        %v1783 = vld [vmem:[#allocation2 + $0x198] sm:$0xff]
        %v1784 = vld [vmem:[#allocation2 + $0x1a0] sm:$0xff]
        %v1785 = vld [vmem:[#allocation2 + $0x1a8] sm:$0xff]
        %v1786 = vld [vmem:[#allocation2 + $0x1b0] sm:$0xff]
        %v1787 = vld [vmem:[#allocation2 + $0x1b8] sm:$0xff]
        %v1788 = vld [vmem:[#allocation2 + $0x1c0] sm:$0xff]
        %v1789 = vld [vmem:[#allocation2 + $0x1c8] sm:$0xff]
        %v1790 = vld [vmem:[#allocation2 + $0x1d0] sm:$0xff]
        %v1791 = vld [vmem:[#allocation2 + $0x1d8] sm:$0xff]
        %v1792 = vld [vmem:[#allocation2 + $0x1e0] sm:$0xff]
        %v1793 = vld [vmem:[#allocation2 + $0x1e8] sm:$0xff]
        %v1794 = vld [vmem:[#allocation2 + $0x1f0] sm:$0xff]
        %v1795 = vld [vmem:[#allocation2 + $0x1f8] sm:$0xff]
        %v1796 = vld [vmem:[#allocation2 + $0x200] sm:$0xff]
        %v1797 = vld [vmem:[#allocation2 + $0x208] sm:$0xff]
        %v1798 = vld [vmem:[#allocation2 + $0x210] sm:$0xff]
        %v1799 = vld [vmem:[#allocation2 + $0x218] sm:$0xff]
        %v1800 = vld [vmem:[#allocation2 + $0x220] sm:$0xff]
        %v1801 = vld [vmem:[#allocation2 + $0x228] sm:$0xff]
        %v1802 = vld [vmem:[#allocation2 + $0x230] sm:$0xff]
        %v1803 = vld [vmem:[#allocation2 + $0x238] sm:$0xff]
        %v1804 = vld [vmem:[#allocation2 + $0x240] sm:$0xff]
        %v1805 = vld [vmem:[#allocation2 + $0x248] sm:$0xff]
        %v1806 = vld [vmem:[#allocation2 + $0x250] sm:$0xff]
        %v1807 = vld [vmem:[#allocation2 + $0x258] sm:$0xff]
        %v1808 = vld [vmem:[#allocation2 + $0x260] sm:$0xff]
        %v1809 = vld [vmem:[#allocation2 + $0x268] sm:$0xff]
        %v1810 = vld [vmem:[#allocation2 + $0x270] sm:$0xff]
        %v1811 = vld [vmem:[#allocation2 + $0x278] sm:$0xff]
        %v1812 = vld [vmem:[#allocation2 + $0x280] sm:$0xff]
        %v1813 = vld [vmem:[#allocation2 + $0x288] sm:$0xff]
        %v1814 = vld [vmem:[#allocation2 + $0x290] sm:$0xff]
        %v1815 = vld [vmem:[#allocation2 + $0x298] sm:$0xff]
        %v1816 = vld [vmem:[#allocation2 + $0x2a0] sm:$0xff]
        %v1817 = vld [vmem:[#allocation2 + $0x2a8] sm:$0xff]
        %v1818 = vld [vmem:[#allocation2 + $0x2b0] sm:$0xff]
        %v1819 = vld [vmem:[#allocation2 + $0x2b8] sm:$0xff]
        %v1820 = vld [vmem:[#allocation2 + $0x2c0] sm:$0xff]
        %v1821 = vld [vmem:[#allocation2 + $0x2c8] sm:$0xff]
        %v1822 = vld [vmem:[#allocation2 + $0x2d0] sm:$0xff]
        %v1823 = vld [vmem:[#allocation2 + $0x2d8] sm:$0xff]
        %v1824 = vld [vmem:[#allocation2 + $0x2e0] sm:$0xff]
        %v1825 = vld [vmem:[#allocation2 + $0x2e8] sm:$0xff]
        %v1826 = vld [vmem:[#allocation2 + $0x2f0] sm:$0xff]
        %v1827 = vld [vmem:[#allocation2 + $0x2f8] sm:$0xff]
        %v1828 = vld [vmem:[#allocation2 + $0x300] sm:$0xff]
        %v1829 = vld [vmem:[#allocation2 + $0x308] sm:$0xff]
        %v1830 = vld [vmem:[#allocation2 + $0x310] sm:$0xff]
        %v1831 = vld [vmem:[#allocation2 + $0x318] sm:$0xff]
        %v1832 = vld [vmem:[#allocation2 + $0x320] sm:$0xff]
        %v1833 = vld [vmem:[#allocation2 + $0x328] sm:$0xff]
        %v1834 = vld [vmem:[#allocation2 + $0x330] sm:$0xff]
        %v1835 = vld [vmem:[#allocation2 + $0x338] sm:$0xff]
        %v1836 = vld [vmem:[#allocation2 + $0x340] sm:$0xff]
        %v1837 = vld [vmem:[#allocation2 + $0x348] sm:$0xff]
        %v1838 = vld [vmem:[#allocation2 + $0x350] sm:$0xff]
        %v1839 = vld [vmem:[#allocation2 + $0x358] sm:$0xff]
        %v1840 = vld [vmem:[#allocation2 + $0x360] sm:$0xff]
        %v1841 = vld [vmem:[#allocation2 + $0x368] sm:$0xff]
        %v1842 = vld [vmem:[#allocation2 + $0x370] sm:$0xff]
        %v1843 = vld [vmem:[#allocation2 + $0x378] sm:$0xff]
        %v1844 = vld [vmem:[#allocation2 + $0x380] sm:$0xff]
        %v1845 = vld [vmem:[#allocation2 + $0x388] sm:$0xff]
        %v1846 = vld [vmem:[#allocation2 + $0x390] sm:$0xff]
        %v1847 = vld [vmem:[#allocation2 + $0x398] sm:$0xff]
        %v1848 = vld [vmem:[#allocation2 + $0x3a0] sm:$0xff]
        %v1849 = vld [vmem:[#allocation2 + $0x3a8] sm:$0xff]
        %v1850 = vld [vmem:[#allocation2 + $0x3b0] sm:$0xff]
        %v1851 = vld [vmem:[#allocation2 + $0x3b8] sm:$0xff]
        %v1852 = vld [vmem:[#allocation2 + $0x3c0] sm:$0xff]
        %v1853 = vld [vmem:[#allocation2 + $0x3c8] sm:$0xff]
        %v1854 = vld [vmem:[#allocation2 + $0x3d0] sm:$0xff]
        %v1855 = vld [vmem:[#allocation2 + $0x3d8] sm:$0xff]
        %v1856 = vld [vmem:[#allocation2 + $0x3e0] sm:$0xff]
        %v1857 = vld [vmem:[#allocation2 + $0x3e8] sm:$0xff]
        %v1858 = vld [vmem:[#allocation2 + $0x3f0] sm:$0xff]
        %v1859 = vld [vmem:[#allocation2 + $0x3f8] sm:$0xff]
        %vm1860 = vcmp.ge.f32.partialorder %v1732, 0.0
        %vm1861 = vcmp.ge.f32.partialorder %v1733, 0.0
        %vm1862 = vcmp.ge.f32.partialorder %v1734, 0.0
        %vm1863 = vcmp.ge.f32.partialorder %v1735, 0.0
        %vm1864 = vcmp.ge.f32.partialorder %v1736, 0.0
        %vm1865 = vcmp.ge.f32.partialorder %v1737, 0.0
        %vm1866 = vcmp.ge.f32.partialorder %v1738, 0.0
        %vm1867 = vcmp.ge.f32.partialorder %v1739, 0.0
        %vm1868 = vcmp.ge.f32.partialorder %v1740, 0.0
        %vm1869 = vcmp.ge.f32.partialorder %v1741, 0.0
        %vm1870 = vcmp.ge.f32.partialorder %v1742, 0.0
        %vm1871 = vcmp.ge.f32.partialorder %v1743, 0.0
        %vm1872 = vcmp.ge.f32.partialorder %v1744, 0.0
        %vm1873 = vcmp.ge.f32.partialorder %v1745, 0.0
        %vm1874 = vcmp.ge.f32.partialorder %v1746, 0.0
        %vm1875 = vcmp.ge.f32.partialorder %v1747, 0.0
        %vm1876 = vcmp.ge.f32.partialorder %v1748, 0.0
        %vm1877 = vcmp.ge.f32.partialorder %v1749, 0.0
        %vm1878 = vcmp.ge.f32.partialorder %v1750, 0.0
        %vm1879 = vcmp.ge.f32.partialorder %v1751, 0.0
        %vm1880 = vcmp.ge.f32.partialorder %v1752, 0.0
        %vm1881 = vcmp.ge.f32.partialorder %v1753, 0.0
        %vm1882 = vcmp.ge.f32.partialorder %v1754, 0.0
        %vm1883 = vcmp.ge.f32.partialorder %v1755, 0.0
        %vm1884 = vcmp.ge.f32.partialorder %v1756, 0.0
        %vm1885 = vcmp.ge.f32.partialorder %v1757, 0.0
        %vm1886 = vcmp.ge.f32.partialorder %v1758, 0.0
        %vm1887 = vcmp.ge.f32.partialorder %v1759, 0.0
        %vm1888 = vcmp.ge.f32.partialorder %v1760, 0.0
        %vm1889 = vcmp.ge.f32.partialorder %v1761, 0.0
        %vm1890 = vcmp.ge.f32.partialorder %v1762, 0.0
        %vm1891 = vcmp.ge.f32.partialorder %v1763, 0.0
        %vm1892 = vcmp.ge.f32.partialorder %v1764, 0.0
        %vm1893 = vcmp.ge.f32.partialorder %v1765, 0.0
        %vm1894 = vcmp.ge.f32.partialorder %v1766, 0.0
        %vm1895 = vcmp.ge.f32.partialorder %v1767, 0.0
        %vm1896 = vcmp.ge.f32.partialorder %v1768, 0.0
        %vm1897 = vcmp.ge.f32.partialorder %v1769, 0.0
        %vm1898 = vcmp.ge.f32.partialorder %v1770, 0.0
        %vm1899 = vcmp.ge.f32.partialorder %v1771, 0.0
        %vm1900 = vcmp.ge.f32.partialorder %v1772, 0.0
        %vm1901 = vcmp.ge.f32.partialorder %v1773, 0.0
        %vm1902 = vcmp.ge.f32.partialorder %v1774, 0.0
        %vm1903 = vcmp.ge.f32.partialorder %v1775, 0.0
        %vm1904 = vcmp.ge.f32.partialorder %v1776, 0.0
        %vm1905 = vcmp.ge.f32.partialorder %v1777, 0.0
        %vm1906 = vcmp.ge.f32.partialorder %v1778, 0.0
        %vm1907 = vcmp.ge.f32.partialorder %v1779, 0.0
        %vm1908 = vcmp.ge.f32.partialorder %v1780, 0.0
        %vm1909 = vcmp.ge.f32.partialorder %v1781, 0.0
        %vm1910 = vcmp.ge.f32.partialorder %v1782, 0.0
        %vm1911 = vcmp.ge.f32.partialorder %v1783, 0.0
        %vm1912 = vcmp.ge.f32.partialorder %v1784, 0.0
        %vm1913 = vcmp.ge.f32.partialorder %v1785, 0.0
        %vm1914 = vcmp.ge.f32.partialorder %v1786, 0.0
        %vm1915 = vcmp.ge.f32.partialorder %v1787, 0.0
        %vm1916 = vcmp.ge.f32.partialorder %v1788, 0.0
        %vm1917 = vcmp.ge.f32.partialorder %v1789, 0.0
        %vm1918 = vcmp.ge.f32.partialorder %v1790, 0.0
        %vm1919 = vcmp.ge.f32.partialorder %v1791, 0.0
        %vm1920 = vcmp.ge.f32.partialorder %v1792, 0.0
        %vm1921 = vcmp.ge.f32.partialorder %v1793, 0.0
        %vm1922 = vcmp.ge.f32.partialorder %v1794, 0.0
        %vm1923 = vcmp.ge.f32.partialorder %v1795, 0.0
        %vm1924 = vcmp.ge.f32.partialorder %v1796, 0.0
        %vm1925 = vcmp.ge.f32.partialorder %v1797, 0.0
        %vm1926 = vcmp.ge.f32.partialorder %v1798, 0.0
        %vm1927 = vcmp.ge.f32.partialorder %v1799, 0.0
        %vm1928 = vcmp.ge.f32.partialorder %v1800, 0.0
        %vm1929 = vcmp.ge.f32.partialorder %v1801, 0.0
        %vm1930 = vcmp.ge.f32.partialorder %v1802, 0.0
        %vm1931 = vcmp.ge.f32.partialorder %v1803, 0.0
        %vm1932 = vcmp.ge.f32.partialorder %v1804, 0.0
        %vm1933 = vcmp.ge.f32.partialorder %v1805, 0.0
        %vm1934 = vcmp.ge.f32.partialorder %v1806, 0.0
        %vm1935 = vcmp.ge.f32.partialorder %v1807, 0.0
        %vm1936 = vcmp.ge.f32.partialorder %v1808, 0.0
        %vm1937 = vcmp.ge.f32.partialorder %v1809, 0.0
        %vm1938 = vcmp.ge.f32.partialorder %v1810, 0.0
        %vm1939 = vcmp.ge.f32.partialorder %v1811, 0.0
        %vm1940 = vcmp.ge.f32.partialorder %v1812, 0.0
        %vm1941 = vcmp.ge.f32.partialorder %v1813, 0.0
        %vm1942 = vcmp.ge.f32.partialorder %v1814, 0.0
        %vm1943 = vcmp.ge.f32.partialorder %v1815, 0.0
        %vm1944 = vcmp.ge.f32.partialorder %v1816, 0.0
        %vm1945 = vcmp.ge.f32.partialorder %v1817, 0.0
        %vm1946 = vcmp.ge.f32.partialorder %v1818, 0.0
        %vm1947 = vcmp.ge.f32.partialorder %v1819, 0.0
        %vm1948 = vcmp.ge.f32.partialorder %v1820, 0.0
        %vm1949 = vcmp.ge.f32.partialorder %v1821, 0.0
        %vm1950 = vcmp.ge.f32.partialorder %v1822, 0.0
        %vm1951 = vcmp.ge.f32.partialorder %v1823, 0.0
        %vm1952 = vcmp.ge.f32.partialorder %v1824, 0.0
        %vm1953 = vcmp.ge.f32.partialorder %v1825, 0.0
        %vm1954 = vcmp.ge.f32.partialorder %v1826, 0.0
        %vm1955 = vcmp.ge.f32.partialorder %v1827, 0.0
        %vm1956 = vcmp.ge.f32.partialorder %v1828, 0.0
        %vm1957 = vcmp.ge.f32.partialorder %v1829, 0.0
        %vm1958 = vcmp.ge.f32.partialorder %v1830, 0.0
        %vm1959 = vcmp.ge.f32.partialorder %v1831, 0.0
        %vm1960 = vcmp.ge.f32.partialorder %v1832, 0.0
        %vm1961 = vcmp.ge.f32.partialorder %v1833, 0.0
        %vm1962 = vcmp.ge.f32.partialorder %v1834, 0.0
        %vm1963 = vcmp.ge.f32.partialorder %v1835, 0.0
        %vm1964 = vcmp.ge.f32.partialorder %v1836, 0.0
        %vm1965 = vcmp.ge.f32.partialorder %v1837, 0.0
        %vm1966 = vcmp.ge.f32.partialorder %v1838, 0.0
        %vm1967 = vcmp.ge.f32.partialorder %v1839, 0.0
        %vm1968 = vcmp.ge.f32.partialorder %v1840, 0.0
        %vm1969 = vcmp.ge.f32.partialorder %v1841, 0.0
        %vm1970 = vcmp.ge.f32.partialorder %v1842, 0.0
        %vm1971 = vcmp.ge.f32.partialorder %v1843, 0.0
        %vm1972 = vcmp.ge.f32.partialorder %v1844, 0.0
        %vm1973 = vcmp.ge.f32.partialorder %v1845, 0.0
        %vm1974 = vcmp.ge.f32.partialorder %v1846, 0.0
        %vm1975 = vcmp.ge.f32.partialorder %v1847, 0.0
        %vm1976 = vcmp.ge.f32.partialorder %v1848, 0.0
        %vm1977 = vcmp.ge.f32.partialorder %v1849, 0.0
        %vm1978 = vcmp.ge.f32.partialorder %v1850, 0.0
        %vm1979 = vcmp.ge.f32.partialorder %v1851, 0.0
        %vm1980 = vcmp.ge.f32.partialorder %v1852, 0.0
        %vm1981 = vcmp.ge.f32.partialorder %v1853, 0.0
        %vm1982 = vcmp.ge.f32.partialorder %v1854, 0.0
        %vm1983 = vcmp.ge.f32.partialorder %v1855, 0.0
        %vm1984 = vcmp.ge.f32.partialorder %v1856, 0.0
        %vm1985 = vcmp.ge.f32.partialorder %v1857, 0.0
        %vm1986 = vcmp.ge.f32.partialorder %v1858, 0.0
        %vm1987 = vcmp.ge.f32.partialorder %v1859, 0.0
        %v1988 = vmul.f32 %v1732, 0.2
        %v1989 = vmul.f32 %v1733, 0.2
        %v1990 = vmul.f32 %v1734, 0.2
        %v1991 = vmul.f32 %v1735, 0.2
        %v1992 = vmul.f32 %v1736, 0.2
        %v1993 = vmul.f32 %v1737, 0.2
        %v1994 = vmul.f32 %v1738, 0.2
        %v1995 = vmul.f32 %v1739, 0.2
        %v1996 = vmul.f32 %v1740, 0.2
        %v1997 = vmul.f32 %v1741, 0.2
        %v1998 = vmul.f32 %v1742, 0.2
        %v1999 = vmul.f32 %v1743, 0.2
        %v2000 = vmul.f32 %v1744, 0.2
        %v2001 = vmul.f32 %v1745, 0.2
        %v2002 = vmul.f32 %v1746, 0.2
        %v2003 = vmul.f32 %v1747, 0.2
        %v2004 = vmul.f32 %v1748, 0.2
        %v2005 = vmul.f32 %v1749, 0.2
        %v2006 = vmul.f32 %v1750, 0.2
        %v2007 = vmul.f32 %v1751, 0.2
        %v2008 = vmul.f32 %v1752, 0.2
        %v2009 = vmul.f32 %v1753, 0.2
        %v2010 = vmul.f32 %v1754, 0.2
        %v2011 = vmul.f32 %v1755, 0.2
        %v2012 = vmul.f32 %v1756, 0.2
        %v2013 = vmul.f32 %v1757, 0.2
        %v2014 = vmul.f32 %v1758, 0.2
        %v2015 = vmul.f32 %v1759, 0.2
        %v2016 = vmul.f32 %v1760, 0.2
        %v2017 = vmul.f32 %v1761, 0.2
        %v2018 = vmul.f32 %v1762, 0.2
        %v2019 = vmul.f32 %v1763, 0.2
        %v2020 = vmul.f32 %v1764, 0.2
        %v2021 = vmul.f32 %v1765, 0.2
        %v2022 = vmul.f32 %v1766, 0.2
        %v2023 = vmul.f32 %v1767, 0.2
        %v2024 = vmul.f32 %v1768, 0.2
        %v2025 = vmul.f32 %v1769, 0.2
        %v2026 = vmul.f32 %v1770, 0.2
        %v2027 = vmul.f32 %v1771, 0.2
        %v2028 = vmul.f32 %v1772, 0.2
        %v2029 = vmul.f32 %v1773, 0.2
        %v2030 = vmul.f32 %v1774, 0.2
        %v2031 = vmul.f32 %v1775, 0.2
        %v2032 = vmul.f32 %v1776, 0.2
        %v2033 = vmul.f32 %v1777, 0.2
        %v2034 = vmul.f32 %v1778, 0.2
        %v2035 = vmul.f32 %v1779, 0.2
        %v2036 = vmul.f32 %v1780, 0.2
        %v2037 = vmul.f32 %v1781, 0.2
        %v2038 = vmul.f32 %v1782, 0.2
        %v2039 = vmul.f32 %v1783, 0.2
        %v2040 = vmul.f32 %v1784, 0.2
        %v2041 = vmul.f32 %v1785, 0.2
        %v2042 = vmul.f32 %v1786, 0.2
        %v2043 = vmul.f32 %v1787, 0.2
        %v2044 = vmul.f32 %v1788, 0.2
        %v2045 = vmul.f32 %v1789, 0.2
        %v2046 = vmul.f32 %v1790, 0.2
        %v2047 = vmul.f32 %v1791, 0.2
        %v2048 = vmul.f32 %v1792, 0.2
        %v2049 = vmul.f32 %v1793, 0.2
        %v2050 = vmul.f32 %v1794, 0.2
        %v2051 = vmul.f32 %v1795, 0.2
        %v2052 = vmul.f32 %v1796, 0.2
        %v2053 = vmul.f32 %v1797, 0.2
        %v2054 = vmul.f32 %v1798, 0.2
        %v2055 = vmul.f32 %v1799, 0.2
        %v2056 = vmul.f32 %v1800, 0.2
        %v2057 = vmul.f32 %v1801, 0.2
        %v2058 = vmul.f32 %v1802, 0.2
        %v2059 = vmul.f32 %v1803, 0.2
        %v2060 = vmul.f32 %v1804, 0.2
        %v2061 = vmul.f32 %v1805, 0.2
        %v2062 = vmul.f32 %v1806, 0.2
        %v2063 = vmul.f32 %v1807, 0.2
        %v2064 = vmul.f32 %v1808, 0.2
        %v2065 = vmul.f32 %v1809, 0.2
        %v2066 = vmul.f32 %v1810, 0.2
        %v2067 = vmul.f32 %v1811, 0.2
        %v2068 = vmul.f32 %v1812, 0.2
        %v2069 = vmul.f32 %v1813, 0.2
        %v2070 = vmul.f32 %v1814, 0.2
        %v2071 = vmul.f32 %v1815, 0.2
        %v2072 = vmul.f32 %v1816, 0.2
        %v2073 = vmul.f32 %v1817, 0.2
        %v2074 = vmul.f32 %v1818, 0.2
        %v2075 = vmul.f32 %v1819, 0.2
        %v2076 = vmul.f32 %v1820, 0.2
        %v2077 = vmul.f32 %v1821, 0.2
        %v2078 = vmul.f32 %v1822, 0.2
        %v2079 = vmul.f32 %v1823, 0.2
        %v2080 = vmul.f32 %v1824, 0.2
        %v2081 = vmul.f32 %v1825, 0.2
        %v2082 = vmul.f32 %v1826, 0.2
        %v2083 = vmul.f32 %v1827, 0.2
        %v2084 = vmul.f32 %v1828, 0.2
        %v2085 = vmul.f32 %v1829, 0.2
        %v2086 = vmul.f32 %v1830, 0.2
        %v2087 = vmul.f32 %v1831, 0.2
        %v2088 = vmul.f32 %v1832, 0.2
        %v2089 = vmul.f32 %v1833, 0.2
        %v2090 = vmul.f32 %v1834, 0.2
        %v2091 = vmul.f32 %v1835, 0.2
        %v2092 = vmul.f32 %v1836, 0.2
        %v2093 = vmul.f32 %v1837, 0.2
        %v2094 = vmul.f32 %v1838, 0.2
        %v2095 = vmul.f32 %v1839, 0.2
        %v2096 = vmul.f32 %v1840, 0.2
        %v2097 = vmul.f32 %v1841, 0.2
        %v2098 = vmul.f32 %v1842, 0.2
        %v2099 = vmul.f32 %v1843, 0.2
        %v2100 = vmul.f32 %v1844, 0.2
        %v2101 = vmul.f32 %v1845, 0.2
        %v2102 = vmul.f32 %v1846, 0.2
        %v2103 = vmul.f32 %v1847, 0.2
        %v2104 = vmul.f32 %v1848, 0.2
        %v2105 = vmul.f32 %v1849, 0.2
        %v2106 = vmul.f32 %v1850, 0.2
        %v2107 = vmul.f32 %v1851, 0.2
        %v2108 = vmul.f32 %v1852, 0.2
        %v2109 = vmul.f32 %v1853, 0.2
        %v2110 = vmul.f32 %v1854, 0.2
        %v2111 = vmul.f32 %v1855, 0.2
        %v2112 = vmul.f32 %v1856, 0.2
        %v2113 = vmul.f32 %v1857, 0.2
        %v2114 = vmul.f32 %v1858, 0.2
        %v2115 = vmul.f32 %v1859, 0.2
        %v2116 = vsel %vm1860, %v1732, %v1988
        %v2117 = vsel %vm1861, %v1733, %v1989
        %v2118 = vsel %vm1862, %v1734, %v1990
        %v2119 = vsel %vm1863, %v1735, %v1991
        %v2120 = vsel %vm1864, %v1736, %v1992
        %v2121 = vsel %vm1865, %v1737, %v1993
        %v2122 = vsel %vm1866, %v1738, %v1994
        %v2123 = vsel %vm1867, %v1739, %v1995
        %v2124 = vsel %vm1868, %v1740, %v1996
        %v2125 = vsel %vm1869, %v1741, %v1997
        %v2126 = vsel %vm1870, %v1742, %v1998
        %v2127 = vsel %vm1871, %v1743, %v1999
        %v2128 = vsel %vm1872, %v1744, %v2000
        %v2129 = vsel %vm1873, %v1745, %v2001
        %v2130 = vsel %vm1874, %v1746, %v2002
        %v2131 = vsel %vm1875, %v1747, %v2003
        %v2132 = vsel %vm1876, %v1748, %v2004
        %v2133 = vsel %vm1877, %v1749, %v2005
        %v2134 = vsel %vm1878, %v1750, %v2006
        %v2135 = vsel %vm1879, %v1751, %v2007
        %v2136 = vsel %vm1880, %v1752, %v2008
        %v2137 = vsel %vm1881, %v1753, %v2009
        %v2138 = vsel %vm1882, %v1754, %v2010
        %v2139 = vsel %vm1883, %v1755, %v2011
        %v2140 = vsel %vm1884, %v1756, %v2012
        %v2141 = vsel %vm1885, %v1757, %v2013
        %v2142 = vsel %vm1886, %v1758, %v2014
        %v2143 = vsel %vm1887, %v1759, %v2015
        %v2144 = vsel %vm1888, %v1760, %v2016
        %v2145 = vsel %vm1889, %v1761, %v2017
        %v2146 = vsel %vm1890, %v1762, %v2018
        %v2147 = vsel %vm1891, %v1763, %v2019
        %v2148 = vsel %vm1892, %v1764, %v2020
        %v2149 = vsel %vm1893, %v1765, %v2021
        %v2150 = vsel %vm1894, %v1766, %v2022
        %v2151 = vsel %vm1895, %v1767, %v2023
        %v2152 = vsel %vm1896, %v1768, %v2024
        %v2153 = vsel %vm1897, %v1769, %v2025
        %v2154 = vsel %vm1898, %v1770, %v2026
        %v2155 = vsel %vm1899, %v1771, %v2027
        %v2156 = vsel %vm1900, %v1772, %v2028
        %v2157 = vsel %vm1901, %v1773, %v2029
        %v2158 = vsel %vm1902, %v1774, %v2030
        %v2159 = vsel %vm1903, %v1775, %v2031
        %v2160 = vsel %vm1904, %v1776, %v2032
        %v2161 = vsel %vm1905, %v1777, %v2033
        %v2162 = vsel %vm1906, %v1778, %v2034
        %v2163 = vsel %vm1907, %v1779, %v2035
        %v2164 = vsel %vm1908, %v1780, %v2036
        %v2165 = vsel %vm1909, %v1781, %v2037
        %v2166 = vsel %vm1910, %v1782, %v2038
        %v2167 = vsel %vm1911, %v1783, %v2039
        %v2168 = vsel %vm1912, %v1784, %v2040
        %v2169 = vsel %vm1913, %v1785, %v2041
        %v2170 = vsel %vm1914, %v1786, %v2042
        %v2171 = vsel %vm1915, %v1787, %v2043
        %v2172 = vsel %vm1916, %v1788, %v2044
        %v2173 = vsel %vm1917, %v1789, %v2045
        %v2174 = vsel %vm1918, %v1790, %v2046
        %v2175 = vsel %vm1919, %v1791, %v2047
        %v2176 = vsel %vm1920, %v1792, %v2048
        %v2177 = vsel %vm1921, %v1793, %v2049
        %v2178 = vsel %vm1922, %v1794, %v2050
        %v2179 = vsel %vm1923, %v1795, %v2051
        %v2180 = vsel %vm1924, %v1796, %v2052
        %v2181 = vsel %vm1925, %v1797, %v2053
        %v2182 = vsel %vm1926, %v1798, %v2054
        %v2183 = vsel %vm1927, %v1799, %v2055
        %v2184 = vsel %vm1928, %v1800, %v2056
        %v2185 = vsel %vm1929, %v1801, %v2057
        %v2186 = vsel %vm1930, %v1802, %v2058
        %v2187 = vsel %vm1931, %v1803, %v2059
        %v2188 = vsel %vm1932, %v1804, %v2060
        %v2189 = vsel %vm1933, %v1805, %v2061
        %v2190 = vsel %vm1934, %v1806, %v2062
        %v2191 = vsel %vm1935, %v1807, %v2063
        %v2192 = vsel %vm1936, %v1808, %v2064
        %v2193 = vsel %vm1937, %v1809, %v2065
        %v2194 = vsel %vm1938, %v1810, %v2066
        %v2195 = vsel %vm1939, %v1811, %v2067
        %v2196 = vsel %vm1940, %v1812, %v2068
        %v2197 = vsel %vm1941, %v1813, %v2069
        %v2198 = vsel %vm1942, %v1814, %v2070
        %v2199 = vsel %vm1943, %v1815, %v2071
        %v2200 = vsel %vm1944, %v1816, %v2072
        %v2201 = vsel %vm1945, %v1817, %v2073
        %v2202 = vsel %vm1946, %v1818, %v2074
        %v2203 = vsel %vm1947, %v1819, %v2075
        %v2204 = vsel %vm1948, %v1820, %v2076
        %v2205 = vsel %vm1949, %v1821, %v2077
        %v2206 = vsel %vm1950, %v1822, %v2078
        %v2207 = vsel %vm1951, %v1823, %v2079
        %v2208 = vsel %vm1952, %v1824, %v2080
        %v2209 = vsel %vm1953, %v1825, %v2081
        %v2210 = vsel %vm1954, %v1826, %v2082
        %v2211 = vsel %vm1955, %v1827, %v2083
        %v2212 = vsel %vm1956, %v1828, %v2084
        %v2213 = vsel %vm1957, %v1829, %v2085
        %v2214 = vsel %vm1958, %v1830, %v2086
        %v2215 = vsel %vm1959, %v1831, %v2087
        %v2216 = vsel %vm1960, %v1832, %v2088
        %v2217 = vsel %vm1961, %v1833, %v2089
        %v2218 = vsel %vm1962, %v1834, %v2090
        %v2219 = vsel %vm1963, %v1835, %v2091
        %v2220 = vsel %vm1964, %v1836, %v2092
        %v2221 = vsel %vm1965, %v1837, %v2093
        %v2222 = vsel %vm1966, %v1838, %v2094
        %v2223 = vsel %vm1967, %v1839, %v2095
        %v2224 = vsel %vm1968, %v1840, %v2096
        %v2225 = vsel %vm1969, %v1841, %v2097
        %v2226 = vsel %vm1970, %v1842, %v2098
        %v2227 = vsel %vm1971, %v1843, %v2099
        %v2228 = vsel %vm1972, %v1844, %v2100
        %v2229 = vsel %vm1973, %v1845, %v2101
        %v2230 = vsel %vm1974, %v1846, %v2102
        %v2231 = vsel %vm1975, %v1847, %v2103
        %v2232 = vsel %vm1976, %v1848, %v2104
        %v2233 = vsel %vm1977, %v1849, %v2105
        %v2234 = vsel %vm1978, %v1850, %v2106
        %v2235 = vsel %vm1979, %v1851, %v2107
        %v2236 = vsel %vm1980, %v1852, %v2108
        %v2237 = vsel %vm1981, %v1853, %v2109
        %v2238 = vsel %vm1982, %v1854, %v2110
        %v2239 = vsel %vm1983, %v1855, %v2111
        %v2240 = vsel %vm1984, %v1856, %v2112
        %v2241 = vsel %vm1985, %v1857, %v2113
        %v2242 = vsel %vm1986, %v1858, %v2114
        %v2243 = vsel %vm1987, %v1859, %v2115
        %v2244 = vpack.c.bf16 %v2116, %v2116
        %v2245 = vpack.c.bf16 %v2117, %v2117
        %v2246 = vpack.c.bf16 %v2118, %v2118
        %v2247 = vpack.c.bf16 %v2119, %v2119
        %v2248 = vpack.c.bf16 %v2120, %v2120
        %v2249 = vpack.c.bf16 %v2121, %v2121
        %v2250 = vpack.c.bf16 %v2122, %v2122
        %v2251 = vpack.c.bf16 %v2123, %v2123
        %v2252 = vpack.c.bf16 %v2124, %v2124
        %v2253 = vpack.c.bf16 %v2125, %v2125
        %v2254 = vpack.c.bf16 %v2126, %v2126
        %v2255 = vpack.c.bf16 %v2127, %v2127
        %v2256 = vpack.c.bf16 %v2128, %v2128
        %v2257 = vpack.c.bf16 %v2129, %v2129
        %v2258 = vpack.c.bf16 %v2130, %v2130
        %v2259 = vpack.c.bf16 %v2131, %v2131
        %v2260 = vpack.c.bf16 %v2132, %v2132
        %v2261 = vpack.c.bf16 %v2133, %v2133
        %v2262 = vpack.c.bf16 %v2134, %v2134
        %v2263 = vpack.c.bf16 %v2135, %v2135
        %v2264 = vpack.c.bf16 %v2136, %v2136
        %v2265 = vpack.c.bf16 %v2137, %v2137
        %v2266 = vpack.c.bf16 %v2138, %v2138
        %v2267 = vpack.c.bf16 %v2139, %v2139
        %v2268 = vpack.c.bf16 %v2140, %v2140
        %v2269 = vpack.c.bf16 %v2141, %v2141
        %v2270 = vpack.c.bf16 %v2142, %v2142
        %v2271 = vpack.c.bf16 %v2143, %v2143
        %v2272 = vpack.c.bf16 %v2144, %v2144
        %v2273 = vpack.c.bf16 %v2145, %v2145
        %v2274 = vpack.c.bf16 %v2146, %v2146
        %v2275 = vpack.c.bf16 %v2147, %v2147
        %v2276 = vpack.c.bf16 %v2148, %v2148
        %v2277 = vpack.c.bf16 %v2149, %v2149
        %v2278 = vpack.c.bf16 %v2150, %v2150
        %v2279 = vpack.c.bf16 %v2151, %v2151
        %v2280 = vpack.c.bf16 %v2152, %v2152
        %v2281 = vpack.c.bf16 %v2153, %v2153
        %v2282 = vpack.c.bf16 %v2154, %v2154
        %v2283 = vpack.c.bf16 %v2155, %v2155
        %v2284 = vpack.c.bf16 %v2156, %v2156
        %v2285 = vpack.c.bf16 %v2157, %v2157
        %v2286 = vpack.c.bf16 %v2158, %v2158
        %v2287 = vpack.c.bf16 %v2159, %v2159
        %v2288 = vpack.c.bf16 %v2160, %v2160
        %v2289 = vpack.c.bf16 %v2161, %v2161
        %v2290 = vpack.c.bf16 %v2162, %v2162
        %v2291 = vpack.c.bf16 %v2163, %v2163
        %v2292 = vpack.c.bf16 %v2164, %v2164
        %v2293 = vpack.c.bf16 %v2165, %v2165
        %v2294 = vpack.c.bf16 %v2166, %v2166
        %v2295 = vpack.c.bf16 %v2167, %v2167
        %v2296 = vpack.c.bf16 %v2168, %v2168
        %v2297 = vpack.c.bf16 %v2169, %v2169
        %v2298 = vpack.c.bf16 %v2170, %v2170
        %v2299 = vpack.c.bf16 %v2171, %v2171
        %v2300 = vpack.c.bf16 %v2172, %v2172
        %v2301 = vpack.c.bf16 %v2173, %v2173
        %v2302 = vpack.c.bf16 %v2174, %v2174
        %v2303 = vpack.c.bf16 %v2175, %v2175
        %v2304 = vpack.c.bf16 %v2176, %v2176
        %v2305 = vpack.c.bf16 %v2177, %v2177
        %v2306 = vpack.c.bf16 %v2178, %v2178
        %v2307 = vpack.c.bf16 %v2179, %v2179
        %v2308 = vpack.c.bf16 %v2180, %v2180
        %v2309 = vpack.c.bf16 %v2181, %v2181
        %v2310 = vpack.c.bf16 %v2182, %v2182
        %v2311 = vpack.c.bf16 %v2183, %v2183
        %v2312 = vpack.c.bf16 %v2184, %v2184
        %v2313 = vpack.c.bf16 %v2185, %v2185
        %v2314 = vpack.c.bf16 %v2186, %v2186
        %v2315 = vpack.c.bf16 %v2187, %v2187
        %v2316 = vpack.c.bf16 %v2188, %v2188
        %v2317 = vpack.c.bf16 %v2189, %v2189
        %v2318 = vpack.c.bf16 %v2190, %v2190
        %v2319 = vpack.c.bf16 %v2191, %v2191
        %v2320 = vpack.c.bf16 %v2192, %v2192
        %v2321 = vpack.c.bf16 %v2193, %v2193
        %v2322 = vpack.c.bf16 %v2194, %v2194
        %v2323 = vpack.c.bf16 %v2195, %v2195
        %v2324 = vpack.c.bf16 %v2196, %v2196
        %v2325 = vpack.c.bf16 %v2197, %v2197
        %v2326 = vpack.c.bf16 %v2198, %v2198
        %v2327 = vpack.c.bf16 %v2199, %v2199
        %v2328 = vpack.c.bf16 %v2200, %v2200
        %v2329 = vpack.c.bf16 %v2201, %v2201
        %v2330 = vpack.c.bf16 %v2202, %v2202
        %v2331 = vpack.c.bf16 %v2203, %v2203
        %v2332 = vpack.c.bf16 %v2204, %v2204
        %v2333 = vpack.c.bf16 %v2205, %v2205
        %v2334 = vpack.c.bf16 %v2206, %v2206
        %v2335 = vpack.c.bf16 %v2207, %v2207
        %v2336 = vpack.c.bf16 %v2208, %v2208
        %v2337 = vpack.c.bf16 %v2209, %v2209
        %v2338 = vpack.c.bf16 %v2210, %v2210
        %v2339 = vpack.c.bf16 %v2211, %v2211
        %v2340 = vpack.c.bf16 %v2212, %v2212
        %v2341 = vpack.c.bf16 %v2213, %v2213
        %v2342 = vpack.c.bf16 %v2214, %v2214
        %v2343 = vpack.c.bf16 %v2215, %v2215
        %v2344 = vpack.c.bf16 %v2216, %v2216
        %v2345 = vpack.c.bf16 %v2217, %v2217
        %v2346 = vpack.c.bf16 %v2218, %v2218
        %v2347 = vpack.c.bf16 %v2219, %v2219
        %v2348 = vpack.c.bf16 %v2220, %v2220
        %v2349 = vpack.c.bf16 %v2221, %v2221
        %v2350 = vpack.c.bf16 %v2222, %v2222
        %v2351 = vpack.c.bf16 %v2223, %v2223
        %v2352 = vpack.c.bf16 %v2224, %v2224
        %v2353 = vpack.c.bf16 %v2225, %v2225
        %v2354 = vpack.c.bf16 %v2226, %v2226
        %v2355 = vpack.c.bf16 %v2227, %v2227
        %v2356 = vpack.c.bf16 %v2228, %v2228
        %v2357 = vpack.c.bf16 %v2229, %v2229
        %v2358 = vpack.c.bf16 %v2230, %v2230
        %v2359 = vpack.c.bf16 %v2231, %v2231
        %v2360 = vpack.c.bf16 %v2232, %v2232
        %v2361 = vpack.c.bf16 %v2233, %v2233
        %v2362 = vpack.c.bf16 %v2234, %v2234
        %v2363 = vpack.c.bf16 %v2235, %v2235
        %v2364 = vpack.c.bf16 %v2236, %v2236
        %v2365 = vpack.c.bf16 %v2237, %v2237
        %v2366 = vpack.c.bf16 %v2238, %v2238
        %v2367 = vpack.c.bf16 %v2239, %v2239
        %v2368 = vpack.c.bf16 %v2240, %v2240
        %v2369 = vpack.c.bf16 %v2241, %v2241
        %v2370 = vpack.c.bf16 %v2242, %v2242
        %v2371 = vpack.c.bf16 %v2243, %v2243
        %2372 = vst [vmem:[%s216] sm:$0xf] %v2244
        %2373 = vst [vmem:[%s216 + $0x4] sm:$0xf] %v2245
        %2374 = vst [vmem:[%s216 + $0x8] sm:$0xf] %v2246
        %2375 = vst [vmem:[%s216 + $0xc] sm:$0xf] %v2247
        %2376 = vst [vmem:[%s216 + $0x10] sm:$0xf] %v2248
        %2377 = vst [vmem:[%s216 + $0x14] sm:$0xf] %v2249
        %2378 = vst [vmem:[%s216 + $0x18] sm:$0xf] %v2250
        %2379 = vst [vmem:[%s216 + $0x1c] sm:$0xf] %v2251
        %2380 = vst [vmem:[%s216 + $0x20] sm:$0xf] %v2252
        %2381 = vst [vmem:[%s216 + $0x24] sm:$0xf] %v2253
        %2382 = vst [vmem:[%s216 + $0x28] sm:$0xf] %v2254
        %2383 = vst [vmem:[%s216 + $0x2c] sm:$0xf] %v2255
        %2384 = vst [vmem:[%s216 + $0x30] sm:$0xf] %v2256
        %2385 = vst [vmem:[%s216 + $0x34] sm:$0xf] %v2257
        %2386 = vst [vmem:[%s216 + $0x38] sm:$0xf] %v2258
        %2387 = vst [vmem:[%s216 + $0x3c] sm:$0xf] %v2259
        %2388 = vst [vmem:[%s216 + $0x40] sm:$0xf] %v2260
        %2389 = vst [vmem:[%s216 + $0x44] sm:$0xf] %v2261
        %2390 = vst [vmem:[%s216 + $0x48] sm:$0xf] %v2262
        %2391 = vst [vmem:[%s216 + $0x4c] sm:$0xf] %v2263
        %2392 = vst [vmem:[%s216 + $0x50] sm:$0xf] %v2264
        %2393 = vst [vmem:[%s216 + $0x54] sm:$0xf] %v2265
        %2394 = vst [vmem:[%s216 + $0x58] sm:$0xf] %v2266
        %2395 = vst [vmem:[%s216 + $0x5c] sm:$0xf] %v2267
        %2396 = vst [vmem:[%s216 + $0x60] sm:$0xf] %v2268
        %2397 = vst [vmem:[%s216 + $0x64] sm:$0xf] %v2269
        %2398 = vst [vmem:[%s216 + $0x68] sm:$0xf] %v2270
        %2399 = vst [vmem:[%s216 + $0x6c] sm:$0xf] %v2271
        %2400 = vst [vmem:[%s216 + $0x70] sm:$0xf] %v2272
        %2401 = vst [vmem:[%s216 + $0x74] sm:$0xf] %v2273
        %2402 = vst [vmem:[%s216 + $0x78] sm:$0xf] %v2274
        %2403 = vst [vmem:[%s216 + $0x7c] sm:$0xf] %v2275
        %2404 = vst [vmem:[%s216 + $0x80] sm:$0xf] %v2276
        %2405 = vst [vmem:[%s216 + $0x84] sm:$0xf] %v2277
        %2406 = vst [vmem:[%s216 + $0x88] sm:$0xf] %v2278
        %2407 = vst [vmem:[%s216 + $0x8c] sm:$0xf] %v2279
        %2408 = vst [vmem:[%s216 + $0x90] sm:$0xf] %v2280
        %2409 = vst [vmem:[%s216 + $0x94] sm:$0xf] %v2281
        %2410 = vst [vmem:[%s216 + $0x98] sm:$0xf] %v2282
        %2411 = vst [vmem:[%s216 + $0x9c] sm:$0xf] %v2283
        %2412 = vst [vmem:[%s216 + $0xa0] sm:$0xf] %v2284
        %2413 = vst [vmem:[%s216 + $0xa4] sm:$0xf] %v2285
        %2414 = vst [vmem:[%s216 + $0xa8] sm:$0xf] %v2286
        %2415 = vst [vmem:[%s216 + $0xac] sm:$0xf] %v2287
        %2416 = vst [vmem:[%s216 + $0xb0] sm:$0xf] %v2288
        %2417 = vst [vmem:[%s216 + $0xb4] sm:$0xf] %v2289
        %2418 = vst [vmem:[%s216 + $0xb8] sm:$0xf] %v2290
        %2419 = vst [vmem:[%s216 + $0xbc] sm:$0xf] %v2291
        %2420 = vst [vmem:[%s216 + $0xc0] sm:$0xf] %v2292
        %2421 = vst [vmem:[%s216 + $0xc4] sm:$0xf] %v2293
        %2422 = vst [vmem:[%s216 + $0xc8] sm:$0xf] %v2294
        %2423 = vst [vmem:[%s216 + $0xcc] sm:$0xf] %v2295
        %2424 = vst [vmem:[%s216 + $0xd0] sm:$0xf] %v2296
        %2425 = vst [vmem:[%s216 + $0xd4] sm:$0xf] %v2297
        %2426 = vst [vmem:[%s216 + $0xd8] sm:$0xf] %v2298
        %2427 = vst [vmem:[%s216 + $0xdc] sm:$0xf] %v2299
        %2428 = vst [vmem:[%s216 + $0xe0] sm:$0xf] %v2300
        %2429 = vst [vmem:[%s216 + $0xe4] sm:$0xf] %v2301
        %2430 = vst [vmem:[%s216 + $0xe8] sm:$0xf] %v2302
        %2431 = vst [vmem:[%s216 + $0xec] sm:$0xf] %v2303
        %2432 = vst [vmem:[%s216 + $0xf0] sm:$0xf] %v2304
        %2433 = vst [vmem:[%s216 + $0xf4] sm:$0xf] %v2305
        %2434 = vst [vmem:[%s216 + $0xf8] sm:$0xf] %v2306
        %2435 = vst [vmem:[%s216 + $0xfc] sm:$0xf] %v2307
        %2436 = vst [vmem:[%s216 + $0x100] sm:$0xf] %v2308
        %2437 = vst [vmem:[%s216 + $0x104] sm:$0xf] %v2309
        %2438 = vst [vmem:[%s216 + $0x108] sm:$0xf] %v2310
        %2439 = vst [vmem:[%s216 + $0x10c] sm:$0xf] %v2311
        %2440 = vst [vmem:[%s216 + $0x110] sm:$0xf] %v2312
        %2441 = vst [vmem:[%s216 + $0x114] sm:$0xf] %v2313
        %2442 = vst [vmem:[%s216 + $0x118] sm:$0xf] %v2314
        %2443 = vst [vmem:[%s216 + $0x11c] sm:$0xf] %v2315
        %2444 = vst [vmem:[%s216 + $0x120] sm:$0xf] %v2316
        %2445 = vst [vmem:[%s216 + $0x124] sm:$0xf] %v2317
        %2446 = vst [vmem:[%s216 + $0x128] sm:$0xf] %v2318
        %2447 = vst [vmem:[%s216 + $0x12c] sm:$0xf] %v2319
        %2448 = vst [vmem:[%s216 + $0x130] sm:$0xf] %v2320
        %2449 = vst [vmem:[%s216 + $0x134] sm:$0xf] %v2321
        %2450 = vst [vmem:[%s216 + $0x138] sm:$0xf] %v2322
        %2451 = vst [vmem:[%s216 + $0x13c] sm:$0xf] %v2323
        %2452 = vst [vmem:[%s216 + $0x140] sm:$0xf] %v2324
        %2453 = vst [vmem:[%s216 + $0x144] sm:$0xf] %v2325
        %2454 = vst [vmem:[%s216 + $0x148] sm:$0xf] %v2326
        %2455 = vst [vmem:[%s216 + $0x14c] sm:$0xf] %v2327
        %2456 = vst [vmem:[%s216 + $0x150] sm:$0xf] %v2328
        %2457 = vst [vmem:[%s216 + $0x154] sm:$0xf] %v2329
        %2458 = vst [vmem:[%s216 + $0x158] sm:$0xf] %v2330
        %2459 = vst [vmem:[%s216 + $0x15c] sm:$0xf] %v2331
        %2460 = vst [vmem:[%s216 + $0x160] sm:$0xf] %v2332
        %2461 = vst [vmem:[%s216 + $0x164] sm:$0xf] %v2333
        %2462 = vst [vmem:[%s216 + $0x168] sm:$0xf] %v2334
        %2463 = vst [vmem:[%s216 + $0x16c] sm:$0xf] %v2335
        %2464 = vst [vmem:[%s216 + $0x170] sm:$0xf] %v2336
        %2465 = vst [vmem:[%s216 + $0x174] sm:$0xf] %v2337
        %2466 = vst [vmem:[%s216 + $0x178] sm:$0xf] %v2338
        %2467 = vst [vmem:[%s216 + $0x17c] sm:$0xf] %v2339
        %2468 = vst [vmem:[%s216 + $0x180] sm:$0xf] %v2340
        %2469 = vst [vmem:[%s216 + $0x184] sm:$0xf] %v2341
        %2470 = vst [vmem:[%s216 + $0x188] sm:$0xf] %v2342
        %2471 = vst [vmem:[%s216 + $0x18c] sm:$0xf] %v2343
        %2472 = vst [vmem:[%s216 + $0x190] sm:$0xf] %v2344
        %2473 = vst [vmem:[%s216 + $0x194] sm:$0xf] %v2345
        %2474 = vst [vmem:[%s216 + $0x198] sm:$0xf] %v2346
        %2475 = vst [vmem:[%s216 + $0x19c] sm:$0xf] %v2347
        %2476 = vst [vmem:[%s216 + $0x1a0] sm:$0xf] %v2348
        %2477 = vst [vmem:[%s216 + $0x1a4] sm:$0xf] %v2349
        %2478 = vst [vmem:[%s216 + $0x1a8] sm:$0xf] %v2350
        %2479 = vst [vmem:[%s216 + $0x1ac] sm:$0xf] %v2351
        %2480 = vst [vmem:[%s216 + $0x1b0] sm:$0xf] %v2352
        %2481 = vst [vmem:[%s216 + $0x1b4] sm:$0xf] %v2353
        %2482 = vst [vmem:[%s216 + $0x1b8] sm:$0xf] %v2354
        %2483 = vst [vmem:[%s216 + $0x1bc] sm:$0xf] %v2355
        %2484 = vst [vmem:[%s216 + $0x1c0] sm:$0xf] %v2356
        %2485 = vst [vmem:[%s216 + $0x1c4] sm:$0xf] %v2357
        %2486 = vst [vmem:[%s216 + $0x1c8] sm:$0xf] %v2358
        %2487 = vst [vmem:[%s216 + $0x1cc] sm:$0xf] %v2359
        %2488 = vst [vmem:[%s216 + $0x1d0] sm:$0xf] %v2360
        %2489 = vst [vmem:[%s216 + $0x1d4] sm:$0xf] %v2361
        %2490 = vst [vmem:[%s216 + $0x1d8] sm:$0xf] %v2362
        %2491 = vst [vmem:[%s216 + $0x1dc] sm:$0xf] %v2363
        %2492 = vst [vmem:[%s216 + $0x1e0] sm:$0xf] %v2364
        %2493 = vst [vmem:[%s216 + $0x1e4] sm:$0xf] %v2365
        %2494 = vst [vmem:[%s216 + $0x1e8] sm:$0xf] %v2366
        %2495 = vst [vmem:[%s216 + $0x1ec] sm:$0xf] %v2367
        %2496 = vst [vmem:[%s216 + $0x1f0] sm:$0xf] %v2368
        %2497 = vst [vmem:[%s216 + $0x1f4] sm:$0xf] %v2369
        %2498 = vst [vmem:[%s216 + $0x1f8] sm:$0xf] %v2370
        %2499 = vst [vmem:[%s216 + $0x1fc] sm:$0xf] %v2371
      $region36: #{forward.8} parent=27 // pred_fallthru
        _
      %s2500 = smul.u32 128, %s18
      %p2501 = scmp.lt.s32.totalorder %s2500, 255
      %s2502 = scalar_select %p2501, %s2500, 255
      %p2503 = scmp.lt.s32.totalorder %s19, 0
      %s2504 = scalar_select %p2503, %s19, 0
      %s2505 = sadd.s32 %s2504, %s2502
      %s2506 = smul.addr %s2505, 4
      %s2507 = scalar_lea.vmem %s2, %s2506
      // Predicated region
      $region37: #{forward.8} parent=27 // pred_check
        %p2508 = pneg %p108
      $region38: #{forward.8} parent=27 // pred_check_branch
        %2510 = sbr.rel (%p2508) target = $region40
      $region39: #{forward.8} parent=27 // pred_region
        %s2511 = smul.u32 128, %s18
      $region40: #{forward.8} parent=27 // pred_fallthru
        _
    $region28: #{forward.8} parent=5 // pred_fallthru
      _
    %p2512 = scmp.le.s32.totalorder 2, %s8
    // Predicated region
    $region41: #{forward.8} parent=5 // pred_check
      %p2513 = pneg %p2512
    $region42: #{forward.8} parent=5 // pred_check_branch
      %2515 = sbr.rel (%p2513) target = $region44
    $region43: #{forward.8} parent=5 // pred_region
      %s2516 = ssub.s32 %s8, 2
      // Predicated region
      $region45: #{forward.8} parent=43 // pred_check
        %p2517 = pneg %p114
      $region46: #{forward.8} parent=43 // pred_check_branch
        %2519 = sbr.rel (%p2517) target = $region48
      $region47: #{forward.8} parent=43 // pred_region
        %s2520 = smul.u32 128, %s21
        %p2521 = scmp.lt.s32.totalorder %s2520, 255
        %s2522 = scalar_select %p2521, %s2520, 255
        %p2523 = scmp.lt.s32.totalorder %s22, 0
        %s2524 = scalar_select %p2523, %s22, 0
        %s2525 = sadd.s32 %s2524, %s2522
        %s2526 = smul.addr %s2525, 4
        %s2527 = scalar_lea.vmem %s2, %s2526
      $region48: #{forward.8} parent=43 // pred_fallthru
        _
    $region44: #{forward.8} parent=5 // pred_fallthru
      _
  $region6: #{forward.8} parent=0 // loop_footer
    %s12 = sadd.s32 1, %s8
  $region7: #{forward.8} parent=0 // loop_footer_branch
    %7 = sbr.rel target = $region3
  $region8: #{forward.8} parent=0 // loop_exit
    _

// kernel: forward.9
$region0: #{forward.9}
  #allocation0 [shape = 'u32[]', space=smem, size = 0x4, offset = 0x4, fixed_abs, tag = 'smem constant byte address 0x4 - core index']
  #allocation1 [shape = 'u32[72,128]{1,0:T(1,128)}', space=vmem, size = 0x9000, scoped, tag = 'internal scratch']
  #allocation2 [shape = 'f32[256,128]{1,0:T(8,128)}', space=vmem, size = 0x20000, scoped, tag = 'scratch operand']
  %s0 = inlined_call_operand.vmem [shape: bf16[512,128], index: 0, kind: input, shape index: {}]
  %s1 = inlined_call_operand.vmem [shape: bf16[128,128], index: 1, kind: input, shape index: {}]
  %s2 = inlined_call_operand.vmem [shape: bf16[512,128], index: 2, kind: output, shape index: {0}]
  %s3 = inlined_call_operand.vmem [shape: f32[16,128], index: 3, kind: output, shape index: {1}]
  %s4 = inlined_call_operand.vmem [shape: f32[16,128], index: 4, kind: output, shape index: {2}]
  %5 = xla_tuple %s2, %s3, %s4
  %s6 = sld [smem:[#allocation0]]
  $region65: #{forward.9} parent=0
    _
  %s8 = ssub.s32 1, %s6
  %s9 = scalar_select 0, %s8, %s6
  loop: start=0, step=1, limit=4
  $region2: #{forward.9} parent=0 // loop_pre_header
    _
  $region3: #{forward.9} parent=0 // loop_header
    %s11 = sphi 0, %s15
    %p12 = scmp.ge.s32.totalorder %s11, 4
    %s18 = sphi 0, %s37
    %s19 = sphi 0, %s33
    %s20 = sphi 0, %s29
    %s21 = sphi 0, %s18
    %s22 = sphi 0, %s19
    %s23 = sphi 0, %s20
    %s24 = sphi 0, %s21
    %s25 = sphi 0, %s22
    %s26 = sphi 0, %s23
    %s42 = sphi 0, %s44
    %s45 = sphi 0, %s42
    %s46 = sphi 0, %s45
    %s62 = sphi 0, %s46
    %s70 = sphi 0, %s72
    %s73 = sphi 0, %s70
    %s74 = sphi 0, %s73
    %s90 = sphi 0, %s74
    %s98 = sphi 0, %s100
    %s101 = sphi 0, %s98
    %s102 = sphi 0, %s101
    %s118 = sphi 0, %s102
    %s126 = sphi 0, %s128
    %s129 = sphi 0, %s126
    %s130 = sphi 0, %s129
    %s146 = sphi 0, %s130
    %s154 = sphi 0, %s156
    %s157 = sphi 0, %s154
    %s158 = sphi 0, %s157
    %s174 = sphi 0, %s158
  $region4: #{forward.9} parent=0 // loop_header_branch
    %14 = sbr.rel (%p12) target = $region8
  $region5: #{forward.9} parent=0 // loop_body
    %s16 = ssub.s32 %s11, 1
    %s17 = ssub.s32 %s11, 2
    %s27 = sadd.s32 1, %s20
    %p28 = scmp.ge.s32.totalorder %s27, 1
    %s29 = scalar_select %p28, 0, %s27
    %s30 = sadd.s32 1, %s19
    %s31 = scalar_select %p28, %s30, %s19
    %p32 = scmp.ge.s32.totalorder %s31, 1
    %s33 = scalar_select %p32, 0, %s31
    %s34 = sadd.s32 1, %s18
    %s35 = scalar_select %p32, %s34, %s18
    %p36 = scmp.ge.s32.totalorder %s35, 2
    %s37 = scalar_select %p36, 0, %s35
    %s38 = ssub.s32 %s18, %s37
    %s39 = ssub.s32 %s20, %s29
    %s40 = sor.u32 %s38, %s39
    %p41 = scmp.eq.s32.totalorder %s40, 0
    %s43 = sadd.s32 %s42, 1
    %s44 = scalar_select %p41, %s42, %s43
    %p47 = pneg %p41
    %p48 = scmp.eq.s32.totalorder %s11, 1
    %p49 = por %p47, %p48
    %p50 = scmp.ne.s32.totalorder %s42, %s45
    %p51 = scmp.eq.s32.totalorder %s11, 0
    %p52 = por %p50, %p51
    %p53 = scmp.ne.s32.totalorder %s42, %s45
    %p54 = scmp.eq.s32.totalorder %s16, 1
    %p55 = por %p53, %p54
    %p56 = scmp.ne.s32.totalorder %s45, %s46
    %p57 = scmp.eq.s32.totalorder %s16, 0
    %p58 = por %p56, %p57
    %p59 = scmp.ne.s32.totalorder %s45, %s46
    %p60 = scmp.eq.s32.totalorder %s17, 1
    %p61 = por %p59, %p60
    %p63 = scmp.ne.s32.totalorder %s46, %s62
    %p64 = scmp.eq.s32.totalorder %s17, 0
    %p65 = por %p63, %p64
    %s66 = ssub.s32 %s20, %s29
    %s67 = ssub.s32 %s19, %s33
    %s68 = sor.u32 %s66, %s67
    %p69 = scmp.eq.s32.totalorder %s68, 0
    %s71 = sadd.s32 %s70, 1
    %s72 = scalar_select %p69, %s70, %s71
    %p75 = pneg %p69
    %p76 = scmp.eq.s32.totalorder %s11, 1
    %p77 = por %p75, %p76
    %p78 = scmp.ne.s32.totalorder %s70, %s73
    %p79 = scmp.eq.s32.totalorder %s11, 0
    %p80 = por %p78, %p79
    %p81 = scmp.ne.s32.totalorder %s70, %s73
    %p82 = scmp.eq.s32.totalorder %s16, 1
    %p83 = por %p81, %p82
    %p84 = scmp.ne.s32.totalorder %s73, %s74
    %p85 = scmp.eq.s32.totalorder %s16, 0
    %p86 = por %p84, %p85
    %p87 = scmp.ne.s32.totalorder %s73, %s74
    %p88 = scmp.eq.s32.totalorder %s17, 1
    %p89 = por %p87, %p88
    %p91 = scmp.ne.s32.totalorder %s74, %s90
    %p92 = scmp.eq.s32.totalorder %s17, 0
    %p93 = por %p91, %p92
    %s94 = ssub.s32 %s18, %s37
    %s95 = ssub.s32 %s19, %s33
    %s96 = sor.u32 %s94, %s95
    %p97 = scmp.eq.s32.totalorder %s96, 0
    %s99 = sadd.s32 %s98, 1
    %s100 = scalar_select %p97, %s98, %s99
    %p103 = pneg %p97
    %p104 = scmp.eq.s32.totalorder %s11, 1
    %p105 = por %p103, %p104
    %p106 = scmp.ne.s32.totalorder %s98, %s101
    %p107 = scmp.eq.s32.totalorder %s11, 0
    %p108 = por %p106, %p107
    %p109 = scmp.ne.s32.totalorder %s98, %s101
    %p110 = scmp.eq.s32.totalorder %s16, 1
    %p111 = por %p109, %p110
    %p112 = scmp.ne.s32.totalorder %s101, %s102
    %p113 = scmp.eq.s32.totalorder %s16, 0
    %p114 = por %p112, %p113
    %p115 = scmp.ne.s32.totalorder %s101, %s102
    %p116 = scmp.eq.s32.totalorder %s17, 1
    %p117 = por %p115, %p116
    %p119 = scmp.ne.s32.totalorder %s102, %s118
    %p120 = scmp.eq.s32.totalorder %s17, 0
    %p121 = por %p119, %p120
    %s122 = ssub.s32 %s18, %s37
    %s123 = ssub.s32 %s19, %s33
    %s124 = sor.u32 %s122, %s123
    %p125 = scmp.eq.s32.totalorder %s124, 0
    %s127 = sadd.s32 %s126, 1
    %s128 = scalar_select %p125, %s126, %s127
    %p131 = pneg %p125
    %p132 = scmp.eq.s32.totalorder %s11, 1
    %p133 = por %p131, %p132
    %p134 = scmp.ne.s32.totalorder %s126, %s129
    %p135 = scmp.eq.s32.totalorder %s11, 0
    %p136 = por %p134, %p135
    %p137 = scmp.ne.s32.totalorder %s126, %s129
    %p138 = scmp.eq.s32.totalorder %s16, 1
    %p139 = por %p137, %p138
    %p140 = scmp.ne.s32.totalorder %s129, %s130
    %p141 = scmp.eq.s32.totalorder %s16, 0
    %p142 = por %p140, %p141
    %p143 = scmp.ne.s32.totalorder %s129, %s130
    %p144 = scmp.eq.s32.totalorder %s17, 1
    %p145 = por %p143, %p144
    %p147 = scmp.ne.s32.totalorder %s130, %s146
    %p148 = scmp.eq.s32.totalorder %s17, 0
    %p149 = por %p147, %p148
    %s150 = ssub.s32 %s18, %s37
    %s151 = ssub.s32 %s19, %s33
    %s152 = sor.u32 %s150, %s151
    %p153 = scmp.eq.s32.totalorder %s152, 0
    %s155 = sadd.s32 %s154, 1
    %s156 = scalar_select %p153, %s154, %s155
    %p159 = pneg %p153
    %p160 = scmp.eq.s32.totalorder %s11, 1
    %p161 = por %p159, %p160
    %p162 = scmp.ne.s32.totalorder %s154, %s157
    %p163 = scmp.eq.s32.totalorder %s11, 0
    %p164 = por %p162, %p163
    %p165 = scmp.ne.s32.totalorder %s154, %s157
    %p166 = scmp.eq.s32.totalorder %s16, 1
    %p167 = por %p165, %p166
    %p168 = scmp.ne.s32.totalorder %s157, %s158
    %p169 = scmp.eq.s32.totalorder %s16, 0
    %p170 = por %p168, %p169
    %p171 = scmp.ne.s32.totalorder %s157, %s158
    %p172 = scmp.eq.s32.totalorder %s17, 1
    %p173 = por %p171, %p172
    %p175 = scmp.ne.s32.totalorder %s158, %s174
    %p176 = scmp.eq.s32.totalorder %s17, 0
    %p177 = por %p175, %p176
    %p178 = scmp.le.s32.totalorder 1, %s11
    %p179 = scmp.lt.s32.totalorder %s11, 3
    %p180 = pnand %p178, %p179
    %p181 = pneg %p180
    // Predicated region
    $region9: #{forward.9} parent=5 // pred_check
      _
    $region10: #{forward.9} parent=5 // pred_check_branch
      %183 = sbr.rel (%p180) target = $region12
    $region11: #{forward.9} parent=5 // pred_region
      %s184 = ssub.s32 %s11, 1
      // Predicated region
      $region13: #{forward.9} parent=11 // pred_check
        %p185 = pneg %p86
      $region14: #{forward.9} parent=11 // pred_check_branch
        %187 = sbr.rel (%p185) target = $region16
      $region15: #{forward.9} parent=11 // pred_region
        %s188 = smul.u32 16, %s23
        %p189 = scmp.lt.s32.totalorder %s188, 15
        %s190 = scalar_select %p189, %s188, 15
        %p191 = scmp.lt.s32.totalorder %s22, 0
        %s192 = scalar_select %p191, %s22, 0
        %s193 = sadd.s32 %s192, %s190
        %s194 = smul.addr %s193, 4
        %s195 = scalar_lea.vmem %s1, %s194
        %s196 = smul.u32 16, %s23
      $region16: #{forward.9} parent=11 // pred_fallthru
        _
    $region12: #{forward.9} parent=5 // pred_fallthru
      _
    %p197 = scmp.lt.s32.totalorder %s11, 2
    // Predicated region
    $region17: #{forward.9} parent=5 // pred_check
      %p198 = pneg %p197
    $region18: #{forward.9} parent=5 // pred_check_branch
      %200 = sbr.rel (%p198) target = $region20
    $region19: #{forward.9} parent=5 // pred_region
      // Predicated region
      $region21: #{forward.9} parent=19 // pred_check
        %p201 = pneg %p52
      $region22: #{forward.9} parent=19 // pred_check_branch
        %203 = sbr.rel (%p201) target = $region24
      $region23: #{forward.9} parent=19 // pred_region
        %s204 = smul.u32 32, %s18
        %p205 = scmp.lt.s32.totalorder %s204, 63
        %s206 = scalar_select %p205, %s204, 63
        %p207 = scmp.lt.s32.totalorder %s20, 0
        %s208 = scalar_select %p207, %s20, 0
        %s209 = sadd.s32 %s208, %s206
        %s210 = smul.addr %s209, 4
        %s211 = scalar_lea.vmem %s0, %s210
        %s212 = smul.u32 32, %s18
      $region24: #{forward.9} parent=19 // pred_fallthru
        _
    $region20: #{forward.9} parent=5 // pred_fallthru
      _
    %p213 = scmp.le.s32.totalorder 1, %s11
    %p214 = scmp.lt.s32.totalorder %s11, 3
    %p215 = pnand %p213, %p214
    %p216 = pneg %p215
    // Predicated region
    $region25: #{forward.9} parent=5 // pred_check
      _
    $region26: #{forward.9} parent=5 // pred_check_branch
      %218 = sbr.rel (%p215) target = $region28
    $region27: #{forward.9} parent=5 // pred_region
      %s219 = ssub.s32 %s11, 1
      %s220 = smul.u32 32, %s21
      %p221 = scmp.lt.s32.totalorder %s220, 63
      %s222 = scalar_select %p221, %s220, 63
      %p223 = scmp.lt.s32.totalorder %s23, 0
      %s224 = scalar_select %p223, %s23, 0
      %s225 = sadd.s32 %s224, %s222
      %s226 = smul.addr %s225, 4
      %s227 = scalar_lea.vmem %s0, %s226
      %p228 = pneg %p58
      %p229 = pneg %p55
      %s230 = smul.u32 16, %s23
      %p231 = scmp.lt.s32.totalorder %s230, 15
      %s232 = scalar_select %p231, %s230, 15
      %p233 = scmp.lt.s32.totalorder %s22, 0
      %s234 = scalar_select %p233, %s22, 0
      %s235 = sadd.s32 %s234, %s232
      %s236 = smul.addr %s235, 4
      %s237 = scalar_lea.vmem %s1, %s236
      %p238 = pneg %p86
      %p239 = pneg %p83
      %p240 = pneg %p114
      %p241 = pneg %p111
      %s242 = smul.u32 32, %s21
      %p243 = scmp.lt.s32.totalorder %s242, 63
      %s244 = scalar_select %p243, %s242, 63
      %p245 = scmp.lt.s32.totalorder %s22, 0
      %s246 = scalar_select %p245, %s22, 0
      %s247 = sadd.s32 %s246, %s244
      %s248 = smul.addr %s247, 4
      %s249 = scalar_lea.vmem %s2, %s248
      %p250 = pneg %p142
      %p251 = pneg %p139
      %p252 = scmp.lt.s32.totalorder %s21, 1
      %s253 = scalar_select %p252, %s21, 1
      %p254 = scmp.lt.s32.totalorder %s22, 0
      %s255 = scalar_select %p254, %s22, 0
      %s256 = sadd.s32 %s255, %s253
      %s257 = smul.addr %s256, 8
      %s258 = scalar_lea.vmem %s3, %s257
      %p259 = pneg %p170
      %p260 = pneg %p167
      %p261 = scmp.lt.s32.totalorder %s21, 1
      %s262 = scalar_select %p261, %s21, 1
      %p263 = scmp.lt.s32.totalorder %s22, 0
      %s264 = scalar_select %p263, %s22, 0
      %s265 = sadd.s32 %s264, %s262
      %s266 = smul.addr %s265, 8
      %s267 = scalar_lea.vmem %s4, %s266
      %s268 = smul.u32 32, %s21
      %p269 = scmp.lt.s32.totalorder %s268, 63
      %s270 = scalar_select %p269, %s268, 63
      %p271 = scmp.lt.s32.totalorder %s23, 0
      %s272 = scalar_select %p271, %s23, 0
      %s273 = sadd.s32 %s272, %s270
      %s274 = smul.addr %s273, 4
      %s275 = scalar_lea.vmem %s0, %s274
      %s276 = smul.u32 32, %s21
      %s277 = smul.u32 16, %s23
      %p278 = scmp.lt.s32.totalorder %s277, 15
      %s279 = scalar_select %p278, %s277, 15
      %p280 = scmp.lt.s32.totalorder %s22, 0
      %s281 = scalar_select %p280, %s22, 0
      %s282 = sadd.s32 %s281, %s279
      %s283 = smul.addr %s282, 4
      %s284 = scalar_lea.vmem %s1, %s283
      %s285 = smul.u32 16, %s23
      %s286 = smul.u32 32, %s21
      %p287 = scmp.lt.s32.totalorder %s286, 63
      %s288 = scalar_select %p287, %s286, 63
      %p289 = scmp.lt.s32.totalorder %s22, 0
      %s290 = scalar_select %p289, %s22, 0
      %s291 = sadd.s32 %s290, %s288
      %s292 = smul.addr %s291, 4
      %s293 = scalar_lea.vmem %s2, %s292
      %s294 = smul.u32 32, %s21
      %p295 = scmp.lt.s32.totalorder %s21, 1
      %s296 = scalar_select %p295, %s21, 1
      %p297 = scmp.lt.s32.totalorder %s22, 0
      %s298 = scalar_select %p297, %s22, 0
      %s299 = sadd.s32 %s298, %s296
      %s300 = smul.addr %s299, 8
      %s301 = scalar_lea.vmem %s3, %s300
      %p302 = scmp.lt.s32.totalorder %s21, 1
      %s303 = scalar_select %p302, %s21, 1
      %p304 = scmp.lt.s32.totalorder %s22, 0
      %s305 = scalar_select %p304, %s22, 0
      %s306 = sadd.s32 %s305, %s303
      %s307 = smul.addr %s306, 8
      %s308 = scalar_lea.vmem %s4, %s307
      %p309 = scmp.eq.s32.totalorder %s23, 0
      // Predicated region
      $region29: #{forward.9} parent=27 // pred_check
        %p310 = pneg %p309
      $region30: #{forward.9} parent=27 // pred_check_branch
        %312 = sbr.rel (%p310) target = $region32
      $region31: #{forward.9} parent=27 // pred_region
        %313 = vst [vmem:[#allocation2] sm:$0xff] 0.0
        %314 = vst [vmem:[#allocation2 + $0x8] sm:$0xff] 0.0
        %315 = vst [vmem:[#allocation2 + $0x10] sm:$0xff] 0.0
        %316 = vst [vmem:[#allocation2 + $0x18] sm:$0xff] 0.0
        %317 = vst [vmem:[#allocation2 + $0x20] sm:$0xff] 0.0
        %318 = vst [vmem:[#allocation2 + $0x28] sm:$0xff] 0.0
        %319 = vst [vmem:[#allocation2 + $0x30] sm:$0xff] 0.0
        %320 = vst [vmem:[#allocation2 + $0x38] sm:$0xff] 0.0
        %321 = vst [vmem:[#allocation2 + $0x40] sm:$0xff] 0.0
        %322 = vst [vmem:[#allocation2 + $0x48] sm:$0xff] 0.0
        %323 = vst [vmem:[#allocation2 + $0x50] sm:$0xff] 0.0
        %324 = vst [vmem:[#allocation2 + $0x58] sm:$0xff] 0.0
        %325 = vst [vmem:[#allocation2 + $0x60] sm:$0xff] 0.0
        %326 = vst [vmem:[#allocation2 + $0x68] sm:$0xff] 0.0
        %327 = vst [vmem:[#allocation2 + $0x70] sm:$0xff] 0.0
        %328 = vst [vmem:[#allocation2 + $0x78] sm:$0xff] 0.0
        %329 = vst [vmem:[#allocation2 + $0x80] sm:$0xff] 0.0
        %330 = vst [vmem:[#allocation2 + $0x88] sm:$0xff] 0.0
        %331 = vst [vmem:[#allocation2 + $0x90] sm:$0xff] 0.0
        %332 = vst [vmem:[#allocation2 + $0x98] sm:$0xff] 0.0
        %333 = vst [vmem:[#allocation2 + $0xa0] sm:$0xff] 0.0
        %334 = vst [vmem:[#allocation2 + $0xa8] sm:$0xff] 0.0
        %335 = vst [vmem:[#allocation2 + $0xb0] sm:$0xff] 0.0
        %336 = vst [vmem:[#allocation2 + $0xb8] sm:$0xff] 0.0
        %337 = vst [vmem:[#allocation2 + $0xc0] sm:$0xff] 0.0
        %338 = vst [vmem:[#allocation2 + $0xc8] sm:$0xff] 0.0
        %339 = vst [vmem:[#allocation2 + $0xd0] sm:$0xff] 0.0
        %340 = vst [vmem:[#allocation2 + $0xd8] sm:$0xff] 0.0
        %341 = vst [vmem:[#allocation2 + $0xe0] sm:$0xff] 0.0
        %342 = vst [vmem:[#allocation2 + $0xe8] sm:$0xff] 0.0
        %343 = vst [vmem:[#allocation2 + $0xf0] sm:$0xff] 0.0
        %344 = vst [vmem:[#allocation2 + $0xf8] sm:$0xff] 0.0
      $region32: #{forward.9} parent=27 // pred_fallthru
        _
      %v345 = vld [vmem:[#allocation2] sm:$0xff]
      %v346 = vld [vmem:[#allocation2 + $0x8] sm:$0xff]
      %v347 = vld [vmem:[#allocation2 + $0x10] sm:$0xff]
      %v348 = vld [vmem:[#allocation2 + $0x18] sm:$0xff]
      %v349 = vld [vmem:[#allocation2 + $0x20] sm:$0xff]
      %v350 = vld [vmem:[#allocation2 + $0x28] sm:$0xff]
      %v351 = vld [vmem:[#allocation2 + $0x30] sm:$0xff]
      %v352 = vld [vmem:[#allocation2 + $0x38] sm:$0xff]
      %v353 = vld [vmem:[#allocation2 + $0x40] sm:$0xff]
      %v354 = vld [vmem:[#allocation2 + $0x48] sm:$0xff]
      %v355 = vld [vmem:[#allocation2 + $0x50] sm:$0xff]
      %v356 = vld [vmem:[#allocation2 + $0x58] sm:$0xff]
      %v357 = vld [vmem:[#allocation2 + $0x60] sm:$0xff]
      %v358 = vld [vmem:[#allocation2 + $0x68] sm:$0xff]
      %v359 = vld [vmem:[#allocation2 + $0x70] sm:$0xff]
      %v360 = vld [vmem:[#allocation2 + $0x78] sm:$0xff]
      %v361 = vld [vmem:[#allocation2 + $0x80] sm:$0xff]
      %v362 = vld [vmem:[#allocation2 + $0x88] sm:$0xff]
      %v363 = vld [vmem:[#allocation2 + $0x90] sm:$0xff]
      %v364 = vld [vmem:[#allocation2 + $0x98] sm:$0xff]
      %v365 = vld [vmem:[#allocation2 + $0xa0] sm:$0xff]
      %v366 = vld [vmem:[#allocation2 + $0xa8] sm:$0xff]
      %v367 = vld [vmem:[#allocation2 + $0xb0] sm:$0xff]
      %v368 = vld [vmem:[#allocation2 + $0xb8] sm:$0xff]
      %v369 = vld [vmem:[#allocation2 + $0xc0] sm:$0xff]
      %v370 = vld [vmem:[#allocation2 + $0xc8] sm:$0xff]
      %v371 = vld [vmem:[#allocation2 + $0xd0] sm:$0xff]
      %v372 = vld [vmem:[#allocation2 + $0xd8] sm:$0xff]
      %v373 = vld [vmem:[#allocation2 + $0xe0] sm:$0xff]
      %v374 = vld [vmem:[#allocation2 + $0xe8] sm:$0xff]
      %v375 = vld [vmem:[#allocation2 + $0xf0] sm:$0xff]
      %v376 = vld [vmem:[#allocation2 + $0xf8] sm:$0xff]
      %v377 = vld [vmem:[%s275] sm:$0xf]
      %v378 = vld [vmem:[%s275 + $0x4] sm:$0xf]
      %v379 = vld [vmem:[%s275 + $0x8] sm:$0xf]
      %v380 = vld [vmem:[%s275 + $0xc] sm:$0xf]
      %v381 = vld [vmem:[%s275 + $0x10] sm:$0xf]
      %v382 = vld [vmem:[%s275 + $0x14] sm:$0xf]
      %v383 = vld [vmem:[%s275 + $0x18] sm:$0xf]
      %v384 = vld [vmem:[%s275 + $0x1c] sm:$0xf]
      %v385 = vld [vmem:[%s275 + $0x20] sm:$0xf]
      %v386 = vld [vmem:[%s275 + $0x24] sm:$0xf]
      %v387 = vld [vmem:[%s275 + $0x28] sm:$0xf]
      %v388 = vld [vmem:[%s275 + $0x2c] sm:$0xf]
      %v389 = vld [vmem:[%s275 + $0x30] sm:$0xf]
      %v390 = vld [vmem:[%s275 + $0x34] sm:$0xf]
      %v391 = vld [vmem:[%s275 + $0x38] sm:$0xf]
      %v392 = vld [vmem:[%s275 + $0x3c] sm:$0xf]
      %v393 = vld [vmem:[%s275 + $0x40] sm:$0xf]
      %v394 = vld [vmem:[%s275 + $0x44] sm:$0xf]
      %v395 = vld [vmem:[%s275 + $0x48] sm:$0xf]
      %v396 = vld [vmem:[%s275 + $0x4c] sm:$0xf]
      %v397 = vld [vmem:[%s275 + $0x50] sm:$0xf]
      %v398 = vld [vmem:[%s275 + $0x54] sm:$0xf]
      %v399 = vld [vmem:[%s275 + $0x58] sm:$0xf]
      %v400 = vld [vmem:[%s275 + $0x5c] sm:$0xf]
      %v401 = vld [vmem:[%s275 + $0x60] sm:$0xf]
      %v402 = vld [vmem:[%s275 + $0x64] sm:$0xf]
      %v403 = vld [vmem:[%s275 + $0x68] sm:$0xf]
      %v404 = vld [vmem:[%s275 + $0x6c] sm:$0xf]
      %v405 = vld [vmem:[%s275 + $0x70] sm:$0xf]
      %v406 = vld [vmem:[%s275 + $0x74] sm:$0xf]
      %v407 = vld [vmem:[%s275 + $0x78] sm:$0xf]
      %v408 = vld [vmem:[%s275 + $0x7c] sm:$0xf]
      %v409 = vld [vmem:[%s284] sm:$0xf]
      %v410 = vld [vmem:[%s284 + $0x4] sm:$0xf]
      %v411 = vld [vmem:[%s284 + $0x8] sm:$0xf]
      %v412 = vld [vmem:[%s284 + $0xc] sm:$0xf]
      %v413 = vld [vmem:[%s284 + $0x10] sm:$0xf]
      %v414 = vld [vmem:[%s284 + $0x14] sm:$0xf]
      %v415 = vld [vmem:[%s284 + $0x18] sm:$0xf]
      %v416 = vld [vmem:[%s284 + $0x1c] sm:$0xf]
      %v417 = vld [vmem:[%s284 + $0x20] sm:$0xf]
      %v418 = vld [vmem:[%s284 + $0x24] sm:$0xf]
      %v419 = vld [vmem:[%s284 + $0x28] sm:$0xf]
      %v420 = vld [vmem:[%s284 + $0x2c] sm:$0xf]
      %v421 = vld [vmem:[%s284 + $0x30] sm:$0xf]
      %v422 = vld [vmem:[%s284 + $0x34] sm:$0xf]
      %v423 = vld [vmem:[%s284 + $0x38] sm:$0xf]
      %v424 = vld [vmem:[%s284 + $0x3c] sm:$0xf]
      %v457 = vunpack.c.l.b16 %v377
      %v458 = vunpack.c.l.b16 %v378
      %v459 = vunpack.c.l.b16 %v379
      %v460 = vunpack.c.l.b16 %v380
      %v461 = vunpack.c.l.b16 %v381
      %v462 = vunpack.c.l.b16 %v382
      %v463 = vunpack.c.l.b16 %v383
      %v464 = vunpack.c.l.b16 %v384
      %v465 = vunpack.c.l.b16 %v385
      %v466 = vunpack.c.l.b16 %v386
      %v467 = vunpack.c.l.b16 %v387
      %v468 = vunpack.c.l.b16 %v388
      %v469 = vunpack.c.l.b16 %v389
      %v470 = vunpack.c.l.b16 %v390
      %v471 = vunpack.c.l.b16 %v391
      %v472 = vunpack.c.l.b16 %v392
      %v473 = vunpack.c.l.b16 %v393
      %v474 = vunpack.c.l.b16 %v394
      %v475 = vunpack.c.l.b16 %v395
      %v476 = vunpack.c.l.b16 %v396
      %v477 = vunpack.c.l.b16 %v397
      %v478 = vunpack.c.l.b16 %v398
      %v479 = vunpack.c.l.b16 %v399
      %v480 = vunpack.c.l.b16 %v400
      %v481 = vunpack.c.l.b16 %v401
      %v482 = vunpack.c.l.b16 %v402
      %v483 = vunpack.c.l.b16 %v403
      %v484 = vunpack.c.l.b16 %v404
      %v485 = vunpack.c.l.b16 %v405
      %v486 = vunpack.c.l.b16 %v406
      %v487 = vunpack.c.l.b16 %v407
      %v488 = vunpack.c.l.b16 %v408
      %v489 = vpack.c.b16 %v458, %v457
      %v490 = vpack.c.b16 %v460, %v459
      %v491 = vpack.c.b16 %v462, %v461
      %v492 = vpack.c.b16 %v464, %v463
      %v493 = vpack.c.b16 %v466, %v465
      %v494 = vpack.c.b16 %v468, %v467
      %v495 = vpack.c.b16 %v470, %v469
      %v496 = vpack.c.b16 %v472, %v471
      %v497 = vpack.c.b16 %v474, %v473
      %v498 = vpack.c.b16 %v476, %v475
      %v499 = vpack.c.b16 %v478, %v477
      %v500 = vpack.c.b16 %v480, %v479
      %v501 = vpack.c.b16 %v482, %v481
      %v502 = vpack.c.b16 %v484, %v483
      %v503 = vpack.c.b16 %v486, %v485
      %v504 = vpack.c.b16 %v488, %v487
      %v537 = vunpack.c.l.b16 %v409
      %v538 = vunpack.c.l.b16 %v410
      %v539 = vunpack.c.l.b16 %v411
      %v540 = vunpack.c.l.b16 %v412
      %v541 = vunpack.c.l.b16 %v413
      %v542 = vunpack.c.l.b16 %v414
      %v543 = vunpack.c.l.b16 %v415
      %v544 = vunpack.c.l.b16 %v416
      %v545 = vunpack.c.l.b16 %v417
      %v546 = vunpack.c.l.b16 %v418
      %v547 = vunpack.c.l.b16 %v419
      %v548 = vunpack.c.l.b16 %v420
      %v549 = vunpack.c.l.b16 %v421
      %v550 = vunpack.c.l.b16 %v422
      %v551 = vunpack.c.l.b16 %v423
      %v552 = vunpack.c.l.b16 %v424
      %v553 = vpack.c.b16 %v538, %v537
      %v554 = vpack.c.b16 %v540, %v539
      %v555 = vpack.c.b16 %v542, %v541
      %v556 = vpack.c.b16 %v544, %v543
      %v557 = vpack.c.b16 %v546, %v545
      %v558 = vpack.c.b16 %v548, %v547
      %v559 = vpack.c.b16 %v550, %v549
      %v560 = vpack.c.b16 %v552, %v551
      %569 = vmatpush.bf16.msra.mxu0 %v560
      %570 = vmatpush.bf16.msra.mxu0 %v559
      %571 = vmatpush.bf16.msra.mxu0 %v558
      %572 = vmatpush.bf16.msra.mxu0 %v557
      %573 = vmatpush.bf16.msra.mxu0 %v556
      %574 = vmatpush.bf16.msra.mxu0 %v555
      %575 = vmatpush.bf16.msra.mxu0 %v554
      %576 = vmatpush.bf16.msra.mxu0 %v553
      %577 = vmatmul.bf16.gmra.mxu0 %v489
      %v578 = vpop.f32.mrf.mxu0
      %v579 = vadd.f32 0.0, %v578
      %v580 = vpop.f32.mrf.mxu0
      %v581 = vadd.f32 0.0, %v580
      %582 = vmatmul.bf16.gmra.mxu0 %v490
      %v583 = vpop.f32.mrf.mxu0
      %v584 = vadd.f32 0.0, %v583
      %v585 = vpop.f32.mrf.mxu0
      %v586 = vadd.f32 0.0, %v585
      %587 = vmatmul.bf16.gmra.mxu0 %v491
      %v588 = vpop.f32.mrf.mxu0
      %v589 = vadd.f32 0.0, %v588
      %v590 = vpop.f32.mrf.mxu0
      %v591 = vadd.f32 0.0, %v590
      %592 = vmatmul.bf16.gmra.mxu0 %v492
      %v593 = vpop.f32.mrf.mxu0
      %v594 = vadd.f32 0.0, %v593
      %v595 = vpop.f32.mrf.mxu0
      %v596 = vadd.f32 0.0, %v595
      %597 = vmatmul.bf16.gmra.mxu0 %v493
      %v598 = vpop.f32.mrf.mxu0
      %v599 = vadd.f32 0.0, %v598
      %v600 = vpop.f32.mrf.mxu0
      %v601 = vadd.f32 0.0, %v600
      %602 = vmatmul.bf16.gmra.mxu0 %v494
      %v603 = vpop.f32.mrf.mxu0
      %v604 = vadd.f32 0.0, %v603
      %v605 = vpop.f32.mrf.mxu0
      %v606 = vadd.f32 0.0, %v605
      %607 = vmatmul.bf16.gmra.mxu0 %v495
      %v608 = vpop.f32.mrf.mxu0
      %v609 = vadd.f32 0.0, %v608
      %v610 = vpop.f32.mrf.mxu0
      %v611 = vadd.f32 0.0, %v610
      %612 = vmatmul.bf16.gmra.mxu0 %v496
      %v613 = vpop.f32.mrf.mxu0
      %v614 = vadd.f32 0.0, %v613
      %v615 = vpop.f32.mrf.mxu0
      %v616 = vadd.f32 0.0, %v615
      %617 = vmatmul.bf16.gmra.mxu0 %v497
      %v618 = vpop.f32.mrf.mxu0
      %v619 = vadd.f32 0.0, %v618
      %v620 = vpop.f32.mrf.mxu0
      %v621 = vadd.f32 0.0, %v620
      %622 = vmatmul.bf16.gmra.mxu0 %v498
      %v623 = vpop.f32.mrf.mxu0
      %v624 = vadd.f32 0.0, %v623
      %v625 = vpop.f32.mrf.mxu0
      %v626 = vadd.f32 0.0, %v625
      %627 = vmatmul.bf16.gmra.mxu0 %v499
      %v628 = vpop.f32.mrf.mxu0
      %v629 = vadd.f32 0.0, %v628
      %v630 = vpop.f32.mrf.mxu0
      %v631 = vadd.f32 0.0, %v630
      %632 = vmatmul.bf16.gmra.mxu0 %v500
      %v633 = vpop.f32.mrf.mxu0
      %v634 = vadd.f32 0.0, %v633
      %v635 = vpop.f32.mrf.mxu0
      %v636 = vadd.f32 0.0, %v635
      %637 = vmatmul.bf16.gmra.mxu0 %v501
      %v638 = vpop.f32.mrf.mxu0
      %v639 = vadd.f32 0.0, %v638
      %v640 = vpop.f32.mrf.mxu0
      %v641 = vadd.f32 0.0, %v640
      %642 = vmatmul.bf16.gmra.mxu0 %v502
      %v643 = vpop.f32.mrf.mxu0
      %v644 = vadd.f32 0.0, %v643
      %v645 = vpop.f32.mrf.mxu0
      %v646 = vadd.f32 0.0, %v645
      %647 = vmatmul.bf16.gmra.mxu0 %v503
      %v648 = vpop.f32.mrf.mxu0
      %v649 = vadd.f32 0.0, %v648
      %v650 = vpop.f32.mrf.mxu0
      %v651 = vadd.f32 0.0, %v650
      %652 = vmatmul.bf16.gmra.mxu0 %v504
      %v653 = vpop.f32.mrf.mxu0
      %v654 = vadd.f32 0.0, %v653
      %v655 = vpop.f32.mrf.mxu0
      %v656 = vadd.f32 0.0, %v655
      %657 = vdwg.mxu0
      %v658 = vadd.f32 %v345, %v579
      %v659 = vadd.f32 %v346, %v581
      %v660 = vadd.f32 %v347, %v584
      %v661 = vadd.f32 %v348, %v586
      %v662 = vadd.f32 %v349, %v589
      %v663 = vadd.f32 %v350, %v591
      %v664 = vadd.f32 %v351, %v594
      %v665 = vadd.f32 %v352, %v596
      %v666 = vadd.f32 %v353, %v599
      %v667 = vadd.f32 %v354, %v601
      %v668 = vadd.f32 %v355, %v604
      %v669 = vadd.f32 %v356, %v606
      %v670 = vadd.f32 %v357, %v609
      %v671 = vadd.f32 %v358, %v611
      %v672 = vadd.f32 %v359, %v614
      %v673 = vadd.f32 %v360, %v616
      %v674 = vadd.f32 %v361, %v619
      %v675 = vadd.f32 %v362, %v621
      %v676 = vadd.f32 %v363, %v624
      %v677 = vadd.f32 %v364, %v626
      %v678 = vadd.f32 %v365, %v629
      %v679 = vadd.f32 %v366, %v631
      %v680 = vadd.f32 %v367, %v634
      %v681 = vadd.f32 %v368, %v636
      %v682 = vadd.f32 %v369, %v639
      %v683 = vadd.f32 %v370, %v641
      %v684 = vadd.f32 %v371, %v644
      %v685 = vadd.f32 %v372, %v646
      %v686 = vadd.f32 %v373, %v649
      %v687 = vadd.f32 %v374, %v651
      %v688 = vadd.f32 %v375, %v654
      %v689 = vadd.f32 %v376, %v656
      %690 = vst [vmem:[#allocation2] sm:$0xff] %v658
      %691 = vst [vmem:[#allocation2 + $0x8] sm:$0xff] %v659
      %692 = vst [vmem:[#allocation2 + $0x10] sm:$0xff] %v660
      %693 = vst [vmem:[#allocation2 + $0x18] sm:$0xff] %v661
      %694 = vst [vmem:[#allocation2 + $0x20] sm:$0xff] %v662
      %695 = vst [vmem:[#allocation2 + $0x28] sm:$0xff] %v663
      %696 = vst [vmem:[#allocation2 + $0x30] sm:$0xff] %v664
      %697 = vst [vmem:[#allocation2 + $0x38] sm:$0xff] %v665
      %698 = vst [vmem:[#allocation2 + $0x40] sm:$0xff] %v666
      %699 = vst [vmem:[#allocation2 + $0x48] sm:$0xff] %v667
      %700 = vst [vmem:[#allocation2 + $0x50] sm:$0xff] %v668
      %701 = vst [vmem:[#allocation2 + $0x58] sm:$0xff] %v669
      %702 = vst [vmem:[#allocation2 + $0x60] sm:$0xff] %v670
      %703 = vst [vmem:[#allocation2 + $0x68] sm:$0xff] %v671
      %704 = vst [vmem:[#allocation2 + $0x70] sm:$0xff] %v672
      %705 = vst [vmem:[#allocation2 + $0x78] sm:$0xff] %v673
      %706 = vst [vmem:[#allocation2 + $0x80] sm:$0xff] %v674
      %707 = vst [vmem:[#allocation2 + $0x88] sm:$0xff] %v675
      %708 = vst [vmem:[#allocation2 + $0x90] sm:$0xff] %v676
      %709 = vst [vmem:[#allocation2 + $0x98] sm:$0xff] %v677
      %710 = vst [vmem:[#allocation2 + $0xa0] sm:$0xff] %v678
      %711 = vst [vmem:[#allocation2 + $0xa8] sm:$0xff] %v679
      %712 = vst [vmem:[#allocation2 + $0xb0] sm:$0xff] %v680
      %713 = vst [vmem:[#allocation2 + $0xb8] sm:$0xff] %v681
      %714 = vst [vmem:[#allocation2 + $0xc0] sm:$0xff] %v682
      %715 = vst [vmem:[#allocation2 + $0xc8] sm:$0xff] %v683
      %716 = vst [vmem:[#allocation2 + $0xd0] sm:$0xff] %v684
      %717 = vst [vmem:[#allocation2 + $0xd8] sm:$0xff] %v685
      %718 = vst [vmem:[#allocation2 + $0xe0] sm:$0xff] %v686
      %719 = vst [vmem:[#allocation2 + $0xe8] sm:$0xff] %v687
      %720 = vst [vmem:[#allocation2 + $0xf0] sm:$0xff] %v688
      %721 = vst [vmem:[#allocation2 + $0xf8] sm:$0xff] %v689
      // Predicated region
      $region33: #{forward.9} parent=27 // pred_check
        %p722 = pneg %p309
      $region34: #{forward.9} parent=27 // pred_check_branch
        %724 = sbr.rel (%p722) target = $region36
      $region35: #{forward.9} parent=27 // pred_region
        %v725 = vld [vmem:[#allocation2] sm:$0xff]
        %v726 = vld [vmem:[#allocation2 + $0x8] sm:$0xff]
        %v727 = vld [vmem:[#allocation2 + $0x10] sm:$0xff]
        %v728 = vld [vmem:[#allocation2 + $0x18] sm:$0xff]
        %v729 = vld [vmem:[#allocation2 + $0x20] sm:$0xff]
        %v730 = vld [vmem:[#allocation2 + $0x28] sm:$0xff]
        %v731 = vld [vmem:[#allocation2 + $0x30] sm:$0xff]
        %v732 = vld [vmem:[#allocation2 + $0x38] sm:$0xff]
        %v733 = vld [vmem:[#allocation2 + $0x40] sm:$0xff]
        %v734 = vld [vmem:[#allocation2 + $0x48] sm:$0xff]
        %v735 = vld [vmem:[#allocation2 + $0x50] sm:$0xff]
        %v736 = vld [vmem:[#allocation2 + $0x58] sm:$0xff]
        %v737 = vld [vmem:[#allocation2 + $0x60] sm:$0xff]
        %v738 = vld [vmem:[#allocation2 + $0x68] sm:$0xff]
        %v739 = vld [vmem:[#allocation2 + $0x70] sm:$0xff]
        %v740 = vld [vmem:[#allocation2 + $0x78] sm:$0xff]
        %v741 = vld [vmem:[#allocation2 + $0x80] sm:$0xff]
        %v742 = vld [vmem:[#allocation2 + $0x88] sm:$0xff]
        %v743 = vld [vmem:[#allocation2 + $0x90] sm:$0xff]
        %v744 = vld [vmem:[#allocation2 + $0x98] sm:$0xff]
        %v745 = vld [vmem:[#allocation2 + $0xa0] sm:$0xff]
        %v746 = vld [vmem:[#allocation2 + $0xa8] sm:$0xff]
        %v747 = vld [vmem:[#allocation2 + $0xb0] sm:$0xff]
        %v748 = vld [vmem:[#allocation2 + $0xb8] sm:$0xff]
        %v749 = vld [vmem:[#allocation2 + $0xc0] sm:$0xff]
        %v750 = vld [vmem:[#allocation2 + $0xc8] sm:$0xff]
        %v751 = vld [vmem:[#allocation2 + $0xd0] sm:$0xff]
        %v752 = vld [vmem:[#allocation2 + $0xd8] sm:$0xff]
        %v753 = vld [vmem:[#allocation2 + $0xe0] sm:$0xff]
        %v754 = vld [vmem:[#allocation2 + $0xe8] sm:$0xff]
        %v755 = vld [vmem:[#allocation2 + $0xf0] sm:$0xff]
        %v756 = vld [vmem:[#allocation2 + $0xf8] sm:$0xff]
        %v757 = vpack.c.bf16 %v725, %v725
        %v758 = vpack.c.bf16 %v726, %v726
        %v759 = vpack.c.bf16 %v727, %v727
        %v760 = vpack.c.bf16 %v728, %v728
        %v761 = vpack.c.bf16 %v729, %v729
        %v762 = vpack.c.bf16 %v730, %v730
        %v763 = vpack.c.bf16 %v731, %v731
        %v764 = vpack.c.bf16 %v732, %v732
        %v765 = vpack.c.bf16 %v733, %v733
        %v766 = vpack.c.bf16 %v734, %v734
        %v767 = vpack.c.bf16 %v735, %v735
        %v768 = vpack.c.bf16 %v736, %v736
        %v769 = vpack.c.bf16 %v737, %v737
        %v770 = vpack.c.bf16 %v738, %v738
        %v771 = vpack.c.bf16 %v739, %v739
        %v772 = vpack.c.bf16 %v740, %v740
        %v773 = vpack.c.bf16 %v741, %v741
        %v774 = vpack.c.bf16 %v742, %v742
        %v775 = vpack.c.bf16 %v743, %v743
        %v776 = vpack.c.bf16 %v744, %v744
        %v777 = vpack.c.bf16 %v745, %v745
        %v778 = vpack.c.bf16 %v746, %v746
        %v779 = vpack.c.bf16 %v747, %v747
        %v780 = vpack.c.bf16 %v748, %v748
        %v781 = vpack.c.bf16 %v749, %v749
        %v782 = vpack.c.bf16 %v750, %v750
        %v783 = vpack.c.bf16 %v751, %v751
        %v784 = vpack.c.bf16 %v752, %v752
        %v785 = vpack.c.bf16 %v753, %v753
        %v786 = vpack.c.bf16 %v754, %v754
        %v787 = vpack.c.bf16 %v755, %v755
        %v788 = vpack.c.bf16 %v756, %v756
        %789 = vst [vmem:[%s293] sm:$0xf] %v757
        %790 = vst [vmem:[%s293 + $0x4] sm:$0xf] %v758
        %791 = vst [vmem:[%s293 + $0x8] sm:$0xf] %v759
        %792 = vst [vmem:[%s293 + $0xc] sm:$0xf] %v760
        %793 = vst [vmem:[%s293 + $0x10] sm:$0xf] %v761
        %794 = vst [vmem:[%s293 + $0x14] sm:$0xf] %v762
        %795 = vst [vmem:[%s293 + $0x18] sm:$0xf] %v763
        %796 = vst [vmem:[%s293 + $0x1c] sm:$0xf] %v764
        %797 = vst [vmem:[%s293 + $0x20] sm:$0xf] %v765
        %798 = vst [vmem:[%s293 + $0x24] sm:$0xf] %v766
        %799 = vst [vmem:[%s293 + $0x28] sm:$0xf] %v767
        %800 = vst [vmem:[%s293 + $0x2c] sm:$0xf] %v768
        %801 = vst [vmem:[%s293 + $0x30] sm:$0xf] %v769
        %802 = vst [vmem:[%s293 + $0x34] sm:$0xf] %v770
        %803 = vst [vmem:[%s293 + $0x38] sm:$0xf] %v771
        %804 = vst [vmem:[%s293 + $0x3c] sm:$0xf] %v772
        %805 = vst [vmem:[%s293 + $0x40] sm:$0xf] %v773
        %806 = vst [vmem:[%s293 + $0x44] sm:$0xf] %v774
        %807 = vst [vmem:[%s293 + $0x48] sm:$0xf] %v775
        %808 = vst [vmem:[%s293 + $0x4c] sm:$0xf] %v776
        %809 = vst [vmem:[%s293 + $0x50] sm:$0xf] %v777
        %810 = vst [vmem:[%s293 + $0x54] sm:$0xf] %v778
        %811 = vst [vmem:[%s293 + $0x58] sm:$0xf] %v779
        %812 = vst [vmem:[%s293 + $0x5c] sm:$0xf] %v780
        %813 = vst [vmem:[%s293 + $0x60] sm:$0xf] %v781
        %814 = vst [vmem:[%s293 + $0x64] sm:$0xf] %v782
        %815 = vst [vmem:[%s293 + $0x68] sm:$0xf] %v783
        %816 = vst [vmem:[%s293 + $0x6c] sm:$0xf] %v784
        %817 = vst [vmem:[%s293 + $0x70] sm:$0xf] %v785
        %818 = vst [vmem:[%s293 + $0x74] sm:$0xf] %v786
        %819 = vst [vmem:[%s293 + $0x78] sm:$0xf] %v787
        %820 = vst [vmem:[%s293 + $0x7c] sm:$0xf] %v788
        %v821 = vadd.f32 %v725, %v726
        %v822 = vadd.f32 %v821, %v727
        %v823 = vadd.f32 %v822, %v728
        %v824 = vadd.f32 %v823, %v729
        %v825 = vadd.f32 %v824, %v730
        %v826 = vadd.f32 %v825, %v731
        %v827 = vadd.f32 %v826, %v732
        %v828 = vadd.f32 %v827, %v733
        %v829 = vadd.f32 %v828, %v734
        %v830 = vadd.f32 %v829, %v735
        %v831 = vadd.f32 %v830, %v736
        %v832 = vadd.f32 %v831, %v737
        %v833 = vadd.f32 %v832, %v738
        %v834 = vadd.f32 %v833, %v739
        %v835 = vadd.f32 %v834, %v740
        %v836 = vadd.f32 %v835, %v741
        %v837 = vadd.f32 %v836, %v742
        %v838 = vadd.f32 %v837, %v743
        %v839 = vadd.f32 %v838, %v744
        %v840 = vadd.f32 %v839, %v745
        %v841 = vadd.f32 %v840, %v746
        %v842 = vadd.f32 %v841, %v747
        %v843 = vadd.f32 %v842, %v748
        %v844 = vadd.f32 %v843, %v749
        %v845 = vadd.f32 %v844, %v750
        %v846 = vadd.f32 %v845, %v751
        %v847 = vadd.f32 %v846, %v752
        %v848 = vadd.f32 %v847, %v753
        %v849 = vadd.f32 %v848, %v754
        %v850 = vadd.f32 %v849, %v755
        %v851 = vadd.f32 %v850, %v756
        %v852 = vrot.slane %v851, 4
        %v853 = vadd.f32 %v851, %v852
        %v854 = vrot.slane %v853, 2
        %v855 = vadd.f32 %v853, %v854
        %v856 = vrot.slane %v855, 1
        %v857 = vadd.f32 %v855, %v856
        %v858 = vmul.f32 %v725, %v725
        %v859 = vmul.f32 %v726, %v726
        %v860 = vmul.f32 %v727, %v727
        %v861 = vmul.f32 %v728, %v728
        %v862 = vmul.f32 %v729, %v729
        %v863 = vmul.f32 %v730, %v730
        %v864 = vmul.f32 %v731, %v731
        %v865 = vmul.f32 %v732, %v732
        %v866 = vmul.f32 %v733, %v733
        %v867 = vmul.f32 %v734, %v734
        %v868 = vmul.f32 %v735, %v735
        %v869 = vmul.f32 %v736, %v736
        %v870 = vmul.f32 %v737, %v737
        %v871 = vmul.f32 %v738, %v738
        %v872 = vmul.f32 %v739, %v739
        %v873 = vmul.f32 %v740, %v740
        %v874 = vmul.f32 %v741, %v741
        %v875 = vmul.f32 %v742, %v742
        %v876 = vmul.f32 %v743, %v743
        %v877 = vmul.f32 %v744, %v744
        %v878 = vmul.f32 %v745, %v745
        %v879 = vmul.f32 %v746, %v746
        %v880 = vmul.f32 %v747, %v747
        %v881 = vmul.f32 %v748, %v748
        %v882 = vmul.f32 %v749, %v749
        %v883 = vmul.f32 %v750, %v750
        %v884 = vmul.f32 %v751, %v751
        %v885 = vmul.f32 %v752, %v752
        %v886 = vmul.f32 %v753, %v753
        %v887 = vmul.f32 %v754, %v754
        %v888 = vmul.f32 %v755, %v755
        %v889 = vmul.f32 %v756, %v756
        %v890 = vadd.f32 %v858, %v859
        %v891 = vadd.f32 %v890, %v860
        %v892 = vadd.f32 %v891, %v861
        %v893 = vadd.f32 %v892, %v862
        %v894 = vadd.f32 %v893, %v863
        %v895 = vadd.f32 %v894, %v864
        %v896 = vadd.f32 %v895, %v865
        %v897 = vadd.f32 %v896, %v866
        %v898 = vadd.f32 %v897, %v867
        %v899 = vadd.f32 %v898, %v868
        %v900 = vadd.f32 %v899, %v869
        %v901 = vadd.f32 %v900, %v870
        %v902 = vadd.f32 %v901, %v871
        %v903 = vadd.f32 %v902, %v872
        %v904 = vadd.f32 %v903, %v873
        %v905 = vadd.f32 %v904, %v874
        %v906 = vadd.f32 %v905, %v875
        %v907 = vadd.f32 %v906, %v876
        %v908 = vadd.f32 %v907, %v877
        %v909 = vadd.f32 %v908, %v878
        %v910 = vadd.f32 %v909, %v879
        %v911 = vadd.f32 %v910, %v880
        %v912 = vadd.f32 %v911, %v881
        %v913 = vadd.f32 %v912, %v882
        %v914 = vadd.f32 %v913, %v883
        %v915 = vadd.f32 %v914, %v884
        %v916 = vadd.f32 %v915, %v885
        %v917 = vadd.f32 %v916, %v886
        %v918 = vadd.f32 %v917, %v887
        %v919 = vadd.f32 %v918, %v888
        %v920 = vadd.f32 %v919, %v889
        %v921 = vrot.slane %v920, 4
        %v922 = vadd.f32 %v920, %v921
        %v923 = vrot.slane %v922, 2
        %v924 = vadd.f32 %v922, %v923
        %v925 = vrot.slane %v924, 1
        %v926 = vadd.f32 %v924, %v925
        %v927 = vlaneseq
        %v928 = vshrl.u32 %v927, 7
        %vm929 = vcmp.eq.s32.totalorder %v928, 0
        %v930 = vsel %vm929, %v857, 0.0
        %931 = vst [vmem:[%s301] sm:$0xff] %v930
        %v932 = vsel %vm929, %v926, 0.0
        %933 = vst [vmem:[%s308] sm:$0xff] %v932
      $region36: #{forward.9} parent=27 // pred_fallthru
        _
      %s934 = smul.u32 32, %s21
      %p935 = scmp.lt.s32.totalorder %s934, 63
      %s936 = scalar_select %p935, %s934, 63
      %p937 = scmp.lt.s32.totalorder %s22, 0
      %s938 = scalar_select %p937, %s22, 0
      %s939 = sadd.s32 %s938, %s936
      %s940 = smul.addr %s939, 4
      %s941 = scalar_lea.vmem %s2, %s940
      %p942 = scmp.lt.s32.totalorder %s21, 1
      %s943 = scalar_select %p942, %s21, 1
      %p944 = scmp.lt.s32.totalorder %s22, 0
      %s945 = scalar_select %p944, %s22, 0
      %s946 = sadd.s32 %s945, %s943
      %s947 = smul.addr %s946, 8
      %s948 = scalar_lea.vmem %s3, %s947
      %p949 = scmp.lt.s32.totalorder %s21, 1
      %s950 = scalar_select %p949, %s21, 1
      %p951 = scmp.lt.s32.totalorder %s22, 0
      %s952 = scalar_select %p951, %s22, 0
      %s953 = sadd.s32 %s952, %s950
      %s954 = smul.addr %s953, 8
      %s955 = scalar_lea.vmem %s4, %s954
      // Predicated region
      $region37: #{forward.9} parent=27 // pred_check
        %p956 = pneg %p111
      $region38: #{forward.9} parent=27 // pred_check_branch
        %958 = sbr.rel (%p956) target = $region40
      $region39: #{forward.9} parent=27 // pred_region
        %s959 = smul.u32 32, %s21
      $region40: #{forward.9} parent=27 // pred_fallthru
        _
      // Predicated region
      $region41: #{forward.9} parent=27 // pred_check
        %p960 = pneg %p139
      $region42: #{forward.9} parent=27 // pred_check_branch
        %962 = sbr.rel (%p960) target = $region44
      $region43: #{forward.9} parent=27 // pred_region
        _
      $region44: #{forward.9} parent=27 // pred_fallthru
        _
      // Predicated region
      $region45: #{forward.9} parent=27 // pred_check
        %p963 = pneg %p167
      $region46: #{forward.9} parent=27 // pred_check_branch
        %965 = sbr.rel (%p963) target = $region48
      $region47: #{forward.9} parent=27 // pred_region
        _
      $region48: #{forward.9} parent=27 // pred_fallthru
        _
    $region28: #{forward.9} parent=5 // pred_fallthru
      _
    %p966 = scmp.le.s32.totalorder 2, %s11
    // Predicated region
    $region49: #{forward.9} parent=5 // pred_check
      %p967 = pneg %p966
    $region50: #{forward.9} parent=5 // pred_check_branch
      %969 = sbr.rel (%p967) target = $region52
    $region51: #{forward.9} parent=5 // pred_region
      %s970 = ssub.s32 %s11, 2
      // Predicated region
      $region53: #{forward.9} parent=51 // pred_check
        %p971 = pneg %p117
      $region54: #{forward.9} parent=51 // pred_check_branch
        %973 = sbr.rel (%p971) target = $region56
      $region55: #{forward.9} parent=51 // pred_region
        %s974 = smul.u32 32, %s24
        %p975 = scmp.lt.s32.totalorder %s974, 63
        %s976 = scalar_select %p975, %s974, 63
        %p977 = scmp.lt.s32.totalorder %s25, 0
        %s978 = scalar_select %p977, %s25, 0
        %s979 = sadd.s32 %s978, %s976
        %s980 = smul.addr %s979, 4
        %s981 = scalar_lea.vmem %s2, %s980
      $region56: #{forward.9} parent=51 // pred_fallthru
        _
      // Predicated region
      $region57: #{forward.9} parent=51 // pred_check
        %p982 = pneg %p145
      $region58: #{forward.9} parent=51 // pred_check_branch
        %984 = sbr.rel (%p982) target = $region60
      $region59: #{forward.9} parent=51 // pred_region
        %p985 = scmp.lt.s32.totalorder %s24, 1
        %s986 = scalar_select %p985, %s24, 1
        %p987 = scmp.lt.s32.totalorder %s25, 0
        %s988 = scalar_select %p987, %s25, 0
        %s989 = sadd.s32 %s988, %s986
        %s990 = smul.addr %s989, 8
        %s991 = scalar_lea.vmem %s3, %s990
      $region60: #{forward.9} parent=51 // pred_fallthru
        _
      // Predicated region
      $region61: #{forward.9} parent=51 // pred_check
        %p992 = pneg %p173
      $region62: #{forward.9} parent=51 // pred_check_branch
        %994 = sbr.rel (%p992) target = $region64
      $region63: #{forward.9} parent=51 // pred_region
        %p995 = scmp.lt.s32.totalorder %s24, 1
        %s996 = scalar_select %p995, %s24, 1
        %p997 = scmp.lt.s32.totalorder %s25, 0
        %s998 = scalar_select %p997, %s25, 0
        %s999 = sadd.s32 %s998, %s996
        %s1000 = smul.addr %s999, 8
        %s1001 = scalar_lea.vmem %s4, %s1000
      $region64: #{forward.9} parent=51 // pred_fallthru
        _
    $region52: #{forward.9} parent=5 // pred_fallthru
      _
  $region6: #{forward.9} parent=0 // loop_footer
    %s15 = sadd.s32 1, %s11
  $region7: #{forward.9} parent=0 // loop_footer_branch
    %10 = sbr.rel target = $region3
  $region8: #{forward.9} parent=0 // loop_exit
    _

// kernel: forward.10
$region0: #{forward.10}
  #allocation0 [shape = 'u32[]', space=smem, size = 0x4, offset = 0x4, fixed_abs, tag = 'smem constant byte address 0x4 - core index']
  #allocation1 [shape = 'u32[72,128]{1,0:T(1,128)}', space=vmem, size = 0x9000, scoped, tag = 'internal scratch']
  %s0 = inlined_call_operand.vmem [shape: bf16[512,128], index: 0, kind: input, shape index: {}]
  %s1 = inlined_call_operand.vmem [shape: f32[1,128], index: 1, kind: input, shape index: {}]
  %s2 = inlined_call_operand.vmem [shape: f32[1,128], index: 2, kind: input, shape index: {}]
  %s3 = inlined_call_operand.vmem [shape: bf16[512,128], index: 3, kind: output, shape index: {}]
  %s4 = sld [smem:[#allocation0]]
  $region45: #{forward.10} parent=0
    _
  %s6 = ssub.s32 1, %s4
  %s7 = scalar_select 0, %s6, %s4
  loop: start=0, step=1, limit=4
  $region2: #{forward.10} parent=0 // loop_pre_header
    _
  $region3: #{forward.10} parent=0 // loop_header
    %s9 = sphi 0, %s13
    %p10 = scmp.ge.s32.totalorder %s9, 4
    %s19 = sphi 0, %s21
    %s22 = sphi 0, %s19
    %s23 = sphi 0, %s22
    %s39 = sphi 0, %s23
    %s43 = sphi 0, %s43
    %s45 = sphi 0, %s43
    %s46 = sphi 0, %s45
    %s60 = sphi 0, %s46
    %s64 = sphi 0, %s64
    %s66 = sphi 0, %s64
    %s67 = sphi 0, %s66
    %s81 = sphi 0, %s67
    %s87 = sphi 0, %s89
    %s90 = sphi 0, %s87
    %s91 = sphi 0, %s90
    %s107 = sphi 0, %s91
  $region4: #{forward.10} parent=0 // loop_header_branch
    %12 = sbr.rel (%p10) target = $region8
  $region5: #{forward.10} parent=0 // loop_body
    %s14 = ssub.s32 %s9, 1
    %s15 = ssub.s32 %s9, 2
    %s16 = sadd.s32 %s9, 1
    %s17 = ssub.s32 %s9, %s16
    %p18 = scmp.eq.s32.totalorder %s17, 0
    %s20 = sadd.s32 %s19, 1
    %s21 = scalar_select %p18, %s19, %s20
    %p24 = pneg %p18
    %p25 = scmp.eq.s32.totalorder %s9, 1
    %p26 = por %p24, %p25
    %p27 = scmp.ne.s32.totalorder %s19, %s22
    %p28 = scmp.eq.s32.totalorder %s9, 0
    %p29 = por %p27, %p28
    %p30 = scmp.ne.s32.totalorder %s19, %s22
    %p31 = scmp.eq.s32.totalorder %s14, 1
    %p32 = por %p30, %p31
    %p33 = scmp.ne.s32.totalorder %s22, %s23
    %p34 = scmp.eq.s32.totalorder %s14, 0
    %p35 = por %p33, %p34
    %p36 = scmp.ne.s32.totalorder %s22, %s23
    %p37 = scmp.eq.s32.totalorder %s15, 1
    %p38 = por %p36, %p37
    %p40 = scmp.ne.s32.totalorder %s23, %s39
    %p41 = scmp.eq.s32.totalorder %s15, 0
    %p42 = por %p40, %p41
    %s44 = sadd.s32 %s43, 1
    %p47 = scmp.eq.s32.totalorder %s9, 1
    %p48 = scmp.ne.s32.totalorder %s43, %s45
    %p49 = scmp.eq.s32.totalorder %s9, 0
    %p50 = por %p48, %p49
    %p51 = scmp.ne.s32.totalorder %s43, %s45
    %p52 = scmp.eq.s32.totalorder %s14, 1
    %p53 = por %p51, %p52
    %p54 = scmp.ne.s32.totalorder %s45, %s46
    %p55 = scmp.eq.s32.totalorder %s14, 0
    %p56 = por %p54, %p55
    %p57 = scmp.ne.s32.totalorder %s45, %s46
    %p58 = scmp.eq.s32.totalorder %s15, 1
    %p59 = por %p57, %p58
    %p61 = scmp.ne.s32.totalorder %s46, %s60
    %p62 = scmp.eq.s32.totalorder %s15, 0
    %p63 = por %p61, %p62
    %s65 = sadd.s32 %s64, 1
    %p68 = scmp.eq.s32.totalorder %s9, 1
    %p69 = scmp.ne.s32.totalorder %s64, %s66
    %p70 = scmp.eq.s32.totalorder %s9, 0
    %p71 = por %p69, %p70
    %p72 = scmp.ne.s32.totalorder %s64, %s66
    %p73 = scmp.eq.s32.totalorder %s14, 1
    %p74 = por %p72, %p73
    %p75 = scmp.ne.s32.totalorder %s66, %s67
    %p76 = scmp.eq.s32.totalorder %s14, 0
    %p77 = por %p75, %p76
    %p78 = scmp.ne.s32.totalorder %s66, %s67
    %p79 = scmp.eq.s32.totalorder %s15, 1
    %p80 = por %p78, %p79
    %p82 = scmp.ne.s32.totalorder %s67, %s81
    %p83 = scmp.eq.s32.totalorder %s15, 0
    %p84 = por %p82, %p83
    %s85 = ssub.s32 %s9, %s16
    %p86 = scmp.eq.s32.totalorder %s85, 0
    %s88 = sadd.s32 %s87, 1
    %s89 = scalar_select %p86, %s87, %s88
    %p92 = pneg %p86
    %p93 = scmp.eq.s32.totalorder %s9, 1
    %p94 = por %p92, %p93
    %p95 = scmp.ne.s32.totalorder %s87, %s90
    %p96 = scmp.eq.s32.totalorder %s9, 0
    %p97 = por %p95, %p96
    %p98 = scmp.ne.s32.totalorder %s87, %s90
    %p99 = scmp.eq.s32.totalorder %s14, 1
    %p100 = por %p98, %p99
    %p101 = scmp.ne.s32.totalorder %s90, %s91
    %p102 = scmp.eq.s32.totalorder %s14, 0
    %p103 = por %p101, %p102
    %p104 = scmp.ne.s32.totalorder %s90, %s91
    %p105 = scmp.eq.s32.totalorder %s15, 1
    %p106 = por %p104, %p105
    %p108 = scmp.ne.s32.totalorder %s91, %s107
    %p109 = scmp.eq.s32.totalorder %s15, 0
    %p110 = por %p108, %p109
    %p111 = scmp.le.s32.totalorder 1, %s9
    %p112 = scmp.lt.s32.totalorder %s9, 3
    %p113 = pnand %p111, %p112
    %p114 = pneg %p113
    // Predicated region
    $region9: #{forward.10} parent=5 // pred_check
      _
    $region10: #{forward.10} parent=5 // pred_check_branch
      %116 = sbr.rel (%p113) target = $region12
    $region11: #{forward.10} parent=5 // pred_region
      %s117 = ssub.s32 %s9, 1
      // Predicated region
      $region13: #{forward.10} parent=11 // pred_check
        %p118 = pneg %p56
      $region14: #{forward.10} parent=11 // pred_check_branch
        %120 = sbr.rel (%p118) target = $region16
      $region15: #{forward.10} parent=11 // pred_region
        _
      $region16: #{forward.10} parent=11 // pred_fallthru
        _
      // Predicated region
      $region17: #{forward.10} parent=11 // pred_check
        %p121 = pneg %p77
      $region18: #{forward.10} parent=11 // pred_check_branch
        %123 = sbr.rel (%p121) target = $region20
      $region19: #{forward.10} parent=11 // pred_region
        _
      $region20: #{forward.10} parent=11 // pred_fallthru
        _
    $region12: #{forward.10} parent=5 // pred_fallthru
      _
    %p124 = scmp.lt.s32.totalorder %s9, 2
    // Predicated region
    $region21: #{forward.10} parent=5 // pred_check
      %p125 = pneg %p124
    $region22: #{forward.10} parent=5 // pred_check_branch
      %127 = sbr.rel (%p125) target = $region24
    $region23: #{forward.10} parent=5 // pred_region
      // Predicated region
      $region25: #{forward.10} parent=23 // pred_check
        %p128 = pneg %p29
      $region26: #{forward.10} parent=23 // pred_check_branch
        %130 = sbr.rel (%p128) target = $region28
      $region27: #{forward.10} parent=23 // pred_region
        %s131 = smul.u32 32, %s9
        %p132 = scmp.lt.s32.totalorder %s131, 63
        %s133 = scalar_select %p132, %s131, 63
        %s134 = smul.addr %s133, 4
        %s135 = scalar_lea.vmem %s0, %s134
        %s136 = smul.u32 32, %s9
      $region28: #{forward.10} parent=23 // pred_fallthru
        _
    $region24: #{forward.10} parent=5 // pred_fallthru
      _
    %p137 = scmp.le.s32.totalorder 1, %s9
    %p138 = scmp.lt.s32.totalorder %s9, 3
    %p139 = pnand %p137, %p138
    %p140 = pneg %p139
    // Predicated region
    $region29: #{forward.10} parent=5 // pred_check
      _
    $region30: #{forward.10} parent=5 // pred_check_branch
      %142 = sbr.rel (%p139) target = $region32
    $region31: #{forward.10} parent=5 // pred_region
      %s143 = ssub.s32 %s9, 1
      %s144 = smul.u32 32, %s14
      %p145 = scmp.lt.s32.totalorder %s144, 63
      %s146 = scalar_select %p145, %s144, 63
      %s147 = smul.addr %s146, 4
      %s148 = scalar_lea.vmem %s0, %s147
      %p149 = pneg %p35
      %p150 = pneg %p32
      %p151 = pneg %p56
      %p152 = pneg %p53
      %p153 = pneg %p77
      %p154 = pneg %p74
      %p155 = pneg %p103
      %p156 = pneg %p100
      %s157 = smul.u32 32, %s14
      %p158 = scmp.lt.s32.totalorder %s157, 63
      %s159 = scalar_select %p158, %s157, 63
      %s160 = smul.addr %s159, 4
      %s161 = scalar_lea.vmem %s3, %s160
      %s162 = smul.u32 32, %s14
      %p163 = scmp.lt.s32.totalorder %s162, 63
      %s164 = scalar_select %p163, %s162, 63
      %s165 = smul.addr %s164, 4
      %s166 = scalar_lea.vmem %s0, %s165
      %s167 = smul.u32 32, %s14
      %s168 = smul.u32 32, %s14
      %p169 = scmp.lt.s32.totalorder %s168, 63
      %s170 = scalar_select %p169, %s168, 63
      %s171 = smul.addr %s170, 4
      %s172 = scalar_lea.vmem %s3, %s171
      %s173 = smul.u32 32, %s14
      %v174 = vld [vmem:[%s166] sm:$0xf]
      %v175 = vld [vmem:[%s166 + $0x4] sm:$0xf]
      %v176 = vld [vmem:[%s166 + $0x8] sm:$0xf]
      %v177 = vld [vmem:[%s166 + $0xc] sm:$0xf]
      %v178 = vld [vmem:[%s166 + $0x10] sm:$0xf]
      %v179 = vld [vmem:[%s166 + $0x14] sm:$0xf]
      %v180 = vld [vmem:[%s166 + $0x18] sm:$0xf]
      %v181 = vld [vmem:[%s166 + $0x1c] sm:$0xf]
      %v182 = vld [vmem:[%s166 + $0x20] sm:$0xf]
      %v183 = vld [vmem:[%s166 + $0x24] sm:$0xf]
      %v184 = vld [vmem:[%s166 + $0x28] sm:$0xf]
      %v185 = vld [vmem:[%s166 + $0x2c] sm:$0xf]
      %v186 = vld [vmem:[%s166 + $0x30] sm:$0xf]
      %v187 = vld [vmem:[%s166 + $0x34] sm:$0xf]
      %v188 = vld [vmem:[%s166 + $0x38] sm:$0xf]
      %v189 = vld [vmem:[%s166 + $0x3c] sm:$0xf]
      %v190 = vld [vmem:[%s166 + $0x40] sm:$0xf]
      %v191 = vld [vmem:[%s166 + $0x44] sm:$0xf]
      %v192 = vld [vmem:[%s166 + $0x48] sm:$0xf]
      %v193 = vld [vmem:[%s166 + $0x4c] sm:$0xf]
      %v194 = vld [vmem:[%s166 + $0x50] sm:$0xf]
      %v195 = vld [vmem:[%s166 + $0x54] sm:$0xf]
      %v196 = vld [vmem:[%s166 + $0x58] sm:$0xf]
      %v197 = vld [vmem:[%s166 + $0x5c] sm:$0xf]
      %v198 = vld [vmem:[%s166 + $0x60] sm:$0xf]
      %v199 = vld [vmem:[%s166 + $0x64] sm:$0xf]
      %v200 = vld [vmem:[%s166 + $0x68] sm:$0xf]
      %v201 = vld [vmem:[%s166 + $0x6c] sm:$0xf]
      %v202 = vld [vmem:[%s166 + $0x70] sm:$0xf]
      %v203 = vld [vmem:[%s166 + $0x74] sm:$0xf]
      %v204 = vld [vmem:[%s166 + $0x78] sm:$0xf]
      %v205 = vld [vmem:[%s166 + $0x7c] sm:$0xf]
      %v206 = vunpack.c.l.bf16 %v174
      %v207 = vunpack.c.l.bf16 %v175
      %v208 = vunpack.c.l.bf16 %v176
      %v209 = vunpack.c.l.bf16 %v177
      %v210 = vunpack.c.l.bf16 %v178
      %v211 = vunpack.c.l.bf16 %v179
      %v212 = vunpack.c.l.bf16 %v180
      %v213 = vunpack.c.l.bf16 %v181
      %v214 = vunpack.c.l.bf16 %v182
      %v215 = vunpack.c.l.bf16 %v183
      %v216 = vunpack.c.l.bf16 %v184
      %v217 = vunpack.c.l.bf16 %v185
      %v218 = vunpack.c.l.bf16 %v186
      %v219 = vunpack.c.l.bf16 %v187
      %v220 = vunpack.c.l.bf16 %v188
      %v221 = vunpack.c.l.bf16 %v189
      %v222 = vunpack.c.l.bf16 %v190
      %v223 = vunpack.c.l.bf16 %v191
      %v224 = vunpack.c.l.bf16 %v192
      %v225 = vunpack.c.l.bf16 %v193
      %v226 = vunpack.c.l.bf16 %v194
      %v227 = vunpack.c.l.bf16 %v195
      %v228 = vunpack.c.l.bf16 %v196
      %v229 = vunpack.c.l.bf16 %v197
      %v230 = vunpack.c.l.bf16 %v198
      %v231 = vunpack.c.l.bf16 %v199
      %v232 = vunpack.c.l.bf16 %v200
      %v233 = vunpack.c.l.bf16 %v201
      %v234 = vunpack.c.l.bf16 %v202
      %v235 = vunpack.c.l.bf16 %v203
      %v236 = vunpack.c.l.bf16 %v204
      %v237 = vunpack.c.l.bf16 %v205
      %v238 = vld [vmem:[%s1] sm:$0x1]
      %v240 = vperm.slane %v238, 0
      %v242 = vmul.f32 %v206, %v240
      %v243 = vmul.f32 %v207, %v240
      %v244 = vmul.f32 %v208, %v240
      %v245 = vmul.f32 %v209, %v240
      %v246 = vmul.f32 %v210, %v240
      %v247 = vmul.f32 %v211, %v240
      %v248 = vmul.f32 %v212, %v240
      %v249 = vmul.f32 %v213, %v240
      %v250 = vmul.f32 %v214, %v240
      %v251 = vmul.f32 %v215, %v240
      %v252 = vmul.f32 %v216, %v240
      %v253 = vmul.f32 %v217, %v240
      %v254 = vmul.f32 %v218, %v240
      %v255 = vmul.f32 %v219, %v240
      %v256 = vmul.f32 %v220, %v240
      %v257 = vmul.f32 %v221, %v240
      %v258 = vmul.f32 %v222, %v240
      %v259 = vmul.f32 %v223, %v240
      %v260 = vmul.f32 %v224, %v240
      %v261 = vmul.f32 %v225, %v240
      %v262 = vmul.f32 %v226, %v240
      %v263 = vmul.f32 %v227, %v240
      %v264 = vmul.f32 %v228, %v240
      %v265 = vmul.f32 %v229, %v240
      %v266 = vmul.f32 %v230, %v240
      %v267 = vmul.f32 %v231, %v240
      %v268 = vmul.f32 %v232, %v240
      %v269 = vmul.f32 %v233, %v240
      %v270 = vmul.f32 %v234, %v240
      %v271 = vmul.f32 %v235, %v240
      %v272 = vmul.f32 %v236, %v240
      %v273 = vmul.f32 %v237, %v240
      %v274 = vld [vmem:[%s2] sm:$0x1]
      %v276 = vperm.slane %v274, 0
      %v278 = vadd.f32 %v242, %v276
      %v279 = vadd.f32 %v243, %v276
      %v280 = vadd.f32 %v244, %v276
      %v281 = vadd.f32 %v245, %v276
      %v282 = vadd.f32 %v246, %v276
      %v283 = vadd.f32 %v247, %v276
      %v284 = vadd.f32 %v248, %v276
      %v285 = vadd.f32 %v249, %v276
      %v286 = vadd.f32 %v250, %v276
      %v287 = vadd.f32 %v251, %v276
      %v288 = vadd.f32 %v252, %v276
      %v289 = vadd.f32 %v253, %v276
      %v290 = vadd.f32 %v254, %v276
      %v291 = vadd.f32 %v255, %v276
      %v292 = vadd.f32 %v256, %v276
      %v293 = vadd.f32 %v257, %v276
      %v294 = vadd.f32 %v258, %v276
      %v295 = vadd.f32 %v259, %v276
      %v296 = vadd.f32 %v260, %v276
      %v297 = vadd.f32 %v261, %v276
      %v298 = vadd.f32 %v262, %v276
      %v299 = vadd.f32 %v263, %v276
      %v300 = vadd.f32 %v264, %v276
      %v301 = vadd.f32 %v265, %v276
      %v302 = vadd.f32 %v266, %v276
      %v303 = vadd.f32 %v267, %v276
      %v304 = vadd.f32 %v268, %v276
      %v305 = vadd.f32 %v269, %v276
      %v306 = vadd.f32 %v270, %v276
      %v307 = vadd.f32 %v271, %v276
      %v308 = vadd.f32 %v272, %v276
      %v309 = vadd.f32 %v273, %v276
      %vm310 = vcmp.ge.f32.partialorder %v278, 0.0
      %vm311 = vcmp.ge.f32.partialorder %v279, 0.0
      %vm312 = vcmp.ge.f32.partialorder %v280, 0.0
      %vm313 = vcmp.ge.f32.partialorder %v281, 0.0
      %vm314 = vcmp.ge.f32.partialorder %v282, 0.0
      %vm315 = vcmp.ge.f32.partialorder %v283, 0.0
      %vm316 = vcmp.ge.f32.partialorder %v284, 0.0
      %vm317 = vcmp.ge.f32.partialorder %v285, 0.0
      %vm318 = vcmp.ge.f32.partialorder %v286, 0.0
      %vm319 = vcmp.ge.f32.partialorder %v287, 0.0
      %vm320 = vcmp.ge.f32.partialorder %v288, 0.0
      %vm321 = vcmp.ge.f32.partialorder %v289, 0.0
      %vm322 = vcmp.ge.f32.partialorder %v290, 0.0
      %vm323 = vcmp.ge.f32.partialorder %v291, 0.0
      %vm324 = vcmp.ge.f32.partialorder %v292, 0.0
      %vm325 = vcmp.ge.f32.partialorder %v293, 0.0
      %vm326 = vcmp.ge.f32.partialorder %v294, 0.0
      %vm327 = vcmp.ge.f32.partialorder %v295, 0.0
      %vm328 = vcmp.ge.f32.partialorder %v296, 0.0
      %vm329 = vcmp.ge.f32.partialorder %v297, 0.0
      %vm330 = vcmp.ge.f32.partialorder %v298, 0.0
      %vm331 = vcmp.ge.f32.partialorder %v299, 0.0
      %vm332 = vcmp.ge.f32.partialorder %v300, 0.0
      %vm333 = vcmp.ge.f32.partialorder %v301, 0.0
      %vm334 = vcmp.ge.f32.partialorder %v302, 0.0
      %vm335 = vcmp.ge.f32.partialorder %v303, 0.0
      %vm336 = vcmp.ge.f32.partialorder %v304, 0.0
      %vm337 = vcmp.ge.f32.partialorder %v305, 0.0
      %vm338 = vcmp.ge.f32.partialorder %v306, 0.0
      %vm339 = vcmp.ge.f32.partialorder %v307, 0.0
      %vm340 = vcmp.ge.f32.partialorder %v308, 0.0
      %vm341 = vcmp.ge.f32.partialorder %v309, 0.0
      %v342 = vmul.f32 %v278, 0.2
      %v343 = vmul.f32 %v279, 0.2
      %v344 = vmul.f32 %v280, 0.2
      %v345 = vmul.f32 %v281, 0.2
      %v346 = vmul.f32 %v282, 0.2
      %v347 = vmul.f32 %v283, 0.2
      %v348 = vmul.f32 %v284, 0.2
      %v349 = vmul.f32 %v285, 0.2
      %v350 = vmul.f32 %v286, 0.2
      %v351 = vmul.f32 %v287, 0.2
      %v352 = vmul.f32 %v288, 0.2
      %v353 = vmul.f32 %v289, 0.2
      %v354 = vmul.f32 %v290, 0.2
      %v355 = vmul.f32 %v291, 0.2
      %v356 = vmul.f32 %v292, 0.2
      %v357 = vmul.f32 %v293, 0.2
      %v358 = vmul.f32 %v294, 0.2
      %v359 = vmul.f32 %v295, 0.2
      %v360 = vmul.f32 %v296, 0.2
      %v361 = vmul.f32 %v297, 0.2
      %v362 = vmul.f32 %v298, 0.2
      %v363 = vmul.f32 %v299, 0.2
      %v364 = vmul.f32 %v300, 0.2
      %v365 = vmul.f32 %v301, 0.2
      %v366 = vmul.f32 %v302, 0.2
      %v367 = vmul.f32 %v303, 0.2
      %v368 = vmul.f32 %v304, 0.2
      %v369 = vmul.f32 %v305, 0.2
      %v370 = vmul.f32 %v306, 0.2
      %v371 = vmul.f32 %v307, 0.2
      %v372 = vmul.f32 %v308, 0.2
      %v373 = vmul.f32 %v309, 0.2
      %v374 = vsel %vm310, %v278, %v342
      %v375 = vsel %vm311, %v279, %v343
      %v376 = vsel %vm312, %v280, %v344
      %v377 = vsel %vm313, %v281, %v345
      %v378 = vsel %vm314, %v282, %v346
      %v379 = vsel %vm315, %v283, %v347
      %v380 = vsel %vm316, %v284, %v348
      %v381 = vsel %vm317, %v285, %v349
      %v382 = vsel %vm318, %v286, %v350
      %v383 = vsel %vm319, %v287, %v351
      %v384 = vsel %vm320, %v288, %v352
      %v385 = vsel %vm321, %v289, %v353
      %v386 = vsel %vm322, %v290, %v354
      %v387 = vsel %vm323, %v291, %v355
      %v388 = vsel %vm324, %v292, %v356
      %v389 = vsel %vm325, %v293, %v357
      %v390 = vsel %vm326, %v294, %v358
      %v391 = vsel %vm327, %v295, %v359
      %v392 = vsel %vm328, %v296, %v360
      %v393 = vsel %vm329, %v297, %v361
      %v394 = vsel %vm330, %v298, %v362
      %v395 = vsel %vm331, %v299, %v363
      %v396 = vsel %vm332, %v300, %v364
      %v397 = vsel %vm333, %v301, %v365
      %v398 = vsel %vm334, %v302, %v366
      %v399 = vsel %vm335, %v303, %v367
      %v400 = vsel %vm336, %v304, %v368
      %v401 = vsel %vm337, %v305, %v369
      %v402 = vsel %vm338, %v306, %v370
      %v403 = vsel %vm339, %v307, %v371
      %v404 = vsel %vm340, %v308, %v372
      %v405 = vsel %vm341, %v309, %v373
      %v406 = vpack.c.bf16 %v374, %v374
      %v407 = vpack.c.bf16 %v375, %v375
      %v408 = vpack.c.bf16 %v376, %v376
      %v409 = vpack.c.bf16 %v377, %v377
      %v410 = vpack.c.bf16 %v378, %v378
      %v411 = vpack.c.bf16 %v379, %v379
      %v412 = vpack.c.bf16 %v380, %v380
      %v413 = vpack.c.bf16 %v381, %v381
      %v414 = vpack.c.bf16 %v382, %v382
      %v415 = vpack.c.bf16 %v383, %v383
      %v416 = vpack.c.bf16 %v384, %v384
      %v417 = vpack.c.bf16 %v385, %v385
      %v418 = vpack.c.bf16 %v386, %v386
      %v419 = vpack.c.bf16 %v387, %v387
      %v420 = vpack.c.bf16 %v388, %v388
      %v421 = vpack.c.bf16 %v389, %v389
      %v422 = vpack.c.bf16 %v390, %v390
      %v423 = vpack.c.bf16 %v391, %v391
      %v424 = vpack.c.bf16 %v392, %v392
      %v425 = vpack.c.bf16 %v393, %v393
      %v426 = vpack.c.bf16 %v394, %v394
      %v427 = vpack.c.bf16 %v395, %v395
      %v428 = vpack.c.bf16 %v396, %v396
      %v429 = vpack.c.bf16 %v397, %v397
      %v430 = vpack.c.bf16 %v398, %v398
      %v431 = vpack.c.bf16 %v399, %v399
      %v432 = vpack.c.bf16 %v400, %v400
      %v433 = vpack.c.bf16 %v401, %v401
      %v434 = vpack.c.bf16 %v402, %v402
      %v435 = vpack.c.bf16 %v403, %v403
      %v436 = vpack.c.bf16 %v404, %v404
      %v437 = vpack.c.bf16 %v405, %v405
      %438 = vst [vmem:[%s172] sm:$0xf] %v406
      %439 = vst [vmem:[%s172 + $0x4] sm:$0xf] %v407
      %440 = vst [vmem:[%s172 + $0x8] sm:$0xf] %v408
      %441 = vst [vmem:[%s172 + $0xc] sm:$0xf] %v409
      %442 = vst [vmem:[%s172 + $0x10] sm:$0xf] %v410
      %443 = vst [vmem:[%s172 + $0x14] sm:$0xf] %v411
      %444 = vst [vmem:[%s172 + $0x18] sm:$0xf] %v412
      %445 = vst [vmem:[%s172 + $0x1c] sm:$0xf] %v413
      %446 = vst [vmem:[%s172 + $0x20] sm:$0xf] %v414
      %447 = vst [vmem:[%s172 + $0x24] sm:$0xf] %v415
      %448 = vst [vmem:[%s172 + $0x28] sm:$0xf] %v416
      %449 = vst [vmem:[%s172 + $0x2c] sm:$0xf] %v417
      %450 = vst [vmem:[%s172 + $0x30] sm:$0xf] %v418
      %451 = vst [vmem:[%s172 + $0x34] sm:$0xf] %v419
      %452 = vst [vmem:[%s172 + $0x38] sm:$0xf] %v420
      %453 = vst [vmem:[%s172 + $0x3c] sm:$0xf] %v421
      %454 = vst [vmem:[%s172 + $0x40] sm:$0xf] %v422
      %455 = vst [vmem:[%s172 + $0x44] sm:$0xf] %v423
      %456 = vst [vmem:[%s172 + $0x48] sm:$0xf] %v424
      %457 = vst [vmem:[%s172 + $0x4c] sm:$0xf] %v425
      %458 = vst [vmem:[%s172 + $0x50] sm:$0xf] %v426
      %459 = vst [vmem:[%s172 + $0x54] sm:$0xf] %v427
      %460 = vst [vmem:[%s172 + $0x58] sm:$0xf] %v428
      %461 = vst [vmem:[%s172 + $0x5c] sm:$0xf] %v429
      %462 = vst [vmem:[%s172 + $0x60] sm:$0xf] %v430
      %463 = vst [vmem:[%s172 + $0x64] sm:$0xf] %v431
      %464 = vst [vmem:[%s172 + $0x68] sm:$0xf] %v432
      %465 = vst [vmem:[%s172 + $0x6c] sm:$0xf] %v433
      %466 = vst [vmem:[%s172 + $0x70] sm:$0xf] %v434
      %467 = vst [vmem:[%s172 + $0x74] sm:$0xf] %v435
      %468 = vst [vmem:[%s172 + $0x78] sm:$0xf] %v436
      %469 = vst [vmem:[%s172 + $0x7c] sm:$0xf] %v437
      %s470 = smul.u32 32, %s14
      %p471 = scmp.lt.s32.totalorder %s470, 63
      %s472 = scalar_select %p471, %s470, 63
      %s473 = smul.addr %s472, 4
      %s474 = scalar_lea.vmem %s3, %s473
      // Predicated region
      $region33: #{forward.10} parent=31 // pred_check
        %p475 = pneg %p100
      $region34: #{forward.10} parent=31 // pred_check_branch
        %477 = sbr.rel (%p475) target = $region36
      $region35: #{forward.10} parent=31 // pred_region
        %s478 = smul.u32 32, %s14
      $region36: #{forward.10} parent=31 // pred_fallthru
        _
    $region32: #{forward.10} parent=5 // pred_fallthru
      _
    %p479 = scmp.le.s32.totalorder 2, %s9
    // Predicated region
    $region37: #{forward.10} parent=5 // pred_check
      %p480 = pneg %p479
    $region38: #{forward.10} parent=5 // pred_check_branch
      %482 = sbr.rel (%p480) target = $region40
    $region39: #{forward.10} parent=5 // pred_region
      %s483 = ssub.s32 %s9, 2
      // Predicated region
      $region41: #{forward.10} parent=39 // pred_check
        %p484 = pneg %p106
      $region42: #{forward.10} parent=39 // pred_check_branch
        %486 = sbr.rel (%p484) target = $region44
      $region43: #{forward.10} parent=39 // pred_region
        %s487 = smul.u32 32, %s15
        %p488 = scmp.lt.s32.totalorder %s487, 63
        %s489 = scalar_select %p488, %s487, 63
        %s490 = smul.addr %s489, 4
        %s491 = scalar_lea.vmem %s3, %s490
      $region44: #{forward.10} parent=39 // pred_fallthru
        _
    $region40: #{forward.10} parent=5 // pred_fallthru
      _
  $region6: #{forward.10} parent=0 // loop_footer
    %s13 = sadd.s32 1, %s9
  $region7: #{forward.10} parent=0 // loop_footer_branch
    %8 = sbr.rel target = $region3
  $region8: #{forward.10} parent=0 // loop_exit
    _

// kernel: forward.11
$region0: #{forward.11}
  #allocation0 [shape = 'u32[]', space=smem, size = 0x4, offset = 0x4, fixed_abs, tag = 'smem constant byte address 0x4 - core index']
  #allocation1 [shape = 'u32[72,128]{1,0:T(1,128)}', space=vmem, size = 0x9000, scoped, tag = 'internal scratch']
  #allocation2 [shape = 'f32[64,128]{1,0:T(8,128)}', space=vmem, size = 0x8000, scoped, tag = 'scratch operand']
  %s0 = inlined_call_operand.vmem [shape: bf16[128,256], index: 0, kind: input, shape index: {}]
  %s1 = inlined_call_operand.vmem [shape: bf16[256,128], index: 1, kind: input, shape index: {}]
  %s2 = inlined_call_operand.vmem [shape: bf16[128,128], index: 2, kind: output, shape index: {0}]
  %s3 = inlined_call_operand.vmem [shape: f32[16,128], index: 3, kind: output, shape index: {1}]
  %s4 = inlined_call_operand.vmem [shape: f32[16,128], index: 4, kind: output, shape index: {2}]
  %5 = xla_tuple %s2, %s3, %s4
  %s6 = sld [smem:[#allocation0]]
  $region65: #{forward.11} parent=0
    _
  %s8 = ssub.s32 1, %s6
  %s9 = scalar_select 0, %s8, %s6
  loop: start=0, step=1, limit=4
  $region2: #{forward.11} parent=0 // loop_pre_header
    _
  $region3: #{forward.11} parent=0 // loop_header
    %s11 = sphi 0, %s15
    %p12 = scmp.ge.s32.totalorder %s11, 4
    %s18 = sphi 0, %s37
    %s19 = sphi 0, %s33
    %s20 = sphi 0, %s29
    %s21 = sphi 0, %s18
    %s22 = sphi 0, %s19
    %s23 = sphi 0, %s20
    %s24 = sphi 0, %s21
    %s25 = sphi 0, %s22
    %s26 = sphi 0, %s23
    %s42 = sphi 0, %s44
    %s45 = sphi 0, %s42
    %s46 = sphi 0, %s45
    %s62 = sphi 0, %s46
    %s70 = sphi 0, %s72
    %s73 = sphi 0, %s70
    %s74 = sphi 0, %s73
    %s90 = sphi 0, %s74
    %s98 = sphi 0, %s100
    %s101 = sphi 0, %s98
    %s102 = sphi 0, %s101
    %s118 = sphi 0, %s102
    %s126 = sphi 0, %s128
    %s129 = sphi 0, %s126
    %s130 = sphi 0, %s129
    %s146 = sphi 0, %s130
    %s154 = sphi 0, %s156
    %s157 = sphi 0, %s154
    %s158 = sphi 0, %s157
    %s174 = sphi 0, %s158
  $region4: #{forward.11} parent=0 // loop_header_branch
    %14 = sbr.rel (%p12) target = $region8
  $region5: #{forward.11} parent=0 // loop_body
    %s16 = ssub.s32 %s11, 1
    %s17 = ssub.s32 %s11, 2
    %s27 = sadd.s32 1, %s20
    %p28 = scmp.ge.s32.totalorder %s27, 1
    %s29 = scalar_select %p28, 0, %s27
    %s30 = sadd.s32 1, %s19
    %s31 = scalar_select %p28, %s30, %s19
    %p32 = scmp.ge.s32.totalorder %s31, 1
    %s33 = scalar_select %p32, 0, %s31
    %s34 = sadd.s32 1, %s18
    %s35 = scalar_select %p32, %s34, %s18
    %p36 = scmp.ge.s32.totalorder %s35, 2
    %s37 = scalar_select %p36, 0, %s35
    %s38 = ssub.s32 %s18, %s37
    %s39 = ssub.s32 %s20, %s29
    %s40 = sor.u32 %s38, %s39
    %p41 = scmp.eq.s32.totalorder %s40, 0
    %s43 = sadd.s32 %s42, 1
    %s44 = scalar_select %p41, %s42, %s43
    %p47 = pneg %p41
    %p48 = scmp.eq.s32.totalorder %s11, 1
    %p49 = por %p47, %p48
    %p50 = scmp.ne.s32.totalorder %s42, %s45
    %p51 = scmp.eq.s32.totalorder %s11, 0
    %p52 = por %p50, %p51
    %p53 = scmp.ne.s32.totalorder %s42, %s45
    %p54 = scmp.eq.s32.totalorder %s16, 1
    %p55 = por %p53, %p54
    %p56 = scmp.ne.s32.totalorder %s45, %s46
    %p57 = scmp.eq.s32.totalorder %s16, 0
    %p58 = por %p56, %p57
    %p59 = scmp.ne.s32.totalorder %s45, %s46
    %p60 = scmp.eq.s32.totalorder %s17, 1
    %p61 = por %p59, %p60
    %p63 = scmp.ne.s32.totalorder %s46, %s62
    %p64 = scmp.eq.s32.totalorder %s17, 0
    %p65 = por %p63, %p64
    %s66 = ssub.s32 %s20, %s29
    %s67 = ssub.s32 %s19, %s33
    %s68 = sor.u32 %s66, %s67
    %p69 = scmp.eq.s32.totalorder %s68, 0
    %s71 = sadd.s32 %s70, 1
    %s72 = scalar_select %p69, %s70, %s71
    %p75 = pneg %p69
    %p76 = scmp.eq.s32.totalorder %s11, 1
    %p77 = por %p75, %p76
    %p78 = scmp.ne.s32.totalorder %s70, %s73
    %p79 = scmp.eq.s32.totalorder %s11, 0
    %p80 = por %p78, %p79
    %p81 = scmp.ne.s32.totalorder %s70, %s73
    %p82 = scmp.eq.s32.totalorder %s16, 1
    %p83 = por %p81, %p82
    %p84 = scmp.ne.s32.totalorder %s73, %s74
    %p85 = scmp.eq.s32.totalorder %s16, 0
    %p86 = por %p84, %p85
    %p87 = scmp.ne.s32.totalorder %s73, %s74
    %p88 = scmp.eq.s32.totalorder %s17, 1
    %p89 = por %p87, %p88
    %p91 = scmp.ne.s32.totalorder %s74, %s90
    %p92 = scmp.eq.s32.totalorder %s17, 0
    %p93 = por %p91, %p92
    %s94 = ssub.s32 %s18, %s37
    %s95 = ssub.s32 %s19, %s33
    %s96 = sor.u32 %s94, %s95
    %p97 = scmp.eq.s32.totalorder %s96, 0
    %s99 = sadd.s32 %s98, 1
    %s100 = scalar_select %p97, %s98, %s99
    %p103 = pneg %p97
    %p104 = scmp.eq.s32.totalorder %s11, 1
    %p105 = por %p103, %p104
    %p106 = scmp.ne.s32.totalorder %s98, %s101
    %p107 = scmp.eq.s32.totalorder %s11, 0
    %p108 = por %p106, %p107
    %p109 = scmp.ne.s32.totalorder %s98, %s101
    %p110 = scmp.eq.s32.totalorder %s16, 1
    %p111 = por %p109, %p110
    %p112 = scmp.ne.s32.totalorder %s101, %s102
    %p113 = scmp.eq.s32.totalorder %s16, 0
    %p114 = por %p112, %p113
    %p115 = scmp.ne.s32.totalorder %s101, %s102
    %p116 = scmp.eq.s32.totalorder %s17, 1
    %p117 = por %p115, %p116
    %p119 = scmp.ne.s32.totalorder %s102, %s118
    %p120 = scmp.eq.s32.totalorder %s17, 0
    %p121 = por %p119, %p120
    %s122 = ssub.s32 %s18, %s37
    %s123 = ssub.s32 %s19, %s33
    %s124 = sor.u32 %s122, %s123
    %p125 = scmp.eq.s32.totalorder %s124, 0
    %s127 = sadd.s32 %s126, 1
    %s128 = scalar_select %p125, %s126, %s127
    %p131 = pneg %p125
    %p132 = scmp.eq.s32.totalorder %s11, 1
    %p133 = por %p131, %p132
    %p134 = scmp.ne.s32.totalorder %s126, %s129
    %p135 = scmp.eq.s32.totalorder %s11, 0
    %p136 = por %p134, %p135
    %p137 = scmp.ne.s32.totalorder %s126, %s129
    %p138 = scmp.eq.s32.totalorder %s16, 1
    %p139 = por %p137, %p138
    %p140 = scmp.ne.s32.totalorder %s129, %s130
    %p141 = scmp.eq.s32.totalorder %s16, 0
    %p142 = por %p140, %p141
    %p143 = scmp.ne.s32.totalorder %s129, %s130
    %p144 = scmp.eq.s32.totalorder %s17, 1
    %p145 = por %p143, %p144
    %p147 = scmp.ne.s32.totalorder %s130, %s146
    %p148 = scmp.eq.s32.totalorder %s17, 0
    %p149 = por %p147, %p148
    %s150 = ssub.s32 %s18, %s37
    %s151 = ssub.s32 %s19, %s33
    %s152 = sor.u32 %s150, %s151
    %p153 = scmp.eq.s32.totalorder %s152, 0
    %s155 = sadd.s32 %s154, 1
    %s156 = scalar_select %p153, %s154, %s155
    %p159 = pneg %p153
    %p160 = scmp.eq.s32.totalorder %s11, 1
    %p161 = por %p159, %p160
    %p162 = scmp.ne.s32.totalorder %s154, %s157
    %p163 = scmp.eq.s32.totalorder %s11, 0
    %p164 = por %p162, %p163
    %p165 = scmp.ne.s32.totalorder %s154, %s157
    %p166 = scmp.eq.s32.totalorder %s16, 1
    %p167 = por %p165, %p166
    %p168 = scmp.ne.s32.totalorder %s157, %s158
    %p169 = scmp.eq.s32.totalorder %s16, 0
    %p170 = por %p168, %p169
    %p171 = scmp.ne.s32.totalorder %s157, %s158
    %p172 = scmp.eq.s32.totalorder %s17, 1
    %p173 = por %p171, %p172
    %p175 = scmp.ne.s32.totalorder %s158, %s174
    %p176 = scmp.eq.s32.totalorder %s17, 0
    %p177 = por %p175, %p176
    %p178 = scmp.le.s32.totalorder 1, %s11
    %p179 = scmp.lt.s32.totalorder %s11, 3
    %p180 = pnand %p178, %p179
    %p181 = pneg %p180
    // Predicated region
    $region9: #{forward.11} parent=5 // pred_check
      _
    $region10: #{forward.11} parent=5 // pred_check_branch
      %183 = sbr.rel (%p180) target = $region12
    $region11: #{forward.11} parent=5 // pred_region
      %s184 = ssub.s32 %s11, 1
      // Predicated region
      $region13: #{forward.11} parent=11 // pred_check
        %p185 = pneg %p86
      $region14: #{forward.11} parent=11 // pred_check_branch
        %187 = sbr.rel (%p185) target = $region16
      $region15: #{forward.11} parent=11 // pred_region
        %s188 = smul.u32 32, %s23
        %p189 = scmp.lt.s32.totalorder %s188, 31
        %s190 = scalar_select %p189, %s188, 31
        %p191 = scmp.lt.s32.totalorder %s22, 0
        %s192 = scalar_select %p191, %s22, 0
        %s193 = sadd.s32 %s192, %s190
        %s194 = smul.addr %s193, 4
        %s195 = scalar_lea.vmem %s1, %s194
        %s196 = smul.u32 32, %s23
      $region16: #{forward.11} parent=11 // pred_fallthru
        _
    $region12: #{forward.11} parent=5 // pred_fallthru
      _
    %p197 = scmp.lt.s32.totalorder %s11, 2
    // Predicated region
    $region17: #{forward.11} parent=5 // pred_check
      %p198 = pneg %p197
    $region18: #{forward.11} parent=5 // pred_check_branch
      %200 = sbr.rel (%p198) target = $region20
    $region19: #{forward.11} parent=5 // pred_region
      // Predicated region
      $region21: #{forward.11} parent=19 // pred_check
        %p201 = pneg %p52
      $region22: #{forward.11} parent=19 // pred_check_branch
        %203 = sbr.rel (%p201) target = $region24
      $region23: #{forward.11} parent=19 // pred_region
        %s204 = smul.u32 8, %s18
        %s205 = smul.u32 2, %s20
        %p206 = scmp.lt.s32.totalorder %s204, 15
        %s207 = scalar_select %p206, %s204, 15
        %p208 = scmp.lt.s32.totalorder %s205, 1
        %s209 = scalar_select %p208, %s205, 1
        %s210 = smul.addr %s207, 2
        %s211 = sadd.s32 %s209, %s210
        %s212 = smul.addr %s211, 4
        %s213 = scalar_lea.vmem %s0, %s212
        %s214 = smul.u32 8, %s18
        %s215 = smul.u32 2, %s20
      $region24: #{forward.11} parent=19 // pred_fallthru
        _
    $region20: #{forward.11} parent=5 // pred_fallthru
      _
    %p216 = scmp.le.s32.totalorder 1, %s11
    %p217 = scmp.lt.s32.totalorder %s11, 3
    %p218 = pnand %p216, %p217
    %p219 = pneg %p218
    // Predicated region
    $region25: #{forward.11} parent=5 // pred_check
      _
    $region26: #{forward.11} parent=5 // pred_check_branch
      %221 = sbr.rel (%p218) target = $region28
    $region27: #{forward.11} parent=5 // pred_region
      %s222 = ssub.s32 %s11, 1
      %s223 = smul.u32 8, %s21
      %s224 = smul.u32 2, %s23
      %p225 = scmp.lt.s32.totalorder %s223, 15
      %s226 = scalar_select %p225, %s223, 15
      %p227 = scmp.lt.s32.totalorder %s224, 1
      %s228 = scalar_select %p227, %s224, 1
      %s229 = smul.addr %s226, 2
      %s230 = sadd.s32 %s228, %s229
      %s231 = smul.addr %s230, 4
      %s232 = scalar_lea.vmem %s0, %s231
      %p233 = pneg %p58
      %p234 = pneg %p55
      %s235 = smul.u32 32, %s23
      %p236 = scmp.lt.s32.totalorder %s235, 31
      %s237 = scalar_select %p236, %s235, 31
      %p238 = scmp.lt.s32.totalorder %s22, 0
      %s239 = scalar_select %p238, %s22, 0
      %s240 = sadd.s32 %s239, %s237
      %s241 = smul.addr %s240, 4
      %s242 = scalar_lea.vmem %s1, %s241
      %p243 = pneg %p86
      %p244 = pneg %p83
      %p245 = pneg %p114
      %p246 = pneg %p111
      %s247 = smul.u32 8, %s21
      %p248 = scmp.lt.s32.totalorder %s247, 15
      %s249 = scalar_select %p248, %s247, 15
      %p250 = scmp.lt.s32.totalorder %s22, 0
      %s251 = scalar_select %p250, %s22, 0
      %s252 = sadd.s32 %s251, %s249
      %s253 = smul.addr %s252, 4
      %s254 = scalar_lea.vmem %s2, %s253
      %p255 = pneg %p142
      %p256 = pneg %p139
      %p257 = scmp.lt.s32.totalorder %s21, 1
      %s258 = scalar_select %p257, %s21, 1
      %p259 = scmp.lt.s32.totalorder %s22, 0
      %s260 = scalar_select %p259, %s22, 0
      %s261 = sadd.s32 %s260, %s258
      %s262 = smul.addr %s261, 8
      %s263 = scalar_lea.vmem %s3, %s262
      %p264 = pneg %p170
      %p265 = pneg %p167
      %p266 = scmp.lt.s32.totalorder %s21, 1
      %s267 = scalar_select %p266, %s21, 1
      %p268 = scmp.lt.s32.totalorder %s22, 0
      %s269 = scalar_select %p268, %s22, 0
      %s270 = sadd.s32 %s269, %s267
      %s271 = smul.addr %s270, 8
      %s272 = scalar_lea.vmem %s4, %s271
      %s273 = smul.u32 8, %s21
      %s274 = smul.u32 2, %s23
      %p275 = scmp.lt.s32.totalorder %s273, 15
      %s276 = scalar_select %p275, %s273, 15
      %p277 = scmp.lt.s32.totalorder %s274, 1
      %s278 = scalar_select %p277, %s274, 1
      %s279 = smul.addr %s276, 2
      %s280 = sadd.s32 %s278, %s279
      %s281 = smul.addr %s280, 4
      %s282 = scalar_lea.vmem %s0, %s281
      %s283 = smul.u32 8, %s21
      %s284 = smul.u32 2, %s23
      %s285 = smul.u32 32, %s23
      %p286 = scmp.lt.s32.totalorder %s285, 31
      %s287 = scalar_select %p286, %s285, 31
      %p288 = scmp.lt.s32.totalorder %s22, 0
      %s289 = scalar_select %p288, %s22, 0
      %s290 = sadd.s32 %s289, %s287
      %s291 = smul.addr %s290, 4
      %s292 = scalar_lea.vmem %s1, %s291
      %s293 = smul.u32 32, %s23
      %s294 = smul.u32 8, %s21
      %p295 = scmp.lt.s32.totalorder %s294, 15
      %s296 = scalar_select %p295, %s294, 15
      %p297 = scmp.lt.s32.totalorder %s22, 0
      %s298 = scalar_select %p297, %s22, 0
      %s299 = sadd.s32 %s298, %s296
      %s300 = smul.addr %s299, 4
      %s301 = scalar_lea.vmem %s2, %s300
      %s302 = smul.u32 8, %s21
      %p303 = scmp.lt.s32.totalorder %s21, 1
      %s304 = scalar_select %p303, %s21, 1
      %p305 = scmp.lt.s32.totalorder %s22, 0
      %s306 = scalar_select %p305, %s22, 0
      %s307 = sadd.s32 %s306, %s304
      %s308 = smul.addr %s307, 8
      %s309 = scalar_lea.vmem %s3, %s308
      %p310 = scmp.lt.s32.totalorder %s21, 1
      %s311 = scalar_select %p310, %s21, 1
      %p312 = scmp.lt.s32.totalorder %s22, 0
      %s313 = scalar_select %p312, %s22, 0
      %s314 = sadd.s32 %s313, %s311
      %s315 = smul.addr %s314, 8
      %s316 = scalar_lea.vmem %s4, %s315
      %p317 = scmp.eq.s32.totalorder %s23, 0
      // Predicated region
      $region29: #{forward.11} parent=27 // pred_check
        %p318 = pneg %p317
      $region30: #{forward.11} parent=27 // pred_check_branch
        %320 = sbr.rel (%p318) target = $region32
      $region31: #{forward.11} parent=27 // pred_region
        %321 = vst [vmem:[#allocation2] sm:$0xff] 0.0
        %322 = vst [vmem:[#allocation2 + $0x8] sm:$0xff] 0.0
        %323 = vst [vmem:[#allocation2 + $0x10] sm:$0xff] 0.0
        %324 = vst [vmem:[#allocation2 + $0x18] sm:$0xff] 0.0
        %325 = vst [vmem:[#allocation2 + $0x20] sm:$0xff] 0.0
        %326 = vst [vmem:[#allocation2 + $0x28] sm:$0xff] 0.0
        %327 = vst [vmem:[#allocation2 + $0x30] sm:$0xff] 0.0
        %328 = vst [vmem:[#allocation2 + $0x38] sm:$0xff] 0.0
      $region32: #{forward.11} parent=27 // pred_fallthru
        _
      %v329 = vld [vmem:[#allocation2] sm:$0xff]
      %v330 = vld [vmem:[#allocation2 + $0x8] sm:$0xff]
      %v331 = vld [vmem:[#allocation2 + $0x10] sm:$0xff]
      %v332 = vld [vmem:[#allocation2 + $0x18] sm:$0xff]
      %v333 = vld [vmem:[#allocation2 + $0x20] sm:$0xff]
      %v334 = vld [vmem:[#allocation2 + $0x28] sm:$0xff]
      %v335 = vld [vmem:[#allocation2 + $0x30] sm:$0xff]
      %v336 = vld [vmem:[#allocation2 + $0x38] sm:$0xff]
      %v337 = vld [vmem:[%s282] sm:$0xff]
      %v338 = vld [vmem:[%s282 + $0x8] sm:$0xff]
      %v339 = vld [vmem:[%s282 + $0x10] sm:$0xff]
      %v340 = vld [vmem:[%s282 + $0x18] sm:$0xff]
      %v341 = vld [vmem:[%s282 + $0x20] sm:$0xff]
      %v342 = vld [vmem:[%s282 + $0x28] sm:$0xff]
      %v343 = vld [vmem:[%s282 + $0x30] sm:$0xff]
      %v344 = vld [vmem:[%s282 + $0x38] sm:$0xff]
      %v345 = vld [vmem:[%s292] sm:$0xf]
      %v346 = vld [vmem:[%s292 + $0x4] sm:$0xf]
      %v347 = vld [vmem:[%s292 + $0x8] sm:$0xf]
      %v348 = vld [vmem:[%s292 + $0xc] sm:$0xf]
      %v349 = vld [vmem:[%s292 + $0x10] sm:$0xf]
      %v350 = vld [vmem:[%s292 + $0x14] sm:$0xf]
      %v351 = vld [vmem:[%s292 + $0x18] sm:$0xf]
      %v352 = vld [vmem:[%s292 + $0x1c] sm:$0xf]
      %v353 = vld [vmem:[%s292 + $0x20] sm:$0xf]
      %v354 = vld [vmem:[%s292 + $0x24] sm:$0xf]
      %v355 = vld [vmem:[%s292 + $0x28] sm:$0xf]
      %v356 = vld [vmem:[%s292 + $0x2c] sm:$0xf]
      %v357 = vld [vmem:[%s292 + $0x30] sm:$0xf]
      %v358 = vld [vmem:[%s292 + $0x34] sm:$0xf]
      %v359 = vld [vmem:[%s292 + $0x38] sm:$0xf]
      %v360 = vld [vmem:[%s292 + $0x3c] sm:$0xf]
      %v361 = vld [vmem:[%s292 + $0x40] sm:$0xf]
      %v362 = vld [vmem:[%s292 + $0x44] sm:$0xf]
      %v363 = vld [vmem:[%s292 + $0x48] sm:$0xf]
      %v364 = vld [vmem:[%s292 + $0x4c] sm:$0xf]
      %v365 = vld [vmem:[%s292 + $0x50] sm:$0xf]
      %v366 = vld [vmem:[%s292 + $0x54] sm:$0xf]
      %v367 = vld [vmem:[%s292 + $0x58] sm:$0xf]
      %v368 = vld [vmem:[%s292 + $0x5c] sm:$0xf]
      %v369 = vld [vmem:[%s292 + $0x60] sm:$0xf]
      %v370 = vld [vmem:[%s292 + $0x64] sm:$0xf]
      %v371 = vld [vmem:[%s292 + $0x68] sm:$0xf]
      %v372 = vld [vmem:[%s292 + $0x6c] sm:$0xf]
      %v373 = vld [vmem:[%s292 + $0x70] sm:$0xf]
      %v374 = vld [vmem:[%s292 + $0x74] sm:$0xf]
      %v375 = vld [vmem:[%s292 + $0x78] sm:$0xf]
      %v376 = vld [vmem:[%s292 + $0x7c] sm:$0xf]
      %v385 = vunpack.c.l.b16 %v337
      %v386 = vunpack.c.h.b16 %v337
      %v387 = vunpack.c.l.b16 %v338
      %v388 = vunpack.c.h.b16 %v338
      %v389 = vunpack.c.l.b16 %v339
      %v390 = vunpack.c.h.b16 %v339
      %v391 = vunpack.c.l.b16 %v340
      %v392 = vunpack.c.h.b16 %v340
      %v393 = vunpack.c.l.b16 %v341
      %v394 = vunpack.c.h.b16 %v341
      %v395 = vunpack.c.l.b16 %v342
      %v396 = vunpack.c.h.b16 %v342
      %v397 = vunpack.c.l.b16 %v343
      %v398 = vunpack.c.h.b16 %v343
      %v399 = vunpack.c.l.b16 %v344
      %v400 = vunpack.c.h.b16 %v344
      %v401 = vpack.c.b16 %v387, %v385
      %v402 = vpack.c.b16 %v388, %v386
      %v403 = vpack.c.b16 %v391, %v389
      %v404 = vpack.c.b16 %v392, %v390
      %v405 = vpack.c.b16 %v395, %v393
      %v406 = vpack.c.b16 %v396, %v394
      %v407 = vpack.c.b16 %v399, %v397
      %v408 = vpack.c.b16 %v400, %v398
      %v449 = vunpack.c.l.b16 %v345
      %v450 = vunpack.c.l.b16 %v346
      %v451 = vunpack.c.l.b16 %v347
      %v452 = vunpack.c.l.b16 %v348
      %v453 = vunpack.c.l.b16 %v349
      %v454 = vunpack.c.l.b16 %v350
      %v455 = vunpack.c.l.b16 %v351
      %v456 = vunpack.c.l.b16 %v352
      %v457 = vunpack.c.l.b16 %v353
      %v458 = vunpack.c.l.b16 %v354
      %v459 = vunpack.c.l.b16 %v355
      %v460 = vunpack.c.l.b16 %v356
      %v461 = vunpack.c.l.b16 %v357
      %v462 = vunpack.c.l.b16 %v358
      %v463 = vunpack.c.l.b16 %v359
      %v464 = vunpack.c.l.b16 %v360
      %v465 = vunpack.c.l.b16 %v361
      %v466 = vunpack.c.l.b16 %v362
      %v467 = vunpack.c.l.b16 %v363
      %v468 = vunpack.c.l.b16 %v364
      %v469 = vunpack.c.l.b16 %v365
      %v470 = vunpack.c.l.b16 %v366
      %v471 = vunpack.c.l.b16 %v367
      %v472 = vunpack.c.l.b16 %v368
      %v473 = vunpack.c.l.b16 %v369
      %v474 = vunpack.c.l.b16 %v370
      %v475 = vunpack.c.l.b16 %v371
      %v476 = vunpack.c.l.b16 %v372
      %v477 = vunpack.c.l.b16 %v373
      %v478 = vunpack.c.l.b16 %v374
      %v479 = vunpack.c.l.b16 %v375
      %v480 = vunpack.c.l.b16 %v376
      %v481 = vpack.c.b16 %v450, %v449
      %v482 = vpack.c.b16 %v452, %v451
      %v483 = vpack.c.b16 %v454, %v453
      %v484 = vpack.c.b16 %v456, %v455
      %v485 = vpack.c.b16 %v458, %v457
      %v486 = vpack.c.b16 %v460, %v459
      %v487 = vpack.c.b16 %v462, %v461
      %v488 = vpack.c.b16 %v464, %v463
      %v489 = vpack.c.b16 %v466, %v465
      %v490 = vpack.c.b16 %v468, %v467
      %v491 = vpack.c.b16 %v470, %v469
      %v492 = vpack.c.b16 %v472, %v471
      %v493 = vpack.c.b16 %v474, %v473
      %v494 = vpack.c.b16 %v476, %v475
      %v495 = vpack.c.b16 %v478, %v477
      %v496 = vpack.c.b16 %v480, %v479
      %513 = vmatpush.bf16.msra.mxu0 %v488
      %514 = vmatpush.bf16.msra.mxu0 %v487
      %515 = vmatpush.bf16.msra.mxu0 %v486
      %516 = vmatpush.bf16.msra.mxu0 %v485
      %517 = vmatpush.bf16.msra.mxu0 %v484
      %518 = vmatpush.bf16.msra.mxu0 %v483
      %519 = vmatpush.bf16.msra.mxu0 %v482
      %520 = vmatpush.bf16.msra.mxu0 %v481
      %521 = vmatmul.bf16.gmra.mxu0 %v401
      %v522 = vpop.f32.mrf.mxu0
      %v523 = vadd.f32 0.0, %v522
      %v524 = vpop.f32.mrf.mxu0
      %v525 = vadd.f32 0.0, %v524
      %526 = vmatmul.bf16.gmra.mxu0 %v403
      %v527 = vpop.f32.mrf.mxu0
      %v528 = vadd.f32 0.0, %v527
      %v529 = vpop.f32.mrf.mxu0
      %v530 = vadd.f32 0.0, %v529
      %531 = vmatmul.bf16.gmra.mxu0 %v405
      %v532 = vpop.f32.mrf.mxu0
      %v533 = vadd.f32 0.0, %v532
      %v534 = vpop.f32.mrf.mxu0
      %v535 = vadd.f32 0.0, %v534
      %536 = vmatmul.bf16.gmra.mxu0 %v407
      %v537 = vpop.f32.mrf.mxu0
      %v538 = vadd.f32 0.0, %v537
      %v539 = vpop.f32.mrf.mxu0
      %v540 = vadd.f32 0.0, %v539
      %541 = vdwg.mxu0
      %542 = vmatpush.bf16.msra.mxu0 %v496
      %543 = vmatpush.bf16.msra.mxu0 %v495
      %544 = vmatpush.bf16.msra.mxu0 %v494
      %545 = vmatpush.bf16.msra.mxu0 %v493
      %546 = vmatpush.bf16.msra.mxu0 %v492
      %547 = vmatpush.bf16.msra.mxu0 %v491
      %548 = vmatpush.bf16.msra.mxu0 %v490
      %549 = vmatpush.bf16.msra.mxu0 %v489
      %550 = vmatmul.bf16.gmra.mxu0 %v402
      %v551 = vpop.f32.mrf.mxu0
      %v552 = vadd.f32 %v523, %v551
      %v553 = vpop.f32.mrf.mxu0
      %v554 = vadd.f32 %v525, %v553
      %555 = vmatmul.bf16.gmra.mxu0 %v404
      %v556 = vpop.f32.mrf.mxu0
      %v557 = vadd.f32 %v528, %v556
      %v558 = vpop.f32.mrf.mxu0
      %v559 = vadd.f32 %v530, %v558
      %560 = vmatmul.bf16.gmra.mxu0 %v406
      %v561 = vpop.f32.mrf.mxu0
      %v562 = vadd.f32 %v533, %v561
      %v563 = vpop.f32.mrf.mxu0
      %v564 = vadd.f32 %v535, %v563
      %565 = vmatmul.bf16.gmra.mxu0 %v408
      %v566 = vpop.f32.mrf.mxu0
      %v567 = vadd.f32 %v538, %v566
      %v568 = vpop.f32.mrf.mxu0
      %v569 = vadd.f32 %v540, %v568
      %570 = vdwg.mxu0
      %v571 = vadd.f32 %v329, %v552
      %v572 = vadd.f32 %v330, %v554
      %v573 = vadd.f32 %v331, %v557
      %v574 = vadd.f32 %v332, %v559
      %v575 = vadd.f32 %v333, %v562
      %v576 = vadd.f32 %v334, %v564
      %v577 = vadd.f32 %v335, %v567
      %v578 = vadd.f32 %v336, %v569
      %579 = vst [vmem:[#allocation2] sm:$0xff] %v571
      %580 = vst [vmem:[#allocation2 + $0x8] sm:$0xff] %v572
      %581 = vst [vmem:[#allocation2 + $0x10] sm:$0xff] %v573
      %582 = vst [vmem:[#allocation2 + $0x18] sm:$0xff] %v574
      %583 = vst [vmem:[#allocation2 + $0x20] sm:$0xff] %v575
      %584 = vst [vmem:[#allocation2 + $0x28] sm:$0xff] %v576
      %585 = vst [vmem:[#allocation2 + $0x30] sm:$0xff] %v577
      %586 = vst [vmem:[#allocation2 + $0x38] sm:$0xff] %v578
      // Predicated region
      $region33: #{forward.11} parent=27 // pred_check
        %p587 = pneg %p317
      $region34: #{forward.11} parent=27 // pred_check_branch
        %589 = sbr.rel (%p587) target = $region36
      $region35: #{forward.11} parent=27 // pred_region
        %v590 = vld [vmem:[#allocation2] sm:$0xff]
        %v591 = vld [vmem:[#allocation2 + $0x8] sm:$0xff]
        %v592 = vld [vmem:[#allocation2 + $0x10] sm:$0xff]
        %v593 = vld [vmem:[#allocation2 + $0x18] sm:$0xff]
        %v594 = vld [vmem:[#allocation2 + $0x20] sm:$0xff]
        %v595 = vld [vmem:[#allocation2 + $0x28] sm:$0xff]
        %v596 = vld [vmem:[#allocation2 + $0x30] sm:$0xff]
        %v597 = vld [vmem:[#allocation2 + $0x38] sm:$0xff]
        %v598 = vpack.c.bf16 %v590, %v590
        %v599 = vpack.c.bf16 %v591, %v591
        %v600 = vpack.c.bf16 %v592, %v592
        %v601 = vpack.c.bf16 %v593, %v593
        %v602 = vpack.c.bf16 %v594, %v594
        %v603 = vpack.c.bf16 %v595, %v595
        %v604 = vpack.c.bf16 %v596, %v596
        %v605 = vpack.c.bf16 %v597, %v597
        %606 = vst [vmem:[%s301] sm:$0xf] %v598
        %607 = vst [vmem:[%s301 + $0x4] sm:$0xf] %v599
        %608 = vst [vmem:[%s301 + $0x8] sm:$0xf] %v600
        %609 = vst [vmem:[%s301 + $0xc] sm:$0xf] %v601
        %610 = vst [vmem:[%s301 + $0x10] sm:$0xf] %v602
        %611 = vst [vmem:[%s301 + $0x14] sm:$0xf] %v603
        %612 = vst [vmem:[%s301 + $0x18] sm:$0xf] %v604
        %613 = vst [vmem:[%s301 + $0x1c] sm:$0xf] %v605
        %v614 = vadd.f32 %v590, %v591
        %v615 = vadd.f32 %v614, %v592
        %v616 = vadd.f32 %v615, %v593
        %v617 = vadd.f32 %v616, %v594
        %v618 = vadd.f32 %v617, %v595
        %v619 = vadd.f32 %v618, %v596
        %v620 = vadd.f32 %v619, %v597
        %v621 = vrot.slane %v620, 4
        %v622 = vadd.f32 %v620, %v621
        %v623 = vrot.slane %v622, 2
        %v624 = vadd.f32 %v622, %v623
        %v625 = vrot.slane %v624, 1
        %v626 = vadd.f32 %v624, %v625
        %v627 = vmul.f32 %v590, %v590
        %v628 = vmul.f32 %v591, %v591
        %v629 = vmul.f32 %v592, %v592
        %v630 = vmul.f32 %v593, %v593
        %v631 = vmul.f32 %v594, %v594
        %v632 = vmul.f32 %v595, %v595
        %v633 = vmul.f32 %v596, %v596
        %v634 = vmul.f32 %v597, %v597
        %v635 = vadd.f32 %v627, %v628
        %v636 = vadd.f32 %v635, %v629
        %v637 = vadd.f32 %v636, %v630
        %v638 = vadd.f32 %v637, %v631
        %v639 = vadd.f32 %v638, %v632
        %v640 = vadd.f32 %v639, %v633
        %v641 = vadd.f32 %v640, %v634
        %v642 = vrot.slane %v641, 4
        %v643 = vadd.f32 %v641, %v642
        %v644 = vrot.slane %v643, 2
        %v645 = vadd.f32 %v643, %v644
        %v646 = vrot.slane %v645, 1
        %v647 = vadd.f32 %v645, %v646
        %v648 = vlaneseq
        %v649 = vshrl.u32 %v648, 7
        %vm650 = vcmp.eq.s32.totalorder %v649, 0
        %v651 = vsel %vm650, %v626, 0.0
        %652 = vst [vmem:[%s309] sm:$0xff] %v651
        %v653 = vsel %vm650, %v647, 0.0
        %654 = vst [vmem:[%s316] sm:$0xff] %v653
      $region36: #{forward.11} parent=27 // pred_fallthru
        _
      %s655 = smul.u32 8, %s21
      %p656 = scmp.lt.s32.totalorder %s655, 15
      %s657 = scalar_select %p656, %s655, 15
      %p658 = scmp.lt.s32.totalorder %s22, 0
      %s659 = scalar_select %p658, %s22, 0
      %s660 = sadd.s32 %s659, %s657
      %s661 = smul.addr %s660, 4
      %s662 = scalar_lea.vmem %s2, %s661
      %p663 = scmp.lt.s32.totalorder %s21, 1
      %s664 = scalar_select %p663, %s21, 1
      %p665 = scmp.lt.s32.totalorder %s22, 0
      %s666 = scalar_select %p665, %s22, 0
      %s667 = sadd.s32 %s666, %s664
      %s668 = smul.addr %s667, 8
      %s669 = scalar_lea.vmem %s3, %s668
      %p670 = scmp.lt.s32.totalorder %s21, 1
      %s671 = scalar_select %p670, %s21, 1
      %p672 = scmp.lt.s32.totalorder %s22, 0
      %s673 = scalar_select %p672, %s22, 0
      %s674 = sadd.s32 %s673, %s671
      %s675 = smul.addr %s674, 8
      %s676 = scalar_lea.vmem %s4, %s675
      // Predicated region
      $region37: #{forward.11} parent=27 // pred_check
        %p677 = pneg %p111
      $region38: #{forward.11} parent=27 // pred_check_branch
        %679 = sbr.rel (%p677) target = $region40
      $region39: #{forward.11} parent=27 // pred_region
        %s680 = smul.u32 8, %s21
      $region40: #{forward.11} parent=27 // pred_fallthru
        _
      // Predicated region
      $region41: #{forward.11} parent=27 // pred_check
        %p681 = pneg %p139
      $region42: #{forward.11} parent=27 // pred_check_branch
        %683 = sbr.rel (%p681) target = $region44
      $region43: #{forward.11} parent=27 // pred_region
        _
      $region44: #{forward.11} parent=27 // pred_fallthru
        _
      // Predicated region
      $region45: #{forward.11} parent=27 // pred_check
        %p684 = pneg %p167
      $region46: #{forward.11} parent=27 // pred_check_branch
        %686 = sbr.rel (%p684) target = $region48
      $region47: #{forward.11} parent=27 // pred_region
        _
      $region48: #{forward.11} parent=27 // pred_fallthru
        _
    $region28: #{forward.11} parent=5 // pred_fallthru
      _
    %p687 = scmp.le.s32.totalorder 2, %s11
    // Predicated region
    $region49: #{forward.11} parent=5 // pred_check
      %p688 = pneg %p687
    $region50: #{forward.11} parent=5 // pred_check_branch
      %690 = sbr.rel (%p688) target = $region52
    $region51: #{forward.11} parent=5 // pred_region
      %s691 = ssub.s32 %s11, 2
      // Predicated region
      $region53: #{forward.11} parent=51 // pred_check
        %p692 = pneg %p117
      $region54: #{forward.11} parent=51 // pred_check_branch
        %694 = sbr.rel (%p692) target = $region56
      $region55: #{forward.11} parent=51 // pred_region
        %s695 = smul.u32 8, %s24
        %p696 = scmp.lt.s32.totalorder %s695, 15
        %s697 = scalar_select %p696, %s695, 15
        %p698 = scmp.lt.s32.totalorder %s25, 0
        %s699 = scalar_select %p698, %s25, 0
        %s700 = sadd.s32 %s699, %s697
        %s701 = smul.addr %s700, 4
        %s702 = scalar_lea.vmem %s2, %s701
      $region56: #{forward.11} parent=51 // pred_fallthru
        _
      // Predicated region
      $region57: #{forward.11} parent=51 // pred_check
        %p703 = pneg %p145
      $region58: #{forward.11} parent=51 // pred_check_branch
        %705 = sbr.rel (%p703) target = $region60
      $region59: #{forward.11} parent=51 // pred_region
        %p706 = scmp.lt.s32.totalorder %s24, 1
        %s707 = scalar_select %p706, %s24, 1
        %p708 = scmp.lt.s32.totalorder %s25, 0
        %s709 = scalar_select %p708, %s25, 0
        %s710 = sadd.s32 %s709, %s707
        %s711 = smul.addr %s710, 8
        %s712 = scalar_lea.vmem %s3, %s711
      $region60: #{forward.11} parent=51 // pred_fallthru
        _
      // Predicated region
      $region61: #{forward.11} parent=51 // pred_check
        %p713 = pneg %p173
      $region62: #{forward.11} parent=51 // pred_check_branch
        %715 = sbr.rel (%p713) target = $region64
      $region63: #{forward.11} parent=51 // pred_region
        %p716 = scmp.lt.s32.totalorder %s24, 1
        %s717 = scalar_select %p716, %s24, 1
        %p718 = scmp.lt.s32.totalorder %s25, 0
        %s719 = scalar_select %p718, %s25, 0
        %s720 = sadd.s32 %s719, %s717
        %s721 = smul.addr %s720, 8
        %s722 = scalar_lea.vmem %s4, %s721
      $region64: #{forward.11} parent=51 // pred_fallthru
        _
    $region52: #{forward.11} parent=5 // pred_fallthru
      _
  $region6: #{forward.11} parent=0 // loop_footer
    %s15 = sadd.s32 1, %s11
  $region7: #{forward.11} parent=0 // loop_footer_branch
    %10 = sbr.rel target = $region3
  $region8: #{forward.11} parent=0 // loop_exit
    _

// kernel: forward.12
$region0: #{forward.12}
  #allocation0 [shape = 'u32[]', space=smem, size = 0x4, offset = 0x4, fixed_abs, tag = 'smem constant byte address 0x4 - core index']
  #allocation1 [shape = 'u32[72,128]{1,0:T(1,128)}', space=vmem, size = 0x9000, scoped, tag = 'internal scratch']
  %s0 = inlined_call_operand.vmem [shape: bf16[128,128], index: 0, kind: input, shape index: {}]
  %s1 = inlined_call_operand.vmem [shape: f32[1,128], index: 1, kind: input, shape index: {}]
  %s2 = inlined_call_operand.vmem [shape: f32[1,128], index: 2, kind: input, shape index: {}]
  %s3 = inlined_call_operand.vmem [shape: bf16[128,128], index: 3, kind: output, shape index: {}]
  %s4 = sld [smem:[#allocation0]]
  $region45: #{forward.12} parent=0
    _
  %s6 = ssub.s32 1, %s4
  %s7 = scalar_select 0, %s6, %s4
  loop: start=0, step=1, limit=4
  $region2: #{forward.12} parent=0 // loop_pre_header
    _
  $region3: #{forward.12} parent=0 // loop_header
    %s9 = sphi 0, %s13
    %p10 = scmp.ge.s32.totalorder %s9, 4
    %s19 = sphi 0, %s21
    %s22 = sphi 0, %s19
    %s23 = sphi 0, %s22
    %s39 = sphi 0, %s23
    %s43 = sphi 0, %s43
    %s45 = sphi 0, %s43
    %s46 = sphi 0, %s45
    %s60 = sphi 0, %s46
    %s64 = sphi 0, %s64
    %s66 = sphi 0, %s64
    %s67 = sphi 0, %s66
    %s81 = sphi 0, %s67
    %s87 = sphi 0, %s89
    %s90 = sphi 0, %s87
    %s91 = sphi 0, %s90
    %s107 = sphi 0, %s91
  $region4: #{forward.12} parent=0 // loop_header_branch
    %12 = sbr.rel (%p10) target = $region8
  $region5: #{forward.12} parent=0 // loop_body
    %s14 = ssub.s32 %s9, 1
    %s15 = ssub.s32 %s9, 2
    %s16 = sadd.s32 %s9, 1
    %s17 = ssub.s32 %s9, %s16
    %p18 = scmp.eq.s32.totalorder %s17, 0
    %s20 = sadd.s32 %s19, 1
    %s21 = scalar_select %p18, %s19, %s20
    %p24 = pneg %p18
    %p25 = scmp.eq.s32.totalorder %s9, 1
    %p26 = por %p24, %p25
    %p27 = scmp.ne.s32.totalorder %s19, %s22
    %p28 = scmp.eq.s32.totalorder %s9, 0
    %p29 = por %p27, %p28
    %p30 = scmp.ne.s32.totalorder %s19, %s22
    %p31 = scmp.eq.s32.totalorder %s14, 1
    %p32 = por %p30, %p31
    %p33 = scmp.ne.s32.totalorder %s22, %s23
    %p34 = scmp.eq.s32.totalorder %s14, 0
    %p35 = por %p33, %p34
    %p36 = scmp.ne.s32.totalorder %s22, %s23
    %p37 = scmp.eq.s32.totalorder %s15, 1
    %p38 = por %p36, %p37
    %p40 = scmp.ne.s32.totalorder %s23, %s39
    %p41 = scmp.eq.s32.totalorder %s15, 0
    %p42 = por %p40, %p41
    %s44 = sadd.s32 %s43, 1
    %p47 = scmp.eq.s32.totalorder %s9, 1
    %p48 = scmp.ne.s32.totalorder %s43, %s45
    %p49 = scmp.eq.s32.totalorder %s9, 0
    %p50 = por %p48, %p49
    %p51 = scmp.ne.s32.totalorder %s43, %s45
    %p52 = scmp.eq.s32.totalorder %s14, 1
    %p53 = por %p51, %p52
    %p54 = scmp.ne.s32.totalorder %s45, %s46
    %p55 = scmp.eq.s32.totalorder %s14, 0
    %p56 = por %p54, %p55
    %p57 = scmp.ne.s32.totalorder %s45, %s46
    %p58 = scmp.eq.s32.totalorder %s15, 1
    %p59 = por %p57, %p58
    %p61 = scmp.ne.s32.totalorder %s46, %s60
    %p62 = scmp.eq.s32.totalorder %s15, 0
    %p63 = por %p61, %p62
    %s65 = sadd.s32 %s64, 1
    %p68 = scmp.eq.s32.totalorder %s9, 1
    %p69 = scmp.ne.s32.totalorder %s64, %s66
    %p70 = scmp.eq.s32.totalorder %s9, 0
    %p71 = por %p69, %p70
    %p72 = scmp.ne.s32.totalorder %s64, %s66
    %p73 = scmp.eq.s32.totalorder %s14, 1
    %p74 = por %p72, %p73
    %p75 = scmp.ne.s32.totalorder %s66, %s67
    %p76 = scmp.eq.s32.totalorder %s14, 0
    %p77 = por %p75, %p76
    %p78 = scmp.ne.s32.totalorder %s66, %s67
    %p79 = scmp.eq.s32.totalorder %s15, 1
    %p80 = por %p78, %p79
    %p82 = scmp.ne.s32.totalorder %s67, %s81
    %p83 = scmp.eq.s32.totalorder %s15, 0
    %p84 = por %p82, %p83
    %s85 = ssub.s32 %s9, %s16
    %p86 = scmp.eq.s32.totalorder %s85, 0
    %s88 = sadd.s32 %s87, 1
    %s89 = scalar_select %p86, %s87, %s88
    %p92 = pneg %p86
    %p93 = scmp.eq.s32.totalorder %s9, 1
    %p94 = por %p92, %p93
    %p95 = scmp.ne.s32.totalorder %s87, %s90
    %p96 = scmp.eq.s32.totalorder %s9, 0
    %p97 = por %p95, %p96
    %p98 = scmp.ne.s32.totalorder %s87, %s90
    %p99 = scmp.eq.s32.totalorder %s14, 1
    %p100 = por %p98, %p99
    %p101 = scmp.ne.s32.totalorder %s90, %s91
    %p102 = scmp.eq.s32.totalorder %s14, 0
    %p103 = por %p101, %p102
    %p104 = scmp.ne.s32.totalorder %s90, %s91
    %p105 = scmp.eq.s32.totalorder %s15, 1
    %p106 = por %p104, %p105
    %p108 = scmp.ne.s32.totalorder %s91, %s107
    %p109 = scmp.eq.s32.totalorder %s15, 0
    %p110 = por %p108, %p109
    %p111 = scmp.le.s32.totalorder 1, %s9
    %p112 = scmp.lt.s32.totalorder %s9, 3
    %p113 = pnand %p111, %p112
    %p114 = pneg %p113
    // Predicated region
    $region9: #{forward.12} parent=5 // pred_check
      _
    $region10: #{forward.12} parent=5 // pred_check_branch
      %116 = sbr.rel (%p113) target = $region12
    $region11: #{forward.12} parent=5 // pred_region
      %s117 = ssub.s32 %s9, 1
      // Predicated region
      $region13: #{forward.12} parent=11 // pred_check
        %p118 = pneg %p56
      $region14: #{forward.12} parent=11 // pred_check_branch
        %120 = sbr.rel (%p118) target = $region16
      $region15: #{forward.12} parent=11 // pred_region
        _
      $region16: #{forward.12} parent=11 // pred_fallthru
        _
      // Predicated region
      $region17: #{forward.12} parent=11 // pred_check
        %p121 = pneg %p77
      $region18: #{forward.12} parent=11 // pred_check_branch
        %123 = sbr.rel (%p121) target = $region20
      $region19: #{forward.12} parent=11 // pred_region
        _
      $region20: #{forward.12} parent=11 // pred_fallthru
        _
    $region12: #{forward.12} parent=5 // pred_fallthru
      _
    %p124 = scmp.lt.s32.totalorder %s9, 2
    // Predicated region
    $region21: #{forward.12} parent=5 // pred_check
      %p125 = pneg %p124
    $region22: #{forward.12} parent=5 // pred_check_branch
      %127 = sbr.rel (%p125) target = $region24
    $region23: #{forward.12} parent=5 // pred_region
      // Predicated region
      $region25: #{forward.12} parent=23 // pred_check
        %p128 = pneg %p29
      $region26: #{forward.12} parent=23 // pred_check_branch
        %130 = sbr.rel (%p128) target = $region28
      $region27: #{forward.12} parent=23 // pred_region
        %s131 = smul.u32 8, %s9
        %p132 = scmp.lt.s32.totalorder %s131, 15
        %s133 = scalar_select %p132, %s131, 15
        %s134 = smul.addr %s133, 4
        %s135 = scalar_lea.vmem %s0, %s134
        %s136 = smul.u32 8, %s9
      $region28: #{forward.12} parent=23 // pred_fallthru
        _
    $region24: #{forward.12} parent=5 // pred_fallthru
      _
    %p137 = scmp.le.s32.totalorder 1, %s9
    %p138 = scmp.lt.s32.totalorder %s9, 3
    %p139 = pnand %p137, %p138
    %p140 = pneg %p139
    // Predicated region
    $region29: #{forward.12} parent=5 // pred_check
      _
    $region30: #{forward.12} parent=5 // pred_check_branch
      %142 = sbr.rel (%p139) target = $region32
    $region31: #{forward.12} parent=5 // pred_region
      %s143 = ssub.s32 %s9, 1
      %s144 = smul.u32 8, %s14
      %p145 = scmp.lt.s32.totalorder %s144, 15
      %s146 = scalar_select %p145, %s144, 15
      %s147 = smul.addr %s146, 4
      %s148 = scalar_lea.vmem %s0, %s147
      %p149 = pneg %p35
      %p150 = pneg %p32
      %p151 = pneg %p56
      %p152 = pneg %p53
      %p153 = pneg %p77
      %p154 = pneg %p74
      %p155 = pneg %p103
      %p156 = pneg %p100
      %s157 = smul.u32 8, %s14
      %p158 = scmp.lt.s32.totalorder %s157, 15
      %s159 = scalar_select %p158, %s157, 15
      %s160 = smul.addr %s159, 4
      %s161 = scalar_lea.vmem %s3, %s160
      %s162 = smul.u32 8, %s14
      %p163 = scmp.lt.s32.totalorder %s162, 15
      %s164 = scalar_select %p163, %s162, 15
      %s165 = smul.addr %s164, 4
      %s166 = scalar_lea.vmem %s0, %s165
      %s167 = smul.u32 8, %s14
      %s168 = smul.u32 8, %s14
      %p169 = scmp.lt.s32.totalorder %s168, 15
      %s170 = scalar_select %p169, %s168, 15
      %s171 = smul.addr %s170, 4
      %s172 = scalar_lea.vmem %s3, %s171
      %s173 = smul.u32 8, %s14
      %v174 = vld [vmem:[%s166] sm:$0xf]
      %v175 = vld [vmem:[%s166 + $0x4] sm:$0xf]
      %v176 = vld [vmem:[%s166 + $0x8] sm:$0xf]
      %v177 = vld [vmem:[%s166 + $0xc] sm:$0xf]
      %v178 = vld [vmem:[%s166 + $0x10] sm:$0xf]
      %v179 = vld [vmem:[%s166 + $0x14] sm:$0xf]
      %v180 = vld [vmem:[%s166 + $0x18] sm:$0xf]
      %v181 = vld [vmem:[%s166 + $0x1c] sm:$0xf]
      %v182 = vunpack.c.l.bf16 %v174
      %v183 = vunpack.c.l.bf16 %v175
      %v184 = vunpack.c.l.bf16 %v176
      %v185 = vunpack.c.l.bf16 %v177
      %v186 = vunpack.c.l.bf16 %v178
      %v187 = vunpack.c.l.bf16 %v179
      %v188 = vunpack.c.l.bf16 %v180
      %v189 = vunpack.c.l.bf16 %v181
      %v190 = vld [vmem:[%s1] sm:$0x1]
      %v192 = vperm.slane %v190, 0
      %v194 = vmul.f32 %v182, %v192
      %v195 = vmul.f32 %v183, %v192
      %v196 = vmul.f32 %v184, %v192
      %v197 = vmul.f32 %v185, %v192
      %v198 = vmul.f32 %v186, %v192
      %v199 = vmul.f32 %v187, %v192
      %v200 = vmul.f32 %v188, %v192
      %v201 = vmul.f32 %v189, %v192
      %v202 = vld [vmem:[%s2] sm:$0x1]
      %v204 = vperm.slane %v202, 0
      %v206 = vadd.f32 %v194, %v204
      %v207 = vadd.f32 %v195, %v204
      %v208 = vadd.f32 %v196, %v204
      %v209 = vadd.f32 %v197, %v204
      %v210 = vadd.f32 %v198, %v204
      %v211 = vadd.f32 %v199, %v204
      %v212 = vadd.f32 %v200, %v204
      %v213 = vadd.f32 %v201, %v204
      %vm214 = vcmp.ge.f32.partialorder %v206, 0.0
      %vm215 = vcmp.ge.f32.partialorder %v207, 0.0
      %vm216 = vcmp.ge.f32.partialorder %v208, 0.0
      %vm217 = vcmp.ge.f32.partialorder %v209, 0.0
      %vm218 = vcmp.ge.f32.partialorder %v210, 0.0
      %vm219 = vcmp.ge.f32.partialorder %v211, 0.0
      %vm220 = vcmp.ge.f32.partialorder %v212, 0.0
      %vm221 = vcmp.ge.f32.partialorder %v213, 0.0
      %v222 = vmul.f32 %v206, 0.2
      %v223 = vmul.f32 %v207, 0.2
      %v224 = vmul.f32 %v208, 0.2
      %v225 = vmul.f32 %v209, 0.2
      %v226 = vmul.f32 %v210, 0.2
      %v227 = vmul.f32 %v211, 0.2
      %v228 = vmul.f32 %v212, 0.2
      %v229 = vmul.f32 %v213, 0.2
      %v230 = vsel %vm214, %v206, %v222
      %v231 = vsel %vm215, %v207, %v223
      %v232 = vsel %vm216, %v208, %v224
      %v233 = vsel %vm217, %v209, %v225
      %v234 = vsel %vm218, %v210, %v226
      %v235 = vsel %vm219, %v211, %v227
      %v236 = vsel %vm220, %v212, %v228
      %v237 = vsel %vm221, %v213, %v229
      %v238 = vpack.c.bf16 %v230, %v230
      %v239 = vpack.c.bf16 %v231, %v231
      %v240 = vpack.c.bf16 %v232, %v232
      %v241 = vpack.c.bf16 %v233, %v233
      %v242 = vpack.c.bf16 %v234, %v234
      %v243 = vpack.c.bf16 %v235, %v235
      %v244 = vpack.c.bf16 %v236, %v236
      %v245 = vpack.c.bf16 %v237, %v237
      %246 = vst [vmem:[%s172] sm:$0xf] %v238
      %247 = vst [vmem:[%s172 + $0x4] sm:$0xf] %v239
      %248 = vst [vmem:[%s172 + $0x8] sm:$0xf] %v240
      %249 = vst [vmem:[%s172 + $0xc] sm:$0xf] %v241
      %250 = vst [vmem:[%s172 + $0x10] sm:$0xf] %v242
      %251 = vst [vmem:[%s172 + $0x14] sm:$0xf] %v243
      %252 = vst [vmem:[%s172 + $0x18] sm:$0xf] %v244
      %253 = vst [vmem:[%s172 + $0x1c] sm:$0xf] %v245
      %s254 = smul.u32 8, %s14
      %p255 = scmp.lt.s32.totalorder %s254, 15
      %s256 = scalar_select %p255, %s254, 15
      %s257 = smul.addr %s256, 4
      %s258 = scalar_lea.vmem %s3, %s257
      // Predicated region
      $region33: #{forward.12} parent=31 // pred_check
        %p259 = pneg %p100
      $region34: #{forward.12} parent=31 // pred_check_branch
        %261 = sbr.rel (%p259) target = $region36
      $region35: #{forward.12} parent=31 // pred_region
        %s262 = smul.u32 8, %s14
      $region36: #{forward.12} parent=31 // pred_fallthru
        _
    $region32: #{forward.12} parent=5 // pred_fallthru
      _
    %p263 = scmp.le.s32.totalorder 2, %s9
    // Predicated region
    $region37: #{forward.12} parent=5 // pred_check
      %p264 = pneg %p263
    $region38: #{forward.12} parent=5 // pred_check_branch
      %266 = sbr.rel (%p264) target = $region40
    $region39: #{forward.12} parent=5 // pred_region
      %s267 = ssub.s32 %s9, 2
      // Predicated region
      $region41: #{forward.12} parent=39 // pred_check
        %p268 = pneg %p106
      $region42: #{forward.12} parent=39 // pred_check_branch
        %270 = sbr.rel (%p268) target = $region44
      $region43: #{forward.12} parent=39 // pred_region
        %s271 = smul.u32 8, %s15
        %p272 = scmp.lt.s32.totalorder %s271, 15
        %s273 = scalar_select %p272, %s271, 15
        %s274 = smul.addr %s273, 4
        %s275 = scalar_lea.vmem %s3, %s274
      $region44: #{forward.12} parent=39 // pred_fallthru
        _
    $region40: #{forward.12} parent=5 // pred_fallthru
      _
  $region6: #{forward.12} parent=0 // loop_footer
    %s13 = sadd.s32 1, %s9
  $region7: #{forward.12} parent=0 // loop_footer_branch
    %8 = sbr.rel target = $region3
  $region8: #{forward.12} parent=0 // loop_exit
    _

// kernel: forward.13
$region0: #{forward.13}
  #allocation0 [shape = 'u32[]', space=smem, size = 0x4, offset = 0x4, fixed_abs, tag = 'smem constant byte address 0x4 - core index']
  #allocation1 [shape = 'u32[72,128]{1,0:T(1,128)}', space=vmem, size = 0x9000, scoped, tag = 'internal scratch']
  #allocation2 [shape = 'f32[16,128]{1,0:T(8,128)}', space=vmem, size = 0x2000, scoped, tag = 'scratch operand']
  %s0 = inlined_call_operand.vmem [shape: bf16[32,512], index: 0, kind: input, shape index: {}]
  %s1 = inlined_call_operand.vmem [shape: bf16[512,128], index: 1, kind: input, shape index: {}]
  %s2 = inlined_call_operand.vmem [shape: bf16[32,128], index: 2, kind: output, shape index: {0}]
  %s3 = inlined_call_operand.vmem [shape: f32[16,128], index: 3, kind: output, shape index: {1}]
  %s4 = inlined_call_operand.vmem [shape: f32[16,128], index: 4, kind: output, shape index: {2}]
  %5 = xla_tuple %s2, %s3, %s4
  %s6 = sld [smem:[#allocation0]]
  $region65: #{forward.13} parent=0
    _
  %s8 = ssub.s32 1, %s6
  %s9 = scalar_select 0, %s8, %s6
  loop: start=0, step=1, limit=4
  $region2: #{forward.13} parent=0 // loop_pre_header
    _
  $region3: #{forward.13} parent=0 // loop_header
    %s11 = sphi 0, %s15
    %p12 = scmp.ge.s32.totalorder %s11, 4
    %s18 = sphi 0, %s37
    %s19 = sphi 0, %s33
    %s20 = sphi 0, %s29
    %s21 = sphi 0, %s18
    %s22 = sphi 0, %s19
    %s23 = sphi 0, %s20
    %s24 = sphi 0, %s21
    %s25 = sphi 0, %s22
    %s26 = sphi 0, %s23
    %s42 = sphi 0, %s44
    %s45 = sphi 0, %s42
    %s46 = sphi 0, %s45
    %s62 = sphi 0, %s46
    %s70 = sphi 0, %s72
    %s73 = sphi 0, %s70
    %s74 = sphi 0, %s73
    %s90 = sphi 0, %s74
    %s98 = sphi 0, %s100
    %s101 = sphi 0, %s98
    %s102 = sphi 0, %s101
    %s118 = sphi 0, %s102
    %s126 = sphi 0, %s128
    %s129 = sphi 0, %s126
    %s130 = sphi 0, %s129
    %s146 = sphi 0, %s130
    %s154 = sphi 0, %s156
    %s157 = sphi 0, %s154
    %s158 = sphi 0, %s157
    %s174 = sphi 0, %s158
  $region4: #{forward.13} parent=0 // loop_header_branch
    %14 = sbr.rel (%p12) target = $region8
  $region5: #{forward.13} parent=0 // loop_body
    %s16 = ssub.s32 %s11, 1
    %s17 = ssub.s32 %s11, 2
    %s27 = sadd.s32 1, %s20
    %p28 = scmp.ge.s32.totalorder %s27, 1
    %s29 = scalar_select %p28, 0, %s27
    %s30 = sadd.s32 1, %s19
    %s31 = scalar_select %p28, %s30, %s19
    %p32 = scmp.ge.s32.totalorder %s31, 1
    %s33 = scalar_select %p32, 0, %s31
    %s34 = sadd.s32 1, %s18
    %s35 = scalar_select %p32, %s34, %s18
    %p36 = scmp.ge.s32.totalorder %s35, 2
    %s37 = scalar_select %p36, 0, %s35
    %s38 = ssub.s32 %s18, %s37
    %s39 = ssub.s32 %s20, %s29
    %s40 = sor.u32 %s38, %s39
    %p41 = scmp.eq.s32.totalorder %s40, 0
    %s43 = sadd.s32 %s42, 1
    %s44 = scalar_select %p41, %s42, %s43
    %p47 = pneg %p41
    %p48 = scmp.eq.s32.totalorder %s11, 1
    %p49 = por %p47, %p48
    %p50 = scmp.ne.s32.totalorder %s42, %s45
    %p51 = scmp.eq.s32.totalorder %s11, 0
    %p52 = por %p50, %p51
    %p53 = scmp.ne.s32.totalorder %s42, %s45
    %p54 = scmp.eq.s32.totalorder %s16, 1
    %p55 = por %p53, %p54
    %p56 = scmp.ne.s32.totalorder %s45, %s46
    %p57 = scmp.eq.s32.totalorder %s16, 0
    %p58 = por %p56, %p57
    %p59 = scmp.ne.s32.totalorder %s45, %s46
    %p60 = scmp.eq.s32.totalorder %s17, 1
    %p61 = por %p59, %p60
    %p63 = scmp.ne.s32.totalorder %s46, %s62
    %p64 = scmp.eq.s32.totalorder %s17, 0
    %p65 = por %p63, %p64
    %s66 = ssub.s32 %s20, %s29
    %s67 = ssub.s32 %s19, %s33
    %s68 = sor.u32 %s66, %s67
    %p69 = scmp.eq.s32.totalorder %s68, 0
    %s71 = sadd.s32 %s70, 1
    %s72 = scalar_select %p69, %s70, %s71
    %p75 = pneg %p69
    %p76 = scmp.eq.s32.totalorder %s11, 1
    %p77 = por %p75, %p76
    %p78 = scmp.ne.s32.totalorder %s70, %s73
    %p79 = scmp.eq.s32.totalorder %s11, 0
    %p80 = por %p78, %p79
    %p81 = scmp.ne.s32.totalorder %s70, %s73
    %p82 = scmp.eq.s32.totalorder %s16, 1
    %p83 = por %p81, %p82
    %p84 = scmp.ne.s32.totalorder %s73, %s74
    %p85 = scmp.eq.s32.totalorder %s16, 0
    %p86 = por %p84, %p85
    %p87 = scmp.ne.s32.totalorder %s73, %s74
    %p88 = scmp.eq.s32.totalorder %s17, 1
    %p89 = por %p87, %p88
    %p91 = scmp.ne.s32.totalorder %s74, %s90
    %p92 = scmp.eq.s32.totalorder %s17, 0
    %p93 = por %p91, %p92
    %s94 = ssub.s32 %s18, %s37
    %s95 = ssub.s32 %s19, %s33
    %s96 = sor.u32 %s94, %s95
    %p97 = scmp.eq.s32.totalorder %s96, 0
    %s99 = sadd.s32 %s98, 1
    %s100 = scalar_select %p97, %s98, %s99
    %p103 = pneg %p97
    %p104 = scmp.eq.s32.totalorder %s11, 1
    %p105 = por %p103, %p104
    %p106 = scmp.ne.s32.totalorder %s98, %s101
    %p107 = scmp.eq.s32.totalorder %s11, 0
    %p108 = por %p106, %p107
    %p109 = scmp.ne.s32.totalorder %s98, %s101
    %p110 = scmp.eq.s32.totalorder %s16, 1
    %p111 = por %p109, %p110
    %p112 = scmp.ne.s32.totalorder %s101, %s102
    %p113 = scmp.eq.s32.totalorder %s16, 0
    %p114 = por %p112, %p113
    %p115 = scmp.ne.s32.totalorder %s101, %s102
    %p116 = scmp.eq.s32.totalorder %s17, 1
    %p117 = por %p115, %p116
    %p119 = scmp.ne.s32.totalorder %s102, %s118
    %p120 = scmp.eq.s32.totalorder %s17, 0
    %p121 = por %p119, %p120
    %s122 = ssub.s32 %s18, %s37
    %s123 = ssub.s32 %s19, %s33
    %s124 = sor.u32 %s122, %s123
    %p125 = scmp.eq.s32.totalorder %s124, 0
    %s127 = sadd.s32 %s126, 1
    %s128 = scalar_select %p125, %s126, %s127
    %p131 = pneg %p125
    %p132 = scmp.eq.s32.totalorder %s11, 1
    %p133 = por %p131, %p132
    %p134 = scmp.ne.s32.totalorder %s126, %s129
    %p135 = scmp.eq.s32.totalorder %s11, 0
    %p136 = por %p134, %p135
    %p137 = scmp.ne.s32.totalorder %s126, %s129
    %p138 = scmp.eq.s32.totalorder %s16, 1
    %p139 = por %p137, %p138
    %p140 = scmp.ne.s32.totalorder %s129, %s130
    %p141 = scmp.eq.s32.totalorder %s16, 0
    %p142 = por %p140, %p141
    %p143 = scmp.ne.s32.totalorder %s129, %s130
    %p144 = scmp.eq.s32.totalorder %s17, 1
    %p145 = por %p143, %p144
    %p147 = scmp.ne.s32.totalorder %s130, %s146
    %p148 = scmp.eq.s32.totalorder %s17, 0
    %p149 = por %p147, %p148
    %s150 = ssub.s32 %s18, %s37
    %s151 = ssub.s32 %s19, %s33
    %s152 = sor.u32 %s150, %s151
    %p153 = scmp.eq.s32.totalorder %s152, 0
    %s155 = sadd.s32 %s154, 1
    %s156 = scalar_select %p153, %s154, %s155
    %p159 = pneg %p153
    %p160 = scmp.eq.s32.totalorder %s11, 1
    %p161 = por %p159, %p160
    %p162 = scmp.ne.s32.totalorder %s154, %s157
    %p163 = scmp.eq.s32.totalorder %s11, 0
    %p164 = por %p162, %p163
    %p165 = scmp.ne.s32.totalorder %s154, %s157
    %p166 = scmp.eq.s32.totalorder %s16, 1
    %p167 = por %p165, %p166
    %p168 = scmp.ne.s32.totalorder %s157, %s158
    %p169 = scmp.eq.s32.totalorder %s16, 0
    %p170 = por %p168, %p169
    %p171 = scmp.ne.s32.totalorder %s157, %s158
    %p172 = scmp.eq.s32.totalorder %s17, 1
    %p173 = por %p171, %p172
    %p175 = scmp.ne.s32.totalorder %s158, %s174
    %p176 = scmp.eq.s32.totalorder %s17, 0
    %p177 = por %p175, %p176
    %p178 = scmp.le.s32.totalorder 1, %s11
    %p179 = scmp.lt.s32.totalorder %s11, 3
    %p180 = pnand %p178, %p179
    %p181 = pneg %p180
    // Predicated region
    $region9: #{forward.13} parent=5 // pred_check
      _
    $region10: #{forward.13} parent=5 // pred_check_branch
      %183 = sbr.rel (%p180) target = $region12
    $region11: #{forward.13} parent=5 // pred_region
      %s184 = ssub.s32 %s11, 1
      // Predicated region
      $region13: #{forward.13} parent=11 // pred_check
        %p185 = pneg %p86
      $region14: #{forward.13} parent=11 // pred_check_branch
        %187 = sbr.rel (%p185) target = $region16
      $region15: #{forward.13} parent=11 // pred_region
        %s188 = smul.u32 64, %s23
        %p189 = scmp.lt.s32.totalorder %s188, 63
        %s190 = scalar_select %p189, %s188, 63
        %p191 = scmp.lt.s32.totalorder %s22, 0
        %s192 = scalar_select %p191, %s22, 0
        %s193 = sadd.s32 %s192, %s190
        %s194 = smul.addr %s193, 4
        %s195 = scalar_lea.vmem %s1, %s194
        %s196 = smul.u32 64, %s23
      $region16: #{forward.13} parent=11 // pred_fallthru
        _
    $region12: #{forward.13} parent=5 // pred_fallthru
      _
    %p197 = scmp.lt.s32.totalorder %s11, 2
    // Predicated region
    $region17: #{forward.13} parent=5 // pred_check
      %p198 = pneg %p197
    $region18: #{forward.13} parent=5 // pred_check_branch
      %200 = sbr.rel (%p198) target = $region20
    $region19: #{forward.13} parent=5 // pred_region
      // Predicated region
      $region21: #{forward.13} parent=19 // pred_check
        %p201 = pneg %p52
      $region22: #{forward.13} parent=19 // pred_check_branch
        %203 = sbr.rel (%p201) target = $region24
      $region23: #{forward.13} parent=19 // pred_region
        %s204 = smul.u32 2, %s18
        %s205 = smul.u32 4, %s20
        %p206 = scmp.lt.s32.totalorder %s204, 3
        %s207 = scalar_select %p206, %s204, 3
        %p208 = scmp.lt.s32.totalorder %s205, 3
        %s209 = scalar_select %p208, %s205, 3
        %s210 = smul.addr %s207, 4
        %s211 = sadd.s32 %s209, %s210
        %s212 = smul.addr %s211, 4
        %s213 = scalar_lea.vmem %s0, %s212
        %s214 = smul.u32 2, %s18
        %s215 = smul.u32 4, %s20
      $region24: #{forward.13} parent=19 // pred_fallthru
        _
    $region20: #{forward.13} parent=5 // pred_fallthru
      _
    %p216 = scmp.le.s32.totalorder 1, %s11
    %p217 = scmp.lt.s32.totalorder %s11, 3
    %p218 = pnand %p216, %p217
    %p219 = pneg %p218
    // Predicated region
    $region25: #{forward.13} parent=5 // pred_check
      _
    $region26: #{forward.13} parent=5 // pred_check_branch
      %221 = sbr.rel (%p218) target = $region28
    $region27: #{forward.13} parent=5 // pred_region
      %s222 = ssub.s32 %s11, 1
      %s223 = smul.u32 2, %s21
      %s224 = smul.u32 4, %s23
      %p225 = scmp.lt.s32.totalorder %s223, 3
      %s226 = scalar_select %p225, %s223, 3
      %p227 = scmp.lt.s32.totalorder %s224, 3
      %s228 = scalar_select %p227, %s224, 3
      %s229 = smul.addr %s226, 4
      %s230 = sadd.s32 %s228, %s229
      %s231 = smul.addr %s230, 4
      %s232 = scalar_lea.vmem %s0, %s231
      %p233 = pneg %p58
      %p234 = pneg %p55
      %s235 = smul.u32 64, %s23
      %p236 = scmp.lt.s32.totalorder %s235, 63
      %s237 = scalar_select %p236, %s235, 63
      %p238 = scmp.lt.s32.totalorder %s22, 0
      %s239 = scalar_select %p238, %s22, 0
      %s240 = sadd.s32 %s239, %s237
      %s241 = smul.addr %s240, 4
      %s242 = scalar_lea.vmem %s1, %s241
      %p243 = pneg %p86
      %p244 = pneg %p83
      %p245 = pneg %p114
      %p246 = pneg %p111
      %s247 = smul.u32 2, %s21
      %p248 = scmp.lt.s32.totalorder %s247, 3
      %s249 = scalar_select %p248, %s247, 3
      %p250 = scmp.lt.s32.totalorder %s22, 0
      %s251 = scalar_select %p250, %s22, 0
      %s252 = sadd.s32 %s251, %s249
      %s253 = smul.addr %s252, 4
      %s254 = scalar_lea.vmem %s2, %s253
      %p255 = pneg %p142
      %p256 = pneg %p139
      %p257 = scmp.lt.s32.totalorder %s21, 1
      %s258 = scalar_select %p257, %s21, 1
      %p259 = scmp.lt.s32.totalorder %s22, 0
      %s260 = scalar_select %p259, %s22, 0
      %s261 = sadd.s32 %s260, %s258
      %s262 = smul.addr %s261, 8
      %s263 = scalar_lea.vmem %s3, %s262
      %p264 = pneg %p170
      %p265 = pneg %p167
      %p266 = scmp.lt.s32.totalorder %s21, 1
      %s267 = scalar_select %p266, %s21, 1
      %p268 = scmp.lt.s32.totalorder %s22, 0
      %s269 = scalar_select %p268, %s22, 0
      %s270 = sadd.s32 %s269, %s267
      %s271 = smul.addr %s270, 8
      %s272 = scalar_lea.vmem %s4, %s271
      %s273 = smul.u32 2, %s21
      %s274 = smul.u32 4, %s23
      %p275 = scmp.lt.s32.totalorder %s273, 3
      %s276 = scalar_select %p275, %s273, 3
      %p277 = scmp.lt.s32.totalorder %s274, 3
      %s278 = scalar_select %p277, %s274, 3
      %s279 = smul.addr %s276, 4
      %s280 = sadd.s32 %s278, %s279
      %s281 = smul.addr %s280, 4
      %s282 = scalar_lea.vmem %s0, %s281
      %s283 = smul.u32 2, %s21
      %s284 = smul.u32 4, %s23
      %s285 = smul.u32 64, %s23
      %p286 = scmp.lt.s32.totalorder %s285, 63
      %s287 = scalar_select %p286, %s285, 63
      %p288 = scmp.lt.s32.totalorder %s22, 0
      %s289 = scalar_select %p288, %s22, 0
      %s290 = sadd.s32 %s289, %s287
      %s291 = smul.addr %s290, 4
      %s292 = scalar_lea.vmem %s1, %s291
      %s293 = smul.u32 64, %s23
      %s294 = smul.u32 2, %s21
      %p295 = scmp.lt.s32.totalorder %s294, 3
      %s296 = scalar_select %p295, %s294, 3
      %p297 = scmp.lt.s32.totalorder %s22, 0
      %s298 = scalar_select %p297, %s22, 0
      %s299 = sadd.s32 %s298, %s296
      %s300 = smul.addr %s299, 4
      %s301 = scalar_lea.vmem %s2, %s300
      %s302 = smul.u32 2, %s21
      %p303 = scmp.lt.s32.totalorder %s21, 1
      %s304 = scalar_select %p303, %s21, 1
      %p305 = scmp.lt.s32.totalorder %s22, 0
      %s306 = scalar_select %p305, %s22, 0
      %s307 = sadd.s32 %s306, %s304
      %s308 = smul.addr %s307, 8
      %s309 = scalar_lea.vmem %s3, %s308
      %p310 = scmp.lt.s32.totalorder %s21, 1
      %s311 = scalar_select %p310, %s21, 1
      %p312 = scmp.lt.s32.totalorder %s22, 0
      %s313 = scalar_select %p312, %s22, 0
      %s314 = sadd.s32 %s313, %s311
      %s315 = smul.addr %s314, 8
      %s316 = scalar_lea.vmem %s4, %s315
      %p317 = scmp.eq.s32.totalorder %s23, 0
      // Predicated region
      $region29: #{forward.13} parent=27 // pred_check
        %p318 = pneg %p317
      $region30: #{forward.13} parent=27 // pred_check_branch
        %320 = sbr.rel (%p318) target = $region32
      $region31: #{forward.13} parent=27 // pred_region
        %321 = vst [vmem:[#allocation2] sm:$0xff] 0.0
        %322 = vst [vmem:[#allocation2 + $0x8] sm:$0xff] 0.0
      $region32: #{forward.13} parent=27 // pred_fallthru
        _
      %v323 = vld [vmem:[#allocation2] sm:$0xff]
      %v324 = vld [vmem:[#allocation2 + $0x8] sm:$0xff]
      %v325 = vld [vmem:[%s282] sm:$0xff]
      %v326 = vld [vmem:[%s282 + $0x8] sm:$0xff]
      %v327 = vld [vmem:[%s282 + $0x10] sm:$0xff]
      %v328 = vld [vmem:[%s282 + $0x18] sm:$0xff]
      %v329 = vld [vmem:[%s292] sm:$0xf]
      %v330 = vld [vmem:[%s292 + $0x4] sm:$0xf]
      %v331 = vld [vmem:[%s292 + $0x8] sm:$0xf]
      %v332 = vld [vmem:[%s292 + $0xc] sm:$0xf]
      %v333 = vld [vmem:[%s292 + $0x10] sm:$0xf]
      %v334 = vld [vmem:[%s292 + $0x14] sm:$0xf]
      %v335 = vld [vmem:[%s292 + $0x18] sm:$0xf]
      %v336 = vld [vmem:[%s292 + $0x1c] sm:$0xf]
      %v337 = vld [vmem:[%s292 + $0x20] sm:$0xf]
      %v338 = vld [vmem:[%s292 + $0x24] sm:$0xf]
      %v339 = vld [vmem:[%s292 + $0x28] sm:$0xf]
      %v340 = vld [vmem:[%s292 + $0x2c] sm:$0xf]
      %v341 = vld [vmem:[%s292 + $0x30] sm:$0xf]
      %v342 = vld [vmem:[%s292 + $0x34] sm:$0xf]
      %v343 = vld [vmem:[%s292 + $0x38] sm:$0xf]
      %v344 = vld [vmem:[%s292 + $0x3c] sm:$0xf]
      %v345 = vld [vmem:[%s292 + $0x40] sm:$0xf]
      %v346 = vld [vmem:[%s292 + $0x44] sm:$0xf]
      %v347 = vld [vmem:[%s292 + $0x48] sm:$0xf]
      %v348 = vld [vmem:[%s292 + $0x4c] sm:$0xf]
      %v349 = vld [vmem:[%s292 + $0x50] sm:$0xf]
      %v350 = vld [vmem:[%s292 + $0x54] sm:$0xf]
      %v351 = vld [vmem:[%s292 + $0x58] sm:$0xf]
      %v352 = vld [vmem:[%s292 + $0x5c] sm:$0xf]
      %v353 = vld [vmem:[%s292 + $0x60] sm:$0xf]
      %v354 = vld [vmem:[%s292 + $0x64] sm:$0xf]
      %v355 = vld [vmem:[%s292 + $0x68] sm:$0xf]
      %v356 = vld [vmem:[%s292 + $0x6c] sm:$0xf]
      %v357 = vld [vmem:[%s292 + $0x70] sm:$0xf]
      %v358 = vld [vmem:[%s292 + $0x74] sm:$0xf]
      %v359 = vld [vmem:[%s292 + $0x78] sm:$0xf]
      %v360 = vld [vmem:[%s292 + $0x7c] sm:$0xf]
      %v361 = vld [vmem:[%s292 + $0x80] sm:$0xf]
      %v362 = vld [vmem:[%s292 + $0x84] sm:$0xf]
      %v363 = vld [vmem:[%s292 + $0x88] sm:$0xf]
      %v364 = vld [vmem:[%s292 + $0x8c] sm:$0xf]
      %v365 = vld [vmem:[%s292 + $0x90] sm:$0xf]
      %v366 = vld [vmem:[%s292 + $0x94] sm:$0xf]
      %v367 = vld [vmem:[%s292 + $0x98] sm:$0xf]
      %v368 = vld [vmem:[%s292 + $0x9c] sm:$0xf]
      %v369 = vld [vmem:[%s292 + $0xa0] sm:$0xf]
      %v370 = vld [vmem:[%s292 + $0xa4] sm:$0xf]
      %v371 = vld [vmem:[%s292 + $0xa8] sm:$0xf]
      %v372 = vld [vmem:[%s292 + $0xac] sm:$0xf]
      %v373 = vld [vmem:[%s292 + $0xb0] sm:$0xf]
      %v374 = vld [vmem:[%s292 + $0xb4] sm:$0xf]
      %v375 = vld [vmem:[%s292 + $0xb8] sm:$0xf]
      %v376 = vld [vmem:[%s292 + $0xbc] sm:$0xf]
      %v377 = vld [vmem:[%s292 + $0xc0] sm:$0xf]
      %v378 = vld [vmem:[%s292 + $0xc4] sm:$0xf]
      %v379 = vld [vmem:[%s292 + $0xc8] sm:$0xf]
      %v380 = vld [vmem:[%s292 + $0xcc] sm:$0xf]
      %v381 = vld [vmem:[%s292 + $0xd0] sm:$0xf]
      %v382 = vld [vmem:[%s292 + $0xd4] sm:$0xf]
      %v383 = vld [vmem:[%s292 + $0xd8] sm:$0xf]
      %v384 = vld [vmem:[%s292 + $0xdc] sm:$0xf]
      %v385 = vld [vmem:[%s292 + $0xe0] sm:$0xf]
      %v386 = vld [vmem:[%s292 + $0xe4] sm:$0xf]
      %v387 = vld [vmem:[%s292 + $0xe8] sm:$0xf]
      %v388 = vld [vmem:[%s292 + $0xec] sm:$0xf]
      %v389 = vld [vmem:[%s292 + $0xf0] sm:$0xf]
      %v390 = vld [vmem:[%s292 + $0xf4] sm:$0xf]
      %v391 = vld [vmem:[%s292 + $0xf8] sm:$0xf]
      %v392 = vld [vmem:[%s292 + $0xfc] sm:$0xf]
      %v397 = vunpack.c.l.b16 %v325
      %v398 = vunpack.c.h.b16 %v325
      %v399 = vunpack.c.l.b16 %v326
      %v400 = vunpack.c.h.b16 %v326
      %v401 = vunpack.c.l.b16 %v327
      %v402 = vunpack.c.h.b16 %v327
      %v403 = vunpack.c.l.b16 %v328
      %v404 = vunpack.c.h.b16 %v328
      %v405 = vpack.c.b16 %v401, %v397
      %v406 = vpack.c.b16 %v402, %v398
      %v407 = vpack.c.b16 %v403, %v399
      %v408 = vpack.c.b16 %v404, %v400
      %v477 = vunpack.c.l.b16 %v329
      %v478 = vunpack.c.l.b16 %v330
      %v479 = vunpack.c.l.b16 %v331
      %v480 = vunpack.c.l.b16 %v332
      %v481 = vunpack.c.l.b16 %v333
      %v482 = vunpack.c.l.b16 %v334
      %v483 = vunpack.c.l.b16 %v335
      %v484 = vunpack.c.l.b16 %v336
      %v485 = vunpack.c.l.b16 %v337
      %v486 = vunpack.c.l.b16 %v338
      %v487 = vunpack.c.l.b16 %v339
      %v488 = vunpack.c.l.b16 %v340
      %v489 = vunpack.c.l.b16 %v341
      %v490 = vunpack.c.l.b16 %v342
      %v491 = vunpack.c.l.b16 %v343
      %v492 = vunpack.c.l.b16 %v344
      %v493 = vunpack.c.l.b16 %v345
      %v494 = vunpack.c.l.b16 %v346
      %v495 = vunpack.c.l.b16 %v347
      %v496 = vunpack.c.l.b16 %v348
      %v497 = vunpack.c.l.b16 %v349
      %v498 = vunpack.c.l.b16 %v350
      %v499 = vunpack.c.l.b16 %v351
      %v500 = vunpack.c.l.b16 %v352
      %v501 = vunpack.c.l.b16 %v353
      %v502 = vunpack.c.l.b16 %v354
      %v503 = vunpack.c.l.b16 %v355
      %v504 = vunpack.c.l.b16 %v356
      %v505 = vunpack.c.l.b16 %v357
      %v506 = vunpack.c.l.b16 %v358
      %v507 = vunpack.c.l.b16 %v359
      %v508 = vunpack.c.l.b16 %v360
      %v509 = vunpack.c.l.b16 %v361
      %v510 = vunpack.c.l.b16 %v362
      %v511 = vunpack.c.l.b16 %v363
      %v512 = vunpack.c.l.b16 %v364
      %v513 = vunpack.c.l.b16 %v365
      %v514 = vunpack.c.l.b16 %v366
      %v515 = vunpack.c.l.b16 %v367
      %v516 = vunpack.c.l.b16 %v368
      %v517 = vunpack.c.l.b16 %v369
      %v518 = vunpack.c.l.b16 %v370
      %v519 = vunpack.c.l.b16 %v371
      %v520 = vunpack.c.l.b16 %v372
      %v521 = vunpack.c.l.b16 %v373
      %v522 = vunpack.c.l.b16 %v374
      %v523 = vunpack.c.l.b16 %v375
      %v524 = vunpack.c.l.b16 %v376
      %v525 = vunpack.c.l.b16 %v377
      %v526 = vunpack.c.l.b16 %v378
      %v527 = vunpack.c.l.b16 %v379
      %v528 = vunpack.c.l.b16 %v380
      %v529 = vunpack.c.l.b16 %v381
      %v530 = vunpack.c.l.b16 %v382
      %v531 = vunpack.c.l.b16 %v383
      %v532 = vunpack.c.l.b16 %v384
      %v533 = vunpack.c.l.b16 %v385
      %v534 = vunpack.c.l.b16 %v386
      %v535 = vunpack.c.l.b16 %v387
      %v536 = vunpack.c.l.b16 %v388
      %v537 = vunpack.c.l.b16 %v389
      %v538 = vunpack.c.l.b16 %v390
      %v539 = vunpack.c.l.b16 %v391
      %v540 = vunpack.c.l.b16 %v392
      %v541 = vpack.c.b16 %v478, %v477
      %v542 = vpack.c.b16 %v480, %v479
      %v543 = vpack.c.b16 %v482, %v481
      %v544 = vpack.c.b16 %v484, %v483
      %v545 = vpack.c.b16 %v486, %v485
      %v546 = vpack.c.b16 %v488, %v487
      %v547 = vpack.c.b16 %v490, %v489
      %v548 = vpack.c.b16 %v492, %v491
      %v549 = vpack.c.b16 %v494, %v493
      %v550 = vpack.c.b16 %v496, %v495
      %v551 = vpack.c.b16 %v498, %v497
      %v552 = vpack.c.b16 %v500, %v499
      %v553 = vpack.c.b16 %v502, %v501
      %v554 = vpack.c.b16 %v504, %v503
      %v555 = vpack.c.b16 %v506, %v505
      %v556 = vpack.c.b16 %v508, %v507
      %v557 = vpack.c.b16 %v510, %v509
      %v558 = vpack.c.b16 %v512, %v511
      %v559 = vpack.c.b16 %v514, %v513
      %v560 = vpack.c.b16 %v516, %v515
      %v561 = vpack.c.b16 %v518, %v517
      %v562 = vpack.c.b16 %v520, %v519
      %v563 = vpack.c.b16 %v522, %v521
      %v564 = vpack.c.b16 %v524, %v523
      %v565 = vpack.c.b16 %v526, %v525
      %v566 = vpack.c.b16 %v528, %v527
      %v567 = vpack.c.b16 %v530, %v529
      %v568 = vpack.c.b16 %v532, %v531
      %v569 = vpack.c.b16 %v534, %v533
      %v570 = vpack.c.b16 %v536, %v535
      %v571 = vpack.c.b16 %v538, %v537
      %v572 = vpack.c.b16 %v540, %v539
      %605 = vmatpush.bf16.msra.mxu0 %v548
      %606 = vmatpush.bf16.msra.mxu0 %v547
      %607 = vmatpush.bf16.msra.mxu0 %v546
      %608 = vmatpush.bf16.msra.mxu0 %v545
      %609 = vmatpush.bf16.msra.mxu0 %v544
      %610 = vmatpush.bf16.msra.mxu0 %v543
      %611 = vmatpush.bf16.msra.mxu0 %v542
      %612 = vmatpush.bf16.msra.mxu0 %v541
      %613 = vmatmul.bf16.gmra.mxu0 %v405
      %v614 = vpop.f32.mrf.mxu0
      %v615 = vadd.f32 0.0, %v614
      %v616 = vpop.f32.mrf.mxu0
      %v617 = vadd.f32 0.0, %v616
      %618 = vdwg.mxu0
      %619 = vmatpush.bf16.msra.mxu0 %v556
      %620 = vmatpush.bf16.msra.mxu0 %v555
      %621 = vmatpush.bf16.msra.mxu0 %v554
      %622 = vmatpush.bf16.msra.mxu0 %v553
      %623 = vmatpush.bf16.msra.mxu0 %v552
      %624 = vmatpush.bf16.msra.mxu0 %v551
      %625 = vmatpush.bf16.msra.mxu0 %v550
      %626 = vmatpush.bf16.msra.mxu0 %v549
      %627 = vmatmul.bf16.gmra.mxu0 %v406
      %v628 = vpop.f32.mrf.mxu0
      %v629 = vadd.f32 %v615, %v628
      %v630 = vpop.f32.mrf.mxu0
      %v631 = vadd.f32 %v617, %v630
      %632 = vdwg.mxu0
      %633 = vmatpush.bf16.msra.mxu0 %v564
      %634 = vmatpush.bf16.msra.mxu0 %v563
      %635 = vmatpush.bf16.msra.mxu0 %v562
      %636 = vmatpush.bf16.msra.mxu0 %v561
      %637 = vmatpush.bf16.msra.mxu0 %v560
      %638 = vmatpush.bf16.msra.mxu0 %v559
      %639 = vmatpush.bf16.msra.mxu0 %v558
      %640 = vmatpush.bf16.msra.mxu0 %v557
      %641 = vmatmul.bf16.gmra.mxu0 %v407
      %v642 = vpop.f32.mrf.mxu0
      %v643 = vadd.f32 %v629, %v642
      %v644 = vpop.f32.mrf.mxu0
      %v645 = vadd.f32 %v631, %v644
      %646 = vdwg.mxu0
      %647 = vmatpush.bf16.msra.mxu0 %v572
      %648 = vmatpush.bf16.msra.mxu0 %v571
      %649 = vmatpush.bf16.msra.mxu0 %v570
      %650 = vmatpush.bf16.msra.mxu0 %v569
      %651 = vmatpush.bf16.msra.mxu0 %v568
      %652 = vmatpush.bf16.msra.mxu0 %v567
      %653 = vmatpush.bf16.msra.mxu0 %v566
      %654 = vmatpush.bf16.msra.mxu0 %v565
      %655 = vmatmul.bf16.gmra.mxu0 %v408
      %v656 = vpop.f32.mrf.mxu0
      %v657 = vadd.f32 %v643, %v656
      %v658 = vpop.f32.mrf.mxu0
      %v659 = vadd.f32 %v645, %v658
      %660 = vdwg.mxu0
      %v661 = vadd.f32 %v323, %v657
      %v662 = vadd.f32 %v324, %v659
      %663 = vst [vmem:[#allocation2] sm:$0xff] %v661
      %664 = vst [vmem:[#allocation2 + $0x8] sm:$0xff] %v662
      // Predicated region
      $region33: #{forward.13} parent=27 // pred_check
        %p665 = pneg %p317
      $region34: #{forward.13} parent=27 // pred_check_branch
        %667 = sbr.rel (%p665) target = $region36
      $region35: #{forward.13} parent=27 // pred_region
        %v668 = vld [vmem:[#allocation2] sm:$0xff]
        %v669 = vld [vmem:[#allocation2 + $0x8] sm:$0xff]
        %v670 = vpack.c.bf16 %v668, %v668
        %v671 = vpack.c.bf16 %v669, %v669
        %672 = vst [vmem:[%s301] sm:$0xf] %v670
        %673 = vst [vmem:[%s301 + $0x4] sm:$0xf] %v671
        %v674 = vadd.f32 %v668, %v669
        %v675 = vrot.slane %v674, 4
        %v676 = vadd.f32 %v674, %v675
        %v677 = vrot.slane %v676, 2
        %v678 = vadd.f32 %v676, %v677
        %v679 = vrot.slane %v678, 1
        %v680 = vadd.f32 %v678, %v679
        %v681 = vmul.f32 %v668, %v668
        %v682 = vmul.f32 %v669, %v669
        %v683 = vadd.f32 %v681, %v682
        %v684 = vrot.slane %v683, 4
        %v685 = vadd.f32 %v683, %v684
        %v686 = vrot.slane %v685, 2
        %v687 = vadd.f32 %v685, %v686
        %v688 = vrot.slane %v687, 1
        %v689 = vadd.f32 %v687, %v688
        %v690 = vlaneseq
        %v691 = vshrl.u32 %v690, 7
        %vm692 = vcmp.eq.s32.totalorder %v691, 0
        %v693 = vsel %vm692, %v680, 0.0
        %694 = vst [vmem:[%s309] sm:$0xff] %v693
        %v695 = vsel %vm692, %v689, 0.0
        %696 = vst [vmem:[%s316] sm:$0xff] %v695
      $region36: #{forward.13} parent=27 // pred_fallthru
        _
      %s697 = smul.u32 2, %s21
      %p698 = scmp.lt.s32.totalorder %s697, 3
      %s699 = scalar_select %p698, %s697, 3
      %p700 = scmp.lt.s32.totalorder %s22, 0
      %s701 = scalar_select %p700, %s22, 0
      %s702 = sadd.s32 %s701, %s699
      %s703 = smul.addr %s702, 4
      %s704 = scalar_lea.vmem %s2, %s703
      %p705 = scmp.lt.s32.totalorder %s21, 1
      %s706 = scalar_select %p705, %s21, 1
      %p707 = scmp.lt.s32.totalorder %s22, 0
      %s708 = scalar_select %p707, %s22, 0
      %s709 = sadd.s32 %s708, %s706
      %s710 = smul.addr %s709, 8
      %s711 = scalar_lea.vmem %s3, %s710
      %p712 = scmp.lt.s32.totalorder %s21, 1
      %s713 = scalar_select %p712, %s21, 1
      %p714 = scmp.lt.s32.totalorder %s22, 0
      %s715 = scalar_select %p714, %s22, 0
      %s716 = sadd.s32 %s715, %s713
      %s717 = smul.addr %s716, 8
      %s718 = scalar_lea.vmem %s4, %s717
      // Predicated region
      $region37: #{forward.13} parent=27 // pred_check
        %p719 = pneg %p111
      $region38: #{forward.13} parent=27 // pred_check_branch
        %721 = sbr.rel (%p719) target = $region40
      $region39: #{forward.13} parent=27 // pred_region
        %s722 = smul.u32 2, %s21
      $region40: #{forward.13} parent=27 // pred_fallthru
        _
      // Predicated region
      $region41: #{forward.13} parent=27 // pred_check
        %p723 = pneg %p139
      $region42: #{forward.13} parent=27 // pred_check_branch
        %725 = sbr.rel (%p723) target = $region44
      $region43: #{forward.13} parent=27 // pred_region
        _
      $region44: #{forward.13} parent=27 // pred_fallthru
        _
      // Predicated region
      $region45: #{forward.13} parent=27 // pred_check
        %p726 = pneg %p167
      $region46: #{forward.13} parent=27 // pred_check_branch
        %728 = sbr.rel (%p726) target = $region48
      $region47: #{forward.13} parent=27 // pred_region
        _
      $region48: #{forward.13} parent=27 // pred_fallthru
        _
    $region28: #{forward.13} parent=5 // pred_fallthru
      _
    %p729 = scmp.le.s32.totalorder 2, %s11
    // Predicated region
    $region49: #{forward.13} parent=5 // pred_check
      %p730 = pneg %p729
    $region50: #{forward.13} parent=5 // pred_check_branch
      %732 = sbr.rel (%p730) target = $region52
    $region51: #{forward.13} parent=5 // pred_region
      %s733 = ssub.s32 %s11, 2
      // Predicated region
      $region53: #{forward.13} parent=51 // pred_check
        %p734 = pneg %p117
      $region54: #{forward.13} parent=51 // pred_check_branch
        %736 = sbr.rel (%p734) target = $region56
      $region55: #{forward.13} parent=51 // pred_region
        %s737 = smul.u32 2, %s24
        %p738 = scmp.lt.s32.totalorder %s737, 3
        %s739 = scalar_select %p738, %s737, 3
        %p740 = scmp.lt.s32.totalorder %s25, 0
        %s741 = scalar_select %p740, %s25, 0
        %s742 = sadd.s32 %s741, %s739
        %s743 = smul.addr %s742, 4
        %s744 = scalar_lea.vmem %s2, %s743
      $region56: #{forward.13} parent=51 // pred_fallthru
        _
      // Predicated region
      $region57: #{forward.13} parent=51 // pred_check
        %p745 = pneg %p145
      $region58: #{forward.13} parent=51 // pred_check_branch
        %747 = sbr.rel (%p745) target = $region60
      $region59: #{forward.13} parent=51 // pred_region
        %p748 = scmp.lt.s32.totalorder %s24, 1
        %s749 = scalar_select %p748, %s24, 1
        %p750 = scmp.lt.s32.totalorder %s25, 0
        %s751 = scalar_select %p750, %s25, 0
        %s752 = sadd.s32 %s751, %s749
        %s753 = smul.addr %s752, 8
        %s754 = scalar_lea.vmem %s3, %s753
      $region60: #{forward.13} parent=51 // pred_fallthru
        _
      // Predicated region
      $region61: #{forward.13} parent=51 // pred_check
        %p755 = pneg %p173
      $region62: #{forward.13} parent=51 // pred_check_branch
        %757 = sbr.rel (%p755) target = $region64
      $region63: #{forward.13} parent=51 // pred_region
        %p758 = scmp.lt.s32.totalorder %s24, 1
        %s759 = scalar_select %p758, %s24, 1
        %p760 = scmp.lt.s32.totalorder %s25, 0
        %s761 = scalar_select %p760, %s25, 0
        %s762 = sadd.s32 %s761, %s759
        %s763 = smul.addr %s762, 8
        %s764 = scalar_lea.vmem %s4, %s763
      $region64: #{forward.13} parent=51 // pred_fallthru
        _
    $region52: #{forward.13} parent=5 // pred_fallthru
      _
  $region6: #{forward.13} parent=0 // loop_footer
    %s15 = sadd.s32 1, %s11
  $region7: #{forward.13} parent=0 // loop_footer_branch
    %10 = sbr.rel target = $region3
  $region8: #{forward.13} parent=0 // loop_exit
    _

// kernel: forward.14
$region0: #{forward.14}
  #allocation0 [shape = 'u32[]', space=smem, size = 0x4, offset = 0x4, fixed_abs, tag = 'smem constant byte address 0x4 - core index']
  #allocation1 [shape = 'u32[72,128]{1,0:T(1,128)}', space=vmem, size = 0x9000, scoped, tag = 'internal scratch']
  %s0 = inlined_call_operand.vmem [shape: bf16[32,128], index: 0, kind: input, shape index: {}]
  %s1 = inlined_call_operand.vmem [shape: f32[1,128], index: 1, kind: input, shape index: {}]
  %s2 = inlined_call_operand.vmem [shape: f32[1,128], index: 2, kind: input, shape index: {}]
  %s3 = inlined_call_operand.vmem [shape: bf16[32,128], index: 3, kind: output, shape index: {}]
  %s4 = sld [smem:[#allocation0]]
  $region45: #{forward.14} parent=0
    _
  %s6 = ssub.s32 1, %s4
  %s7 = scalar_select 0, %s6, %s4
  loop: start=0, step=1, limit=4
  $region2: #{forward.14} parent=0 // loop_pre_header
    _
  $region3: #{forward.14} parent=0 // loop_header
    %s9 = sphi 0, %s13
    %p10 = scmp.ge.s32.totalorder %s9, 4
    %s19 = sphi 0, %s21
    %s22 = sphi 0, %s19
    %s23 = sphi 0, %s22
    %s39 = sphi 0, %s23
    %s43 = sphi 0, %s43
    %s45 = sphi 0, %s43
    %s46 = sphi 0, %s45
    %s60 = sphi 0, %s46
    %s64 = sphi 0, %s64
    %s66 = sphi 0, %s64
    %s67 = sphi 0, %s66
    %s81 = sphi 0, %s67
    %s87 = sphi 0, %s89
    %s90 = sphi 0, %s87
    %s91 = sphi 0, %s90
    %s107 = sphi 0, %s91
  $region4: #{forward.14} parent=0 // loop_header_branch
    %12 = sbr.rel (%p10) target = $region8
  $region5: #{forward.14} parent=0 // loop_body
    %s14 = ssub.s32 %s9, 1
    %s15 = ssub.s32 %s9, 2
    %s16 = sadd.s32 %s9, 1
    %s17 = ssub.s32 %s9, %s16
    %p18 = scmp.eq.s32.totalorder %s17, 0
    %s20 = sadd.s32 %s19, 1
    %s21 = scalar_select %p18, %s19, %s20
    %p24 = pneg %p18
    %p25 = scmp.eq.s32.totalorder %s9, 1
    %p26 = por %p24, %p25
    %p27 = scmp.ne.s32.totalorder %s19, %s22
    %p28 = scmp.eq.s32.totalorder %s9, 0
    %p29 = por %p27, %p28
    %p30 = scmp.ne.s32.totalorder %s19, %s22
    %p31 = scmp.eq.s32.totalorder %s14, 1
    %p32 = por %p30, %p31
    %p33 = scmp.ne.s32.totalorder %s22, %s23
    %p34 = scmp.eq.s32.totalorder %s14, 0
    %p35 = por %p33, %p34
    %p36 = scmp.ne.s32.totalorder %s22, %s23
    %p37 = scmp.eq.s32.totalorder %s15, 1
    %p38 = por %p36, %p37
    %p40 = scmp.ne.s32.totalorder %s23, %s39
    %p41 = scmp.eq.s32.totalorder %s15, 0
    %p42 = por %p40, %p41
    %s44 = sadd.s32 %s43, 1
    %p47 = scmp.eq.s32.totalorder %s9, 1
    %p48 = scmp.ne.s32.totalorder %s43, %s45
    %p49 = scmp.eq.s32.totalorder %s9, 0
    %p50 = por %p48, %p49
    %p51 = scmp.ne.s32.totalorder %s43, %s45
    %p52 = scmp.eq.s32.totalorder %s14, 1
    %p53 = por %p51, %p52
    %p54 = scmp.ne.s32.totalorder %s45, %s46
    %p55 = scmp.eq.s32.totalorder %s14, 0
    %p56 = por %p54, %p55
    %p57 = scmp.ne.s32.totalorder %s45, %s46
    %p58 = scmp.eq.s32.totalorder %s15, 1
    %p59 = por %p57, %p58
    %p61 = scmp.ne.s32.totalorder %s46, %s60
    %p62 = scmp.eq.s32.totalorder %s15, 0
    %p63 = por %p61, %p62
    %s65 = sadd.s32 %s64, 1
    %p68 = scmp.eq.s32.totalorder %s9, 1
    %p69 = scmp.ne.s32.totalorder %s64, %s66
    %p70 = scmp.eq.s32.totalorder %s9, 0
    %p71 = por %p69, %p70
    %p72 = scmp.ne.s32.totalorder %s64, %s66
    %p73 = scmp.eq.s32.totalorder %s14, 1
    %p74 = por %p72, %p73
    %p75 = scmp.ne.s32.totalorder %s66, %s67
    %p76 = scmp.eq.s32.totalorder %s14, 0
    %p77 = por %p75, %p76
    %p78 = scmp.ne.s32.totalorder %s66, %s67
    %p79 = scmp.eq.s32.totalorder %s15, 1
    %p80 = por %p78, %p79
    %p82 = scmp.ne.s32.totalorder %s67, %s81
    %p83 = scmp.eq.s32.totalorder %s15, 0
    %p84 = por %p82, %p83
    %s85 = ssub.s32 %s9, %s16
    %p86 = scmp.eq.s32.totalorder %s85, 0
    %s88 = sadd.s32 %s87, 1
    %s89 = scalar_select %p86, %s87, %s88
    %p92 = pneg %p86
    %p93 = scmp.eq.s32.totalorder %s9, 1
    %p94 = por %p92, %p93
    %p95 = scmp.ne.s32.totalorder %s87, %s90
    %p96 = scmp.eq.s32.totalorder %s9, 0
    %p97 = por %p95, %p96
    %p98 = scmp.ne.s32.totalorder %s87, %s90
    %p99 = scmp.eq.s32.totalorder %s14, 1
    %p100 = por %p98, %p99
    %p101 = scmp.ne.s32.totalorder %s90, %s91
    %p102 = scmp.eq.s32.totalorder %s14, 0
    %p103 = por %p101, %p102
    %p104 = scmp.ne.s32.totalorder %s90, %s91
    %p105 = scmp.eq.s32.totalorder %s15, 1
    %p106 = por %p104, %p105
    %p108 = scmp.ne.s32.totalorder %s91, %s107
    %p109 = scmp.eq.s32.totalorder %s15, 0
    %p110 = por %p108, %p109
    %p111 = scmp.le.s32.totalorder 1, %s9
    %p112 = scmp.lt.s32.totalorder %s9, 3
    %p113 = pnand %p111, %p112
    %p114 = pneg %p113
    // Predicated region
    $region9: #{forward.14} parent=5 // pred_check
      _
    $region10: #{forward.14} parent=5 // pred_check_branch
      %116 = sbr.rel (%p113) target = $region12
    $region11: #{forward.14} parent=5 // pred_region
      %s117 = ssub.s32 %s9, 1
      // Predicated region
      $region13: #{forward.14} parent=11 // pred_check
        %p118 = pneg %p56
      $region14: #{forward.14} parent=11 // pred_check_branch
        %120 = sbr.rel (%p118) target = $region16
      $region15: #{forward.14} parent=11 // pred_region
        _
      $region16: #{forward.14} parent=11 // pred_fallthru
        _
      // Predicated region
      $region17: #{forward.14} parent=11 // pred_check
        %p121 = pneg %p77
      $region18: #{forward.14} parent=11 // pred_check_branch
        %123 = sbr.rel (%p121) target = $region20
      $region19: #{forward.14} parent=11 // pred_region
        _
      $region20: #{forward.14} parent=11 // pred_fallthru
        _
    $region12: #{forward.14} parent=5 // pred_fallthru
      _
    %p124 = scmp.lt.s32.totalorder %s9, 2
    // Predicated region
    $region21: #{forward.14} parent=5 // pred_check
      %p125 = pneg %p124
    $region22: #{forward.14} parent=5 // pred_check_branch
      %127 = sbr.rel (%p125) target = $region24
    $region23: #{forward.14} parent=5 // pred_region
      // Predicated region
      $region25: #{forward.14} parent=23 // pred_check
        %p128 = pneg %p29
      $region26: #{forward.14} parent=23 // pred_check_branch
        %130 = sbr.rel (%p128) target = $region28
      $region27: #{forward.14} parent=23 // pred_region
        %s131 = smul.u32 2, %s9
        %p132 = scmp.lt.s32.totalorder %s131, 3
        %s133 = scalar_select %p132, %s131, 3
        %s134 = smul.addr %s133, 4
        %s135 = scalar_lea.vmem %s0, %s134
        %s136 = smul.u32 2, %s9
      $region28: #{forward.14} parent=23 // pred_fallthru
        _
    $region24: #{forward.14} parent=5 // pred_fallthru
      _
    %p137 = scmp.le.s32.totalorder 1, %s9
    %p138 = scmp.lt.s32.totalorder %s9, 3
    %p139 = pnand %p137, %p138
    %p140 = pneg %p139
    // Predicated region
    $region29: #{forward.14} parent=5 // pred_check
      _
    $region30: #{forward.14} parent=5 // pred_check_branch
      %142 = sbr.rel (%p139) target = $region32
    $region31: #{forward.14} parent=5 // pred_region
      %s143 = ssub.s32 %s9, 1
      %s144 = smul.u32 2, %s14
      %p145 = scmp.lt.s32.totalorder %s144, 3
      %s146 = scalar_select %p145, %s144, 3
      %s147 = smul.addr %s146, 4
      %s148 = scalar_lea.vmem %s0, %s147
      %p149 = pneg %p35
      %p150 = pneg %p32
      %p151 = pneg %p56
      %p152 = pneg %p53
      %p153 = pneg %p77
      %p154 = pneg %p74
      %p155 = pneg %p103
      %p156 = pneg %p100
      %s157 = smul.u32 2, %s14
      %p158 = scmp.lt.s32.totalorder %s157, 3
      %s159 = scalar_select %p158, %s157, 3
      %s160 = smul.addr %s159, 4
      %s161 = scalar_lea.vmem %s3, %s160
      %s162 = smul.u32 2, %s14
      %p163 = scmp.lt.s32.totalorder %s162, 3
      %s164 = scalar_select %p163, %s162, 3
      %s165 = smul.addr %s164, 4
      %s166 = scalar_lea.vmem %s0, %s165
      %s167 = smul.u32 2, %s14
      %s168 = smul.u32 2, %s14
      %p169 = scmp.lt.s32.totalorder %s168, 3
      %s170 = scalar_select %p169, %s168, 3
      %s171 = smul.addr %s170, 4
      %s172 = scalar_lea.vmem %s3, %s171
      %s173 = smul.u32 2, %s14
      %v174 = vld [vmem:[%s166] sm:$0xf]
      %v175 = vld [vmem:[%s166 + $0x4] sm:$0xf]
      %v176 = vunpack.c.l.bf16 %v174
      %v177 = vunpack.c.l.bf16 %v175
      %v178 = vld [vmem:[%s1] sm:$0x1]
      %v180 = vperm.slane %v178, 0
      %v182 = vmul.f32 %v176, %v180
      %v183 = vmul.f32 %v177, %v180
      %v184 = vld [vmem:[%s2] sm:$0x1]
      %v186 = vperm.slane %v184, 0
      %v188 = vadd.f32 %v182, %v186
      %v189 = vadd.f32 %v183, %v186
      %vm190 = vcmp.ge.f32.partialorder %v188, 0.0
      %vm191 = vcmp.ge.f32.partialorder %v189, 0.0
      %v192 = vmul.f32 %v188, 0.2
      %v193 = vmul.f32 %v189, 0.2
      %v194 = vsel %vm190, %v188, %v192
      %v195 = vsel %vm191, %v189, %v193
      %v196 = vpack.c.bf16 %v194, %v194
      %v197 = vpack.c.bf16 %v195, %v195
      %198 = vst [vmem:[%s172] sm:$0xf] %v196
      %199 = vst [vmem:[%s172 + $0x4] sm:$0xf] %v197
      %s200 = smul.u32 2, %s14
      %p201 = scmp.lt.s32.totalorder %s200, 3
      %s202 = scalar_select %p201, %s200, 3
      %s203 = smul.addr %s202, 4
      %s204 = scalar_lea.vmem %s3, %s203
      // Predicated region
      $region33: #{forward.14} parent=31 // pred_check
        %p205 = pneg %p100
      $region34: #{forward.14} parent=31 // pred_check_branch
        %207 = sbr.rel (%p205) target = $region36
      $region35: #{forward.14} parent=31 // pred_region
        %s208 = smul.u32 2, %s14
      $region36: #{forward.14} parent=31 // pred_fallthru
        _
    $region32: #{forward.14} parent=5 // pred_fallthru
      _
    %p209 = scmp.le.s32.totalorder 2, %s9
    // Predicated region
    $region37: #{forward.14} parent=5 // pred_check
      %p210 = pneg %p209
    $region38: #{forward.14} parent=5 // pred_check_branch
      %212 = sbr.rel (%p210) target = $region40
    $region39: #{forward.14} parent=5 // pred_region
      %s213 = ssub.s32 %s9, 2
      // Predicated region
      $region41: #{forward.14} parent=39 // pred_check
        %p214 = pneg %p106
      $region42: #{forward.14} parent=39 // pred_check_branch
        %216 = sbr.rel (%p214) target = $region44
      $region43: #{forward.14} parent=39 // pred_region
        %s217 = smul.u32 2, %s15
        %p218 = scmp.lt.s32.totalorder %s217, 3
        %s219 = scalar_select %p218, %s217, 3
        %s220 = smul.addr %s219, 4
        %s221 = scalar_lea.vmem %s3, %s220
      $region44: #{forward.14} parent=39 // pred_fallthru
        _
    $region40: #{forward.14} parent=5 // pred_fallthru
      _
  $region6: #{forward.14} parent=0 // loop_footer
    %s13 = sadd.s32 1, %s9
  $region7: #{forward.14} parent=0 // loop_footer_branch
    %8 = sbr.rel target = $region3
  $region8: #{forward.14} parent=0 // loop_exit
    _

// kernel: forward.15
$region0: #{forward.15}
  #allocation0 [shape = 'u32[]', space=smem, size = 0x4, offset = 0x4, fixed_abs, tag = 'smem constant byte address 0x4 - core index']
  #allocation1 [shape = 'u32[72,128]{1,0:T(1,128)}', space=vmem, size = 0x9000, scoped, tag = 'internal scratch']
  #allocation2 [shape = 'f32[8,128]{1,0:T(8,128)}', space=vmem, size = 0x1000, scoped, tag = 'scratch operand']
  %s0 = inlined_call_operand.vmem [shape: bf16[8,1024], index: 0, kind: input, shape index: {}]
  %s1 = inlined_call_operand.vmem [shape: bf16[1024,128], index: 1, kind: input, shape index: {}]
  %s2 = inlined_call_operand.vmem [shape: f32[8,128], index: 2, kind: output, shape index: {}]
  %s3 = sld [smem:[#allocation0]]
  $region26: #{forward.15} parent=0
    _
  %s5 = ssub.s32 1, %s3
  %s6 = scalar_select 0, %s5, %s3
  // Predicated region
  $region2: #{forward.15} parent=0 // pred_check
    _
  $region3: #{forward.15} parent=0 // pred_check_branch
    %8 = sbr.rel (0) target = $region5
  $region4: #{forward.15} parent=0 // pred_region
    _
  $region5: #{forward.15} parent=0 // pred_fallthru
    _
  // Predicated region
  $region6: #{forward.15} parent=0 // pred_check
    _
  $region7: #{forward.15} parent=0 // pred_check_branch
    %10 = sbr.rel (0) target = $region9
  $region8: #{forward.15} parent=0 // pred_region
    _
  $region9: #{forward.15} parent=0 // pred_fallthru
    _
  %p11 = scmp.eq.s32.totalorder 0, 0
  // Predicated region
  $region10: #{forward.15} parent=0 // pred_check
    %p12 = pneg %p11
  $region11: #{forward.15} parent=0 // pred_check_branch
    %14 = sbr.rel (%p12) target = $region13
  $region12: #{forward.15} parent=0 // pred_region
    %15 = vst [vmem:[#allocation2] sm:$0xff] 0.0
  $region13: #{forward.15} parent=0 // pred_fallthru
    _
  %v16 = vld [vmem:[#allocation2] sm:$0xff]
  %v17 = vld [vmem:[%s0] sm:$0xff]
  %v18 = vld [vmem:[%s0 + $0x8] sm:$0xff]
  %v19 = vld [vmem:[%s0 + $0x10] sm:$0xff]
  %v20 = vld [vmem:[%s0 + $0x18] sm:$0xff]
  %v21 = vld [vmem:[%s1] sm:$0xf]
  %v22 = vld [vmem:[%s1 + $0x4] sm:$0xf]
  %v23 = vld [vmem:[%s1 + $0x8] sm:$0xf]
  %v24 = vld [vmem:[%s1 + $0xc] sm:$0xf]
  %v25 = vld [vmem:[%s1 + $0x10] sm:$0xf]
  %v26 = vld [vmem:[%s1 + $0x14] sm:$0xf]
  %v27 = vld [vmem:[%s1 + $0x18] sm:$0xf]
  %v28 = vld [vmem:[%s1 + $0x1c] sm:$0xf]
  %v29 = vld [vmem:[%s1 + $0x20] sm:$0xf]
  %v30 = vld [vmem:[%s1 + $0x24] sm:$0xf]
  %v31 = vld [vmem:[%s1 + $0x28] sm:$0xf]
  %v32 = vld [vmem:[%s1 + $0x2c] sm:$0xf]
  %v33 = vld [vmem:[%s1 + $0x30] sm:$0xf]
  %v34 = vld [vmem:[%s1 + $0x34] sm:$0xf]
  %v35 = vld [vmem:[%s1 + $0x38] sm:$0xf]
  %v36 = vld [vmem:[%s1 + $0x3c] sm:$0xf]
  %v37 = vld [vmem:[%s1 + $0x40] sm:$0xf]
  %v38 = vld [vmem:[%s1 + $0x44] sm:$0xf]
  %v39 = vld [vmem:[%s1 + $0x48] sm:$0xf]
  %v40 = vld [vmem:[%s1 + $0x4c] sm:$0xf]
  %v41 = vld [vmem:[%s1 + $0x50] sm:$0xf]
  %v42 = vld [vmem:[%s1 + $0x54] sm:$0xf]
  %v43 = vld [vmem:[%s1 + $0x58] sm:$0xf]
  %v44 = vld [vmem:[%s1 + $0x5c] sm:$0xf]
  %v45 = vld [vmem:[%s1 + $0x60] sm:$0xf]
  %v46 = vld [vmem:[%s1 + $0x64] sm:$0xf]
  %v47 = vld [vmem:[%s1 + $0x68] sm:$0xf]
  %v48 = vld [vmem:[%s1 + $0x6c] sm:$0xf]
  %v49 = vld [vmem:[%s1 + $0x70] sm:$0xf]
  %v50 = vld [vmem:[%s1 + $0x74] sm:$0xf]
  %v51 = vld [vmem:[%s1 + $0x78] sm:$0xf]
  %v52 = vld [vmem:[%s1 + $0x7c] sm:$0xf]
  %v53 = vld [vmem:[%s1 + $0x80] sm:$0xf]
  %v54 = vld [vmem:[%s1 + $0x84] sm:$0xf]
  %v55 = vld [vmem:[%s1 + $0x88] sm:$0xf]
  %v56 = vld [vmem:[%s1 + $0x8c] sm:$0xf]
  %v57 = vld [vmem:[%s1 + $0x90] sm:$0xf]
  %v58 = vld [vmem:[%s1 + $0x94] sm:$0xf]
  %v59 = vld [vmem:[%s1 + $0x98] sm:$0xf]
  %v60 = vld [vmem:[%s1 + $0x9c] sm:$0xf]
  %v61 = vld [vmem:[%s1 + $0xa0] sm:$0xf]
  %v62 = vld [vmem:[%s1 + $0xa4] sm:$0xf]
  %v63 = vld [vmem:[%s1 + $0xa8] sm:$0xf]
  %v64 = vld [vmem:[%s1 + $0xac] sm:$0xf]
  %v65 = vld [vmem:[%s1 + $0xb0] sm:$0xf]
  %v66 = vld [vmem:[%s1 + $0xb4] sm:$0xf]
  %v67 = vld [vmem:[%s1 + $0xb8] sm:$0xf]
  %v68 = vld [vmem:[%s1 + $0xbc] sm:$0xf]
  %v69 = vld [vmem:[%s1 + $0xc0] sm:$0xf]
  %v70 = vld [vmem:[%s1 + $0xc4] sm:$0xf]
  %v71 = vld [vmem:[%s1 + $0xc8] sm:$0xf]
  %v72 = vld [vmem:[%s1 + $0xcc] sm:$0xf]
  %v73 = vld [vmem:[%s1 + $0xd0] sm:$0xf]
  %v74 = vld [vmem:[%s1 + $0xd4] sm:$0xf]
  %v75 = vld [vmem:[%s1 + $0xd8] sm:$0xf]
  %v76 = vld [vmem:[%s1 + $0xdc] sm:$0xf]
  %v77 = vld [vmem:[%s1 + $0xe0] sm:$0xf]
  %v78 = vld [vmem:[%s1 + $0xe4] sm:$0xf]
  %v79 = vld [vmem:[%s1 + $0xe8] sm:$0xf]
  %v80 = vld [vmem:[%s1 + $0xec] sm:$0xf]
  %v81 = vld [vmem:[%s1 + $0xf0] sm:$0xf]
  %v82 = vld [vmem:[%s1 + $0xf4] sm:$0xf]
  %v83 = vld [vmem:[%s1 + $0xf8] sm:$0xf]
  %v84 = vld [vmem:[%s1 + $0xfc] sm:$0xf]
  %v85 = vld [vmem:[%s1 + $0x100] sm:$0xf]
  %v86 = vld [vmem:[%s1 + $0x104] sm:$0xf]
  %v87 = vld [vmem:[%s1 + $0x108] sm:$0xf]
  %v88 = vld [vmem:[%s1 + $0x10c] sm:$0xf]
  %v89 = vld [vmem:[%s1 + $0x110] sm:$0xf]
  %v90 = vld [vmem:[%s1 + $0x114] sm:$0xf]
  %v91 = vld [vmem:[%s1 + $0x118] sm:$0xf]
  %v92 = vld [vmem:[%s1 + $0x11c] sm:$0xf]
  %v93 = vld [vmem:[%s1 + $0x120] sm:$0xf]
  %v94 = vld [vmem:[%s1 + $0x124] sm:$0xf]
  %v95 = vld [vmem:[%s1 + $0x128] sm:$0xf]
  %v96 = vld [vmem:[%s1 + $0x12c] sm:$0xf]
  %v97 = vld [vmem:[%s1 + $0x130] sm:$0xf]
  %v98 = vld [vmem:[%s1 + $0x134] sm:$0xf]
  %v99 = vld [vmem:[%s1 + $0x138] sm:$0xf]
  %v100 = vld [vmem:[%s1 + $0x13c] sm:$0xf]
  %v101 = vld [vmem:[%s1 + $0x140] sm:$0xf]
  %v102 = vld [vmem:[%s1 + $0x144] sm:$0xf]
  %v103 = vld [vmem:[%s1 + $0x148] sm:$0xf]
  %v104 = vld [vmem:[%s1 + $0x14c] sm:$0xf]
  %v105 = vld [vmem:[%s1 + $0x150] sm:$0xf]
  %v106 = vld [vmem:[%s1 + $0x154] sm:$0xf]
  %v107 = vld [vmem:[%s1 + $0x158] sm:$0xf]
  %v108 = vld [vmem:[%s1 + $0x15c] sm:$0xf]
  %v109 = vld [vmem:[%s1 + $0x160] sm:$0xf]
  %v110 = vld [vmem:[%s1 + $0x164] sm:$0xf]
  %v111 = vld [vmem:[%s1 + $0x168] sm:$0xf]
  %v112 = vld [vmem:[%s1 + $0x16c] sm:$0xf]
  %v113 = vld [vmem:[%s1 + $0x170] sm:$0xf]
  %v114 = vld [vmem:[%s1 + $0x174] sm:$0xf]
  %v115 = vld [vmem:[%s1 + $0x178] sm:$0xf]
  %v116 = vld [vmem:[%s1 + $0x17c] sm:$0xf]
  %v117 = vld [vmem:[%s1 + $0x180] sm:$0xf]
  %v118 = vld [vmem:[%s1 + $0x184] sm:$0xf]
  %v119 = vld [vmem:[%s1 + $0x188] sm:$0xf]
  %v120 = vld [vmem:[%s1 + $0x18c] sm:$0xf]
  %v121 = vld [vmem:[%s1 + $0x190] sm:$0xf]
  %v122 = vld [vmem:[%s1 + $0x194] sm:$0xf]
  %v123 = vld [vmem:[%s1 + $0x198] sm:$0xf]
  %v124 = vld [vmem:[%s1 + $0x19c] sm:$0xf]
  %v125 = vld [vmem:[%s1 + $0x1a0] sm:$0xf]
  %v126 = vld [vmem:[%s1 + $0x1a4] sm:$0xf]
  %v127 = vld [vmem:[%s1 + $0x1a8] sm:$0xf]
  %v128 = vld [vmem:[%s1 + $0x1ac] sm:$0xf]
  %v129 = vld [vmem:[%s1 + $0x1b0] sm:$0xf]
  %v130 = vld [vmem:[%s1 + $0x1b4] sm:$0xf]
  %v131 = vld [vmem:[%s1 + $0x1b8] sm:$0xf]
  %v132 = vld [vmem:[%s1 + $0x1bc] sm:$0xf]
  %v133 = vld [vmem:[%s1 + $0x1c0] sm:$0xf]
  %v134 = vld [vmem:[%s1 + $0x1c4] sm:$0xf]
  %v135 = vld [vmem:[%s1 + $0x1c8] sm:$0xf]
  %v136 = vld [vmem:[%s1 + $0x1cc] sm:$0xf]
  %v137 = vld [vmem:[%s1 + $0x1d0] sm:$0xf]
  %v138 = vld [vmem:[%s1 + $0x1d4] sm:$0xf]
  %v139 = vld [vmem:[%s1 + $0x1d8] sm:$0xf]
  %v140 = vld [vmem:[%s1 + $0x1dc] sm:$0xf]
  %v141 = vld [vmem:[%s1 + $0x1e0] sm:$0xf]
  %v142 = vld [vmem:[%s1 + $0x1e4] sm:$0xf]
  %v143 = vld [vmem:[%s1 + $0x1e8] sm:$0xf]
  %v144 = vld [vmem:[%s1 + $0x1ec] sm:$0xf]
  %v145 = vld [vmem:[%s1 + $0x1f0] sm:$0xf]
  %v146 = vld [vmem:[%s1 + $0x1f4] sm:$0xf]
  %v147 = vld [vmem:[%s1 + $0x1f8] sm:$0xf]
  %v148 = vld [vmem:[%s1 + $0x1fc] sm:$0xf]
  %v153 = vunpack.c.l.b16 %v17
  %v154 = vunpack.c.h.b16 %v17
  %v155 = vunpack.c.l.b16 %v18
  %v156 = vunpack.c.h.b16 %v18
  %v157 = vunpack.c.l.b16 %v19
  %v158 = vunpack.c.h.b16 %v19
  %v159 = vunpack.c.l.b16 %v20
  %v160 = vunpack.c.h.b16 %v20
  %v161 = vpack.c.b16 %v153, %v153
  %v162 = vpack.c.b16 %v154, %v154
  %v163 = vpack.c.b16 %v155, %v155
  %v164 = vpack.c.b16 %v156, %v156
  %v165 = vpack.c.b16 %v157, %v157
  %v166 = vpack.c.b16 %v158, %v158
  %v167 = vpack.c.b16 %v159, %v159
  %v168 = vpack.c.b16 %v160, %v160
  %v305 = vunpack.c.l.b16 %v21
  %v306 = vunpack.c.l.b16 %v22
  %v307 = vunpack.c.l.b16 %v23
  %v308 = vunpack.c.l.b16 %v24
  %v309 = vunpack.c.l.b16 %v25
  %v310 = vunpack.c.l.b16 %v26
  %v311 = vunpack.c.l.b16 %v27
  %v312 = vunpack.c.l.b16 %v28
  %v313 = vunpack.c.l.b16 %v29
  %v314 = vunpack.c.l.b16 %v30
  %v315 = vunpack.c.l.b16 %v31
  %v316 = vunpack.c.l.b16 %v32
  %v317 = vunpack.c.l.b16 %v33
  %v318 = vunpack.c.l.b16 %v34
  %v319 = vunpack.c.l.b16 %v35
  %v320 = vunpack.c.l.b16 %v36
  %v321 = vunpack.c.l.b16 %v37
  %v322 = vunpack.c.l.b16 %v38
  %v323 = vunpack.c.l.b16 %v39
  %v324 = vunpack.c.l.b16 %v40
  %v325 = vunpack.c.l.b16 %v41
  %v326 = vunpack.c.l.b16 %v42
  %v327 = vunpack.c.l.b16 %v43
  %v328 = vunpack.c.l.b16 %v44
  %v329 = vunpack.c.l.b16 %v45
  %v330 = vunpack.c.l.b16 %v46
  %v331 = vunpack.c.l.b16 %v47
  %v332 = vunpack.c.l.b16 %v48
  %v333 = vunpack.c.l.b16 %v49
  %v334 = vunpack.c.l.b16 %v50
  %v335 = vunpack.c.l.b16 %v51
  %v336 = vunpack.c.l.b16 %v52
  %v337 = vunpack.c.l.b16 %v53
  %v338 = vunpack.c.l.b16 %v54
  %v339 = vunpack.c.l.b16 %v55
  %v340 = vunpack.c.l.b16 %v56
  %v341 = vunpack.c.l.b16 %v57
  %v342 = vunpack.c.l.b16 %v58
  %v343 = vunpack.c.l.b16 %v59
  %v344 = vunpack.c.l.b16 %v60
  %v345 = vunpack.c.l.b16 %v61
  %v346 = vunpack.c.l.b16 %v62
  %v347 = vunpack.c.l.b16 %v63
  %v348 = vunpack.c.l.b16 %v64
  %v349 = vunpack.c.l.b16 %v65
  %v350 = vunpack.c.l.b16 %v66
  %v351 = vunpack.c.l.b16 %v67
  %v352 = vunpack.c.l.b16 %v68
  %v353 = vunpack.c.l.b16 %v69
  %v354 = vunpack.c.l.b16 %v70
  %v355 = vunpack.c.l.b16 %v71
  %v356 = vunpack.c.l.b16 %v72
  %v357 = vunpack.c.l.b16 %v73
  %v358 = vunpack.c.l.b16 %v74
  %v359 = vunpack.c.l.b16 %v75
  %v360 = vunpack.c.l.b16 %v76
  %v361 = vunpack.c.l.b16 %v77
  %v362 = vunpack.c.l.b16 %v78
  %v363 = vunpack.c.l.b16 %v79
  %v364 = vunpack.c.l.b16 %v80
  %v365 = vunpack.c.l.b16 %v81
  %v366 = vunpack.c.l.b16 %v82
  %v367 = vunpack.c.l.b16 %v83
  %v368 = vunpack.c.l.b16 %v84
  %v369 = vunpack.c.l.b16 %v85
  %v370 = vunpack.c.l.b16 %v86
  %v371 = vunpack.c.l.b16 %v87
  %v372 = vunpack.c.l.b16 %v88
  %v373 = vunpack.c.l.b16 %v89
  %v374 = vunpack.c.l.b16 %v90
  %v375 = vunpack.c.l.b16 %v91
  %v376 = vunpack.c.l.b16 %v92
  %v377 = vunpack.c.l.b16 %v93
  %v378 = vunpack.c.l.b16 %v94
  %v379 = vunpack.c.l.b16 %v95
  %v380 = vunpack.c.l.b16 %v96
  %v381 = vunpack.c.l.b16 %v97
  %v382 = vunpack.c.l.b16 %v98
  %v383 = vunpack.c.l.b16 %v99
  %v384 = vunpack.c.l.b16 %v100
  %v385 = vunpack.c.l.b16 %v101
  %v386 = vunpack.c.l.b16 %v102
  %v387 = vunpack.c.l.b16 %v103
  %v388 = vunpack.c.l.b16 %v104
  %v389 = vunpack.c.l.b16 %v105
  %v390 = vunpack.c.l.b16 %v106
  %v391 = vunpack.c.l.b16 %v107
  %v392 = vunpack.c.l.b16 %v108
  %v393 = vunpack.c.l.b16 %v109
  %v394 = vunpack.c.l.b16 %v110
  %v395 = vunpack.c.l.b16 %v111
  %v396 = vunpack.c.l.b16 %v112
  %v397 = vunpack.c.l.b16 %v113
  %v398 = vunpack.c.l.b16 %v114
  %v399 = vunpack.c.l.b16 %v115
  %v400 = vunpack.c.l.b16 %v116
  %v401 = vunpack.c.l.b16 %v117
  %v402 = vunpack.c.l.b16 %v118
  %v403 = vunpack.c.l.b16 %v119
  %v404 = vunpack.c.l.b16 %v120
  %v405 = vunpack.c.l.b16 %v121
  %v406 = vunpack.c.l.b16 %v122
  %v407 = vunpack.c.l.b16 %v123
  %v408 = vunpack.c.l.b16 %v124
  %v409 = vunpack.c.l.b16 %v125
  %v410 = vunpack.c.l.b16 %v126
  %v411 = vunpack.c.l.b16 %v127
  %v412 = vunpack.c.l.b16 %v128
  %v413 = vunpack.c.l.b16 %v129
  %v414 = vunpack.c.l.b16 %v130
  %v415 = vunpack.c.l.b16 %v131
  %v416 = vunpack.c.l.b16 %v132
  %v417 = vunpack.c.l.b16 %v133
  %v418 = vunpack.c.l.b16 %v134
  %v419 = vunpack.c.l.b16 %v135
  %v420 = vunpack.c.l.b16 %v136
  %v421 = vunpack.c.l.b16 %v137
  %v422 = vunpack.c.l.b16 %v138
  %v423 = vunpack.c.l.b16 %v139
  %v424 = vunpack.c.l.b16 %v140
  %v425 = vunpack.c.l.b16 %v141
  %v426 = vunpack.c.l.b16 %v142
  %v427 = vunpack.c.l.b16 %v143
  %v428 = vunpack.c.l.b16 %v144
  %v429 = vunpack.c.l.b16 %v145
  %v430 = vunpack.c.l.b16 %v146
  %v431 = vunpack.c.l.b16 %v147
  %v432 = vunpack.c.l.b16 %v148
  %v433 = vpack.c.b16 %v306, %v305
  %v434 = vpack.c.b16 %v308, %v307
  %v435 = vpack.c.b16 %v310, %v309
  %v436 = vpack.c.b16 %v312, %v311
  %v437 = vpack.c.b16 %v314, %v313
  %v438 = vpack.c.b16 %v316, %v315
  %v439 = vpack.c.b16 %v318, %v317
  %v440 = vpack.c.b16 %v320, %v319
  %v441 = vpack.c.b16 %v322, %v321
  %v442 = vpack.c.b16 %v324, %v323
  %v443 = vpack.c.b16 %v326, %v325
  %v444 = vpack.c.b16 %v328, %v327
  %v445 = vpack.c.b16 %v330, %v329
  %v446 = vpack.c.b16 %v332, %v331
  %v447 = vpack.c.b16 %v334, %v333
  %v448 = vpack.c.b16 %v336, %v335
  %v449 = vpack.c.b16 %v338, %v337
  %v450 = vpack.c.b16 %v340, %v339
  %v451 = vpack.c.b16 %v342, %v341
  %v452 = vpack.c.b16 %v344, %v343
  %v453 = vpack.c.b16 %v346, %v345
  %v454 = vpack.c.b16 %v348, %v347
  %v455 = vpack.c.b16 %v350, %v349
  %v456 = vpack.c.b16 %v352, %v351
  %v457 = vpack.c.b16 %v354, %v353
  %v458 = vpack.c.b16 %v356, %v355
  %v459 = vpack.c.b16 %v358, %v357
  %v460 = vpack.c.b16 %v360, %v359
  %v461 = vpack.c.b16 %v362, %v361
  %v462 = vpack.c.b16 %v364, %v363
  %v463 = vpack.c.b16 %v366, %v365
  %v464 = vpack.c.b16 %v368, %v367
  %v465 = vpack.c.b16 %v370, %v369
  %v466 = vpack.c.b16 %v372, %v371
  %v467 = vpack.c.b16 %v374, %v373
  %v468 = vpack.c.b16 %v376, %v375
  %v469 = vpack.c.b16 %v378, %v377
  %v470 = vpack.c.b16 %v380, %v379
  %v471 = vpack.c.b16 %v382, %v381
  %v472 = vpack.c.b16 %v384, %v383
  %v473 = vpack.c.b16 %v386, %v385
  %v474 = vpack.c.b16 %v388, %v387
  %v475 = vpack.c.b16 %v390, %v389
  %v476 = vpack.c.b16 %v392, %v391
  %v477 = vpack.c.b16 %v394, %v393
  %v478 = vpack.c.b16 %v396, %v395
  %v479 = vpack.c.b16 %v398, %v397
  %v480 = vpack.c.b16 %v400, %v399
  %v481 = vpack.c.b16 %v402, %v401
  %v482 = vpack.c.b16 %v404, %v403
  %v483 = vpack.c.b16 %v406, %v405
  %v484 = vpack.c.b16 %v408, %v407
  %v485 = vpack.c.b16 %v410, %v409
  %v486 = vpack.c.b16 %v412, %v411
  %v487 = vpack.c.b16 %v414, %v413
  %v488 = vpack.c.b16 %v416, %v415
  %v489 = vpack.c.b16 %v418, %v417
  %v490 = vpack.c.b16 %v420, %v419
  %v491 = vpack.c.b16 %v422, %v421
  %v492 = vpack.c.b16 %v424, %v423
  %v493 = vpack.c.b16 %v426, %v425
  %v494 = vpack.c.b16 %v428, %v427
  %v495 = vpack.c.b16 %v430, %v429
  %v496 = vpack.c.b16 %v432, %v431
  %561 = vmatpush.bf16.msra.mxu0 %v440
  %562 = vmatpush.bf16.msra.mxu0 %v439
  %563 = vmatpush.bf16.msra.mxu0 %v438
  %564 = vmatpush.bf16.msra.mxu0 %v437
  %565 = vmatpush.bf16.msra.mxu0 %v436
  %566 = vmatpush.bf16.msra.mxu0 %v435
  %567 = vmatpush.bf16.msra.mxu0 %v434
  %568 = vmatpush.bf16.msra.mxu0 %v433
  %569 = vmatmul.bf16.gmra.mxu0 %v161
  %v570 = vpop.f32.mrf.mxu0
  %v571 = vadd.f32 0.0, %v570
  %v572 = vpop.f32.mrf.mxu0
  %573 = vdwg.mxu0
  %574 = vmatpush.bf16.msra.mxu0 %v448
  %575 = vmatpush.bf16.msra.mxu0 %v447
  %576 = vmatpush.bf16.msra.mxu0 %v446
  %577 = vmatpush.bf16.msra.mxu0 %v445
  %578 = vmatpush.bf16.msra.mxu0 %v444
  %579 = vmatpush.bf16.msra.mxu0 %v443
  %580 = vmatpush.bf16.msra.mxu0 %v442
  %581 = vmatpush.bf16.msra.mxu0 %v441
  %582 = vmatmul.bf16.gmra.mxu0 %v162
  %v583 = vpop.f32.mrf.mxu0
  %v584 = vadd.f32 %v571, %v583
  %v585 = vpop.f32.mrf.mxu0
  %586 = vdwg.mxu0
  %587 = vmatpush.bf16.msra.mxu0 %v456
  %588 = vmatpush.bf16.msra.mxu0 %v455
  %589 = vmatpush.bf16.msra.mxu0 %v454
  %590 = vmatpush.bf16.msra.mxu0 %v453
  %591 = vmatpush.bf16.msra.mxu0 %v452
  %592 = vmatpush.bf16.msra.mxu0 %v451
  %593 = vmatpush.bf16.msra.mxu0 %v450
  %594 = vmatpush.bf16.msra.mxu0 %v449
  %595 = vmatmul.bf16.gmra.mxu0 %v163
  %v596 = vpop.f32.mrf.mxu0
  %v597 = vadd.f32 %v584, %v596
  %v598 = vpop.f32.mrf.mxu0
  %599 = vdwg.mxu0
  %600 = vmatpush.bf16.msra.mxu0 %v464
  %601 = vmatpush.bf16.msra.mxu0 %v463
  %602 = vmatpush.bf16.msra.mxu0 %v462
  %603 = vmatpush.bf16.msra.mxu0 %v461
  %604 = vmatpush.bf16.msra.mxu0 %v460
  %605 = vmatpush.bf16.msra.mxu0 %v459
  %606 = vmatpush.bf16.msra.mxu0 %v458
  %607 = vmatpush.bf16.msra.mxu0 %v457
  %608 = vmatmul.bf16.gmra.mxu0 %v164
  %v609 = vpop.f32.mrf.mxu0
  %v610 = vadd.f32 %v597, %v609
  %v611 = vpop.f32.mrf.mxu0
  %612 = vdwg.mxu0
  %613 = vmatpush.bf16.msra.mxu0 %v472
  %614 = vmatpush.bf16.msra.mxu0 %v471
  %615 = vmatpush.bf16.msra.mxu0 %v470
  %616 = vmatpush.bf16.msra.mxu0 %v469
  %617 = vmatpush.bf16.msra.mxu0 %v468
  %618 = vmatpush.bf16.msra.mxu0 %v467
  %619 = vmatpush.bf16.msra.mxu0 %v466
  %620 = vmatpush.bf16.msra.mxu0 %v465
  %621 = vmatmul.bf16.gmra.mxu0 %v165
  %v622 = vpop.f32.mrf.mxu0
  %v623 = vadd.f32 %v610, %v622
  %v624 = vpop.f32.mrf.mxu0
  %625 = vdwg.mxu0
  %626 = vmatpush.bf16.msra.mxu0 %v480
  %627 = vmatpush.bf16.msra.mxu0 %v479
  %628 = vmatpush.bf16.msra.mxu0 %v478
  %629 = vmatpush.bf16.msra.mxu0 %v477
  %630 = vmatpush.bf16.msra.mxu0 %v476
  %631 = vmatpush.bf16.msra.mxu0 %v475
  %632 = vmatpush.bf16.msra.mxu0 %v474
  %633 = vmatpush.bf16.msra.mxu0 %v473
  %634 = vmatmul.bf16.gmra.mxu0 %v166
  %v635 = vpop.f32.mrf.mxu0
  %v636 = vadd.f32 %v623, %v635
  %v637 = vpop.f32.mrf.mxu0
  %638 = vdwg.mxu0
  %639 = vmatpush.bf16.msra.mxu0 %v488
  %640 = vmatpush.bf16.msra.mxu0 %v487
  %641 = vmatpush.bf16.msra.mxu0 %v486
  %642 = vmatpush.bf16.msra.mxu0 %v485
  %643 = vmatpush.bf16.msra.mxu0 %v484
  %644 = vmatpush.bf16.msra.mxu0 %v483
  %645 = vmatpush.bf16.msra.mxu0 %v482
  %646 = vmatpush.bf16.msra.mxu0 %v481
  %647 = vmatmul.bf16.gmra.mxu0 %v167
  %v648 = vpop.f32.mrf.mxu0
  %v649 = vadd.f32 %v636, %v648
  %v650 = vpop.f32.mrf.mxu0
  %651 = vdwg.mxu0
  %652 = vmatpush.bf16.msra.mxu0 %v496
  %653 = vmatpush.bf16.msra.mxu0 %v495
  %654 = vmatpush.bf16.msra.mxu0 %v494
  %655 = vmatpush.bf16.msra.mxu0 %v493
  %656 = vmatpush.bf16.msra.mxu0 %v492
  %657 = vmatpush.bf16.msra.mxu0 %v491
  %658 = vmatpush.bf16.msra.mxu0 %v490
  %659 = vmatpush.bf16.msra.mxu0 %v489
  %660 = vmatmul.bf16.gmra.mxu0 %v168
  %v661 = vpop.f32.mrf.mxu0
  %v662 = vadd.f32 %v649, %v661
  %v663 = vpop.f32.mrf.mxu0
  %664 = vdwg.mxu0
  %v665 = vadd.f32 %v16, %v662
  %666 = vst [vmem:[#allocation2] sm:$0xff] %v665
  // Predicated region
  $region14: #{forward.15} parent=0 // pred_check
    %p667 = pneg %p11
  $region15: #{forward.15} parent=0 // pred_check_branch
    %669 = sbr.rel (%p667) target = $region17
  $region16: #{forward.15} parent=0 // pred_region
    %v670 = vld [vmem:[#allocation2] sm:$0xff]
    %v671 = vxor.u32 %v670, 2147483648
    %v672 = vmul.f32 %v671, 1.442695
    %v673 = vpow.pop %v672
    %v674 = vadd.f32 %v673, 1.0
    %v675 = vrcp.pop %v674
    %v676 = vmul.f32 %v674, %v675
    %v677 = vsub.f32 1.0, %v676
    %v678 = vmul.f32 %v675, %v677
    %v679 = vadd.f32 %v675, %v678
    %vm680 = vweird.f32 %v674
    %vm681 = vweird.f32 %v675
    %vm682 = vmor %vm680, %vm681
    %v683 = vsel %vm682, %v675, %v679
    %v684 = vand.u32 2147483647, %v674
    %vm685 = vcmp.eq.f32.partialorder %v684, 8.507059e+37
    %v686 = vand.u32 %v674, 2147483648
    %v687 = vor.u32 1.1754944e-38, %v686
    %v688 = vsel %vm685, %v687, %v683
    %v689 = vmul.f32 1.0, %v688
    %690 = vst [vmem:[%s2] sm:$0xff] %v689
  $region17: #{forward.15} parent=0 // pred_fallthru
    _
  // Predicated region
  $region18: #{forward.15} parent=0 // pred_check
    _
  $region19: #{forward.15} parent=0 // pred_check_branch
    %692 = sbr.rel (0) target = $region21
  $region20: #{forward.15} parent=0 // pred_region
    _
  $region21: #{forward.15} parent=0 // pred_fallthru
    _
  // Predicated region
  $region22: #{forward.15} parent=0 // pred_check
    _
  $region23: #{forward.15} parent=0 // pred_check_branch
    %694 = sbr.rel (0) target = $region25
  $region24: #{forward.15} parent=0 // pred_region
    _
  $region25: #{forward.15} parent=0 // pred_fallthru
    _

</llo_original>
